<compile_context>
chip_gen: v7x
topology: tpu7x:2x2x1
jax: 0.10.0
libtpu: 0.0.40
codegen_flags: <defaults>
</compile_context>

<pallas_src>
import math

import jax
import jax.numpy as jnp
from jax import lax
from jax.experimental import pallas as pl
from jax.experimental.pallas import tpu as pltpu


_VMEM = pl.BlockSpec(memory_space=pltpu.MemorySpace.VMEM)


# ---------------------------------- kernel ------------------------------------

def _encoder_gru_kernel(seq_ref, len_ref, emb_ref,
                        wi_f_ref, wh_f_ref, bi_f_ref, bh_f_ref,
                        wi_b_ref, wh_b_ref, bi_b_ref, bh_b_ref,
                        out_ref, hid_ref):
    V, H = emb_ref.shape
    B = len_ref.shape[0]
    L = out_ref.shape[0]

    # ---- embedding lookup: one-hot @ table on the MXU (avoids a gather) ----
    ids = seq_ref[...]                                               # (L*B, 1) int32
    onehot = (ids == lax.broadcasted_iota(jnp.int32, (L * B, V), 1)
              ).astype(jnp.float32)                                   # (L*B, V)
    x = jnp.dot(onehot, emb_ref[...],
                preferred_element_type=jnp.float32)                   # (L*B, H)

    # ---- input projections for all timesteps, both directions (hoisted) ----
    def in_proj(wi_ref, bi_ref):
        # wi_ref: (3, H, H) pre-transposed, gate order (r, z, n)
        return [jnp.dot(x, wi_ref[g], preferred_element_type=jnp.float32) + bi_ref[g]
                for g in range(3)]                                     # 3 x (L*B, H)

    gr_f, gz_f, gn_f = in_proj(wi_f_ref, bi_f_ref)
    gr_b, gz_b, gn_b = in_proj(wi_b_ref, bi_b_ref)

    lengths = len_ref[...]                                             # (B, 1) int32

    def gru_step(t, h, gr, gz, gn, wh_ref, bh_ref):
        lo, hi = t * B, (t + 1) * B
        xr, xz, xn = gr[lo:hi], gz[lo:hi], gn[lo:hi]                   # (B, H) each
        hr = jnp.dot(h, wh_ref[0], preferred_element_type=jnp.float32) + bh_ref[0]
        hz = jnp.dot(h, wh_ref[1], preferred_element_type=jnp.float32) + bh_ref[1]
        hn = jnp.dot(h, wh_ref[2], preferred_element_type=jnp.float32) + bh_ref[2]
        r = jax.nn.sigmoid(xr + hr)
        z = jax.nn.sigmoid(xz + hz)
        n = jnp.tanh(xn + r * hn)
        h_new = (1.0 - z) * n + z * h
        # pack_padded_sequence semantics: padded steps leave h untouched, output 0
        m = (lengths > t).astype(jnp.float32)                          # (B, 1)
        return m * h_new + (1.0 - m) * h, m * h_new

    h0 = jnp.zeros((B, H), jnp.float32)

    # forward direction
    outs_f = [None] * L
    h_f = h0
    for t in range(L):                       # L is static & small -> fully unrolled
        h_f, outs_f[t] = gru_step(t, h_f, gr_f, gz_f, gn_f, wh_f_ref, bh_f_ref)

    # backward direction
    outs_b = [None] * L
    h_b = h0
    for t in range(L - 1, -1, -1):
        h_b, outs_b[t] = gru_step(t, h_b, gr_b, gz_b, gn_b, wh_b_ref, bh_b_ref)

    # sum of the two directions, single stores
    out_ref[...] = jnp.stack([outs_f[t] + outs_b[t] for t in range(L)], axis=0)
    hid_ref[...] = (h_f + h_b)[None, :, :]


# --------------------------------- wrapper ------------------------------------

class EncoderRNNPallas:
    """JAX/Pallas re-implementation of the PyTorch `EncoderRNN` forward pass."""

    def __init__(self, hidden_size, vocab_size, key, n_layers=1, dropout=0.0):
        assert n_layers == 1  # TODO(synk): multi-layer stacked GRU not implemented
        self.hidden_size = H = hidden_size
        self.vocab_size = V = vocab_size

        keys = jax.random.split(key, 9)
        bound = 1.0 / math.sqrt(H)

        def u(k, shape):
            return jax.random.uniform(k, shape, jnp.float32, -bound, bound)

        # nn.Embedding weight ~ N(0, 1)
        self.embedding = jax.random.normal(keys[0], (V, H), jnp.float32)

        # PyTorch-layout GRU params, gate order (r, z, n); f = forward, b = reverse
        self.W_ih_f = u(keys[1], (3 * H, H)); self.W_hh_f = u(keys[2], (3 * H, H))
        self.b_ih_f = u(keys[3], (3 * H,));   self.b_hh_f = u(keys[4], (3 * H,))
        self.W_ih_b = u(keys[5], (3 * H, H)); self.W_hh_b = u(keys[6], (3 * H, H))
        self.b_ih_b = u(keys[7], (3 * H,));   self.b_hh_b = u(keys[8], (3 * H,))

        # Kernel-layout params: split per gate and transposed ONCE at init so the
        # kernel does plain x @ wT with no in-kernel .T / packed-weight slicing.
        def split_t(W):   # (3H, H) -> (3, H, H), each gate transposed
            return jnp.stack([W[g * H:(g + 1) * H].T for g in range(3)], axis=0)

        def split_b(b):   # (3H,) -> (3, 1, H)
            return b.reshape(3, 1, H)

        self._wi_f, self._wh_f = split_t(self.W_ih_f), split_t(self.W_hh_f)
        self._bi_f, self._bh_f = split_b(self.b_ih_f), split_b(self.b_hh_f)
        self._wi_b, self._wh_b = split_t(self.W_ih_b), split_t(self.W_hh_b)
        self._bi_b, self._bh_b = split_b(self.b_ih_b), split_b(self.b_hh_b)

    def __call__(self, input_seq, input_lengths, hidden=None):
        assert hidden is None  # TODO(synk): external initial hidden state not supported
        L, B = input_seq.shape
        H = self.hidden_size

        # wrapper-side layout plumbing (free): flat token column, lengths as (B, 1)
        seq2d = input_seq.reshape(L * B, 1).astype(jnp.int32)
        len2d = jnp.asarray(input_lengths, jnp.int32).reshape(B, 1)

        outputs, hid = pl.pallas_call(
            _encoder_gru_kernel,
            out_shape=(jax.ShapeDtypeStruct((L, B, H), jnp.float32),
                       jax.ShapeDtypeStruct((1, B, H), jnp.float32)),
            in_specs=[_VMEM] * 11,
            out_specs=(_VMEM, _VMEM),
        )(seq2d, len2d, self.embedding,
          self._wi_f, self._wh_f, self._bi_f, self._bh_f,
          self._wi_b, self._wh_b, self._bi_b, self._bh_b)
        return outputs, hid


# ----------------------------- pure-JAX reference ------------------------------

def _reference(model, input_seq, input_lengths):
    H = model.hidden_size
    x = model.embedding[input_seq]                       # (L, B, H)
    L, B, _ = x.shape
    lengths = jnp.asarray(input_lengths)

    def run(Wi, Wh, bi, bh, reverse):
        h = jnp.zeros((B, H), jnp.float32)
        out = jnp.zeros((L, B, H), jnp.float32)
        order = range(L - 1, -1, -1) if reverse else range(L)
        for t in order:
            gi = x[t] @ Wi.T + bi
            gh = h @ Wh.T + bh
            r = jax.nn.sigmoid(gi[:, :H] + gh[:, :H])
            z = jax.nn.sigmoid(gi[:, H:2 * H] + gh[:, H:2 * H])
            n = jnp.tanh(gi[:, 2 * H:] + r * gh[:, 2 * H:])
            h_new = (1.0 - z) * n + z * h
            m = (lengths > t).astype(jnp.float32)[:, None]
            h = m * h_new + (1.0 - m) * h
            out = out.at[t].set(m * h_new)
        return out, h

    of, hf = run(model.W_ih_f, model.W_hh_f, model.b_ih_f, model.b_hh_f, False)
    ob, hb = run(model.W_ih_b, model.W_hh_b, model.b_ih_b, model.b_hh_b, True)
    return of + ob, (hf + hb)[None, :, :]


# ----------------------------------- main --------------------------------------

if __name__ == "__main__":
    L, B, H, V = 8, 2, 32, 16   # seq_len, batch, hidden_size, vocab

    key = jax.random.PRNGKey(0)
    k_seq, k_par = jax.random.split(key)
    input_seq = jax.random.randint(k_seq, (L, B), 0, V, jnp.int32)
    input_lengths = jnp.array([8, 5], jnp.int32)   # sorted descending (pack_padded)

    enc = EncoderRNNPallas(H, V, k_par)
    outputs, hidden = enc(input_seq, input_lengths)
    outputs, hidden = jax.block_until_ready((outputs, hidden))

    ref_out, ref_hid = _reference(enc, input_seq, input_lengths)

    assert outputs.shape == (L, B, H), outputs.shape
    assert hidden.shape == (1, B, H), hidden.shape
    ok = (jnp.allclose(outputs, ref_out, atol=1e-5, rtol=1e-5) and
          jnp.allclose(hidden, ref_hid, atol=1e-5, rtol=1e-5))
    if not ok:
        print("mismatch: out err", float(jnp.max(jnp.abs(outputs - ref_out))),
              "hid err", float(jnp.max(jnp.abs(hidden - ref_hid))))
    else:
        print("KERNEL_OK")
</pallas_src>

<mosaic_0001>
module attributes {stable_mosaic.version = 11 : i64} {
  func.func @_encoder_gru_kernel(%arg0: memref<16x1xi32, #tpu.memory_space<vmem>>, %arg1: memref<2x1xi32, #tpu.memory_space<vmem>>, %arg2: memref<16x32xf32, #tpu.memory_space<vmem>>, %arg3: memref<3x32x32xf32, #tpu.memory_space<vmem>>, %arg4: memref<3x32x32xf32, #tpu.memory_space<vmem>>, %arg5: memref<3x1x32xf32, #tpu.memory_space<vmem>>, %arg6: memref<3x1x32xf32, #tpu.memory_space<vmem>>, %arg7: memref<3x32x32xf32, #tpu.memory_space<vmem>>, %arg8: memref<3x32x32xf32, #tpu.memory_space<vmem>>, %arg9: memref<3x1x32xf32, #tpu.memory_space<vmem>>, %arg10: memref<3x1x32xf32, #tpu.memory_space<vmem>>, %arg11: memref<8x2x32xf32, #tpu.memory_space<vmem>>, %arg12: memref<1x2x32xf32, #tpu.memory_space<vmem>>) attributes {dimension_semantics = [], scalar_prefetch = 0 : i64, scratch_operands = 0 : i64, tpu.core_type = #tpu.core_type<tc>} {
    %c0 = arith.constant 0 : index
    %c0_0 = arith.constant 0 : index
    %0 = vector.load %arg0[%c0, %c0_0] : memref<16x1xi32, #tpu.memory_space<vmem>>, vector<16x1xi32>
    %1 = tpu.iota {dimensions = array<i32: 1>} : vector<16x16xi32>
    %2 = vector.broadcast %0 : vector<16x1xi32> to vector<16x16xi32>
    %3 = arith.cmpi eq, %2, %1 : vector<16x16xi32>
    %4 = arith.extui %3 : vector<16x16xi1> to vector<16x16xi32>
    %5 = arith.sitofp %4 : vector<16x16xi32> to vector<16x16xf32>
    %c0_1 = arith.constant 0 : index
    %c0_2 = arith.constant 0 : index
    %6 = vector.load %arg2[%c0_1, %c0_2] : memref<16x32xf32, #tpu.memory_space<vmem>>, vector<16x32xf32>
    %cst = arith.constant dense<0.000000e+00> : vector<16x32xf32>
    %7 = tpu.matmul %5, %6, %cst {dimension_numbers = #tpu.dot_dimension_numbers<[1], [0], [0], [1], [0, 0, 1, 1], [], []>} : vector<16x16xf32>, vector<16x32xf32>, vector<16x32xf32> -> vector<16x32xf32>
    %c0_3 = arith.constant 0 : index
    %c0_4 = arith.constant 0 : index
    %c0_5 = arith.constant 0 : index
    %8 = vector.load %arg3[%c0_3, %c0_4, %c0_5] : memref<3x32x32xf32, #tpu.memory_space<vmem>>, vector<1x32x32xf32>
    %9 = vector.shape_cast %8 : vector<1x32x32xf32> to vector<32x32xf32>
    %cst_6 = arith.constant dense<0.000000e+00> : vector<16x32xf32>
    %10 = tpu.matmul %7, %9, %cst_6 {dimension_numbers = #tpu.dot_dimension_numbers<[1], [0], [0], [1], [0, 0, 1, 1], [], []>} : vector<16x32xf32>, vector<32x32xf32>, vector<16x32xf32> -> vector<16x32xf32>
    %c0_7 = arith.constant 0 : index
    %c0_8 = arith.constant 0 : index
    %c0_9 = arith.constant 0 : index
    %11 = vector.load %arg5[%c0_7, %c0_8, %c0_9] : memref<3x1x32xf32, #tpu.memory_space<vmem>>, vector<1x1x32xf32>
    %12 = vector.shape_cast %11 : vector<1x1x32xf32> to vector<1x32xf32>
    %13 = vector.broadcast %12 : vector<1x32xf32> to vector<16x32xf32>
    %14 = arith.addf %10, %13 : vector<16x32xf32>
    %c1 = arith.constant 1 : index
    %c0_10 = arith.constant 0 : index
    %c0_11 = arith.constant 0 : index
    %15 = vector.load %arg3[%c1, %c0_10, %c0_11] : memref<3x32x32xf32, #tpu.memory_space<vmem>>, vector<1x32x32xf32>
    %16 = vector.shape_cast %15 : vector<1x32x32xf32> to vector<32x32xf32>
    %cst_12 = arith.constant dense<0.000000e+00> : vector<16x32xf32>
    %17 = tpu.matmul %7, %16, %cst_12 {dimension_numbers = #tpu.dot_dimension_numbers<[1], [0], [0], [1], [0, 0, 1, 1], [], []>} : vector<16x32xf32>, vector<32x32xf32>, vector<16x32xf32> -> vector<16x32xf32>
    %c1_13 = arith.constant 1 : index
    %c0_14 = arith.constant 0 : index
    %c0_15 = arith.constant 0 : index
    %18 = vector.load %arg5[%c1_13, %c0_14, %c0_15] : memref<3x1x32xf32, #tpu.memory_space<vmem>>, vector<1x1x32xf32>
    %19 = vector.shape_cast %18 : vector<1x1x32xf32> to vector<1x32xf32>
    %20 = vector.broadcast %19 : vector<1x32xf32> to vector<16x32xf32>
    %21 = arith.addf %17, %20 : vector<16x32xf32>
    %c2 = arith.constant 2 : index
    %c0_16 = arith.constant 0 : index
    %c0_17 = arith.constant 0 : index
    %22 = vector.load %arg3[%c2, %c0_16, %c0_17] : memref<3x32x32xf32, #tpu.memory_space<vmem>>, vector<1x32x32xf32>
    %23 = vector.shape_cast %22 : vector<1x32x32xf32> to vector<32x32xf32>
    %cst_18 = arith.constant dense<0.000000e+00> : vector<16x32xf32>
    %24 = tpu.matmul %7, %23, %cst_18 {dimension_numbers = #tpu.dot_dimension_numbers<[1], [0], [0], [1], [0, 0, 1, 1], [], []>} : vector<16x32xf32>, vector<32x32xf32>, vector<16x32xf32> -> vector<16x32xf32>
    %c2_19 = arith.constant 2 : index
    %c0_20 = arith.constant 0 : index
    %c0_21 = arith.constant 0 : index
    %25 = vector.load %arg5[%c2_19, %c0_20, %c0_21] : memref<3x1x32xf32, #tpu.memory_space<vmem>>, vector<1x1x32xf32>
    %26 = vector.shape_cast %25 : vector<1x1x32xf32> to vector<1x32xf32>
    %27 = vector.broadcast %26 : vector<1x32xf32> to vector<16x32xf32>
    %28 = arith.addf %24, %27 : vector<16x32xf32>
    %c0_22 = arith.constant 0 : index
    %c0_23 = arith.constant 0 : index
    %c0_24 = arith.constant 0 : index
    %29 = vector.load %arg7[%c0_22, %c0_23, %c0_24] : memref<3x32x32xf32, #tpu.memory_space<vmem>>, vector<1x32x32xf32>
    %30 = vector.shape_cast %29 : vector<1x32x32xf32> to vector<32x32xf32>
    %cst_25 = arith.constant dense<0.000000e+00> : vector<16x32xf32>
    %31 = tpu.matmul %7, %30, %cst_25 {dimension_numbers = #tpu.dot_dimension_numbers<[1], [0], [0], [1], [0, 0, 1, 1], [], []>} : vector<16x32xf32>, vector<32x32xf32>, vector<16x32xf32> -> vector<16x32xf32>
    %c0_26 = arith.constant 0 : index
    %c0_27 = arith.constant 0 : index
    %c0_28 = arith.constant 0 : index
    %32 = vector.load %arg9[%c0_26, %c0_27, %c0_28] : memref<3x1x32xf32, #tpu.memory_space<vmem>>, vector<1x1x32xf32>
    %33 = vector.shape_cast %32 : vector<1x1x32xf32> to vector<1x32xf32>
    %34 = vector.broadcast %33 : vector<1x32xf32> to vector<16x32xf32>
    %35 = arith.addf %31, %34 : vector<16x32xf32>
    %c1_29 = arith.constant 1 : index
    %c0_30 = arith.constant 0 : index
    %c0_31 = arith.constant 0 : index
    %36 = vector.load %arg7[%c1_29, %c0_30, %c0_31] : memref<3x32x32xf32, #tpu.memory_space<vmem>>, vector<1x32x32xf32>
    %37 = vector.shape_cast %36 : vector<1x32x32xf32> to vector<32x32xf32>
    %cst_32 = arith.constant dense<0.000000e+00> : vector<16x32xf32>
    %38 = tpu.matmul %7, %37, %cst_32 {dimension_numbers = #tpu.dot_dimension_numbers<[1], [0], [0], [1], [0, 0, 1, 1], [], []>} : vector<16x32xf32>, vector<32x32xf32>, vector<16x32xf32> -> vector<16x32xf32>
    %c1_33 = arith.constant 1 : index
    %c0_34 = arith.constant 0 : index
    %c0_35 = arith.constant 0 : index
    %39 = vector.load %arg9[%c1_33, %c0_34, %c0_35] : memref<3x1x32xf32, #tpu.memory_space<vmem>>, vector<1x1x32xf32>
    %40 = vector.shape_cast %39 : vector<1x1x32xf32> to vector<1x32xf32>
    %41 = vector.broadcast %40 : vector<1x32xf32> to vector<16x32xf32>
    %42 = arith.addf %38, %41 : vector<16x32xf32>
    %c2_36 = arith.constant 2 : index
    %c0_37 = arith.constant 0 : index
    %c0_38 = arith.constant 0 : index
    %43 = vector.load %arg7[%c2_36, %c0_37, %c0_38] : memref<3x32x32xf32, #tpu.memory_space<vmem>>, vector<1x32x32xf32>
    %44 = vector.shape_cast %43 : vector<1x32x32xf32> to vector<32x32xf32>
    %cst_39 = arith.constant dense<0.000000e+00> : vector<16x32xf32>
    %45 = tpu.matmul %7, %44, %cst_39 {dimension_numbers = #tpu.dot_dimension_numbers<[1], [0], [0], [1], [0, 0, 1, 1], [], []>} : vector<16x32xf32>, vector<32x32xf32>, vector<16x32xf32> -> vector<16x32xf32>
    %c2_40 = arith.constant 2 : index
    %c0_41 = arith.constant 0 : index
    %c0_42 = arith.constant 0 : index
    %46 = vector.load %arg9[%c2_40, %c0_41, %c0_42] : memref<3x1x32xf32, #tpu.memory_space<vmem>>, vector<1x1x32xf32>
    %47 = vector.shape_cast %46 : vector<1x1x32xf32> to vector<1x32xf32>
    %48 = vector.broadcast %47 : vector<1x32xf32> to vector<16x32xf32>
    %49 = arith.addf %45, %48 : vector<16x32xf32>
    %c0_43 = arith.constant 0 : index
    %c0_44 = arith.constant 0 : index
    %50 = vector.load %arg1[%c0_43, %c0_44] : memref<2x1xi32, #tpu.memory_space<vmem>>, vector<2x1xi32>
    %cst_45 = arith.constant 0.000000e+00 : f32
    %51 = vector.broadcast %cst_45 : f32 to vector<2x32xf32>
    %52 = vector.extract_strided_slice %14 {offsets = [0, 0], sizes = [2, 32], strides = [1, 1]} : vector<16x32xf32> to vector<2x32xf32>
    %53 = vector.extract_strided_slice %21 {offsets = [0, 0], sizes = [2, 32], strides = [1, 1]} : vector<16x32xf32> to vector<2x32xf32>
    %54 = vector.extract_strided_slice %28 {offsets = [0, 0], sizes = [2, 32], strides = [1, 1]} : vector<16x32xf32> to vector<2x32xf32>
    %c0_46 = arith.constant 0 : index
    %c0_47 = arith.constant 0 : index
    %c0_48 = arith.constant 0 : index
    %55 = vector.load %arg4[%c0_46, %c0_47, %c0_48] : memref<3x32x32xf32, #tpu.memory_space<vmem>>, vector<1x32x32xf32>
    %56 = vector.shape_cast %55 : vector<1x32x32xf32> to vector<32x32xf32>
    %cst_49 = arith.constant dense<0.000000e+00> : vector<2x32xf32>
    %57 = tpu.matmul %51, %56, %cst_49 {dimension_numbers = #tpu.dot_dimension_numbers<[1], [0], [0], [1], [0, 0, 1, 1], [], []>} : vector<2x32xf32>, vector<32x32xf32>, vector<2x32xf32> -> vector<2x32xf32>
    %c0_50 = arith.constant 0 : index
    %c0_51 = arith.constant 0 : index
    %c0_52 = arith.constant 0 : index
    %58 = vector.load %arg6[%c0_50, %c0_51, %c0_52] : memref<3x1x32xf32, #tpu.memory_space<vmem>>, vector<1x1x32xf32>
    %59 = vector.shape_cast %58 : vector<1x1x32xf32> to vector<1x32xf32>
    %60 = vector.broadcast %59 : vector<1x32xf32> to vector<2x32xf32>
    %61 = arith.addf %57, %60 : vector<2x32xf32>
    %c1_53 = arith.constant 1 : index
    %c0_54 = arith.constant 0 : index
    %c0_55 = arith.constant 0 : index
    %62 = vector.load %arg4[%c1_53, %c0_54, %c0_55] : memref<3x32x32xf32, #tpu.memory_space<vmem>>, vector<1x32x32xf32>
    %63 = vector.shape_cast %62 : vector<1x32x32xf32> to vector<32x32xf32>
    %cst_56 = arith.constant dense<0.000000e+00> : vector<2x32xf32>
    %64 = tpu.matmul %51, %63, %cst_56 {dimension_numbers = #tpu.dot_dimension_numbers<[1], [0], [0], [1], [0, 0, 1, 1], [], []>} : vector<2x32xf32>, vector<32x32xf32>, vector<2x32xf32> -> vector<2x32xf32>
    %c1_57 = arith.constant 1 : index
    %c0_58 = arith.constant 0 : index
    %c0_59 = arith.constant 0 : index
    %65 = vector.load %arg6[%c1_57, %c0_58, %c0_59] : memref<3x1x32xf32, #tpu.memory_space<vmem>>, vector<1x1x32xf32>
    %66 = vector.shape_cast %65 : vector<1x1x32xf32> to vector<1x32xf32>
    %67 = vector.broadcast %66 : vector<1x32xf32> to vector<2x32xf32>
    %68 = arith.addf %64, %67 : vector<2x32xf32>
    %c2_60 = arith.constant 2 : index
    %c0_61 = arith.constant 0 : index
    %c0_62 = arith.constant 0 : index
    %69 = vector.load %arg4[%c2_60, %c0_61, %c0_62] : memref<3x32x32xf32, #tpu.memory_space<vmem>>, vector<1x32x32xf32>
    %70 = vector.shape_cast %69 : vector<1x32x32xf32> to vector<32x32xf32>
    %cst_63 = arith.constant dense<0.000000e+00> : vector<2x32xf32>
    %71 = tpu.matmul %51, %70, %cst_63 {dimension_numbers = #tpu.dot_dimension_numbers<[1], [0], [0], [1], [0, 0, 1, 1], [], []>} : vector<2x32xf32>, vector<32x32xf32>, vector<2x32xf32> -> vector<2x32xf32>
    %c2_64 = arith.constant 2 : index
    %c0_65 = arith.constant 0 : index
    %c0_66 = arith.constant 0 : index
    %72 = vector.load %arg6[%c2_64, %c0_65, %c0_66] : memref<3x1x32xf32, #tpu.memory_space<vmem>>, vector<1x1x32xf32>
    %73 = vector.shape_cast %72 : vector<1x1x32xf32> to vector<1x32xf32>
    %74 = vector.broadcast %73 : vector<1x32xf32> to vector<2x32xf32>
    %75 = arith.addf %71, %74 : vector<2x32xf32>
    %76 = arith.addf %52, %61 : vector<2x32xf32>
    %77 = arith.negf %76 : vector<2x32xf32>
    %78 = math.exp %77 : vector<2x32xf32>
    %cst_67 = arith.constant 1.000000e+00 : f32
    %79 = vector.broadcast %cst_67 : f32 to vector<2x32xf32>
    %80 = arith.addf %79, %78 : vector<2x32xf32>
    %81 = arith.divf %79, %80 : vector<2x32xf32>
    %82 = arith.addf %53, %68 : vector<2x32xf32>
    %83 = arith.negf %82 : vector<2x32xf32>
    %84 = math.exp %83 : vector<2x32xf32>
    %cst_68 = arith.constant 1.000000e+00 : f32
    %85 = vector.broadcast %cst_68 : f32 to vector<2x32xf32>
    %86 = arith.addf %85, %84 : vector<2x32xf32>
    %87 = arith.divf %85, %86 : vector<2x32xf32>
    %88 = arith.mulf %81, %75 : vector<2x32xf32>
    %89 = arith.addf %54, %88 : vector<2x32xf32>
    %90 = math.tanh %89 : vector<2x32xf32>
    %cst_69 = arith.constant 1.000000e+00 : f32
    %91 = vector.broadcast %cst_69 : f32 to vector<2x32xf32>
    %92 = arith.subf %91, %87 : vector<2x32xf32>
    %93 = arith.mulf %92, %90 : vector<2x32xf32>
    %94 = arith.mulf %87, %51 : vector<2x32xf32>
    %95 = arith.addf %93, %94 : vector<2x32xf32>
    %c0_i32 = arith.constant 0 : i32
    %96 = vector.broadcast %c0_i32 : i32 to vector<2x1xi32>
    %97 = arith.cmpi sgt, %50, %96 : vector<2x1xi32>
    %98 = arith.extui %97 : vector<2x1xi1> to vector<2x1xi32>
    %99 = arith.sitofp %98 : vector<2x1xi32> to vector<2x1xf32>
    %100 = vector.broadcast %99 : vector<2x1xf32> to vector<2x32xf32>
    %101 = arith.mulf %100, %95 : vector<2x32xf32>
    %cst_70 = arith.constant 1.000000e+00 : f32
    %102 = vector.broadcast %cst_70 : f32 to vector<2x1xf32>
    %103 = arith.subf %102, %99 : vector<2x1xf32>
    %104 = vector.broadcast %103 : vector<2x1xf32> to vector<2x32xf32>
    %105 = arith.mulf %104, %51 : vector<2x32xf32>
    %106 = arith.addf %101, %105 : vector<2x32xf32>
    %107 = vector.broadcast %99 : vector<2x1xf32> to vector<2x32xf32>
    %108 = arith.mulf %107, %95 : vector<2x32xf32>
    %109 = vector.extract_strided_slice %14 {offsets = [2, 0], sizes = [2, 32], strides = [1, 1]} : vector<16x32xf32> to vector<2x32xf32>
    %110 = vector.extract_strided_slice %21 {offsets = [2, 0], sizes = [2, 32], strides = [1, 1]} : vector<16x32xf32> to vector<2x32xf32>
    %111 = vector.extract_strided_slice %28 {offsets = [2, 0], sizes = [2, 32], strides = [1, 1]} : vector<16x32xf32> to vector<2x32xf32>
    %c0_71 = arith.constant 0 : index
    %c0_72 = arith.constant 0 : index
    %c0_73 = arith.constant 0 : index
    %112 = vector.load %arg4[%c0_71, %c0_72, %c0_73] : memref<3x32x32xf32, #tpu.memory_space<vmem>>, vector<1x32x32xf32>
    %113 = vector.shape_cast %112 : vector<1x32x32xf32> to vector<32x32xf32>
    %cst_74 = arith.constant dense<0.000000e+00> : vector<2x32xf32>
    %114 = tpu.matmul %106, %113, %cst_74 {dimension_numbers = #tpu.dot_dimension_numbers<[1], [0], [0], [1], [0, 0, 1, 1], [], []>} : vector<2x32xf32>, vector<32x32xf32>, vector<2x32xf32> -> vector<2x32xf32>
    %c0_75 = arith.constant 0 : index
    %c0_76 = arith.constant 0 : index
    %c0_77 = arith.constant 0 : index
    %115 = vector.load %arg6[%c0_75, %c0_76, %c0_77] : memref<3x1x32xf32, #tpu.memory_space<vmem>>, vector<1x1x32xf32>
    %116 = vector.shape_cast %115 : vector<1x1x32xf32> to vector<1x32xf32>
    %117 = vector.broadcast %116 : vector<1x32xf32> to vector<2x32xf32>
    %118 = arith.addf %114, %117 : vector<2x32xf32>
    %c1_78 = arith.constant 1 : index
    %c0_79 = arith.constant 0 : index
    %c0_80 = arith.constant 0 : index
    %119 = vector.load %arg4[%c1_78, %c0_79, %c0_80] : memref<3x32x32xf32, #tpu.memory_space<vmem>>, vector<1x32x32xf32>
    %120 = vector.shape_cast %119 : vector<1x32x32xf32> to vector<32x32xf32>
    %cst_81 = arith.constant dense<0.000000e+00> : vector<2x32xf32>
    %121 = tpu.matmul %106, %120, %cst_81 {dimension_numbers = #tpu.dot_dimension_numbers<[1], [0], [0], [1], [0, 0, 1, 1], [], []>} : vector<2x32xf32>, vector<32x32xf32>, vector<2x32xf32> -> vector<2x32xf32>
    %c1_82 = arith.constant 1 : index
    %c0_83 = arith.constant 0 : index
    %c0_84 = arith.constant 0 : index
    %122 = vector.load %arg6[%c1_82, %c0_83, %c0_84] : memref<3x1x32xf32, #tpu.memory_space<vmem>>, vector<1x1x32xf32>
    %123 = vector.shape_cast %122 : vector<1x1x32xf32> to vector<1x32xf32>
    %124 = vector.broadcast %123 : vector<1x32xf32> to vector<2x32xf32>
    %125 = arith.addf %121, %124 : vector<2x32xf32>
    %c2_85 = arith.constant 2 : index
    %c0_86 = arith.constant 0 : index
    %c0_87 = arith.constant 0 : index
    %126 = vector.load %arg4[%c2_85, %c0_86, %c0_87] : memref<3x32x32xf32, #tpu.memory_space<vmem>>, vector<1x32x32xf32>
    %127 = vector.shape_cast %126 : vector<1x32x32xf32> to vector<32x32xf32>
    %cst_88 = arith.constant dense<0.000000e+00> : vector<2x32xf32>
    %128 = tpu.matmul %106, %127, %cst_88 {dimension_numbers = #tpu.dot_dimension_numbers<[1], [0], [0], [1], [0, 0, 1, 1], [], []>} : vector<2x32xf32>, vector<32x32xf32>, vector<2x32xf32> -> vector<2x32xf32>
    %c2_89 = arith.constant 2 : index
    %c0_90 = arith.constant 0 : index
    %c0_91 = arith.constant 0 : index
    %129 = vector.load %arg6[%c2_89, %c0_90, %c0_91] : memref<3x1x32xf32, #tpu.memory_space<vmem>>, vector<1x1x32xf32>
    %130 = vector.shape_cast %129 : vector<1x1x32xf32> to vector<1x32xf32>
    %131 = vector.broadcast %130 : vector<1x32xf32> to vector<2x32xf32>
    %132 = arith.addf %128, %131 : vector<2x32xf32>
    %133 = arith.addf %109, %118 : vector<2x32xf32>
    %134 = arith.negf %133 : vector<2x32xf32>
    %135 = math.exp %134 : vector<2x32xf32>
    %cst_92 = arith.constant 1.000000e+00 : f32
    %136 = vector.broadcast %cst_92 : f32 to vector<2x32xf32>
    %137 = arith.addf %136, %135 : vector<2x32xf32>
    %138 = arith.divf %136, %137 : vector<2x32xf32>
    %139 = arith.addf %110, %125 : vector<2x32xf32>
    %140 = arith.negf %139 : vector<2x32xf32>
    %141 = math.exp %140 : vector<2x32xf32>
    %cst_93 = arith.constant 1.000000e+00 : f32
    %142 = vector.broadcast %cst_93 : f32 to vector<2x32xf32>
    %143 = arith.addf %142, %141 : vector<2x32xf32>
    %144 = arith.divf %142, %143 : vector<2x32xf32>
    %145 = arith.mulf %138, %132 : vector<2x32xf32>
    %146 = arith.addf %111, %145 : vector<2x32xf32>
    %147 = math.tanh %146 : vector<2x32xf32>
    %cst_94 = arith.constant 1.000000e+00 : f32
    %148 = vector.broadcast %cst_94 : f32 to vector<2x32xf32>
    %149 = arith.subf %148, %144 : vector<2x32xf32>
    %150 = arith.mulf %149, %147 : vector<2x32xf32>
    %151 = arith.mulf %144, %106 : vector<2x32xf32>
    %152 = arith.addf %150, %151 : vector<2x32xf32>
    %c1_i32 = arith.constant 1 : i32
    %153 = vector.broadcast %c1_i32 : i32 to vector<2x1xi32>
    %154 = arith.cmpi sgt, %50, %153 : vector<2x1xi32>
    %155 = arith.extui %154 : vector<2x1xi1> to vector<2x1xi32>
    %156 = arith.sitofp %155 : vector<2x1xi32> to vector<2x1xf32>
    %157 = vector.broadcast %156 : vector<2x1xf32> to vector<2x32xf32>
    %158 = arith.mulf %157, %152 : vector<2x32xf32>
    %cst_95 = arith.constant 1.000000e+00 : f32
    %159 = vector.broadcast %cst_95 : f32 to vector<2x1xf32>
    %160 = arith.subf %159, %156 : vector<2x1xf32>
    %161 = vector.broadcast %160 : vector<2x1xf32> to vector<2x32xf32>
    %162 = arith.mulf %161, %106 : vector<2x32xf32>
    %163 = arith.addf %158, %162 : vector<2x32xf32>
    %164 = vector.broadcast %156 : vector<2x1xf32> to vector<2x32xf32>
    %165 = arith.mulf %164, %152 : vector<2x32xf32>
    %166 = vector.extract_strided_slice %14 {offsets = [4, 0], sizes = [2, 32], strides = [1, 1]} : vector<16x32xf32> to vector<2x32xf32>
    %167 = vector.extract_strided_slice %21 {offsets = [4, 0], sizes = [2, 32], strides = [1, 1]} : vector<16x32xf32> to vector<2x32xf32>
    %168 = vector.extract_strided_slice %28 {offsets = [4, 0], sizes = [2, 32], strides = [1, 1]} : vector<16x32xf32> to vector<2x32xf32>
    %c0_96 = arith.constant 0 : index
    %c0_97 = arith.constant 0 : index
    %c0_98 = arith.constant 0 : index
    %169 = vector.load %arg4[%c0_96, %c0_97, %c0_98] : memref<3x32x32xf32, #tpu.memory_space<vmem>>, vector<1x32x32xf32>
    %170 = vector.shape_cast %169 : vector<1x32x32xf32> to vector<32x32xf32>
    %cst_99 = arith.constant dense<0.000000e+00> : vector<2x32xf32>
    %171 = tpu.matmul %163, %170, %cst_99 {dimension_numbers = #tpu.dot_dimension_numbers<[1], [0], [0], [1], [0, 0, 1, 1], [], []>} : vector<2x32xf32>, vector<32x32xf32>, vector<2x32xf32> -> vector<2x32xf32>
    %c0_100 = arith.constant 0 : index
    %c0_101 = arith.constant 0 : index
    %c0_102 = arith.constant 0 : index
    %172 = vector.load %arg6[%c0_100, %c0_101, %c0_102] : memref<3x1x32xf32, #tpu.memory_space<vmem>>, vector<1x1x32xf32>
    %173 = vector.shape_cast %172 : vector<1x1x32xf32> to vector<1x32xf32>
    %174 = vector.broadcast %173 : vector<1x32xf32> to vector<2x32xf32>
    %175 = arith.addf %171, %174 : vector<2x32xf32>
    %c1_103 = arith.constant 1 : index
    %c0_104 = arith.constant 0 : index
    %c0_105 = arith.constant 0 : index
    %176 = vector.load %arg4[%c1_103, %c0_104, %c0_105] : memref<3x32x32xf32, #tpu.memory_space<vmem>>, vector<1x32x32xf32>
    %177 = vector.shape_cast %176 : vector<1x32x32xf32> to vector<32x32xf32>
    %cst_106 = arith.constant dense<0.000000e+00> : vector<2x32xf32>
    %178 = tpu.matmul %163, %177, %cst_106 {dimension_numbers = #tpu.dot_dimension_numbers<[1], [0], [0], [1], [0, 0, 1, 1], [], []>} : vector<2x32xf32>, vector<32x32xf32>, vector<2x32xf32> -> vector<2x32xf32>
    %c1_107 = arith.constant 1 : index
    %c0_108 = arith.constant 0 : index
    %c0_109 = arith.constant 0 : index
    %179 = vector.load %arg6[%c1_107, %c0_108, %c0_109] : memref<3x1x32xf32, #tpu.memory_space<vmem>>, vector<1x1x32xf32>
    %180 = vector.shape_cast %179 : vector<1x1x32xf32> to vector<1x32xf32>
    %181 = vector.broadcast %180 : vector<1x32xf32> to vector<2x32xf32>
    %182 = arith.addf %178, %181 : vector<2x32xf32>
    %c2_110 = arith.constant 2 : index
    %c0_111 = arith.constant 0 : index
    %c0_112 = arith.constant 0 : index
    %183 = vector.load %arg4[%c2_110, %c0_111, %c0_112] : memref<3x32x32xf32, #tpu.memory_space<vmem>>, vector<1x32x32xf32>
    %184 = vector.shape_cast %183 : vector<1x32x32xf32> to vector<32x32xf32>
    %cst_113 = arith.constant dense<0.000000e+00> : vector<2x32xf32>
    %185 = tpu.matmul %163, %184, %cst_113 {dimension_numbers = #tpu.dot_dimension_numbers<[1], [0], [0], [1], [0, 0, 1, 1], [], []>} : vector<2x32xf32>, vector<32x32xf32>, vector<2x32xf32> -> vector<2x32xf32>
    %c2_114 = arith.constant 2 : index
    %c0_115 = arith.constant 0 : index
    %c0_116 = arith.constant 0 : index
    %186 = vector.load %arg6[%c2_114, %c0_115, %c0_116] : memref<3x1x32xf32, #tpu.memory_space<vmem>>, vector<1x1x32xf32>
    %187 = vector.shape_cast %186 : vector<1x1x32xf32> to vector<1x32xf32>
    %188 = vector.broadcast %187 : vector<1x32xf32> to vector<2x32xf32>
    %189 = arith.addf %185, %188 : vector<2x32xf32>
    %190 = arith.addf %166, %175 : vector<2x32xf32>
    %191 = arith.negf %190 : vector<2x32xf32>
    %192 = math.exp %191 : vector<2x32xf32>
    %cst_117 = arith.constant 1.000000e+00 : f32
    %193 = vector.broadcast %cst_117 : f32 to vector<2x32xf32>
    %194 = arith.addf %193, %192 : vector<2x32xf32>
    %195 = arith.divf %193, %194 : vector<2x32xf32>
    %196 = arith.addf %167, %182 : vector<2x32xf32>
    %197 = arith.negf %196 : vector<2x32xf32>
    %198 = math.exp %197 : vector<2x32xf32>
    %cst_118 = arith.constant 1.000000e+00 : f32
    %199 = vector.broadcast %cst_118 : f32 to vector<2x32xf32>
    %200 = arith.addf %199, %198 : vector<2x32xf32>
    %201 = arith.divf %199, %200 : vector<2x32xf32>
    %202 = arith.mulf %195, %189 : vector<2x32xf32>
    %203 = arith.addf %168, %202 : vector<2x32xf32>
    %204 = math.tanh %203 : vector<2x32xf32>
    %cst_119 = arith.constant 1.000000e+00 : f32
    %205 = vector.broadcast %cst_119 : f32 to vector<2x32xf32>
    %206 = arith.subf %205, %201 : vector<2x32xf32>
    %207 = arith.mulf %206, %204 : vector<2x32xf32>
    %208 = arith.mulf %201, %163 : vector<2x32xf32>
    %209 = arith.addf %207, %208 : vector<2x32xf32>
    %c2_i32 = arith.constant 2 : i32
    %210 = vector.broadcast %c2_i32 : i32 to vector<2x1xi32>
    %211 = arith.cmpi sgt, %50, %210 : vector<2x1xi32>
    %212 = arith.extui %211 : vector<2x1xi1> to vector<2x1xi32>
    %213 = arith.sitofp %212 : vector<2x1xi32> to vector<2x1xf32>
    %214 = vector.broadcast %213 : vector<2x1xf32> to vector<2x32xf32>
    %215 = arith.mulf %214, %209 : vector<2x32xf32>
    %cst_120 = arith.constant 1.000000e+00 : f32
    %216 = vector.broadcast %cst_120 : f32 to vector<2x1xf32>
    %217 = arith.subf %216, %213 : vector<2x1xf32>
    %218 = vector.broadcast %217 : vector<2x1xf32> to vector<2x32xf32>
    %219 = arith.mulf %218, %163 : vector<2x32xf32>
    %220 = arith.addf %215, %219 : vector<2x32xf32>
    %221 = vector.broadcast %213 : vector<2x1xf32> to vector<2x32xf32>
    %222 = arith.mulf %221, %209 : vector<2x32xf32>
    %223 = vector.extract_strided_slice %14 {offsets = [6, 0], sizes = [2, 32], strides = [1, 1]} : vector<16x32xf32> to vector<2x32xf32>
    %224 = vector.extract_strided_slice %21 {offsets = [6, 0], sizes = [2, 32], strides = [1, 1]} : vector<16x32xf32> to vector<2x32xf32>
    %225 = vector.extract_strided_slice %28 {offsets = [6, 0], sizes = [2, 32], strides = [1, 1]} : vector<16x32xf32> to vector<2x32xf32>
    %c0_121 = arith.constant 0 : index
    %c0_122 = arith.constant 0 : index
    %c0_123 = arith.constant 0 : index
    %226 = vector.load %arg4[%c0_121, %c0_122, %c0_123] : memref<3x32x32xf32, #tpu.memory_space<vmem>>, vector<1x32x32xf32>
    %227 = vector.shape_cast %226 : vector<1x32x32xf32> to vector<32x32xf32>
    %cst_124 = arith.constant dense<0.000000e+00> : vector<2x32xf32>
    %228 = tpu.matmul %220, %227, %cst_124 {dimension_numbers = #tpu.dot_dimension_numbers<[1], [0], [0], [1], [0, 0, 1, 1], [], []>} : vector<2x32xf32>, vector<32x32xf32>, vector<2x32xf32> -> vector<2x32xf32>
    %c0_125 = arith.constant 0 : index
    %c0_126 = arith.constant 0 : index
    %c0_127 = arith.constant 0 : index
    %229 = vector.load %arg6[%c0_125, %c0_126, %c0_127] : memref<3x1x32xf32, #tpu.memory_space<vmem>>, vector<1x1x32xf32>
    %230 = vector.shape_cast %229 : vector<1x1x32xf32> to vector<1x32xf32>
    %231 = vector.broadcast %230 : vector<1x32xf32> to vector<2x32xf32>
    %232 = arith.addf %228, %231 : vector<2x32xf32>
    %c1_128 = arith.constant 1 : index
    %c0_129 = arith.constant 0 : index
    %c0_130 = arith.constant 0 : index
    %233 = vector.load %arg4[%c1_128, %c0_129, %c0_130] : memref<3x32x32xf32, #tpu.memory_space<vmem>>, vector<1x32x32xf32>
    %234 = vector.shape_cast %233 : vector<1x32x32xf32> to vector<32x32xf32>
    %cst_131 = arith.constant dense<0.000000e+00> : vector<2x32xf32>
    %235 = tpu.matmul %220, %234, %cst_131 {dimension_numbers = #tpu.dot_dimension_numbers<[1], [0], [0], [1], [0, 0, 1, 1], [], []>} : vector<2x32xf32>, vector<32x32xf32>, vector<2x32xf32> -> vector<2x32xf32>
    %c1_132 = arith.constant 1 : index
    %c0_133 = arith.constant 0 : index
    %c0_134 = arith.constant 0 : index
    %236 = vector.load %arg6[%c1_132, %c0_133, %c0_134] : memref<3x1x32xf32, #tpu.memory_space<vmem>>, vector<1x1x32xf32>
    %237 = vector.shape_cast %236 : vector<1x1x32xf32> to vector<1x32xf32>
    %238 = vector.broadcast %237 : vector<1x32xf32> to vector<2x32xf32>
    %239 = arith.addf %235, %238 : vector<2x32xf32>
    %c2_135 = arith.constant 2 : index
    %c0_136 = arith.constant 0 : index
    %c0_137 = arith.constant 0 : index
    %240 = vector.load %arg4[%c2_135, %c0_136, %c0_137] : memref<3x32x32xf32, #tpu.memory_space<vmem>>, vector<1x32x32xf32>
    %241 = vector.shape_cast %240 : vector<1x32x32xf32> to vector<32x32xf32>
    %cst_138 = arith.constant dense<0.000000e+00> : vector<2x32xf32>
    %242 = tpu.matmul %220, %241, %cst_138 {dimension_numbers = #tpu.dot_dimension_numbers<[1], [0], [0], [1], [0, 0, 1, 1], [], []>} : vector<2x32xf32>, vector<32x32xf32>, vector<2x32xf32> -> vector<2x32xf32>
    %c2_139 = arith.constant 2 : index
    %c0_140 = arith.constant 0 : index
    %c0_141 = arith.constant 0 : index
    %243 = vector.load %arg6[%c2_139, %c0_140, %c0_141] : memref<3x1x32xf32, #tpu.memory_space<vmem>>, vector<1x1x32xf32>
    %244 = vector.shape_cast %243 : vector<1x1x32xf32> to vector<1x32xf32>
    %245 = vector.broadcast %244 : vector<1x32xf32> to vector<2x32xf32>
    %246 = arith.addf %242, %245 : vector<2x32xf32>
    %247 = arith.addf %223, %232 : vector<2x32xf32>
    %248 = arith.negf %247 : vector<2x32xf32>
    %249 = math.exp %248 : vector<2x32xf32>
    %cst_142 = arith.constant 1.000000e+00 : f32
    %250 = vector.broadcast %cst_142 : f32 to vector<2x32xf32>
    %251 = arith.addf %250, %249 : vector<2x32xf32>
    %252 = arith.divf %250, %251 : vector<2x32xf32>
    %253 = arith.addf %224, %239 : vector<2x32xf32>
    %254 = arith.negf %253 : vector<2x32xf32>
    %255 = math.exp %254 : vector<2x32xf32>
    %cst_143 = arith.constant 1.000000e+00 : f32
    %256 = vector.broadcast %cst_143 : f32 to vector<2x32xf32>
    %257 = arith.addf %256, %255 : vector<2x32xf32>
    %258 = arith.divf %256, %257 : vector<2x32xf32>
    %259 = arith.mulf %252, %246 : vector<2x32xf32>
    %260 = arith.addf %225, %259 : vector<2x32xf32>
    %261 = math.tanh %260 : vector<2x32xf32>
    %cst_144 = arith.constant 1.000000e+00 : f32
    %262 = vector.broadcast %cst_144 : f32 to vector<2x32xf32>
    %263 = arith.subf %262, %258 : vector<2x32xf32>
    %264 = arith.mulf %263, %261 : vector<2x32xf32>
    %265 = arith.mulf %258, %220 : vector<2x32xf32>
    %266 = arith.addf %264, %265 : vector<2x32xf32>
    %c3_i32 = arith.constant 3 : i32
    %267 = vector.broadcast %c3_i32 : i32 to vector<2x1xi32>
    %268 = arith.cmpi sgt, %50, %267 : vector<2x1xi32>
    %269 = arith.extui %268 : vector<2x1xi1> to vector<2x1xi32>
    %270 = arith.sitofp %269 : vector<2x1xi32> to vector<2x1xf32>
    %271 = vector.broadcast %270 : vector<2x1xf32> to vector<2x32xf32>
    %272 = arith.mulf %271, %266 : vector<2x32xf32>
    %cst_145 = arith.constant 1.000000e+00 : f32
    %273 = vector.broadcast %cst_145 : f32 to vector<2x1xf32>
    %274 = arith.subf %273, %270 : vector<2x1xf32>
    %275 = vector.broadcast %274 : vector<2x1xf32> to vector<2x32xf32>
    %276 = arith.mulf %275, %220 : vector<2x32xf32>
    %277 = arith.addf %272, %276 : vector<2x32xf32>
    %278 = vector.broadcast %270 : vector<2x1xf32> to vector<2x32xf32>
    %279 = arith.mulf %278, %266 : vector<2x32xf32>
    %280 = vector.extract_strided_slice %14 {offsets = [8, 0], sizes = [2, 32], strides = [1, 1]} : vector<16x32xf32> to vector<2x32xf32>
    %281 = vector.extract_strided_slice %21 {offsets = [8, 0], sizes = [2, 32], strides = [1, 1]} : vector<16x32xf32> to vector<2x32xf32>
    %282 = vector.extract_strided_slice %28 {offsets = [8, 0], sizes = [2, 32], strides = [1, 1]} : vector<16x32xf32> to vector<2x32xf32>
    %c0_146 = arith.constant 0 : index
    %c0_147 = arith.constant 0 : index
    %c0_148 = arith.constant 0 : index
    %283 = vector.load %arg4[%c0_146, %c0_147, %c0_148] : memref<3x32x32xf32, #tpu.memory_space<vmem>>, vector<1x32x32xf32>
    %284 = vector.shape_cast %283 : vector<1x32x32xf32> to vector<32x32xf32>
    %cst_149 = arith.constant dense<0.000000e+00> : vector<2x32xf32>
    %285 = tpu.matmul %277, %284, %cst_149 {dimension_numbers = #tpu.dot_dimension_numbers<[1], [0], [0], [1], [0, 0, 1, 1], [], []>} : vector<2x32xf32>, vector<32x32xf32>, vector<2x32xf32> -> vector<2x32xf32>
    %c0_150 = arith.constant 0 : index
    %c0_151 = arith.constant 0 : index
    %c0_152 = arith.constant 0 : index
    %286 = vector.load %arg6[%c0_150, %c0_151, %c0_152] : memref<3x1x32xf32, #tpu.memory_space<vmem>>, vector<1x1x32xf32>
    %287 = vector.shape_cast %286 : vector<1x1x32xf32> to vector<1x32xf32>
    %288 = vector.broadcast %287 : vector<1x32xf32> to vector<2x32xf32>
    %289 = arith.addf %285, %288 : vector<2x32xf32>
    %c1_153 = arith.constant 1 : index
    %c0_154 = arith.constant 0 : index
    %c0_155 = arith.constant 0 : index
    %290 = vector.load %arg4[%c1_153, %c0_154, %c0_155] : memref<3x32x32xf32, #tpu.memory_space<vmem>>, vector<1x32x32xf32>
    %291 = vector.shape_cast %290 : vector<1x32x32xf32> to vector<32x32xf32>
    %cst_156 = arith.constant dense<0.000000e+00> : vector<2x32xf32>
    %292 = tpu.matmul %277, %291, %cst_156 {dimension_numbers = #tpu.dot_dimension_numbers<[1], [0], [0], [1], [0, 0, 1, 1], [], []>} : vector<2x32xf32>, vector<32x32xf32>, vector<2x32xf32> -> vector<2x32xf32>
    %c1_157 = arith.constant 1 : index
    %c0_158 = arith.constant 0 : index
    %c0_159 = arith.constant 0 : index
    %293 = vector.load %arg6[%c1_157, %c0_158, %c0_159] : memref<3x1x32xf32, #tpu.memory_space<vmem>>, vector<1x1x32xf32>
    %294 = vector.shape_cast %293 : vector<1x1x32xf32> to vector<1x32xf32>
    %295 = vector.broadcast %294 : vector<1x32xf32> to vector<2x32xf32>
    %296 = arith.addf %292, %295 : vector<2x32xf32>
    %c2_160 = arith.constant 2 : index
    %c0_161 = arith.constant 0 : index
    %c0_162 = arith.constant 0 : index
    %297 = vector.load %arg4[%c2_160, %c0_161, %c0_162] : memref<3x32x32xf32, #tpu.memory_space<vmem>>, vector<1x32x32xf32>
    %298 = vector.shape_cast %297 : vector<1x32x32xf32> to vector<32x32xf32>
    %cst_163 = arith.constant dense<0.000000e+00> : vector<2x32xf32>
    %299 = tpu.matmul %277, %298, %cst_163 {dimension_numbers = #tpu.dot_dimension_numbers<[1], [0], [0], [1], [0, 0, 1, 1], [], []>} : vector<2x32xf32>, vector<32x32xf32>, vector<2x32xf32> -> vector<2x32xf32>
    %c2_164 = arith.constant 2 : index
    %c0_165 = arith.constant 0 : index
    %c0_166 = arith.constant 0 : index
    %300 = vector.load %arg6[%c2_164, %c0_165, %c0_166] : memref<3x1x32xf32, #tpu.memory_space<vmem>>, vector<1x1x32xf32>
    %301 = vector.shape_cast %300 : vector<1x1x32xf32> to vector<1x32xf32>
    %302 = vector.broadcast %301 : vector<1x32xf32> to vector<2x32xf32>
    %303 = arith.addf %299, %302 : vector<2x32xf32>
    %304 = arith.addf %280, %289 : vector<2x32xf32>
    %305 = arith.negf %304 : vector<2x32xf32>
    %306 = math.exp %305 : vector<2x32xf32>
    %cst_167 = arith.constant 1.000000e+00 : f32
    %307 = vector.broadcast %cst_167 : f32 to vector<2x32xf32>
    %308 = arith.addf %307, %306 : vector<2x32xf32>
    %309 = arith.divf %307, %308 : vector<2x32xf32>
    %310 = arith.addf %281, %296 : vector<2x32xf32>
    %311 = arith.negf %310 : vector<2x32xf32>
    %312 = math.exp %311 : vector<2x32xf32>
    %cst_168 = arith.constant 1.000000e+00 : f32
    %313 = vector.broadcast %cst_168 : f32 to vector<2x32xf32>
    %314 = arith.addf %313, %312 : vector<2x32xf32>
    %315 = arith.divf %313, %314 : vector<2x32xf32>
    %316 = arith.mulf %309, %303 : vector<2x32xf32>
    %317 = arith.addf %282, %316 : vector<2x32xf32>
    %318 = math.tanh %317 : vector<2x32xf32>
    %cst_169 = arith.constant 1.000000e+00 : f32
    %319 = vector.broadcast %cst_169 : f32 to vector<2x32xf32>
    %320 = arith.subf %319, %315 : vector<2x32xf32>
    %321 = arith.mulf %320, %318 : vector<2x32xf32>
    %322 = arith.mulf %315, %277 : vector<2x32xf32>
    %323 = arith.addf %321, %322 : vector<2x32xf32>
    %c4_i32 = arith.constant 4 : i32
    %324 = vector.broadcast %c4_i32 : i32 to vector<2x1xi32>
    %325 = arith.cmpi sgt, %50, %324 : vector<2x1xi32>
    %326 = arith.extui %325 : vector<2x1xi1> to vector<2x1xi32>
    %327 = arith.sitofp %326 : vector<2x1xi32> to vector<2x1xf32>
    %328 = vector.broadcast %327 : vector<2x1xf32> to vector<2x32xf32>
    %329 = arith.mulf %328, %323 : vector<2x32xf32>
    %cst_170 = arith.constant 1.000000e+00 : f32
    %330 = vector.broadcast %cst_170 : f32 to vector<2x1xf32>
    %331 = arith.subf %330, %327 : vector<2x1xf32>
    %332 = vector.broadcast %331 : vector<2x1xf32> to vector<2x32xf32>
    %333 = arith.mulf %332, %277 : vector<2x32xf32>
    %334 = arith.addf %329, %333 : vector<2x32xf32>
    %335 = vector.broadcast %327 : vector<2x1xf32> to vector<2x32xf32>
    %336 = arith.mulf %335, %323 : vector<2x32xf32>
    %337 = vector.extract_strided_slice %14 {offsets = [10, 0], sizes = [2, 32], strides = [1, 1]} : vector<16x32xf32> to vector<2x32xf32>
    %338 = vector.extract_strided_slice %21 {offsets = [10, 0], sizes = [2, 32], strides = [1, 1]} : vector<16x32xf32> to vector<2x32xf32>
    %339 = vector.extract_strided_slice %28 {offsets = [10, 0], sizes = [2, 32], strides = [1, 1]} : vector<16x32xf32> to vector<2x32xf32>
    %c0_171 = arith.constant 0 : index
    %c0_172 = arith.constant 0 : index
    %c0_173 = arith.constant 0 : index
    %340 = vector.load %arg4[%c0_171, %c0_172, %c0_173] : memref<3x32x32xf32, #tpu.memory_space<vmem>>, vector<1x32x32xf32>
    %341 = vector.shape_cast %340 : vector<1x32x32xf32> to vector<32x32xf32>
    %cst_174 = arith.constant dense<0.000000e+00> : vector<2x32xf32>
    %342 = tpu.matmul %334, %341, %cst_174 {dimension_numbers = #tpu.dot_dimension_numbers<[1], [0], [0], [1], [0, 0, 1, 1], [], []>} : vector<2x32xf32>, vector<32x32xf32>, vector<2x32xf32> -> vector<2x32xf32>
    %c0_175 = arith.constant 0 : index
    %c0_176 = arith.constant 0 : index
    %c0_177 = arith.constant 0 : index
    %343 = vector.load %arg6[%c0_175, %c0_176, %c0_177] : memref<3x1x32xf32, #tpu.memory_space<vmem>>, vector<1x1x32xf32>
    %344 = vector.shape_cast %343 : vector<1x1x32xf32> to vector<1x32xf32>
    %345 = vector.broadcast %344 : vector<1x32xf32> to vector<2x32xf32>
    %346 = arith.addf %342, %345 : vector<2x32xf32>
    %c1_178 = arith.constant 1 : index
    %c0_179 = arith.constant 0 : index
    %c0_180 = arith.constant 0 : index
    %347 = vector.load %arg4[%c1_178, %c0_179, %c0_180] : memref<3x32x32xf32, #tpu.memory_space<vmem>>, vector<1x32x32xf32>
    %348 = vector.shape_cast %347 : vector<1x32x32xf32> to vector<32x32xf32>
    %cst_181 = arith.constant dense<0.000000e+00> : vector<2x32xf32>
    %349 = tpu.matmul %334, %348, %cst_181 {dimension_numbers = #tpu.dot_dimension_numbers<[1], [0], [0], [1], [0, 0, 1, 1], [], []>} : vector<2x32xf32>, vector<32x32xf32>, vector<2x32xf32> -> vector<2x32xf32>
    %c1_182 = arith.constant 1 : index
    %c0_183 = arith.constant 0 : index
    %c0_184 = arith.constant 0 : index
    %350 = vector.load %arg6[%c1_182, %c0_183, %c0_184] : memref<3x1x32xf32, #tpu.memory_space<vmem>>, vector<1x1x32xf32>
    %351 = vector.shape_cast %350 : vector<1x1x32xf32> to vector<1x32xf32>
    %352 = vector.broadcast %351 : vector<1x32xf32> to vector<2x32xf32>
    %353 = arith.addf %349, %352 : vector<2x32xf32>
    %c2_185 = arith.constant 2 : index
    %c0_186 = arith.constant 0 : index
    %c0_187 = arith.constant 0 : index
    %354 = vector.load %arg4[%c2_185, %c0_186, %c0_187] : memref<3x32x32xf32, #tpu.memory_space<vmem>>, vector<1x32x32xf32>
    %355 = vector.shape_cast %354 : vector<1x32x32xf32> to vector<32x32xf32>
    %cst_188 = arith.constant dense<0.000000e+00> : vector<2x32xf32>
    %356 = tpu.matmul %334, %355, %cst_188 {dimension_numbers = #tpu.dot_dimension_numbers<[1], [0], [0], [1], [0, 0, 1, 1], [], []>} : vector<2x32xf32>, vector<32x32xf32>, vector<2x32xf32> -> vector<2x32xf32>
    %c2_189 = arith.constant 2 : index
    %c0_190 = arith.constant 0 : index
    %c0_191 = arith.constant 0 : index
    %357 = vector.load %arg6[%c2_189, %c0_190, %c0_191] : memref<3x1x32xf32, #tpu.memory_space<vmem>>, vector<1x1x32xf32>
    %358 = vector.shape_cast %357 : vector<1x1x32xf32> to vector<1x32xf32>
    %359 = vector.broadcast %358 : vector<1x32xf32> to vector<2x32xf32>
    %360 = arith.addf %356, %359 : vector<2x32xf32>
    %361 = arith.addf %337, %346 : vector<2x32xf32>
    %362 = arith.negf %361 : vector<2x32xf32>
    %363 = math.exp %362 : vector<2x32xf32>
    %cst_192 = arith.constant 1.000000e+00 : f32
    %364 = vector.broadcast %cst_192 : f32 to vector<2x32xf32>
    %365 = arith.addf %364, %363 : vector<2x32xf32>
    %366 = arith.divf %364, %365 : vector<2x32xf32>
    %367 = arith.addf %338, %353 : vector<2x32xf32>
    %368 = arith.negf %367 : vector<2x32xf32>
    %369 = math.exp %368 : vector<2x32xf32>
    %cst_193 = arith.constant 1.000000e+00 : f32
    %370 = vector.broadcast %cst_193 : f32 to vector<2x32xf32>
    %371 = arith.addf %370, %369 : vector<2x32xf32>
    %372 = arith.divf %370, %371 : vector<2x32xf32>
    %373 = arith.mulf %366, %360 : vector<2x32xf32>
    %374 = arith.addf %339, %373 : vector<2x32xf32>
    %375 = math.tanh %374 : vector<2x32xf32>
    %cst_194 = arith.constant 1.000000e+00 : f32
    %376 = vector.broadcast %cst_194 : f32 to vector<2x32xf32>
    %377 = arith.subf %376, %372 : vector<2x32xf32>
    %378 = arith.mulf %377, %375 : vector<2x32xf32>
    %379 = arith.mulf %372, %334 : vector<2x32xf32>
    %380 = arith.addf %378, %379 : vector<2x32xf32>
    %c5_i32 = arith.constant 5 : i32
    %381 = vector.broadcast %c5_i32 : i32 to vector<2x1xi32>
    %382 = arith.cmpi sgt, %50, %381 : vector<2x1xi32>
    %383 = arith.extui %382 : vector<2x1xi1> to vector<2x1xi32>
    %384 = arith.sitofp %383 : vector<2x1xi32> to vector<2x1xf32>
    %385 = vector.broadcast %384 : vector<2x1xf32> to vector<2x32xf32>
    %386 = arith.mulf %385, %380 : vector<2x32xf32>
    %cst_195 = arith.constant 1.000000e+00 : f32
    %387 = vector.broadcast %cst_195 : f32 to vector<2x1xf32>
    %388 = arith.subf %387, %384 : vector<2x1xf32>
    %389 = vector.broadcast %388 : vector<2x1xf32> to vector<2x32xf32>
    %390 = arith.mulf %389, %334 : vector<2x32xf32>
    %391 = arith.addf %386, %390 : vector<2x32xf32>
    %392 = vector.broadcast %384 : vector<2x1xf32> to vector<2x32xf32>
    %393 = arith.mulf %392, %380 : vector<2x32xf32>
    %394 = vector.extract_strided_slice %14 {offsets = [12, 0], sizes = [2, 32], strides = [1, 1]} : vector<16x32xf32> to vector<2x32xf32>
    %395 = vector.extract_strided_slice %21 {offsets = [12, 0], sizes = [2, 32], strides = [1, 1]} : vector<16x32xf32> to vector<2x32xf32>
    %396 = vector.extract_strided_slice %28 {offsets = [12, 0], sizes = [2, 32], strides = [1, 1]} : vector<16x32xf32> to vector<2x32xf32>
    %c0_196 = arith.constant 0 : index
    %c0_197 = arith.constant 0 : index
    %c0_198 = arith.constant 0 : index
    %397 = vector.load %arg4[%c0_196, %c0_197, %c0_198] : memref<3x32x32xf32, #tpu.memory_space<vmem>>, vector<1x32x32xf32>
    %398 = vector.shape_cast %397 : vector<1x32x32xf32> to vector<32x32xf32>
    %cst_199 = arith.constant dense<0.000000e+00> : vector<2x32xf32>
    %399 = tpu.matmul %391, %398, %cst_199 {dimension_numbers = #tpu.dot_dimension_numbers<[1], [0], [0], [1], [0, 0, 1, 1], [], []>} : vector<2x32xf32>, vector<32x32xf32>, vector<2x32xf32> -> vector<2x32xf32>
    %c0_200 = arith.constant 0 : index
    %c0_201 = arith.constant 0 : index
    %c0_202 = arith.constant 0 : index
    %400 = vector.load %arg6[%c0_200, %c0_201, %c0_202] : memref<3x1x32xf32, #tpu.memory_space<vmem>>, vector<1x1x32xf32>
    %401 = vector.shape_cast %400 : vector<1x1x32xf32> to vector<1x32xf32>
    %402 = vector.broadcast %401 : vector<1x32xf32> to vector<2x32xf32>
    %403 = arith.addf %399, %402 : vector<2x32xf32>
    %c1_203 = arith.constant 1 : index
    %c0_204 = arith.constant 0 : index
    %c0_205 = arith.constant 0 : index
    %404 = vector.load %arg4[%c1_203, %c0_204, %c0_205] : memref<3x32x32xf32, #tpu.memory_space<vmem>>, vector<1x32x32xf32>
    %405 = vector.shape_cast %404 : vector<1x32x32xf32> to vector<32x32xf32>
    %cst_206 = arith.constant dense<0.000000e+00> : vector<2x32xf32>
    %406 = tpu.matmul %391, %405, %cst_206 {dimension_numbers = #tpu.dot_dimension_numbers<[1], [0], [0], [1], [0, 0, 1, 1], [], []>} : vector<2x32xf32>, vector<32x32xf32>, vector<2x32xf32> -> vector<2x32xf32>
    %c1_207 = arith.constant 1 : index
    %c0_208 = arith.constant 0 : index
    %c0_209 = arith.constant 0 : index
    %407 = vector.load %arg6[%c1_207, %c0_208, %c0_209] : memref<3x1x32xf32, #tpu.memory_space<vmem>>, vector<1x1x32xf32>
    %408 = vector.shape_cast %407 : vector<1x1x32xf32> to vector<1x32xf32>
    %409 = vector.broadcast %408 : vector<1x32xf32> to vector<2x32xf32>
    %410 = arith.addf %406, %409 : vector<2x32xf32>
    %c2_210 = arith.constant 2 : index
    %c0_211 = arith.constant 0 : index
    %c0_212 = arith.constant 0 : index
    %411 = vector.load %arg4[%c2_210, %c0_211, %c0_212] : memref<3x32x32xf32, #tpu.memory_space<vmem>>, vector<1x32x32xf32>
    %412 = vector.shape_cast %411 : vector<1x32x32xf32> to vector<32x32xf32>
    %cst_213 = arith.constant dense<0.000000e+00> : vector<2x32xf32>
    %413 = tpu.matmul %391, %412, %cst_213 {dimension_numbers = #tpu.dot_dimension_numbers<[1], [0], [0], [1], [0, 0, 1, 1], [], []>} : vector<2x32xf32>, vector<32x32xf32>, vector<2x32xf32> -> vector<2x32xf32>
    %c2_214 = arith.constant 2 : index
    %c0_215 = arith.constant 0 : index
    %c0_216 = arith.constant 0 : index
    %414 = vector.load %arg6[%c2_214, %c0_215, %c0_216] : memref<3x1x32xf32, #tpu.memory_space<vmem>>, vector<1x1x32xf32>
    %415 = vector.shape_cast %414 : vector<1x1x32xf32> to vector<1x32xf32>
    %416 = vector.broadcast %415 : vector<1x32xf32> to vector<2x32xf32>
    %417 = arith.addf %413, %416 : vector<2x32xf32>
    %418 = arith.addf %394, %403 : vector<2x32xf32>
    %419 = arith.negf %418 : vector<2x32xf32>
    %420 = math.exp %419 : vector<2x32xf32>
    %cst_217 = arith.constant 1.000000e+00 : f32
    %421 = vector.broadcast %cst_217 : f32 to vector<2x32xf32>
    %422 = arith.addf %421, %420 : vector<2x32xf32>
    %423 = arith.divf %421, %422 : vector<2x32xf32>
    %424 = arith.addf %395, %410 : vector<2x32xf32>
    %425 = arith.negf %424 : vector<2x32xf32>
    %426 = math.exp %425 : vector<2x32xf32>
    %cst_218 = arith.constant 1.000000e+00 : f32
    %427 = vector.broadcast %cst_218 : f32 to vector<2x32xf32>
    %428 = arith.addf %427, %426 : vector<2x32xf32>
    %429 = arith.divf %427, %428 : vector<2x32xf32>
    %430 = arith.mulf %423, %417 : vector<2x32xf32>
    %431 = arith.addf %396, %430 : vector<2x32xf32>
    %432 = math.tanh %431 : vector<2x32xf32>
    %cst_219 = arith.constant 1.000000e+00 : f32
    %433 = vector.broadcast %cst_219 : f32 to vector<2x32xf32>
    %434 = arith.subf %433, %429 : vector<2x32xf32>
    %435 = arith.mulf %434, %432 : vector<2x32xf32>
    %436 = arith.mulf %429, %391 : vector<2x32xf32>
    %437 = arith.addf %435, %436 : vector<2x32xf32>
    %c6_i32 = arith.constant 6 : i32
    %438 = vector.broadcast %c6_i32 : i32 to vector<2x1xi32>
    %439 = arith.cmpi sgt, %50, %438 : vector<2x1xi32>
    %440 = arith.extui %439 : vector<2x1xi1> to vector<2x1xi32>
    %441 = arith.sitofp %440 : vector<2x1xi32> to vector<2x1xf32>
    %442 = vector.broadcast %441 : vector<2x1xf32> to vector<2x32xf32>
    %443 = arith.mulf %442, %437 : vector<2x32xf32>
    %cst_220 = arith.constant 1.000000e+00 : f32
    %444 = vector.broadcast %cst_220 : f32 to vector<2x1xf32>
    %445 = arith.subf %444, %441 : vector<2x1xf32>
    %446 = vector.broadcast %445 : vector<2x1xf32> to vector<2x32xf32>
    %447 = arith.mulf %446, %391 : vector<2x32xf32>
    %448 = arith.addf %443, %447 : vector<2x32xf32>
    %449 = vector.broadcast %441 : vector<2x1xf32> to vector<2x32xf32>
    %450 = arith.mulf %449, %437 : vector<2x32xf32>
    %451 = vector.extract_strided_slice %14 {offsets = [14, 0], sizes = [2, 32], strides = [1, 1]} : vector<16x32xf32> to vector<2x32xf32>
    %452 = vector.extract_strided_slice %21 {offsets = [14, 0], sizes = [2, 32], strides = [1, 1]} : vector<16x32xf32> to vector<2x32xf32>
    %453 = vector.extract_strided_slice %28 {offsets = [14, 0], sizes = [2, 32], strides = [1, 1]} : vector<16x32xf32> to vector<2x32xf32>
    %c0_221 = arith.constant 0 : index
    %c0_222 = arith.constant 0 : index
    %c0_223 = arith.constant 0 : index
    %454 = vector.load %arg4[%c0_221, %c0_222, %c0_223] : memref<3x32x32xf32, #tpu.memory_space<vmem>>, vector<1x32x32xf32>
    %455 = vector.shape_cast %454 : vector<1x32x32xf32> to vector<32x32xf32>
    %cst_224 = arith.constant dense<0.000000e+00> : vector<2x32xf32>
    %456 = tpu.matmul %448, %455, %cst_224 {dimension_numbers = #tpu.dot_dimension_numbers<[1], [0], [0], [1], [0, 0, 1, 1], [], []>} : vector<2x32xf32>, vector<32x32xf32>, vector<2x32xf32> -> vector<2x32xf32>
    %c0_225 = arith.constant 0 : index
    %c0_226 = arith.constant 0 : index
    %c0_227 = arith.constant 0 : index
    %457 = vector.load %arg6[%c0_225, %c0_226, %c0_227] : memref<3x1x32xf32, #tpu.memory_space<vmem>>, vector<1x1x32xf32>
    %458 = vector.shape_cast %457 : vector<1x1x32xf32> to vector<1x32xf32>
    %459 = vector.broadcast %458 : vector<1x32xf32> to vector<2x32xf32>
    %460 = arith.addf %456, %459 : vector<2x32xf32>
    %c1_228 = arith.constant 1 : index
    %c0_229 = arith.constant 0 : index
    %c0_230 = arith.constant 0 : index
    %461 = vector.load %arg4[%c1_228, %c0_229, %c0_230] : memref<3x32x32xf32, #tpu.memory_space<vmem>>, vector<1x32x32xf32>
    %462 = vector.shape_cast %461 : vector<1x32x32xf32> to vector<32x32xf32>
    %cst_231 = arith.constant dense<0.000000e+00> : vector<2x32xf32>
    %463 = tpu.matmul %448, %462, %cst_231 {dimension_numbers = #tpu.dot_dimension_numbers<[1], [0], [0], [1], [0, 0, 1, 1], [], []>} : vector<2x32xf32>, vector<32x32xf32>, vector<2x32xf32> -> vector<2x32xf32>
    %c1_232 = arith.constant 1 : index
    %c0_233 = arith.constant 0 : index
    %c0_234 = arith.constant 0 : index
    %464 = vector.load %arg6[%c1_232, %c0_233, %c0_234] : memref<3x1x32xf32, #tpu.memory_space<vmem>>, vector<1x1x32xf32>
    %465 = vector.shape_cast %464 : vector<1x1x32xf32> to vector<1x32xf32>
    %466 = vector.broadcast %465 : vector<1x32xf32> to vector<2x32xf32>
    %467 = arith.addf %463, %466 : vector<2x32xf32>
    %c2_235 = arith.constant 2 : index
    %c0_236 = arith.constant 0 : index
    %c0_237 = arith.constant 0 : index
    %468 = vector.load %arg4[%c2_235, %c0_236, %c0_237] : memref<3x32x32xf32, #tpu.memory_space<vmem>>, vector<1x32x32xf32>
    %469 = vector.shape_cast %468 : vector<1x32x32xf32> to vector<32x32xf32>
    %cst_238 = arith.constant dense<0.000000e+00> : vector<2x32xf32>
    %470 = tpu.matmul %448, %469, %cst_238 {dimension_numbers = #tpu.dot_dimension_numbers<[1], [0], [0], [1], [0, 0, 1, 1], [], []>} : vector<2x32xf32>, vector<32x32xf32>, vector<2x32xf32> -> vector<2x32xf32>
    %c2_239 = arith.constant 2 : index
    %c0_240 = arith.constant 0 : index
    %c0_241 = arith.constant 0 : index
    %471 = vector.load %arg6[%c2_239, %c0_240, %c0_241] : memref<3x1x32xf32, #tpu.memory_space<vmem>>, vector<1x1x32xf32>
    %472 = vector.shape_cast %471 : vector<1x1x32xf32> to vector<1x32xf32>
    %473 = vector.broadcast %472 : vector<1x32xf32> to vector<2x32xf32>
    %474 = arith.addf %470, %473 : vector<2x32xf32>
    %475 = arith.addf %451, %460 : vector<2x32xf32>
    %476 = arith.negf %475 : vector<2x32xf32>
    %477 = math.exp %476 : vector<2x32xf32>
    %cst_242 = arith.constant 1.000000e+00 : f32
    %478 = vector.broadcast %cst_242 : f32 to vector<2x32xf32>
    %479 = arith.addf %478, %477 : vector<2x32xf32>
    %480 = arith.divf %478, %479 : vector<2x32xf32>
    %481 = arith.addf %452, %467 : vector<2x32xf32>
    %482 = arith.negf %481 : vector<2x32xf32>
    %483 = math.exp %482 : vector<2x32xf32>
    %cst_243 = arith.constant 1.000000e+00 : f32
    %484 = vector.broadcast %cst_243 : f32 to vector<2x32xf32>
    %485 = arith.addf %484, %483 : vector<2x32xf32>
    %486 = arith.divf %484, %485 : vector<2x32xf32>
    %487 = arith.mulf %480, %474 : vector<2x32xf32>
    %488 = arith.addf %453, %487 : vector<2x32xf32>
    %489 = math.tanh %488 : vector<2x32xf32>
    %cst_244 = arith.constant 1.000000e+00 : f32
    %490 = vector.broadcast %cst_244 : f32 to vector<2x32xf32>
    %491 = arith.subf %490, %486 : vector<2x32xf32>
    %492 = arith.mulf %491, %489 : vector<2x32xf32>
    %493 = arith.mulf %486, %448 : vector<2x32xf32>
    %494 = arith.addf %492, %493 : vector<2x32xf32>
    %c7_i32 = arith.constant 7 : i32
    %495 = vector.broadcast %c7_i32 : i32 to vector<2x1xi32>
    %496 = arith.cmpi sgt, %50, %495 : vector<2x1xi32>
    %497 = arith.extui %496 : vector<2x1xi1> to vector<2x1xi32>
    %498 = arith.sitofp %497 : vector<2x1xi32> to vector<2x1xf32>
    %499 = vector.broadcast %498 : vector<2x1xf32> to vector<2x32xf32>
    %500 = arith.mulf %499, %494 : vector<2x32xf32>
    %cst_245 = arith.constant 1.000000e+00 : f32
    %501 = vector.broadcast %cst_245 : f32 to vector<2x1xf32>
    %502 = arith.subf %501, %498 : vector<2x1xf32>
    %503 = vector.broadcast %502 : vector<2x1xf32> to vector<2x32xf32>
    %504 = arith.mulf %503, %448 : vector<2x32xf32>
    %505 = arith.addf %500, %504 : vector<2x32xf32>
    %506 = vector.broadcast %498 : vector<2x1xf32> to vector<2x32xf32>
    %507 = arith.mulf %506, %494 : vector<2x32xf32>
    %508 = vector.extract_strided_slice %35 {offsets = [14, 0], sizes = [2, 32], strides = [1, 1]} : vector<16x32xf32> to vector<2x32xf32>
    %509 = vector.extract_strided_slice %42 {offsets = [14, 0], sizes = [2, 32], strides = [1, 1]} : vector<16x32xf32> to vector<2x32xf32>
    %510 = vector.extract_strided_slice %49 {offsets = [14, 0], sizes = [2, 32], strides = [1, 1]} : vector<16x32xf32> to vector<2x32xf32>
    %c0_246 = arith.constant 0 : index
    %c0_247 = arith.constant 0 : index
    %c0_248 = arith.constant 0 : index
    %511 = vector.load %arg8[%c0_246, %c0_247, %c0_248] : memref<3x32x32xf32, #tpu.memory_space<vmem>>, vector<1x32x32xf32>
    %512 = vector.shape_cast %511 : vector<1x32x32xf32> to vector<32x32xf32>
    %cst_249 = arith.constant dense<0.000000e+00> : vector<2x32xf32>
    %513 = tpu.matmul %51, %512, %cst_249 {dimension_numbers = #tpu.dot_dimension_numbers<[1], [0], [0], [1], [0, 0, 1, 1], [], []>} : vector<2x32xf32>, vector<32x32xf32>, vector<2x32xf32> -> vector<2x32xf32>
    %c0_250 = arith.constant 0 : index
    %c0_251 = arith.constant 0 : index
    %c0_252 = arith.constant 0 : index
    %514 = vector.load %arg10[%c0_250, %c0_251, %c0_252] : memref<3x1x32xf32, #tpu.memory_space<vmem>>, vector<1x1x32xf32>
    %515 = vector.shape_cast %514 : vector<1x1x32xf32> to vector<1x32xf32>
    %516 = vector.broadcast %515 : vector<1x32xf32> to vector<2x32xf32>
    %517 = arith.addf %513, %516 : vector<2x32xf32>
    %c1_253 = arith.constant 1 : index
    %c0_254 = arith.constant 0 : index
    %c0_255 = arith.constant 0 : index
    %518 = vector.load %arg8[%c1_253, %c0_254, %c0_255] : memref<3x32x32xf32, #tpu.memory_space<vmem>>, vector<1x32x32xf32>
    %519 = vector.shape_cast %518 : vector<1x32x32xf32> to vector<32x32xf32>
    %cst_256 = arith.constant dense<0.000000e+00> : vector<2x32xf32>
    %520 = tpu.matmul %51, %519, %cst_256 {dimension_numbers = #tpu.dot_dimension_numbers<[1], [0], [0], [1], [0, 0, 1, 1], [], []>} : vector<2x32xf32>, vector<32x32xf32>, vector<2x32xf32> -> vector<2x32xf32>
    %c1_257 = arith.constant 1 : index
    %c0_258 = arith.constant 0 : index
    %c0_259 = arith.constant 0 : index
    %521 = vector.load %arg10[%c1_257, %c0_258, %c0_259] : memref<3x1x32xf32, #tpu.memory_space<vmem>>, vector<1x1x32xf32>
    %522 = vector.shape_cast %521 : vector<1x1x32xf32> to vector<1x32xf32>
    %523 = vector.broadcast %522 : vector<1x32xf32> to vector<2x32xf32>
    %524 = arith.addf %520, %523 : vector<2x32xf32>
    %c2_260 = arith.constant 2 : index
    %c0_261 = arith.constant 0 : index
    %c0_262 = arith.constant 0 : index
    %525 = vector.load %arg8[%c2_260, %c0_261, %c0_262] : memref<3x32x32xf32, #tpu.memory_space<vmem>>, vector<1x32x32xf32>
    %526 = vector.shape_cast %525 : vector<1x32x32xf32> to vector<32x32xf32>
    %cst_263 = arith.constant dense<0.000000e+00> : vector<2x32xf32>
    %527 = tpu.matmul %51, %526, %cst_263 {dimension_numbers = #tpu.dot_dimension_numbers<[1], [0], [0], [1], [0, 0, 1, 1], [], []>} : vector<2x32xf32>, vector<32x32xf32>, vector<2x32xf32> -> vector<2x32xf32>
    %c2_264 = arith.constant 2 : index
    %c0_265 = arith.constant 0 : index
    %c0_266 = arith.constant 0 : index
    %528 = vector.load %arg10[%c2_264, %c0_265, %c0_266] : memref<3x1x32xf32, #tpu.memory_space<vmem>>, vector<1x1x32xf32>
    %529 = vector.shape_cast %528 : vector<1x1x32xf32> to vector<1x32xf32>
    %530 = vector.broadcast %529 : vector<1x32xf32> to vector<2x32xf32>
    %531 = arith.addf %527, %530 : vector<2x32xf32>
    %532 = arith.addf %508, %517 : vector<2x32xf32>
    %533 = arith.negf %532 : vector<2x32xf32>
    %534 = math.exp %533 : vector<2x32xf32>
    %cst_267 = arith.constant 1.000000e+00 : f32
    %535 = vector.broadcast %cst_267 : f32 to vector<2x32xf32>
    %536 = arith.addf %535, %534 : vector<2x32xf32>
    %537 = arith.divf %535, %536 : vector<2x32xf32>
    %538 = arith.addf %509, %524 : vector<2x32xf32>
    %539 = arith.negf %538 : vector<2x32xf32>
    %540 = math.exp %539 : vector<2x32xf32>
    %cst_268 = arith.constant 1.000000e+00 : f32
    %541 = vector.broadcast %cst_268 : f32 to vector<2x32xf32>
    %542 = arith.addf %541, %540 : vector<2x32xf32>
    %543 = arith.divf %541, %542 : vector<2x32xf32>
    %544 = arith.mulf %537, %531 : vector<2x32xf32>
    %545 = arith.addf %510, %544 : vector<2x32xf32>
    %546 = math.tanh %545 : vector<2x32xf32>
    %cst_269 = arith.constant 1.000000e+00 : f32
    %547 = vector.broadcast %cst_269 : f32 to vector<2x32xf32>
    %548 = arith.subf %547, %543 : vector<2x32xf32>
    %549 = arith.mulf %548, %546 : vector<2x32xf32>
    %550 = arith.mulf %543, %51 : vector<2x32xf32>
    %551 = arith.addf %549, %550 : vector<2x32xf32>
    %c7_i32_270 = arith.constant 7 : i32
    %552 = vector.broadcast %c7_i32_270 : i32 to vector<2x1xi32>
    %553 = arith.cmpi sgt, %50, %552 : vector<2x1xi32>
    %554 = arith.extui %553 : vector<2x1xi1> to vector<2x1xi32>
    %555 = arith.sitofp %554 : vector<2x1xi32> to vector<2x1xf32>
    %556 = vector.broadcast %555 : vector<2x1xf32> to vector<2x32xf32>
    %557 = arith.mulf %556, %551 : vector<2x32xf32>
    %cst_271 = arith.constant 1.000000e+00 : f32
    %558 = vector.broadcast %cst_271 : f32 to vector<2x1xf32>
    %559 = arith.subf %558, %555 : vector<2x1xf32>
    %560 = vector.broadcast %559 : vector<2x1xf32> to vector<2x32xf32>
    %561 = arith.mulf %560, %51 : vector<2x32xf32>
    %562 = arith.addf %557, %561 : vector<2x32xf32>
    %563 = vector.broadcast %555 : vector<2x1xf32> to vector<2x32xf32>
    %564 = arith.mulf %563, %551 : vector<2x32xf32>
    %565 = vector.extract_strided_slice %35 {offsets = [12, 0], sizes = [2, 32], strides = [1, 1]} : vector<16x32xf32> to vector<2x32xf32>
    %566 = vector.extract_strided_slice %42 {offsets = [12, 0], sizes = [2, 32], strides = [1, 1]} : vector<16x32xf32> to vector<2x32xf32>
    %567 = vector.extract_strided_slice %49 {offsets = [12, 0], sizes = [2, 32], strides = [1, 1]} : vector<16x32xf32> to vector<2x32xf32>
    %c0_272 = arith.constant 0 : index
    %c0_273 = arith.constant 0 : index
    %c0_274 = arith.constant 0 : index
    %568 = vector.load %arg8[%c0_272, %c0_273, %c0_274] : memref<3x32x32xf32, #tpu.memory_space<vmem>>, vector<1x32x32xf32>
    %569 = vector.shape_cast %568 : vector<1x32x32xf32> to vector<32x32xf32>
    %cst_275 = arith.constant dense<0.000000e+00> : vector<2x32xf32>
    %570 = tpu.matmul %562, %569, %cst_275 {dimension_numbers = #tpu.dot_dimension_numbers<[1], [0], [0], [1], [0, 0, 1, 1], [], []>} : vector<2x32xf32>, vector<32x32xf32>, vector<2x32xf32> -> vector<2x32xf32>
    %c0_276 = arith.constant 0 : index
    %c0_277 = arith.constant 0 : index
    %c0_278 = arith.constant 0 : index
    %571 = vector.load %arg10[%c0_276, %c0_277, %c0_278] : memref<3x1x32xf32, #tpu.memory_space<vmem>>, vector<1x1x32xf32>
    %572 = vector.shape_cast %571 : vector<1x1x32xf32> to vector<1x32xf32>
    %573 = vector.broadcast %572 : vector<1x32xf32> to vector<2x32xf32>
    %574 = arith.addf %570, %573 : vector<2x32xf32>
    %c1_279 = arith.constant 1 : index
    %c0_280 = arith.constant 0 : index
    %c0_281 = arith.constant 0 : index
    %575 = vector.load %arg8[%c1_279, %c0_280, %c0_281] : memref<3x32x32xf32, #tpu.memory_space<vmem>>, vector<1x32x32xf32>
    %576 = vector.shape_cast %575 : vector<1x32x32xf32> to vector<32x32xf32>
    %cst_282 = arith.constant dense<0.000000e+00> : vector<2x32xf32>
    %577 = tpu.matmul %562, %576, %cst_282 {dimension_numbers = #tpu.dot_dimension_numbers<[1], [0], [0], [1], [0, 0, 1, 1], [], []>} : vector<2x32xf32>, vector<32x32xf32>, vector<2x32xf32> -> vector<2x32xf32>
    %c1_283 = arith.constant 1 : index
    %c0_284 = arith.constant 0 : index
    %c0_285 = arith.constant 0 : index
    %578 = vector.load %arg10[%c1_283, %c0_284, %c0_285] : memref<3x1x32xf32, #tpu.memory_space<vmem>>, vector<1x1x32xf32>
    %579 = vector.shape_cast %578 : vector<1x1x32xf32> to vector<1x32xf32>
    %580 = vector.broadcast %579 : vector<1x32xf32> to vector<2x32xf32>
    %581 = arith.addf %577, %580 : vector<2x32xf32>
    %c2_286 = arith.constant 2 : index
    %c0_287 = arith.constant 0 : index
    %c0_288 = arith.constant 0 : index
    %582 = vector.load %arg8[%c2_286, %c0_287, %c0_288] : memref<3x32x32xf32, #tpu.memory_space<vmem>>, vector<1x32x32xf32>
    %583 = vector.shape_cast %582 : vector<1x32x32xf32> to vector<32x32xf32>
    %cst_289 = arith.constant dense<0.000000e+00> : vector<2x32xf32>
    %584 = tpu.matmul %562, %583, %cst_289 {dimension_numbers = #tpu.dot_dimension_numbers<[1], [0], [0], [1], [0, 0, 1, 1], [], []>} : vector<2x32xf32>, vector<32x32xf32>, vector<2x32xf32> -> vector<2x32xf32>
    %c2_290 = arith.constant 2 : index
    %c0_291 = arith.constant 0 : index
    %c0_292 = arith.constant 0 : index
    %585 = vector.load %arg10[%c2_290, %c0_291, %c0_292] : memref<3x1x32xf32, #tpu.memory_space<vmem>>, vector<1x1x32xf32>
    %586 = vector.shape_cast %585 : vector<1x1x32xf32> to vector<1x32xf32>
    %587 = vector.broadcast %586 : vector<1x32xf32> to vector<2x32xf32>
    %588 = arith.addf %584, %587 : vector<2x32xf32>
    %589 = arith.addf %565, %574 : vector<2x32xf32>
    %590 = arith.negf %589 : vector<2x32xf32>
    %591 = math.exp %590 : vector<2x32xf32>
    %cst_293 = arith.constant 1.000000e+00 : f32
    %592 = vector.broadcast %cst_293 : f32 to vector<2x32xf32>
    %593 = arith.addf %592, %591 : vector<2x32xf32>
    %594 = arith.divf %592, %593 : vector<2x32xf32>
    %595 = arith.addf %566, %581 : vector<2x32xf32>
    %596 = arith.negf %595 : vector<2x32xf32>
    %597 = math.exp %596 : vector<2x32xf32>
    %cst_294 = arith.constant 1.000000e+00 : f32
    %598 = vector.broadcast %cst_294 : f32 to vector<2x32xf32>
    %599 = arith.addf %598, %597 : vector<2x32xf32>
    %600 = arith.divf %598, %599 : vector<2x32xf32>
    %601 = arith.mulf %594, %588 : vector<2x32xf32>
    %602 = arith.addf %567, %601 : vector<2x32xf32>
    %603 = math.tanh %602 : vector<2x32xf32>
    %cst_295 = arith.constant 1.000000e+00 : f32
    %604 = vector.broadcast %cst_295 : f32 to vector<2x32xf32>
    %605 = arith.subf %604, %600 : vector<2x32xf32>
    %606 = arith.mulf %605, %603 : vector<2x32xf32>
    %607 = arith.mulf %600, %562 : vector<2x32xf32>
    %608 = arith.addf %606, %607 : vector<2x32xf32>
    %c6_i32_296 = arith.constant 6 : i32
    %609 = vector.broadcast %c6_i32_296 : i32 to vector<2x1xi32>
    %610 = arith.cmpi sgt, %50, %609 : vector<2x1xi32>
    %611 = arith.extui %610 : vector<2x1xi1> to vector<2x1xi32>
    %612 = arith.sitofp %611 : vector<2x1xi32> to vector<2x1xf32>
    %613 = vector.broadcast %612 : vector<2x1xf32> to vector<2x32xf32>
    %614 = arith.mulf %613, %608 : vector<2x32xf32>
    %cst_297 = arith.constant 1.000000e+00 : f32
    %615 = vector.broadcast %cst_297 : f32 to vector<2x1xf32>
    %616 = arith.subf %615, %612 : vector<2x1xf32>
    %617 = vector.broadcast %616 : vector<2x1xf32> to vector<2x32xf32>
    %618 = arith.mulf %617, %562 : vector<2x32xf32>
    %619 = arith.addf %614, %618 : vector<2x32xf32>
    %620 = vector.broadcast %612 : vector<2x1xf32> to vector<2x32xf32>
    %621 = arith.mulf %620, %608 : vector<2x32xf32>
    %622 = vector.extract_strided_slice %35 {offsets = [10, 0], sizes = [2, 32], strides = [1, 1]} : vector<16x32xf32> to vector<2x32xf32>
    %623 = vector.extract_strided_slice %42 {offsets = [10, 0], sizes = [2, 32], strides = [1, 1]} : vector<16x32xf32> to vector<2x32xf32>
    %624 = vector.extract_strided_slice %49 {offsets = [10, 0], sizes = [2, 32], strides = [1, 1]} : vector<16x32xf32> to vector<2x32xf32>
    %c0_298 = arith.constant 0 : index
    %c0_299 = arith.constant 0 : index
    %c0_300 = arith.constant 0 : index
    %625 = vector.load %arg8[%c0_298, %c0_299, %c0_300] : memref<3x32x32xf32, #tpu.memory_space<vmem>>, vector<1x32x32xf32>
    %626 = vector.shape_cast %625 : vector<1x32x32xf32> to vector<32x32xf32>
    %cst_301 = arith.constant dense<0.000000e+00> : vector<2x32xf32>
    %627 = tpu.matmul %619, %626, %cst_301 {dimension_numbers = #tpu.dot_dimension_numbers<[1], [0], [0], [1], [0, 0, 1, 1], [], []>} : vector<2x32xf32>, vector<32x32xf32>, vector<2x32xf32> -> vector<2x32xf32>
    %c0_302 = arith.constant 0 : index
    %c0_303 = arith.constant 0 : index
    %c0_304 = arith.constant 0 : index
    %628 = vector.load %arg10[%c0_302, %c0_303, %c0_304] : memref<3x1x32xf32, #tpu.memory_space<vmem>>, vector<1x1x32xf32>
    %629 = vector.shape_cast %628 : vector<1x1x32xf32> to vector<1x32xf32>
    %630 = vector.broadcast %629 : vector<1x32xf32> to vector<2x32xf32>
    %631 = arith.addf %627, %630 : vector<2x32xf32>
    %c1_305 = arith.constant 1 : index
    %c0_306 = arith.constant 0 : index
    %c0_307 = arith.constant 0 : index
    %632 = vector.load %arg8[%c1_305, %c0_306, %c0_307] : memref<3x32x32xf32, #tpu.memory_space<vmem>>, vector<1x32x32xf32>
    %633 = vector.shape_cast %632 : vector<1x32x32xf32> to vector<32x32xf32>
    %cst_308 = arith.constant dense<0.000000e+00> : vector<2x32xf32>
    %634 = tpu.matmul %619, %633, %cst_308 {dimension_numbers = #tpu.dot_dimension_numbers<[1], [0], [0], [1], [0, 0, 1, 1], [], []>} : vector<2x32xf32>, vector<32x32xf32>, vector<2x32xf32> -> vector<2x32xf32>
    %c1_309 = arith.constant 1 : index
    %c0_310 = arith.constant 0 : index
    %c0_311 = arith.constant 0 : index
    %635 = vector.load %arg10[%c1_309, %c0_310, %c0_311] : memref<3x1x32xf32, #tpu.memory_space<vmem>>, vector<1x1x32xf32>
    %636 = vector.shape_cast %635 : vector<1x1x32xf32> to vector<1x32xf32>
    %637 = vector.broadcast %636 : vector<1x32xf32> to vector<2x32xf32>
    %638 = arith.addf %634, %637 : vector<2x32xf32>
    %c2_312 = arith.constant 2 : index
    %c0_313 = arith.constant 0 : index
    %c0_314 = arith.constant 0 : index
    %639 = vector.load %arg8[%c2_312, %c0_313, %c0_314] : memref<3x32x32xf32, #tpu.memory_space<vmem>>, vector<1x32x32xf32>
    %640 = vector.shape_cast %639 : vector<1x32x32xf32> to vector<32x32xf32>
    %cst_315 = arith.constant dense<0.000000e+00> : vector<2x32xf32>
    %641 = tpu.matmul %619, %640, %cst_315 {dimension_numbers = #tpu.dot_dimension_numbers<[1], [0], [0], [1], [0, 0, 1, 1], [], []>} : vector<2x32xf32>, vector<32x32xf32>, vector<2x32xf32> -> vector<2x32xf32>
    %c2_316 = arith.constant 2 : index
    %c0_317 = arith.constant 0 : index
    %c0_318 = arith.constant 0 : index
    %642 = vector.load %arg10[%c2_316, %c0_317, %c0_318] : memref<3x1x32xf32, #tpu.memory_space<vmem>>, vector<1x1x32xf32>
    %643 = vector.shape_cast %642 : vector<1x1x32xf32> to vector<1x32xf32>
    %644 = vector.broadcast %643 : vector<1x32xf32> to vector<2x32xf32>
    %645 = arith.addf %641, %644 : vector<2x32xf32>
    %646 = arith.addf %622, %631 : vector<2x32xf32>
    %647 = arith.negf %646 : vector<2x32xf32>
    %648 = math.exp %647 : vector<2x32xf32>
    %cst_319 = arith.constant 1.000000e+00 : f32
    %649 = vector.broadcast %cst_319 : f32 to vector<2x32xf32>
    %650 = arith.addf %649, %648 : vector<2x32xf32>
    %651 = arith.divf %649, %650 : vector<2x32xf32>
    %652 = arith.addf %623, %638 : vector<2x32xf32>
    %653 = arith.negf %652 : vector<2x32xf32>
    %654 = math.exp %653 : vector<2x32xf32>
    %cst_320 = arith.constant 1.000000e+00 : f32
    %655 = vector.broadcast %cst_320 : f32 to vector<2x32xf32>
    %656 = arith.addf %655, %654 : vector<2x32xf32>
    %657 = arith.divf %655, %656 : vector<2x32xf32>
    %658 = arith.mulf %651, %645 : vector<2x32xf32>
    %659 = arith.addf %624, %658 : vector<2x32xf32>
    %660 = math.tanh %659 : vector<2x32xf32>
    %cst_321 = arith.constant 1.000000e+00 : f32
    %661 = vector.broadcast %cst_321 : f32 to vector<2x32xf32>
    %662 = arith.subf %661, %657 : vector<2x32xf32>
    %663 = arith.mulf %662, %660 : vector<2x32xf32>
    %664 = arith.mulf %657, %619 : vector<2x32xf32>
    %665 = arith.addf %663, %664 : vector<2x32xf32>
    %c5_i32_322 = arith.constant 5 : i32
    %666 = vector.broadcast %c5_i32_322 : i32 to vector<2x1xi32>
    %667 = arith.cmpi sgt, %50, %666 : vector<2x1xi32>
    %668 = arith.extui %667 : vector<2x1xi1> to vector<2x1xi32>
    %669 = arith.sitofp %668 : vector<2x1xi32> to vector<2x1xf32>
    %670 = vector.broadcast %669 : vector<2x1xf32> to vector<2x32xf32>
    %671 = arith.mulf %670, %665 : vector<2x32xf32>
    %cst_323 = arith.constant 1.000000e+00 : f32
    %672 = vector.broadcast %cst_323 : f32 to vector<2x1xf32>
    %673 = arith.subf %672, %669 : vector<2x1xf32>
    %674 = vector.broadcast %673 : vector<2x1xf32> to vector<2x32xf32>
    %675 = arith.mulf %674, %619 : vector<2x32xf32>
    %676 = arith.addf %671, %675 : vector<2x32xf32>
    %677 = vector.broadcast %669 : vector<2x1xf32> to vector<2x32xf32>
    %678 = arith.mulf %677, %665 : vector<2x32xf32>
    %679 = vector.extract_strided_slice %35 {offsets = [8, 0], sizes = [2, 32], strides = [1, 1]} : vector<16x32xf32> to vector<2x32xf32>
    %680 = vector.extract_strided_slice %42 {offsets = [8, 0], sizes = [2, 32], strides = [1, 1]} : vector<16x32xf32> to vector<2x32xf32>
    %681 = vector.extract_strided_slice %49 {offsets = [8, 0], sizes = [2, 32], strides = [1, 1]} : vector<16x32xf32> to vector<2x32xf32>
    %c0_324 = arith.constant 0 : index
    %c0_325 = arith.constant 0 : index
    %c0_326 = arith.constant 0 : index
    %682 = vector.load %arg8[%c0_324, %c0_325, %c0_326] : memref<3x32x32xf32, #tpu.memory_space<vmem>>, vector<1x32x32xf32>
    %683 = vector.shape_cast %682 : vector<1x32x32xf32> to vector<32x32xf32>
    %cst_327 = arith.constant dense<0.000000e+00> : vector<2x32xf32>
    %684 = tpu.matmul %676, %683, %cst_327 {dimension_numbers = #tpu.dot_dimension_numbers<[1], [0], [0], [1], [0, 0, 1, 1], [], []>} : vector<2x32xf32>, vector<32x32xf32>, vector<2x32xf32> -> vector<2x32xf32>
    %c0_328 = arith.constant 0 : index
    %c0_329 = arith.constant 0 : index
    %c0_330 = arith.constant 0 : index
    %685 = vector.load %arg10[%c0_328, %c0_329, %c0_330] : memref<3x1x32xf32, #tpu.memory_space<vmem>>, vector<1x1x32xf32>
    %686 = vector.shape_cast %685 : vector<1x1x32xf32> to vector<1x32xf32>
    %687 = vector.broadcast %686 : vector<1x32xf32> to vector<2x32xf32>
    %688 = arith.addf %684, %687 : vector<2x32xf32>
    %c1_331 = arith.constant 1 : index
    %c0_332 = arith.constant 0 : index
    %c0_333 = arith.constant 0 : index
    %689 = vector.load %arg8[%c1_331, %c0_332, %c0_333] : memref<3x32x32xf32, #tpu.memory_space<vmem>>, vector<1x32x32xf32>
    %690 = vector.shape_cast %689 : vector<1x32x32xf32> to vector<32x32xf32>
    %cst_334 = arith.constant dense<0.000000e+00> : vector<2x32xf32>
    %691 = tpu.matmul %676, %690, %cst_334 {dimension_numbers = #tpu.dot_dimension_numbers<[1], [0], [0], [1], [0, 0, 1, 1], [], []>} : vector<2x32xf32>, vector<32x32xf32>, vector<2x32xf32> -> vector<2x32xf32>
    %c1_335 = arith.constant 1 : index
    %c0_336 = arith.constant 0 : index
    %c0_337 = arith.constant 0 : index
    %692 = vector.load %arg10[%c1_335, %c0_336, %c0_337] : memref<3x1x32xf32, #tpu.memory_space<vmem>>, vector<1x1x32xf32>
    %693 = vector.shape_cast %692 : vector<1x1x32xf32> to vector<1x32xf32>
    %694 = vector.broadcast %693 : vector<1x32xf32> to vector<2x32xf32>
    %695 = arith.addf %691, %694 : vector<2x32xf32>
    %c2_338 = arith.constant 2 : index
    %c0_339 = arith.constant 0 : index
    %c0_340 = arith.constant 0 : index
    %696 = vector.load %arg8[%c2_338, %c0_339, %c0_340] : memref<3x32x32xf32, #tpu.memory_space<vmem>>, vector<1x32x32xf32>
    %697 = vector.shape_cast %696 : vector<1x32x32xf32> to vector<32x32xf32>
    %cst_341 = arith.constant dense<0.000000e+00> : vector<2x32xf32>
    %698 = tpu.matmul %676, %697, %cst_341 {dimension_numbers = #tpu.dot_dimension_numbers<[1], [0], [0], [1], [0, 0, 1, 1], [], []>} : vector<2x32xf32>, vector<32x32xf32>, vector<2x32xf32> -> vector<2x32xf32>
    %c2_342 = arith.constant 2 : index
    %c0_343 = arith.constant 0 : index
    %c0_344 = arith.constant 0 : index
    %699 = vector.load %arg10[%c2_342, %c0_343, %c0_344] : memref<3x1x32xf32, #tpu.memory_space<vmem>>, vector<1x1x32xf32>
    %700 = vector.shape_cast %699 : vector<1x1x32xf32> to vector<1x32xf32>
    %701 = vector.broadcast %700 : vector<1x32xf32> to vector<2x32xf32>
    %702 = arith.addf %698, %701 : vector<2x32xf32>
    %703 = arith.addf %679, %688 : vector<2x32xf32>
    %704 = arith.negf %703 : vector<2x32xf32>
    %705 = math.exp %704 : vector<2x32xf32>
    %cst_345 = arith.constant 1.000000e+00 : f32
    %706 = vector.broadcast %cst_345 : f32 to vector<2x32xf32>
    %707 = arith.addf %706, %705 : vector<2x32xf32>
    %708 = arith.divf %706, %707 : vector<2x32xf32>
    %709 = arith.addf %680, %695 : vector<2x32xf32>
    %710 = arith.negf %709 : vector<2x32xf32>
    %711 = math.exp %710 : vector<2x32xf32>
    %cst_346 = arith.constant 1.000000e+00 : f32
    %712 = vector.broadcast %cst_346 : f32 to vector<2x32xf32>
    %713 = arith.addf %712, %711 : vector<2x32xf32>
    %714 = arith.divf %712, %713 : vector<2x32xf32>
    %715 = arith.mulf %708, %702 : vector<2x32xf32>
    %716 = arith.addf %681, %715 : vector<2x32xf32>
    %717 = math.tanh %716 : vector<2x32xf32>
    %cst_347 = arith.constant 1.000000e+00 : f32
    %718 = vector.broadcast %cst_347 : f32 to vector<2x32xf32>
    %719 = arith.subf %718, %714 : vector<2x32xf32>
    %720 = arith.mulf %719, %717 : vector<2x32xf32>
    %721 = arith.mulf %714, %676 : vector<2x32xf32>
    %722 = arith.addf %720, %721 : vector<2x32xf32>
    %c4_i32_348 = arith.constant 4 : i32
    %723 = vector.broadcast %c4_i32_348 : i32 to vector<2x1xi32>
    %724 = arith.cmpi sgt, %50, %723 : vector<2x1xi32>
    %725 = arith.extui %724 : vector<2x1xi1> to vector<2x1xi32>
    %726 = arith.sitofp %725 : vector<2x1xi32> to vector<2x1xf32>
    %727 = vector.broadcast %726 : vector<2x1xf32> to vector<2x32xf32>
    %728 = arith.mulf %727, %722 : vector<2x32xf32>
    %cst_349 = arith.constant 1.000000e+00 : f32
    %729 = vector.broadcast %cst_349 : f32 to vector<2x1xf32>
    %730 = arith.subf %729, %726 : vector<2x1xf32>
    %731 = vector.broadcast %730 : vector<2x1xf32> to vector<2x32xf32>
    %732 = arith.mulf %731, %676 : vector<2x32xf32>
    %733 = arith.addf %728, %732 : vector<2x32xf32>
    %734 = vector.broadcast %726 : vector<2x1xf32> to vector<2x32xf32>
    %735 = arith.mulf %734, %722 : vector<2x32xf32>
    %736 = vector.extract_strided_slice %35 {offsets = [6, 0], sizes = [2, 32], strides = [1, 1]} : vector<16x32xf32> to vector<2x32xf32>
    %737 = vector.extract_strided_slice %42 {offsets = [6, 0], sizes = [2, 32], strides = [1, 1]} : vector<16x32xf32> to vector<2x32xf32>
    %738 = vector.extract_strided_slice %49 {offsets = [6, 0], sizes = [2, 32], strides = [1, 1]} : vector<16x32xf32> to vector<2x32xf32>
    %c0_350 = arith.constant 0 : index
    %c0_351 = arith.constant 0 : index
    %c0_352 = arith.constant 0 : index
    %739 = vector.load %arg8[%c0_350, %c0_351, %c0_352] : memref<3x32x32xf32, #tpu.memory_space<vmem>>, vector<1x32x32xf32>
    %740 = vector.shape_cast %739 : vector<1x32x32xf32> to vector<32x32xf32>
    %cst_353 = arith.constant dense<0.000000e+00> : vector<2x32xf32>
    %741 = tpu.matmul %733, %740, %cst_353 {dimension_numbers = #tpu.dot_dimension_numbers<[1], [0], [0], [1], [0, 0, 1, 1], [], []>} : vector<2x32xf32>, vector<32x32xf32>, vector<2x32xf32> -> vector<2x32xf32>
    %c0_354 = arith.constant 0 : index
    %c0_355 = arith.constant 0 : index
    %c0_356 = arith.constant 0 : index
    %742 = vector.load %arg10[%c0_354, %c0_355, %c0_356] : memref<3x1x32xf32, #tpu.memory_space<vmem>>, vector<1x1x32xf32>
    %743 = vector.shape_cast %742 : vector<1x1x32xf32> to vector<1x32xf32>
    %744 = vector.broadcast %743 : vector<1x32xf32> to vector<2x32xf32>
    %745 = arith.addf %741, %744 : vector<2x32xf32>
    %c1_357 = arith.constant 1 : index
    %c0_358 = arith.constant 0 : index
    %c0_359 = arith.constant 0 : index
    %746 = vector.load %arg8[%c1_357, %c0_358, %c0_359] : memref<3x32x32xf32, #tpu.memory_space<vmem>>, vector<1x32x32xf32>
    %747 = vector.shape_cast %746 : vector<1x32x32xf32> to vector<32x32xf32>
    %cst_360 = arith.constant dense<0.000000e+00> : vector<2x32xf32>
    %748 = tpu.matmul %733, %747, %cst_360 {dimension_numbers = #tpu.dot_dimension_numbers<[1], [0], [0], [1], [0, 0, 1, 1], [], []>} : vector<2x32xf32>, vector<32x32xf32>, vector<2x32xf32> -> vector<2x32xf32>
    %c1_361 = arith.constant 1 : index
    %c0_362 = arith.constant 0 : index
    %c0_363 = arith.constant 0 : index
    %749 = vector.load %arg10[%c1_361, %c0_362, %c0_363] : memref<3x1x32xf32, #tpu.memory_space<vmem>>, vector<1x1x32xf32>
    %750 = vector.shape_cast %749 : vector<1x1x32xf32> to vector<1x32xf32>
    %751 = vector.broadcast %750 : vector<1x32xf32> to vector<2x32xf32>
    %752 = arith.addf %748, %751 : vector<2x32xf32>
    %c2_364 = arith.constant 2 : index
    %c0_365 = arith.constant 0 : index
    %c0_366 = arith.constant 0 : index
    %753 = vector.load %arg8[%c2_364, %c0_365, %c0_366] : memref<3x32x32xf32, #tpu.memory_space<vmem>>, vector<1x32x32xf32>
    %754 = vector.shape_cast %753 : vector<1x32x32xf32> to vector<32x32xf32>
    %cst_367 = arith.constant dense<0.000000e+00> : vector<2x32xf32>
    %755 = tpu.matmul %733, %754, %cst_367 {dimension_numbers = #tpu.dot_dimension_numbers<[1], [0], [0], [1], [0, 0, 1, 1], [], []>} : vector<2x32xf32>, vector<32x32xf32>, vector<2x32xf32> -> vector<2x32xf32>
    %c2_368 = arith.constant 2 : index
    %c0_369 = arith.constant 0 : index
    %c0_370 = arith.constant 0 : index
    %756 = vector.load %arg10[%c2_368, %c0_369, %c0_370] : memref<3x1x32xf32, #tpu.memory_space<vmem>>, vector<1x1x32xf32>
    %757 = vector.shape_cast %756 : vector<1x1x32xf32> to vector<1x32xf32>
    %758 = vector.broadcast %757 : vector<1x32xf32> to vector<2x32xf32>
    %759 = arith.addf %755, %758 : vector<2x32xf32>
    %760 = arith.addf %736, %745 : vector<2x32xf32>
    %761 = arith.negf %760 : vector<2x32xf32>
    %762 = math.exp %761 : vector<2x32xf32>
    %cst_371 = arith.constant 1.000000e+00 : f32
    %763 = vector.broadcast %cst_371 : f32 to vector<2x32xf32>
    %764 = arith.addf %763, %762 : vector<2x32xf32>
    %765 = arith.divf %763, %764 : vector<2x32xf32>
    %766 = arith.addf %737, %752 : vector<2x32xf32>
    %767 = arith.negf %766 : vector<2x32xf32>
    %768 = math.exp %767 : vector<2x32xf32>
    %cst_372 = arith.constant 1.000000e+00 : f32
    %769 = vector.broadcast %cst_372 : f32 to vector<2x32xf32>
    %770 = arith.addf %769, %768 : vector<2x32xf32>
    %771 = arith.divf %769, %770 : vector<2x32xf32>
    %772 = arith.mulf %765, %759 : vector<2x32xf32>
    %773 = arith.addf %738, %772 : vector<2x32xf32>
    %774 = math.tanh %773 : vector<2x32xf32>
    %cst_373 = arith.constant 1.000000e+00 : f32
    %775 = vector.broadcast %cst_373 : f32 to vector<2x32xf32>
    %776 = arith.subf %775, %771 : vector<2x32xf32>
    %777 = arith.mulf %776, %774 : vector<2x32xf32>
    %778 = arith.mulf %771, %733 : vector<2x32xf32>
    %779 = arith.addf %777, %778 : vector<2x32xf32>
    %c3_i32_374 = arith.constant 3 : i32
    %780 = vector.broadcast %c3_i32_374 : i32 to vector<2x1xi32>
    %781 = arith.cmpi sgt, %50, %780 : vector<2x1xi32>
    %782 = arith.extui %781 : vector<2x1xi1> to vector<2x1xi32>
    %783 = arith.sitofp %782 : vector<2x1xi32> to vector<2x1xf32>
    %784 = vector.broadcast %783 : vector<2x1xf32> to vector<2x32xf32>
    %785 = arith.mulf %784, %779 : vector<2x32xf32>
    %cst_375 = arith.constant 1.000000e+00 : f32
    %786 = vector.broadcast %cst_375 : f32 to vector<2x1xf32>
    %787 = arith.subf %786, %783 : vector<2x1xf32>
    %788 = vector.broadcast %787 : vector<2x1xf32> to vector<2x32xf32>
    %789 = arith.mulf %788, %733 : vector<2x32xf32>
    %790 = arith.addf %785, %789 : vector<2x32xf32>
    %791 = vector.broadcast %783 : vector<2x1xf32> to vector<2x32xf32>
    %792 = arith.mulf %791, %779 : vector<2x32xf32>
    %793 = vector.extract_strided_slice %35 {offsets = [4, 0], sizes = [2, 32], strides = [1, 1]} : vector<16x32xf32> to vector<2x32xf32>
    %794 = vector.extract_strided_slice %42 {offsets = [4, 0], sizes = [2, 32], strides = [1, 1]} : vector<16x32xf32> to vector<2x32xf32>
    %795 = vector.extract_strided_slice %49 {offsets = [4, 0], sizes = [2, 32], strides = [1, 1]} : vector<16x32xf32> to vector<2x32xf32>
    %c0_376 = arith.constant 0 : index
    %c0_377 = arith.constant 0 : index
    %c0_378 = arith.constant 0 : index
    %796 = vector.load %arg8[%c0_376, %c0_377, %c0_378] : memref<3x32x32xf32, #tpu.memory_space<vmem>>, vector<1x32x32xf32>
    %797 = vector.shape_cast %796 : vector<1x32x32xf32> to vector<32x32xf32>
    %cst_379 = arith.constant dense<0.000000e+00> : vector<2x32xf32>
    %798 = tpu.matmul %790, %797, %cst_379 {dimension_numbers = #tpu.dot_dimension_numbers<[1], [0], [0], [1], [0, 0, 1, 1], [], []>} : vector<2x32xf32>, vector<32x32xf32>, vector<2x32xf32> -> vector<2x32xf32>
    %c0_380 = arith.constant 0 : index
    %c0_381 = arith.constant 0 : index
    %c0_382 = arith.constant 0 : index
    %799 = vector.load %arg10[%c0_380, %c0_381, %c0_382] : memref<3x1x32xf32, #tpu.memory_space<vmem>>, vector<1x1x32xf32>
    %800 = vector.shape_cast %799 : vector<1x1x32xf32> to vector<1x32xf32>
    %801 = vector.broadcast %800 : vector<1x32xf32> to vector<2x32xf32>
    %802 = arith.addf %798, %801 : vector<2x32xf32>
    %c1_383 = arith.constant 1 : index
    %c0_384 = arith.constant 0 : index
    %c0_385 = arith.constant 0 : index
    %803 = vector.load %arg8[%c1_383, %c0_384, %c0_385] : memref<3x32x32xf32, #tpu.memory_space<vmem>>, vector<1x32x32xf32>
    %804 = vector.shape_cast %803 : vector<1x32x32xf32> to vector<32x32xf32>
    %cst_386 = arith.constant dense<0.000000e+00> : vector<2x32xf32>
    %805 = tpu.matmul %790, %804, %cst_386 {dimension_numbers = #tpu.dot_dimension_numbers<[1], [0], [0], [1], [0, 0, 1, 1], [], []>} : vector<2x32xf32>, vector<32x32xf32>, vector<2x32xf32> -> vector<2x32xf32>
    %c1_387 = arith.constant 1 : index
    %c0_388 = arith.constant 0 : index
    %c0_389 = arith.constant 0 : index
    %806 = vector.load %arg10[%c1_387, %c0_388, %c0_389] : memref<3x1x32xf32, #tpu.memory_space<vmem>>, vector<1x1x32xf32>
    %807 = vector.shape_cast %806 : vector<1x1x32xf32> to vector<1x32xf32>
    %808 = vector.broadcast %807 : vector<1x32xf32> to vector<2x32xf32>
    %809 = arith.addf %805, %808 : vector<2x32xf32>
    %c2_390 = arith.constant 2 : index
    %c0_391 = arith.constant 0 : index
    %c0_392 = arith.constant 0 : index
    %810 = vector.load %arg8[%c2_390, %c0_391, %c0_392] : memref<3x32x32xf32, #tpu.memory_space<vmem>>, vector<1x32x32xf32>
    %811 = vector.shape_cast %810 : vector<1x32x32xf32> to vector<32x32xf32>
    %cst_393 = arith.constant dense<0.000000e+00> : vector<2x32xf32>
    %812 = tpu.matmul %790, %811, %cst_393 {dimension_numbers = #tpu.dot_dimension_numbers<[1], [0], [0], [1], [0, 0, 1, 1], [], []>} : vector<2x32xf32>, vector<32x32xf32>, vector<2x32xf32> -> vector<2x32xf32>
    %c2_394 = arith.constant 2 : index
    %c0_395 = arith.constant 0 : index
    %c0_396 = arith.constant 0 : index
    %813 = vector.load %arg10[%c2_394, %c0_395, %c0_396] : memref<3x1x32xf32, #tpu.memory_space<vmem>>, vector<1x1x32xf32>
    %814 = vector.shape_cast %813 : vector<1x1x32xf32> to vector<1x32xf32>
    %815 = vector.broadcast %814 : vector<1x32xf32> to vector<2x32xf32>
    %816 = arith.addf %812, %815 : vector<2x32xf32>
    %817 = arith.addf %793, %802 : vector<2x32xf32>
    %818 = arith.negf %817 : vector<2x32xf32>
    %819 = math.exp %818 : vector<2x32xf32>
    %cst_397 = arith.constant 1.000000e+00 : f32
    %820 = vector.broadcast %cst_397 : f32 to vector<2x32xf32>
    %821 = arith.addf %820, %819 : vector<2x32xf32>
    %822 = arith.divf %820, %821 : vector<2x32xf32>
    %823 = arith.addf %794, %809 : vector<2x32xf32>
    %824 = arith.negf %823 : vector<2x32xf32>
    %825 = math.exp %824 : vector<2x32xf32>
    %cst_398 = arith.constant 1.000000e+00 : f32
    %826 = vector.broadcast %cst_398 : f32 to vector<2x32xf32>
    %827 = arith.addf %826, %825 : vector<2x32xf32>
    %828 = arith.divf %826, %827 : vector<2x32xf32>
    %829 = arith.mulf %822, %816 : vector<2x32xf32>
    %830 = arith.addf %795, %829 : vector<2x32xf32>
    %831 = math.tanh %830 : vector<2x32xf32>
    %cst_399 = arith.constant 1.000000e+00 : f32
    %832 = vector.broadcast %cst_399 : f32 to vector<2x32xf32>
    %833 = arith.subf %832, %828 : vector<2x32xf32>
    %834 = arith.mulf %833, %831 : vector<2x32xf32>
    %835 = arith.mulf %828, %790 : vector<2x32xf32>
    %836 = arith.addf %834, %835 : vector<2x32xf32>
    %c2_i32_400 = arith.constant 2 : i32
    %837 = vector.broadcast %c2_i32_400 : i32 to vector<2x1xi32>
    %838 = arith.cmpi sgt, %50, %837 : vector<2x1xi32>
    %839 = arith.extui %838 : vector<2x1xi1> to vector<2x1xi32>
    %840 = arith.sitofp %839 : vector<2x1xi32> to vector<2x1xf32>
    %841 = vector.broadcast %840 : vector<2x1xf32> to vector<2x32xf32>
    %842 = arith.mulf %841, %836 : vector<2x32xf32>
    %cst_401 = arith.constant 1.000000e+00 : f32
    %843 = vector.broadcast %cst_401 : f32 to vector<2x1xf32>
    %844 = arith.subf %843, %840 : vector<2x1xf32>
    %845 = vector.broadcast %844 : vector<2x1xf32> to vector<2x32xf32>
    %846 = arith.mulf %845, %790 : vector<2x32xf32>
    %847 = arith.addf %842, %846 : vector<2x32xf32>
    %848 = vector.broadcast %840 : vector<2x1xf32> to vector<2x32xf32>
    %849 = arith.mulf %848, %836 : vector<2x32xf32>
    %850 = vector.extract_strided_slice %35 {offsets = [2, 0], sizes = [2, 32], strides = [1, 1]} : vector<16x32xf32> to vector<2x32xf32>
    %851 = vector.extract_strided_slice %42 {offsets = [2, 0], sizes = [2, 32], strides = [1, 1]} : vector<16x32xf32> to vector<2x32xf32>
    %852 = vector.extract_strided_slice %49 {offsets = [2, 0], sizes = [2, 32], strides = [1, 1]} : vector<16x32xf32> to vector<2x32xf32>
    %c0_402 = arith.constant 0 : index
    %c0_403 = arith.constant 0 : index
    %c0_404 = arith.constant 0 : index
    %853 = vector.load %arg8[%c0_402, %c0_403, %c0_404] : memref<3x32x32xf32, #tpu.memory_space<vmem>>, vector<1x32x32xf32>
    %854 = vector.shape_cast %853 : vector<1x32x32xf32> to vector<32x32xf32>
    %cst_405 = arith.constant dense<0.000000e+00> : vector<2x32xf32>
    %855 = tpu.matmul %847, %854, %cst_405 {dimension_numbers = #tpu.dot_dimension_numbers<[1], [0], [0], [1], [0, 0, 1, 1], [], []>} : vector<2x32xf32>, vector<32x32xf32>, vector<2x32xf32> -> vector<2x32xf32>
    %c0_406 = arith.constant 0 : index
    %c0_407 = arith.constant 0 : index
    %c0_408 = arith.constant 0 : index
    %856 = vector.load %arg10[%c0_406, %c0_407, %c0_408] : memref<3x1x32xf32, #tpu.memory_space<vmem>>, vector<1x1x32xf32>
    %857 = vector.shape_cast %856 : vector<1x1x32xf32> to vector<1x32xf32>
    %858 = vector.broadcast %857 : vector<1x32xf32> to vector<2x32xf32>
    %859 = arith.addf %855, %858 : vector<2x32xf32>
    %c1_409 = arith.constant 1 : index
    %c0_410 = arith.constant 0 : index
    %c0_411 = arith.constant 0 : index
    %860 = vector.load %arg8[%c1_409, %c0_410, %c0_411] : memref<3x32x32xf32, #tpu.memory_space<vmem>>, vector<1x32x32xf32>
    %861 = vector.shape_cast %860 : vector<1x32x32xf32> to vector<32x32xf32>
    %cst_412 = arith.constant dense<0.000000e+00> : vector<2x32xf32>
    %862 = tpu.matmul %847, %861, %cst_412 {dimension_numbers = #tpu.dot_dimension_numbers<[1], [0], [0], [1], [0, 0, 1, 1], [], []>} : vector<2x32xf32>, vector<32x32xf32>, vector<2x32xf32> -> vector<2x32xf32>
    %c1_413 = arith.constant 1 : index
    %c0_414 = arith.constant 0 : index
    %c0_415 = arith.constant 0 : index
    %863 = vector.load %arg10[%c1_413, %c0_414, %c0_415] : memref<3x1x32xf32, #tpu.memory_space<vmem>>, vector<1x1x32xf32>
    %864 = vector.shape_cast %863 : vector<1x1x32xf32> to vector<1x32xf32>
    %865 = vector.broadcast %864 : vector<1x32xf32> to vector<2x32xf32>
    %866 = arith.addf %862, %865 : vector<2x32xf32>
    %c2_416 = arith.constant 2 : index
    %c0_417 = arith.constant 0 : index
    %c0_418 = arith.constant 0 : index
    %867 = vector.load %arg8[%c2_416, %c0_417, %c0_418] : memref<3x32x32xf32, #tpu.memory_space<vmem>>, vector<1x32x32xf32>
    %868 = vector.shape_cast %867 : vector<1x32x32xf32> to vector<32x32xf32>
    %cst_419 = arith.constant dense<0.000000e+00> : vector<2x32xf32>
    %869 = tpu.matmul %847, %868, %cst_419 {dimension_numbers = #tpu.dot_dimension_numbers<[1], [0], [0], [1], [0, 0, 1, 1], [], []>} : vector<2x32xf32>, vector<32x32xf32>, vector<2x32xf32> -> vector<2x32xf32>
    %c2_420 = arith.constant 2 : index
    %c0_421 = arith.constant 0 : index
    %c0_422 = arith.constant 0 : index
    %870 = vector.load %arg10[%c2_420, %c0_421, %c0_422] : memref<3x1x32xf32, #tpu.memory_space<vmem>>, vector<1x1x32xf32>
    %871 = vector.shape_cast %870 : vector<1x1x32xf32> to vector<1x32xf32>
    %872 = vector.broadcast %871 : vector<1x32xf32> to vector<2x32xf32>
    %873 = arith.addf %869, %872 : vector<2x32xf32>
    %874 = arith.addf %850, %859 : vector<2x32xf32>
    %875 = arith.negf %874 : vector<2x32xf32>
    %876 = math.exp %875 : vector<2x32xf32>
    %cst_423 = arith.constant 1.000000e+00 : f32
    %877 = vector.broadcast %cst_423 : f32 to vector<2x32xf32>
    %878 = arith.addf %877, %876 : vector<2x32xf32>
    %879 = arith.divf %877, %878 : vector<2x32xf32>
    %880 = arith.addf %851, %866 : vector<2x32xf32>
    %881 = arith.negf %880 : vector<2x32xf32>
    %882 = math.exp %881 : vector<2x32xf32>
    %cst_424 = arith.constant 1.000000e+00 : f32
    %883 = vector.broadcast %cst_424 : f32 to vector<2x32xf32>
    %884 = arith.addf %883, %882 : vector<2x32xf32>
    %885 = arith.divf %883, %884 : vector<2x32xf32>
    %886 = arith.mulf %879, %873 : vector<2x32xf32>
    %887 = arith.addf %852, %886 : vector<2x32xf32>
    %888 = math.tanh %887 : vector<2x32xf32>
    %cst_425 = arith.constant 1.000000e+00 : f32
    %889 = vector.broadcast %cst_425 : f32 to vector<2x32xf32>
    %890 = arith.subf %889, %885 : vector<2x32xf32>
    %891 = arith.mulf %890, %888 : vector<2x32xf32>
    %892 = arith.mulf %885, %847 : vector<2x32xf32>
    %893 = arith.addf %891, %892 : vector<2x32xf32>
    %c1_i32_426 = arith.constant 1 : i32
    %894 = vector.broadcast %c1_i32_426 : i32 to vector<2x1xi32>
    %895 = arith.cmpi sgt, %50, %894 : vector<2x1xi32>
    %896 = arith.extui %895 : vector<2x1xi1> to vector<2x1xi32>
    %897 = arith.sitofp %896 : vector<2x1xi32> to vector<2x1xf32>
    %898 = vector.broadcast %897 : vector<2x1xf32> to vector<2x32xf32>
    %899 = arith.mulf %898, %893 : vector<2x32xf32>
    %cst_427 = arith.constant 1.000000e+00 : f32
    %900 = vector.broadcast %cst_427 : f32 to vector<2x1xf32>
    %901 = arith.subf %900, %897 : vector<2x1xf32>
    %902 = vector.broadcast %901 : vector<2x1xf32> to vector<2x32xf32>
    %903 = arith.mulf %902, %847 : vector<2x32xf32>
    %904 = arith.addf %899, %903 : vector<2x32xf32>
    %905 = vector.broadcast %897 : vector<2x1xf32> to vector<2x32xf32>
    %906 = arith.mulf %905, %893 : vector<2x32xf32>
    %907 = vector.extract_strided_slice %35 {offsets = [0, 0], sizes = [2, 32], strides = [1, 1]} : vector<16x32xf32> to vector<2x32xf32>
    %908 = vector.extract_strided_slice %42 {offsets = [0, 0], sizes = [2, 32], strides = [1, 1]} : vector<16x32xf32> to vector<2x32xf32>
    %909 = vector.extract_strided_slice %49 {offsets = [0, 0], sizes = [2, 32], strides = [1, 1]} : vector<16x32xf32> to vector<2x32xf32>
    %c0_428 = arith.constant 0 : index
    %c0_429 = arith.constant 0 : index
    %c0_430 = arith.constant 0 : index
    %910 = vector.load %arg8[%c0_428, %c0_429, %c0_430] : memref<3x32x32xf32, #tpu.memory_space<vmem>>, vector<1x32x32xf32>
    %911 = vector.shape_cast %910 : vector<1x32x32xf32> to vector<32x32xf32>
    %cst_431 = arith.constant dense<0.000000e+00> : vector<2x32xf32>
    %912 = tpu.matmul %904, %911, %cst_431 {dimension_numbers = #tpu.dot_dimension_numbers<[1], [0], [0], [1], [0, 0, 1, 1], [], []>} : vector<2x32xf32>, vector<32x32xf32>, vector<2x32xf32> -> vector<2x32xf32>
    %c0_432 = arith.constant 0 : index
    %c0_433 = arith.constant 0 : index
    %c0_434 = arith.constant 0 : index
    %913 = vector.load %arg10[%c0_432, %c0_433, %c0_434] : memref<3x1x32xf32, #tpu.memory_space<vmem>>, vector<1x1x32xf32>
    %914 = vector.shape_cast %913 : vector<1x1x32xf32> to vector<1x32xf32>
    %915 = vector.broadcast %914 : vector<1x32xf32> to vector<2x32xf32>
    %916 = arith.addf %912, %915 : vector<2x32xf32>
    %c1_435 = arith.constant 1 : index
    %c0_436 = arith.constant 0 : index
    %c0_437 = arith.constant 0 : index
    %917 = vector.load %arg8[%c1_435, %c0_436, %c0_437] : memref<3x32x32xf32, #tpu.memory_space<vmem>>, vector<1x32x32xf32>
    %918 = vector.shape_cast %917 : vector<1x32x32xf32> to vector<32x32xf32>
    %cst_438 = arith.constant dense<0.000000e+00> : vector<2x32xf32>
    %919 = tpu.matmul %904, %918, %cst_438 {dimension_numbers = #tpu.dot_dimension_numbers<[1], [0], [0], [1], [0, 0, 1, 1], [], []>} : vector<2x32xf32>, vector<32x32xf32>, vector<2x32xf32> -> vector<2x32xf32>
    %c1_439 = arith.constant 1 : index
    %c0_440 = arith.constant 0 : index
    %c0_441 = arith.constant 0 : index
    %920 = vector.load %arg10[%c1_439, %c0_440, %c0_441] : memref<3x1x32xf32, #tpu.memory_space<vmem>>, vector<1x1x32xf32>
    %921 = vector.shape_cast %920 : vector<1x1x32xf32> to vector<1x32xf32>
    %922 = vector.broadcast %921 : vector<1x32xf32> to vector<2x32xf32>
    %923 = arith.addf %919, %922 : vector<2x32xf32>
    %c2_442 = arith.constant 2 : index
    %c0_443 = arith.constant 0 : index
    %c0_444 = arith.constant 0 : index
    %924 = vector.load %arg8[%c2_442, %c0_443, %c0_444] : memref<3x32x32xf32, #tpu.memory_space<vmem>>, vector<1x32x32xf32>
    %925 = vector.shape_cast %924 : vector<1x32x32xf32> to vector<32x32xf32>
    %cst_445 = arith.constant dense<0.000000e+00> : vector<2x32xf32>
    %926 = tpu.matmul %904, %925, %cst_445 {dimension_numbers = #tpu.dot_dimension_numbers<[1], [0], [0], [1], [0, 0, 1, 1], [], []>} : vector<2x32xf32>, vector<32x32xf32>, vector<2x32xf32> -> vector<2x32xf32>
    %c2_446 = arith.constant 2 : index
    %c0_447 = arith.constant 0 : index
    %c0_448 = arith.constant 0 : index
    %927 = vector.load %arg10[%c2_446, %c0_447, %c0_448] : memref<3x1x32xf32, #tpu.memory_space<vmem>>, vector<1x1x32xf32>
    %928 = vector.shape_cast %927 : vector<1x1x32xf32> to vector<1x32xf32>
    %929 = vector.broadcast %928 : vector<1x32xf32> to vector<2x32xf32>
    %930 = arith.addf %926, %929 : vector<2x32xf32>
    %931 = arith.addf %907, %916 : vector<2x32xf32>
    %932 = arith.negf %931 : vector<2x32xf32>
    %933 = math.exp %932 : vector<2x32xf32>
    %cst_449 = arith.constant 1.000000e+00 : f32
    %934 = vector.broadcast %cst_449 : f32 to vector<2x32xf32>
    %935 = arith.addf %934, %933 : vector<2x32xf32>
    %936 = arith.divf %934, %935 : vector<2x32xf32>
    %937 = arith.addf %908, %923 : vector<2x32xf32>
    %938 = arith.negf %937 : vector<2x32xf32>
    %939 = math.exp %938 : vector<2x32xf32>
    %cst_450 = arith.constant 1.000000e+00 : f32
    %940 = vector.broadcast %cst_450 : f32 to vector<2x32xf32>
    %941 = arith.addf %940, %939 : vector<2x32xf32>
    %942 = arith.divf %940, %941 : vector<2x32xf32>
    %943 = arith.mulf %936, %930 : vector<2x32xf32>
    %944 = arith.addf %909, %943 : vector<2x32xf32>
    %945 = math.tanh %944 : vector<2x32xf32>
    %cst_451 = arith.constant 1.000000e+00 : f32
    %946 = vector.broadcast %cst_451 : f32 to vector<2x32xf32>
    %947 = arith.subf %946, %942 : vector<2x32xf32>
    %948 = arith.mulf %947, %945 : vector<2x32xf32>
    %949 = arith.mulf %942, %904 : vector<2x32xf32>
    %950 = arith.addf %948, %949 : vector<2x32xf32>
    %c0_i32_452 = arith.constant 0 : i32
    %951 = vector.broadcast %c0_i32_452 : i32 to vector<2x1xi32>
    %952 = arith.cmpi sgt, %50, %951 : vector<2x1xi32>
    %953 = arith.extui %952 : vector<2x1xi1> to vector<2x1xi32>
    %954 = arith.sitofp %953 : vector<2x1xi32> to vector<2x1xf32>
    %955 = vector.broadcast %954 : vector<2x1xf32> to vector<2x32xf32>
    %956 = arith.mulf %955, %950 : vector<2x32xf32>
    %cst_453 = arith.constant 1.000000e+00 : f32
    %957 = vector.broadcast %cst_453 : f32 to vector<2x1xf32>
    %958 = arith.subf %957, %954 : vector<2x1xf32>
    %959 = vector.broadcast %958 : vector<2x1xf32> to vector<2x32xf32>
    %960 = arith.mulf %959, %904 : vector<2x32xf32>
    %961 = arith.addf %956, %960 : vector<2x32xf32>
    %962 = vector.broadcast %954 : vector<2x1xf32> to vector<2x32xf32>
    %963 = arith.mulf %962, %950 : vector<2x32xf32>
    %964 = arith.addf %108, %963 : vector<2x32xf32>
    %965 = arith.addf %165, %906 : vector<2x32xf32>
    %966 = arith.addf %222, %849 : vector<2x32xf32>
    %967 = arith.addf %279, %792 : vector<2x32xf32>
    %968 = arith.addf %336, %735 : vector<2x32xf32>
    %969 = arith.addf %393, %678 : vector<2x32xf32>
    %970 = arith.addf %450, %621 : vector<2x32xf32>
    %971 = arith.addf %507, %564 : vector<2x32xf32>
    %972 = vector.shape_cast %964 : vector<2x32xf32> to vector<1x2x32xf32>
    %973 = vector.shape_cast %965 : vector<2x32xf32> to vector<1x2x32xf32>
    %974 = vector.shape_cast %966 : vector<2x32xf32> to vector<1x2x32xf32>
    %975 = vector.shape_cast %967 : vector<2x32xf32> to vector<1x2x32xf32>
    %976 = vector.shape_cast %968 : vector<2x32xf32> to vector<1x2x32xf32>
    %977 = vector.shape_cast %969 : vector<2x32xf32> to vector<1x2x32xf32>
    %978 = vector.shape_cast %970 : vector<2x32xf32> to vector<1x2x32xf32>
    %979 = vector.shape_cast %971 : vector<2x32xf32> to vector<1x2x32xf32>
    %980 = tpu.concatenate %972, %973, %974, %975, %976, %977, %978, %979 in 0 : vector<1x2x32xf32>, vector<1x2x32xf32>, vector<1x2x32xf32>, vector<1x2x32xf32>, vector<1x2x32xf32>, vector<1x2x32xf32>, vector<1x2x32xf32>, vector<1x2x32xf32> -> vector<8x2x32xf32>
    %c0_454 = arith.constant 0 : index
    %c0_455 = arith.constant 0 : index
    %c0_456 = arith.constant 0 : index
    %981 = vector.load %arg11[%c0_454, %c0_455, %c0_456] : memref<8x2x32xf32, #tpu.memory_space<vmem>>, vector<8x2x32xf32>
    tpu.vector_store %arg11[%c0_454, %c0_455, %c0_456], %980 {strides = array<i32>} : memref<8x2x32xf32, #tpu.memory_space<vmem>>, vector<8x2x32xf32>,
    %982 = arith.addf %505, %961 : vector<2x32xf32>
    %983 = vector.shape_cast %982 : vector<2x32xf32> to vector<1x2x32xf32>
    %c0_457 = arith.constant 0 : index
    %c0_458 = arith.constant 0 : index
    %c0_459 = arith.constant 0 : index
    %984 = vector.load %arg12[%c0_457, %c0_458, %c0_459] : memref<1x2x32xf32, #tpu.memory_space<vmem>>, vector<1x2x32xf32>
    tpu.vector_store %arg12[%c0_457, %c0_458, %c0_459], %983 {strides = array<i32>} : memref<1x2x32xf32, #tpu.memory_space<vmem>>, vector<1x2x32xf32>,
    return
  }
}

</mosaic_0001>

<llo_original>
// kernel: tpu_custom_call.1
$region0: #{tpu_custom_call.1}
  #allocation0 [shape = 'u32[]', space=smem, size = 0x4, offset = 0x4, fixed_abs, tag = 'smem constant byte address 0x4 - core index']
  #allocation1 [shape = 'u32[144,128]{1,0:T(1,128)}', space=vmem, size = 0x12000, scoped, tag = 'internal scratch']
  %s0 = inlined_call_operand.vmem [shape: s32[16,1], index: 0, kind: input, shape index: {}]
  %s1 = inlined_call_operand.vmem [shape: s32[2,1], index: 1, kind: input, shape index: {}]
  %s2 = inlined_call_operand.vmem [shape: f32[16,32], index: 2, kind: input, shape index: {}]
  %s3 = inlined_call_operand.hbm [shape: f32[3,32,32], index: 3, kind: input, shape index: {}]
  %s4 = inlined_call_operand.hbm [shape: f32[3,32,32], index: 4, kind: input, shape index: {}]
  %s5 = inlined_call_operand.vmem [shape: f32[3,1,32], index: 5, kind: input, shape index: {}]
  %s6 = inlined_call_operand.vmem [shape: f32[3,1,32], index: 6, kind: input, shape index: {}]
  %s7 = inlined_call_operand.hbm [shape: f32[3,32,32], index: 7, kind: input, shape index: {}]
  %s8 = inlined_call_operand.hbm [shape: f32[3,32,32], index: 8, kind: input, shape index: {}]
  %s9 = inlined_call_operand.vmem [shape: f32[3,1,32], index: 9, kind: input, shape index: {}]
  %s10 = inlined_call_operand.vmem [shape: f32[3,1,32], index: 10, kind: input, shape index: {}]
  %s11 = inlined_call_operand.hbm [shape: f32[8,2,32], index: 11, kind: output, shape index: {0}]
  %s12 = inlined_call_operand.hbm [shape: f32[1,2,32], index: 12, kind: output, shape index: {1}]
  %13 = xla_tuple %s11, %s12
  %s14 = sld [smem:[#allocation0]]
  $region78: #{tpu_custom_call.1} parent=0
    _
  %s16 = ssub.s32 1, %s14
  %s17 = scalar_select 0, %s16, %s14
  $region1: #{tpu_custom_call.1} parent=0
    #allocation2 [shape = 'u8[49152]{0}', space=vmem, size = 0xc000, scoped, tag = 'input window, operand 3, single buffered']
    #allocation3 [shape = 's32[1]{0}', space=sflag, size = 0x4, scoped, tag = 'scoped memory for tpu_custom_call.1']
    #allocation4 [shape = 's32[1]{0}', space=sflag, size = 0x4, scoped, tag = 'scoped memory for tpu_custom_call.1']
    #allocation5 [shape = 'u8[49152]{0}', space=vmem, size = 0xc000, scoped, tag = 'input window, operand 4, single buffered']
    #allocation6 [shape = 's32[1]{0}', space=sflag, size = 0x4, scoped, tag = 'scoped memory for tpu_custom_call.1']
    #allocation7 [shape = 'u8[49152]{0}', space=vmem, size = 0xc000, scoped, tag = 'input window, operand 7, single buffered']
    #allocation8 [shape = 'u8[49152]{0}', space=vmem, size = 0xc000, scoped, tag = 'input window, operand 8, single buffered']
    #allocation9 [shape = 's32[1]{0}', space=sflag, size = 0x4, scoped, tag = 'scoped memory for tpu_custom_call.1']
    #allocation10 [shape = 'u8[8192]{0}', space=vmem, size = 0x2000, scoped, tag = 'output window, operand 0, single buffered']
    #allocation11 [shape = 'u8[1024]{0}', space=vmem, size = 0x400, scoped, tag = 'output window, operand 1, single buffered']
    #allocation12 [shape = 's32[1]{0}', space=sflag, size = 0x4, scoped, tag = 'scoped memory for tpu_custom_call.1']
    %18 = vsyncpa [#allocation3], 0
    %19 = vsyncpa [#allocation6], 0
    %20 = vsyncpa [#allocation9], 0
    %21 = vsyncpa [#allocation4], 0
    %22 = vsyncpa [#allocation12], 0
    // Predicated region
    $region2: #{tpu_custom_call.1} parent=1 // pred_check
      _
    $region3: #{tpu_custom_call.1} parent=1 // pred_check_branch
      %24 = sbr.rel (0) target = $region5
    $region4: #{tpu_custom_call.1} parent=1 // pred_region
      _
    $region5: #{tpu_custom_call.1} parent=1 // pred_fallthru
      _
    // Predicated region
    $region6: #{tpu_custom_call.1} parent=1 // pred_check
      _
    $region7: #{tpu_custom_call.1} parent=1 // pred_check_branch
      %26 = sbr.rel (0) target = $region9
    $region8: #{tpu_custom_call.1} parent=1 // pred_region
      _
    $region9: #{tpu_custom_call.1} parent=1 // pred_fallthru
      _
    // Predicated region
    $region10: #{tpu_custom_call.1} parent=1 // pred_check
      _
    $region11: #{tpu_custom_call.1} parent=1 // pred_check_branch
      %28 = sbr.rel (0) target = $region13
    $region12: #{tpu_custom_call.1} parent=1 // pred_region
      _
    $region13: #{tpu_custom_call.1} parent=1 // pred_fallthru
      _
    // Predicated region
    $region14: #{tpu_custom_call.1} parent=1 // pred_check
      _
    $region15: #{tpu_custom_call.1} parent=1 // pred_check_branch
      %30 = sbr.rel (0) target = $region17
    $region16: #{tpu_custom_call.1} parent=1 // pred_region
      %s32 = ssub.s32 1536, 1536
      %33 = vsyncadd [#allocation3], %s32
      %s34 = sshll.u32 [#allocation2], 4
      %s35 = int_to_ptr.vmem [resolvable:$true] %s34
      %40 = dma.hbm_to_vmem [thread:$0]  %s3, 1536, %s35, [#allocation3], 128, 128, 8
    $region17: #{tpu_custom_call.1} parent=1 // pred_fallthru
      _
    // Predicated region
    $region18: #{tpu_custom_call.1} parent=1 // pred_check
      _
    $region19: #{tpu_custom_call.1} parent=1 // pred_check_branch
      %42 = sbr.rel (0) target = $region21
    $region20: #{tpu_custom_call.1} parent=1 // pred_region
      %s44 = ssub.s32 1536, 1536
      %45 = vsyncadd [#allocation6], %s44
      %s46 = sshll.u32 [#allocation5], 4
      %s47 = int_to_ptr.vmem [resolvable:$true] %s46
      %52 = dma.hbm_to_vmem [thread:$0]  %s4, 1536, %s47, [#allocation6], 128, 128, 8
    $region21: #{tpu_custom_call.1} parent=1 // pred_fallthru
      _
    // Predicated region
    $region22: #{tpu_custom_call.1} parent=1 // pred_check
      _
    $region23: #{tpu_custom_call.1} parent=1 // pred_check_branch
      %54 = sbr.rel (0) target = $region25
    $region24: #{tpu_custom_call.1} parent=1 // pred_region
      _
    $region25: #{tpu_custom_call.1} parent=1 // pred_fallthru
      _
    // Predicated region
    $region26: #{tpu_custom_call.1} parent=1 // pred_check
      _
    $region27: #{tpu_custom_call.1} parent=1 // pred_check_branch
      %56 = sbr.rel (0) target = $region29
    $region28: #{tpu_custom_call.1} parent=1 // pred_region
      _
    $region29: #{tpu_custom_call.1} parent=1 // pred_fallthru
      _
    // Predicated region
    $region30: #{tpu_custom_call.1} parent=1 // pred_check
      _
    $region31: #{tpu_custom_call.1} parent=1 // pred_check_branch
      %58 = sbr.rel (0) target = $region33
    $region32: #{tpu_custom_call.1} parent=1 // pred_region
      %s60 = ssub.s32 1536, 1536
      %61 = vsyncadd [#allocation6], %s60
      %s62 = sshll.u32 [#allocation7], 4
      %s63 = int_to_ptr.vmem [resolvable:$true] %s62
      %68 = dma.hbm_to_vmem [thread:$0]  %s7, 1536, %s63, [#allocation6], 128, 128, 8
    $region33: #{tpu_custom_call.1} parent=1 // pred_fallthru
      _
    // Predicated region
    $region34: #{tpu_custom_call.1} parent=1 // pred_check
      _
    $region35: #{tpu_custom_call.1} parent=1 // pred_check_branch
      %70 = sbr.rel (0) target = $region37
    $region36: #{tpu_custom_call.1} parent=1 // pred_region
      %s72 = ssub.s32 1536, 1536
      %73 = vsyncadd [#allocation9], %s72
      %s74 = sshll.u32 [#allocation8], 4
      %s75 = int_to_ptr.vmem [resolvable:$true] %s74
      %80 = dma.hbm_to_vmem [thread:$0]  %s8, 1536, %s75, [#allocation9], 128, 128, 8
    $region37: #{tpu_custom_call.1} parent=1 // pred_fallthru
      _
    // Predicated region
    $region38: #{tpu_custom_call.1} parent=1 // pred_check
      _
    $region39: #{tpu_custom_call.1} parent=1 // pred_check_branch
      %82 = sbr.rel (0) target = $region41
    $region40: #{tpu_custom_call.1} parent=1 // pred_region
      _
    $region41: #{tpu_custom_call.1} parent=1 // pred_fallthru
      _
    // Predicated region
    $region42: #{tpu_custom_call.1} parent=1 // pred_check
      _
    $region43: #{tpu_custom_call.1} parent=1 // pred_check_branch
      %84 = sbr.rel (0) target = $region45
    $region44: #{tpu_custom_call.1} parent=1 // pred_region
      _
    $region45: #{tpu_custom_call.1} parent=1 // pred_fallthru
      _
    // Predicated region
    $region46: #{tpu_custom_call.1} parent=1 // pred_check
      _
    $region47: #{tpu_custom_call.1} parent=1 // pred_check_branch
      %86 = sbr.rel (0) target = $region49
    $region48: #{tpu_custom_call.1} parent=1 // pred_region
      %87 = dma.done [#allocation3], 1536
    $region49: #{tpu_custom_call.1} parent=1 // pred_fallthru
      _
    // Predicated region
    $region50: #{tpu_custom_call.1} parent=1 // pred_check
      _
    $region51: #{tpu_custom_call.1} parent=1 // pred_check_branch
      %89 = sbr.rel (0) target = $region53
    $region52: #{tpu_custom_call.1} parent=1 // pred_region
      %90 = dma.done [#allocation6], 1536
    $region53: #{tpu_custom_call.1} parent=1 // pred_fallthru
      _
    // Predicated region
    $region54: #{tpu_custom_call.1} parent=1 // pred_check
      _
    $region55: #{tpu_custom_call.1} parent=1 // pred_check_branch
      %92 = sbr.rel (0) target = $region57
    $region56: #{tpu_custom_call.1} parent=1 // pred_region
      %93 = dma.done [#allocation6], 1536
    $region57: #{tpu_custom_call.1} parent=1 // pred_fallthru
      _
    // Predicated region
    $region58: #{tpu_custom_call.1} parent=1 // pred_check
      _
    $region59: #{tpu_custom_call.1} parent=1 // pred_check_branch
      %95 = sbr.rel (0) target = $region61
    $region60: #{tpu_custom_call.1} parent=1 // pred_region
      %96 = dma.done [#allocation9], 1536
    $region61: #{tpu_custom_call.1} parent=1 // pred_fallthru
      _
    %v97 = vld [vmem:[%s0] sm:$0xff]
    %v98 = vld [vmem:[%s0 + $0x8] sm:$0xff]
    %v99 = vlaneseq
    %v100 = vand.u32 %v99, 127
    %101 = vset.pattern.permute.xlu0 0
    %102 = vperm.xlu0 %101, %v97
    %v103 = vpop.permute.xlu0 %102
    %104 = vset.pattern.permute.xlu0 0
    %105 = vperm.xlu0 %104, %v98
    %v106 = vpop.permute.xlu0 %105
    %vm107 = vcmp.eq.s32.totalorder %v103, %v100
    %vm108 = vcmp.eq.s32.totalorder %v106, %v100
    %v109 = vsel %vm107, 1, 0
    %v110 = vsel %vm108, 1, 0
    %v111 = vcvt.s32.f32 %v109
    %v112 = vcvt.s32.f32 %v110
    %v113 = vld [vmem:[%s2] sm:$0xff]
    %v114 = vld [vmem:[%s2 + $0x8] sm:$0xff]
    %vm115 = vcmask 130048
    %v117 = vsel %vm115, %v111, 0
    %v120 = vsel %vm115, %v112, 0
    %122 = vmatprep.subr.mxu0 0.0
    %123 = vmatpush1.msra.mxu0 %v113
    %124 = vmatprep.subr.mxu0 0.0
    %125 = vmatpush1.msra.mxu0 %v114
    %126 = vmatprep.subr.mxu0 0.0
    %127 = vmatpush1.msra.mxu0 0.0
    %128 = vmatprep.subr.mxu0 0.0
    %129 = vmatpush1.msra.mxu0 0.0
    %130 = vmatprep.subr.mxu0 0.0
    %131 = vmatpush1.msra.mxu0 0.0
    %132 = vmatprep.subr.mxu0 0.0
    %133 = vmatpush1.msra.mxu0 0.0
    %134 = vmatprep.subr.mxu0 0.0
    %135 = vmatpush1.msra.mxu0 0.0
    %136 = vmatprep.subr.mxu0 0.0
    %137 = vmatpush1.msra.mxu0 0.0
    %138 = vmatprep.subr.mxu0 0.0
    %139 = vmatpush1.msra.mxu0 0.0
    %140 = vmatprep.subr.mxu0 0.0
    %141 = vmatpush1.msra.mxu0 0.0
    %142 = vmatprep.subr.mxu0 0.0
    %143 = vmatpush1.msra.mxu0 0.0
    %144 = vmatprep.subr.mxu0 0.0
    %145 = vmatpush1.msra.mxu0 0.0
    %146 = vmatprep.subr.mxu0 0.0
    %147 = vmatpush1.msra.mxu0 0.0
    %148 = vmatprep.subr.mxu0 0.0
    %149 = vmatpush1.msra.mxu0 0.0
    %150 = vmatprep.subr.mxu0 0.0
    %151 = vmatpush1.msra.mxu0 0.0
    %152 = vmatprep.subr.mxu0 0.0
    %153 = vmatpush1.msra.mxu0 0.0
    %154 = vmatprep.subr.mxu0 0.0
    %155 = vmatpush1.msra.mxu0 0.0
    %156 = vmatprep.subr.mxu0 0.0
    %157 = vmatpush1.msra.mxu0 0.0
    %158 = vmatprep.subr.mxu0 0.0
    %159 = vmatpush1.msra.mxu0 0.0
    %160 = vmatprep.subr.mxu0 0.0
    %161 = vmatpush1.msra.mxu0 0.0
    %162 = vmatprep.subr.mxu0 0.0
    %163 = vmatpush1.msra.mxu0 0.0
    %164 = vmatprep.subr.mxu0 0.0
    %165 = vmatpush1.msra.mxu0 0.0
    %166 = vmatprep.subr.mxu0 0.0
    %167 = vmatpush1.msra.mxu0 0.0
    %168 = vmatprep.subr.mxu0 0.0
    %169 = vmatpush1.msra.mxu0 0.0
    %170 = vmatprep.subr.mxu0 0.0
    %171 = vmatpush1.msra.mxu0 0.0
    %172 = vmatprep.subr.mxu0 0.0
    %173 = vmatpush1.msra.mxu0 0.0
    %174 = vmatprep.subr.mxu0 0.0
    %175 = vmatpush1.msra.mxu0 0.0
    %176 = vmatprep.subr.mxu0 0.0
    %177 = vmatpush1.msra.mxu0 0.0
    %178 = vmatprep.subr.mxu0 0.0
    %179 = vmatpush1.msra.mxu0 0.0
    %180 = vmatprep.subr.mxu0 0.0
    %181 = vmatpush1.msra.mxu0 0.0
    %182 = vmatprep.subr.mxu0 0.0
    %183 = vmatpush1.msra.mxu0 0.0
    %184 = vmatprep.subr.mxu0 0.0
    %185 = vmatpush1.msra.mxu0 0.0
    %186 = vmatprep.mubr.f32.mxu0 0.0
    %187 = vmatmul.mubr.f32.gmra.mrb[0].mxu0 %v117
    %v188 = vpop.f32.mrb[0].mxu0
    %v189 = vadd.f32 0.0, %v188
    %v190 = vpop.f32.mrb[0].mxu0
    %191 = vmatprep.mubr.f32.mxu0 0.0
    %192 = vmatmul.mubr.f32.gmra.mrb[0].mxu0 %v120
    %v193 = vpop.f32.mrb[0].mxu0
    %v194 = vadd.f32 0.0, %v193
    %v195 = vpop.f32.mrb[0].mxu0
    %196 = vdwg.mxu0
    %v197 = vld [vmem:[#allocation2] sm:$0xff]
    %v198 = vld [vmem:[#allocation2 + $0x8] sm:$0xff]
    %v199 = vld [vmem:[#allocation2 + $0x10] sm:$0xff]
    %v200 = vld [vmem:[#allocation2 + $0x18] sm:$0xff]
    %v201 = vld [vmem:[%s5] sm:$0x1]
    %v203 = vlaneseq
    %v204 = vshrl.u32 %v203, 7
    %v205 = vsub.s32 0, %v204
    %v206 = vrot.slane %v201, %v205
    %vm208 = vcmask 261120
    %v210 = vsel %vm208, %v189, 0
    %v213 = vsel %vm208, %v194, 0
    %215 = vmatprep.subr.mxu0 0.0
    %216 = vmatpush1.msra.mxu0 %v197
    %217 = vmatprep.subr.mxu0 0.0
    %218 = vmatpush1.msra.mxu0 %v198
    %219 = vmatprep.subr.mxu0 0.0
    %220 = vmatpush1.msra.mxu0 %v199
    %221 = vmatprep.subr.mxu0 0.0
    %222 = vmatpush1.msra.mxu0 %v200
    %223 = vmatprep.subr.mxu0 0.0
    %224 = vmatpush1.msra.mxu0 0.0
    %225 = vmatprep.subr.mxu0 0.0
    %226 = vmatpush1.msra.mxu0 0.0
    %227 = vmatprep.subr.mxu0 0.0
    %228 = vmatpush1.msra.mxu0 0.0
    %229 = vmatprep.subr.mxu0 0.0
    %230 = vmatpush1.msra.mxu0 0.0
    %231 = vmatprep.subr.mxu0 0.0
    %232 = vmatpush1.msra.mxu0 0.0
    %233 = vmatprep.subr.mxu0 0.0
    %234 = vmatpush1.msra.mxu0 0.0
    %235 = vmatprep.subr.mxu0 0.0
    %236 = vmatpush1.msra.mxu0 0.0
    %237 = vmatprep.subr.mxu0 0.0
    %238 = vmatpush1.msra.mxu0 0.0
    %239 = vmatprep.subr.mxu0 0.0
    %240 = vmatpush1.msra.mxu0 0.0
    %241 = vmatprep.subr.mxu0 0.0
    %242 = vmatpush1.msra.mxu0 0.0
    %243 = vmatprep.subr.mxu0 0.0
    %244 = vmatpush1.msra.mxu0 0.0
    %245 = vmatprep.subr.mxu0 0.0
    %246 = vmatpush1.msra.mxu0 0.0
    %247 = vmatprep.subr.mxu0 0.0
    %248 = vmatpush1.msra.mxu0 0.0
    %249 = vmatprep.subr.mxu0 0.0
    %250 = vmatpush1.msra.mxu0 0.0
    %251 = vmatprep.subr.mxu0 0.0
    %252 = vmatpush1.msra.mxu0 0.0
    %253 = vmatprep.subr.mxu0 0.0
    %254 = vmatpush1.msra.mxu0 0.0
    %255 = vmatprep.subr.mxu0 0.0
    %256 = vmatpush1.msra.mxu0 0.0
    %257 = vmatprep.subr.mxu0 0.0
    %258 = vmatpush1.msra.mxu0 0.0
    %259 = vmatprep.subr.mxu0 0.0
    %260 = vmatpush1.msra.mxu0 0.0
    %261 = vmatprep.subr.mxu0 0.0
    %262 = vmatpush1.msra.mxu0 0.0
    %263 = vmatprep.subr.mxu0 0.0
    %264 = vmatpush1.msra.mxu0 0.0
    %265 = vmatprep.subr.mxu0 0.0
    %266 = vmatpush1.msra.mxu0 0.0
    %267 = vmatprep.subr.mxu0 0.0
    %268 = vmatpush1.msra.mxu0 0.0
    %269 = vmatprep.subr.mxu0 0.0
    %270 = vmatpush1.msra.mxu0 0.0
    %271 = vmatprep.subr.mxu0 0.0
    %272 = vmatpush1.msra.mxu0 0.0
    %273 = vmatprep.subr.mxu0 0.0
    %274 = vmatpush1.msra.mxu0 0.0
    %275 = vmatprep.subr.mxu0 0.0
    %276 = vmatpush1.msra.mxu0 0.0
    %277 = vmatprep.subr.mxu0 0.0
    %278 = vmatpush1.msra.mxu0 0.0
    %279 = vmatprep.mubr.f32.mxu0 0.0
    %280 = vmatmul.mubr.f32.gmra.mrb[0].mxu0 %v210
    %v281 = vpop.f32.mrb[0].mxu0
    %v282 = vadd.f32 %v206, %v281
    %v283 = vpop.f32.mrb[0].mxu0
    %284 = vmatprep.mubr.f32.mxu0 0.0
    %285 = vmatmul.mubr.f32.gmra.mrb[0].mxu0 %v213
    %v286 = vpop.f32.mrb[0].mxu0
    %v287 = vadd.f32 %v206, %v286
    %v288 = vpop.f32.mrb[0].mxu0
    %289 = vdwg.mxu0
    %s290 = scalar_lea.vmem [#allocation2], 32
    %v291 = vld [vmem:[%s290] sm:$0xff]
    %v292 = vld [vmem:[%s290 + $0x8] sm:$0xff]
    %v293 = vld [vmem:[%s290 + $0x10] sm:$0xff]
    %v294 = vld [vmem:[%s290 + $0x18] sm:$0xff]
    %s295 = scalar_lea.vmem %s5, 1
    %v296 = vld [vmem:[%s295] sm:$0x1]
    %v298 = vlaneseq
    %v299 = vshrl.u32 %v298, 7
    %v300 = vsub.s32 0, %v299
    %v301 = vrot.slane %v296, %v300
    %303 = vmatprep.subr.mxu0 0.0
    %304 = vmatpush1.msra.mxu0 %v291
    %305 = vmatprep.subr.mxu0 0.0
    %306 = vmatpush1.msra.mxu0 %v292
    %307 = vmatprep.subr.mxu0 0.0
    %308 = vmatpush1.msra.mxu0 %v293
    %309 = vmatprep.subr.mxu0 0.0
    %310 = vmatpush1.msra.mxu0 %v294
    %311 = vmatprep.subr.mxu0 0.0
    %312 = vmatpush1.msra.mxu0 0.0
    %313 = vmatprep.subr.mxu0 0.0
    %314 = vmatpush1.msra.mxu0 0.0
    %315 = vmatprep.subr.mxu0 0.0
    %316 = vmatpush1.msra.mxu0 0.0
    %317 = vmatprep.subr.mxu0 0.0
    %318 = vmatpush1.msra.mxu0 0.0
    %319 = vmatprep.subr.mxu0 0.0
    %320 = vmatpush1.msra.mxu0 0.0
    %321 = vmatprep.subr.mxu0 0.0
    %322 = vmatpush1.msra.mxu0 0.0
    %323 = vmatprep.subr.mxu0 0.0
    %324 = vmatpush1.msra.mxu0 0.0
    %325 = vmatprep.subr.mxu0 0.0
    %326 = vmatpush1.msra.mxu0 0.0
    %327 = vmatprep.subr.mxu0 0.0
    %328 = vmatpush1.msra.mxu0 0.0
    %329 = vmatprep.subr.mxu0 0.0
    %330 = vmatpush1.msra.mxu0 0.0
    %331 = vmatprep.subr.mxu0 0.0
    %332 = vmatpush1.msra.mxu0 0.0
    %333 = vmatprep.subr.mxu0 0.0
    %334 = vmatpush1.msra.mxu0 0.0
    %335 = vmatprep.subr.mxu0 0.0
    %336 = vmatpush1.msra.mxu0 0.0
    %337 = vmatprep.subr.mxu0 0.0
    %338 = vmatpush1.msra.mxu0 0.0
    %339 = vmatprep.subr.mxu0 0.0
    %340 = vmatpush1.msra.mxu0 0.0
    %341 = vmatprep.subr.mxu0 0.0
    %342 = vmatpush1.msra.mxu0 0.0
    %343 = vmatprep.subr.mxu0 0.0
    %344 = vmatpush1.msra.mxu0 0.0
    %345 = vmatprep.subr.mxu0 0.0
    %346 = vmatpush1.msra.mxu0 0.0
    %347 = vmatprep.subr.mxu0 0.0
    %348 = vmatpush1.msra.mxu0 0.0
    %349 = vmatprep.subr.mxu0 0.0
    %350 = vmatpush1.msra.mxu0 0.0
    %351 = vmatprep.subr.mxu0 0.0
    %352 = vmatpush1.msra.mxu0 0.0
    %353 = vmatprep.subr.mxu0 0.0
    %354 = vmatpush1.msra.mxu0 0.0
    %355 = vmatprep.subr.mxu0 0.0
    %356 = vmatpush1.msra.mxu0 0.0
    %357 = vmatprep.subr.mxu0 0.0
    %358 = vmatpush1.msra.mxu0 0.0
    %359 = vmatprep.subr.mxu0 0.0
    %360 = vmatpush1.msra.mxu0 0.0
    %361 = vmatprep.subr.mxu0 0.0
    %362 = vmatpush1.msra.mxu0 0.0
    %363 = vmatprep.subr.mxu0 0.0
    %364 = vmatpush1.msra.mxu0 0.0
    %365 = vmatprep.subr.mxu0 0.0
    %366 = vmatpush1.msra.mxu0 0.0
    %367 = vmatprep.mubr.f32.mxu0 0.0
    %368 = vmatmul.mubr.f32.gmra.mrb[0].mxu0 %v210
    %v369 = vpop.f32.mrb[0].mxu0
    %v370 = vadd.f32 %v301, %v369
    %v371 = vpop.f32.mrb[0].mxu0
    %372 = vmatprep.mubr.f32.mxu0 0.0
    %373 = vmatmul.mubr.f32.gmra.mrb[0].mxu0 %v213
    %v374 = vpop.f32.mrb[0].mxu0
    %v375 = vadd.f32 %v301, %v374
    %v376 = vpop.f32.mrb[0].mxu0
    %377 = vdwg.mxu0
    %s378 = scalar_lea.vmem [#allocation2], 64
    %v379 = vld [vmem:[%s378] sm:$0xff]
    %v380 = vld [vmem:[%s378 + $0x8] sm:$0xff]
    %v381 = vld [vmem:[%s378 + $0x10] sm:$0xff]
    %v382 = vld [vmem:[%s378 + $0x18] sm:$0xff]
    %s383 = scalar_lea.vmem %s5, 2
    %v384 = vld [vmem:[%s383] sm:$0x1]
    %v386 = vlaneseq
    %v387 = vshrl.u32 %v386, 7
    %v388 = vsub.s32 0, %v387
    %v389 = vrot.slane %v384, %v388
    %391 = vmatprep.subr.mxu0 0.0
    %392 = vmatpush1.msra.mxu0 %v379
    %393 = vmatprep.subr.mxu0 0.0
    %394 = vmatpush1.msra.mxu0 %v380
    %395 = vmatprep.subr.mxu0 0.0
    %396 = vmatpush1.msra.mxu0 %v381
    %397 = vmatprep.subr.mxu0 0.0
    %398 = vmatpush1.msra.mxu0 %v382
    %399 = vmatprep.subr.mxu0 0.0
    %400 = vmatpush1.msra.mxu0 0.0
    %401 = vmatprep.subr.mxu0 0.0
    %402 = vmatpush1.msra.mxu0 0.0
    %403 = vmatprep.subr.mxu0 0.0
    %404 = vmatpush1.msra.mxu0 0.0
    %405 = vmatprep.subr.mxu0 0.0
    %406 = vmatpush1.msra.mxu0 0.0
    %407 = vmatprep.subr.mxu0 0.0
    %408 = vmatpush1.msra.mxu0 0.0
    %409 = vmatprep.subr.mxu0 0.0
    %410 = vmatpush1.msra.mxu0 0.0
    %411 = vmatprep.subr.mxu0 0.0
    %412 = vmatpush1.msra.mxu0 0.0
    %413 = vmatprep.subr.mxu0 0.0
    %414 = vmatpush1.msra.mxu0 0.0
    %415 = vmatprep.subr.mxu0 0.0
    %416 = vmatpush1.msra.mxu0 0.0
    %417 = vmatprep.subr.mxu0 0.0
    %418 = vmatpush1.msra.mxu0 0.0
    %419 = vmatprep.subr.mxu0 0.0
    %420 = vmatpush1.msra.mxu0 0.0
    %421 = vmatprep.subr.mxu0 0.0
    %422 = vmatpush1.msra.mxu0 0.0
    %423 = vmatprep.subr.mxu0 0.0
    %424 = vmatpush1.msra.mxu0 0.0
    %425 = vmatprep.subr.mxu0 0.0
    %426 = vmatpush1.msra.mxu0 0.0
    %427 = vmatprep.subr.mxu0 0.0
    %428 = vmatpush1.msra.mxu0 0.0
    %429 = vmatprep.subr.mxu0 0.0
    %430 = vmatpush1.msra.mxu0 0.0
    %431 = vmatprep.subr.mxu0 0.0
    %432 = vmatpush1.msra.mxu0 0.0
    %433 = vmatprep.subr.mxu0 0.0
    %434 = vmatpush1.msra.mxu0 0.0
    %435 = vmatprep.subr.mxu0 0.0
    %436 = vmatpush1.msra.mxu0 0.0
    %437 = vmatprep.subr.mxu0 0.0
    %438 = vmatpush1.msra.mxu0 0.0
    %439 = vmatprep.subr.mxu0 0.0
    %440 = vmatpush1.msra.mxu0 0.0
    %441 = vmatprep.subr.mxu0 0.0
    %442 = vmatpush1.msra.mxu0 0.0
    %443 = vmatprep.subr.mxu0 0.0
    %444 = vmatpush1.msra.mxu0 0.0
    %445 = vmatprep.subr.mxu0 0.0
    %446 = vmatpush1.msra.mxu0 0.0
    %447 = vmatprep.subr.mxu0 0.0
    %448 = vmatpush1.msra.mxu0 0.0
    %449 = vmatprep.subr.mxu0 0.0
    %450 = vmatpush1.msra.mxu0 0.0
    %451 = vmatprep.subr.mxu0 0.0
    %452 = vmatpush1.msra.mxu0 0.0
    %453 = vmatprep.subr.mxu0 0.0
    %454 = vmatpush1.msra.mxu0 0.0
    %455 = vmatprep.mubr.f32.mxu0 0.0
    %456 = vmatmul.mubr.f32.gmra.mrb[0].mxu0 %v210
    %v457 = vpop.f32.mrb[0].mxu0
    %v458 = vadd.f32 %v389, %v457
    %v459 = vpop.f32.mrb[0].mxu0
    %460 = vmatprep.mubr.f32.mxu0 0.0
    %461 = vmatmul.mubr.f32.gmra.mrb[0].mxu0 %v213
    %v462 = vpop.f32.mrb[0].mxu0
    %v463 = vadd.f32 %v389, %v462
    %v464 = vpop.f32.mrb[0].mxu0
    %465 = vdwg.mxu0
    %v466 = vld [vmem:[#allocation7] sm:$0xff]
    %v467 = vld [vmem:[#allocation7 + $0x8] sm:$0xff]
    %v468 = vld [vmem:[#allocation7 + $0x10] sm:$0xff]
    %v469 = vld [vmem:[#allocation7 + $0x18] sm:$0xff]
    %v470 = vld [vmem:[%s9] sm:$0x1]
    %v472 = vlaneseq
    %v473 = vshrl.u32 %v472, 7
    %v474 = vsub.s32 0, %v473
    %v475 = vrot.slane %v470, %v474
    %477 = vmatprep.subr.mxu0 0.0
    %478 = vmatpush1.msra.mxu0 %v466
    %479 = vmatprep.subr.mxu0 0.0
    %480 = vmatpush1.msra.mxu0 %v467
    %481 = vmatprep.subr.mxu0 0.0
    %482 = vmatpush1.msra.mxu0 %v468
    %483 = vmatprep.subr.mxu0 0.0
    %484 = vmatpush1.msra.mxu0 %v469
    %485 = vmatprep.subr.mxu0 0.0
    %486 = vmatpush1.msra.mxu0 0.0
    %487 = vmatprep.subr.mxu0 0.0
    %488 = vmatpush1.msra.mxu0 0.0
    %489 = vmatprep.subr.mxu0 0.0
    %490 = vmatpush1.msra.mxu0 0.0
    %491 = vmatprep.subr.mxu0 0.0
    %492 = vmatpush1.msra.mxu0 0.0
    %493 = vmatprep.subr.mxu0 0.0
    %494 = vmatpush1.msra.mxu0 0.0
    %495 = vmatprep.subr.mxu0 0.0
    %496 = vmatpush1.msra.mxu0 0.0
    %497 = vmatprep.subr.mxu0 0.0
    %498 = vmatpush1.msra.mxu0 0.0
    %499 = vmatprep.subr.mxu0 0.0
    %500 = vmatpush1.msra.mxu0 0.0
    %501 = vmatprep.subr.mxu0 0.0
    %502 = vmatpush1.msra.mxu0 0.0
    %503 = vmatprep.subr.mxu0 0.0
    %504 = vmatpush1.msra.mxu0 0.0
    %505 = vmatprep.subr.mxu0 0.0
    %506 = vmatpush1.msra.mxu0 0.0
    %507 = vmatprep.subr.mxu0 0.0
    %508 = vmatpush1.msra.mxu0 0.0
    %509 = vmatprep.subr.mxu0 0.0
    %510 = vmatpush1.msra.mxu0 0.0
    %511 = vmatprep.subr.mxu0 0.0
    %512 = vmatpush1.msra.mxu0 0.0
    %513 = vmatprep.subr.mxu0 0.0
    %514 = vmatpush1.msra.mxu0 0.0
    %515 = vmatprep.subr.mxu0 0.0
    %516 = vmatpush1.msra.mxu0 0.0
    %517 = vmatprep.subr.mxu0 0.0
    %518 = vmatpush1.msra.mxu0 0.0
    %519 = vmatprep.subr.mxu0 0.0
    %520 = vmatpush1.msra.mxu0 0.0
    %521 = vmatprep.subr.mxu0 0.0
    %522 = vmatpush1.msra.mxu0 0.0
    %523 = vmatprep.subr.mxu0 0.0
    %524 = vmatpush1.msra.mxu0 0.0
    %525 = vmatprep.subr.mxu0 0.0
    %526 = vmatpush1.msra.mxu0 0.0
    %527 = vmatprep.subr.mxu0 0.0
    %528 = vmatpush1.msra.mxu0 0.0
    %529 = vmatprep.subr.mxu0 0.0
    %530 = vmatpush1.msra.mxu0 0.0
    %531 = vmatprep.subr.mxu0 0.0
    %532 = vmatpush1.msra.mxu0 0.0
    %533 = vmatprep.subr.mxu0 0.0
    %534 = vmatpush1.msra.mxu0 0.0
    %535 = vmatprep.subr.mxu0 0.0
    %536 = vmatpush1.msra.mxu0 0.0
    %537 = vmatprep.subr.mxu0 0.0
    %538 = vmatpush1.msra.mxu0 0.0
    %539 = vmatprep.subr.mxu0 0.0
    %540 = vmatpush1.msra.mxu0 0.0
    %541 = vmatprep.mubr.f32.mxu0 0.0
    %542 = vmatmul.mubr.f32.gmra.mrb[0].mxu0 %v210
    %v543 = vpop.f32.mrb[0].mxu0
    %v544 = vadd.f32 %v475, %v543
    %v545 = vpop.f32.mrb[0].mxu0
    %546 = vmatprep.mubr.f32.mxu0 0.0
    %547 = vmatmul.mubr.f32.gmra.mrb[0].mxu0 %v213
    %v548 = vpop.f32.mrb[0].mxu0
    %v549 = vadd.f32 %v475, %v548
    %v550 = vpop.f32.mrb[0].mxu0
    %551 = vdwg.mxu0
    %s552 = scalar_lea.vmem [#allocation7], 32
    %v553 = vld [vmem:[%s552] sm:$0xff]
    %v554 = vld [vmem:[%s552 + $0x8] sm:$0xff]
    %v555 = vld [vmem:[%s552 + $0x10] sm:$0xff]
    %v556 = vld [vmem:[%s552 + $0x18] sm:$0xff]
    %s557 = scalar_lea.vmem %s9, 1
    %v558 = vld [vmem:[%s557] sm:$0x1]
    %v560 = vlaneseq
    %v561 = vshrl.u32 %v560, 7
    %v562 = vsub.s32 0, %v561
    %v563 = vrot.slane %v558, %v562
    %565 = vmatprep.subr.mxu0 0.0
    %566 = vmatpush1.msra.mxu0 %v553
    %567 = vmatprep.subr.mxu0 0.0
    %568 = vmatpush1.msra.mxu0 %v554
    %569 = vmatprep.subr.mxu0 0.0
    %570 = vmatpush1.msra.mxu0 %v555
    %571 = vmatprep.subr.mxu0 0.0
    %572 = vmatpush1.msra.mxu0 %v556
    %573 = vmatprep.subr.mxu0 0.0
    %574 = vmatpush1.msra.mxu0 0.0
    %575 = vmatprep.subr.mxu0 0.0
    %576 = vmatpush1.msra.mxu0 0.0
    %577 = vmatprep.subr.mxu0 0.0
    %578 = vmatpush1.msra.mxu0 0.0
    %579 = vmatprep.subr.mxu0 0.0
    %580 = vmatpush1.msra.mxu0 0.0
    %581 = vmatprep.subr.mxu0 0.0
    %582 = vmatpush1.msra.mxu0 0.0
    %583 = vmatprep.subr.mxu0 0.0
    %584 = vmatpush1.msra.mxu0 0.0
    %585 = vmatprep.subr.mxu0 0.0
    %586 = vmatpush1.msra.mxu0 0.0
    %587 = vmatprep.subr.mxu0 0.0
    %588 = vmatpush1.msra.mxu0 0.0
    %589 = vmatprep.subr.mxu0 0.0
    %590 = vmatpush1.msra.mxu0 0.0
    %591 = vmatprep.subr.mxu0 0.0
    %592 = vmatpush1.msra.mxu0 0.0
    %593 = vmatprep.subr.mxu0 0.0
    %594 = vmatpush1.msra.mxu0 0.0
    %595 = vmatprep.subr.mxu0 0.0
    %596 = vmatpush1.msra.mxu0 0.0
    %597 = vmatprep.subr.mxu0 0.0
    %598 = vmatpush1.msra.mxu0 0.0
    %599 = vmatprep.subr.mxu0 0.0
    %600 = vmatpush1.msra.mxu0 0.0
    %601 = vmatprep.subr.mxu0 0.0
    %602 = vmatpush1.msra.mxu0 0.0
    %603 = vmatprep.subr.mxu0 0.0
    %604 = vmatpush1.msra.mxu0 0.0
    %605 = vmatprep.subr.mxu0 0.0
    %606 = vmatpush1.msra.mxu0 0.0
    %607 = vmatprep.subr.mxu0 0.0
    %608 = vmatpush1.msra.mxu0 0.0
    %609 = vmatprep.subr.mxu0 0.0
    %610 = vmatpush1.msra.mxu0 0.0
    %611 = vmatprep.subr.mxu0 0.0
    %612 = vmatpush1.msra.mxu0 0.0
    %613 = vmatprep.subr.mxu0 0.0
    %614 = vmatpush1.msra.mxu0 0.0
    %615 = vmatprep.subr.mxu0 0.0
    %616 = vmatpush1.msra.mxu0 0.0
    %617 = vmatprep.subr.mxu0 0.0
    %618 = vmatpush1.msra.mxu0 0.0
    %619 = vmatprep.subr.mxu0 0.0
    %620 = vmatpush1.msra.mxu0 0.0
    %621 = vmatprep.subr.mxu0 0.0
    %622 = vmatpush1.msra.mxu0 0.0
    %623 = vmatprep.subr.mxu0 0.0
    %624 = vmatpush1.msra.mxu0 0.0
    %625 = vmatprep.subr.mxu0 0.0
    %626 = vmatpush1.msra.mxu0 0.0
    %627 = vmatprep.subr.mxu0 0.0
    %628 = vmatpush1.msra.mxu0 0.0
    %629 = vmatprep.mubr.f32.mxu0 0.0
    %630 = vmatmul.mubr.f32.gmra.mrb[0].mxu0 %v210
    %v631 = vpop.f32.mrb[0].mxu0
    %v632 = vadd.f32 %v563, %v631
    %v633 = vpop.f32.mrb[0].mxu0
    %634 = vmatprep.mubr.f32.mxu0 0.0
    %635 = vmatmul.mubr.f32.gmra.mrb[0].mxu0 %v213
    %v636 = vpop.f32.mrb[0].mxu0
    %v637 = vadd.f32 %v563, %v636
    %v638 = vpop.f32.mrb[0].mxu0
    %639 = vdwg.mxu0
    %s640 = scalar_lea.vmem [#allocation7], 64
    %v641 = vld [vmem:[%s640] sm:$0xff]
    %v642 = vld [vmem:[%s640 + $0x8] sm:$0xff]
    %v643 = vld [vmem:[%s640 + $0x10] sm:$0xff]
    %v644 = vld [vmem:[%s640 + $0x18] sm:$0xff]
    %s645 = scalar_lea.vmem %s9, 2
    %v646 = vld [vmem:[%s645] sm:$0x1]
    %v648 = vlaneseq
    %v649 = vshrl.u32 %v648, 7
    %v650 = vsub.s32 0, %v649
    %v651 = vrot.slane %v646, %v650
    %653 = vmatprep.subr.mxu0 0.0
    %654 = vmatpush1.msra.mxu0 %v641
    %655 = vmatprep.subr.mxu0 0.0
    %656 = vmatpush1.msra.mxu0 %v642
    %657 = vmatprep.subr.mxu0 0.0
    %658 = vmatpush1.msra.mxu0 %v643
    %659 = vmatprep.subr.mxu0 0.0
    %660 = vmatpush1.msra.mxu0 %v644
    %661 = vmatprep.subr.mxu0 0.0
    %662 = vmatpush1.msra.mxu0 0.0
    %663 = vmatprep.subr.mxu0 0.0
    %664 = vmatpush1.msra.mxu0 0.0
    %665 = vmatprep.subr.mxu0 0.0
    %666 = vmatpush1.msra.mxu0 0.0
    %667 = vmatprep.subr.mxu0 0.0
    %668 = vmatpush1.msra.mxu0 0.0
    %669 = vmatprep.subr.mxu0 0.0
    %670 = vmatpush1.msra.mxu0 0.0
    %671 = vmatprep.subr.mxu0 0.0
    %672 = vmatpush1.msra.mxu0 0.0
    %673 = vmatprep.subr.mxu0 0.0
    %674 = vmatpush1.msra.mxu0 0.0
    %675 = vmatprep.subr.mxu0 0.0
    %676 = vmatpush1.msra.mxu0 0.0
    %677 = vmatprep.subr.mxu0 0.0
    %678 = vmatpush1.msra.mxu0 0.0
    %679 = vmatprep.subr.mxu0 0.0
    %680 = vmatpush1.msra.mxu0 0.0
    %681 = vmatprep.subr.mxu0 0.0
    %682 = vmatpush1.msra.mxu0 0.0
    %683 = vmatprep.subr.mxu0 0.0
    %684 = vmatpush1.msra.mxu0 0.0
    %685 = vmatprep.subr.mxu0 0.0
    %686 = vmatpush1.msra.mxu0 0.0
    %687 = vmatprep.subr.mxu0 0.0
    %688 = vmatpush1.msra.mxu0 0.0
    %689 = vmatprep.subr.mxu0 0.0
    %690 = vmatpush1.msra.mxu0 0.0
    %691 = vmatprep.subr.mxu0 0.0
    %692 = vmatpush1.msra.mxu0 0.0
    %693 = vmatprep.subr.mxu0 0.0
    %694 = vmatpush1.msra.mxu0 0.0
    %695 = vmatprep.subr.mxu0 0.0
    %696 = vmatpush1.msra.mxu0 0.0
    %697 = vmatprep.subr.mxu0 0.0
    %698 = vmatpush1.msra.mxu0 0.0
    %699 = vmatprep.subr.mxu0 0.0
    %700 = vmatpush1.msra.mxu0 0.0
    %701 = vmatprep.subr.mxu0 0.0
    %702 = vmatpush1.msra.mxu0 0.0
    %703 = vmatprep.subr.mxu0 0.0
    %704 = vmatpush1.msra.mxu0 0.0
    %705 = vmatprep.subr.mxu0 0.0
    %706 = vmatpush1.msra.mxu0 0.0
    %707 = vmatprep.subr.mxu0 0.0
    %708 = vmatpush1.msra.mxu0 0.0
    %709 = vmatprep.subr.mxu0 0.0
    %710 = vmatpush1.msra.mxu0 0.0
    %711 = vmatprep.subr.mxu0 0.0
    %712 = vmatpush1.msra.mxu0 0.0
    %713 = vmatprep.subr.mxu0 0.0
    %714 = vmatpush1.msra.mxu0 0.0
    %715 = vmatprep.subr.mxu0 0.0
    %716 = vmatpush1.msra.mxu0 0.0
    %717 = vmatprep.mubr.f32.mxu0 0.0
    %718 = vmatmul.mubr.f32.gmra.mrb[0].mxu0 %v210
    %v719 = vpop.f32.mrb[0].mxu0
    %v720 = vadd.f32 %v651, %v719
    %v721 = vpop.f32.mrb[0].mxu0
    %722 = vmatprep.mubr.f32.mxu0 0.0
    %723 = vmatmul.mubr.f32.gmra.mrb[0].mxu0 %v213
    %v724 = vpop.f32.mrb[0].mxu0
    %v725 = vadd.f32 %v651, %v724
    %v726 = vpop.f32.mrb[0].mxu0
    %727 = vdwg.mxu0
    %v728 = vld [vmem:[%s1] sm:$0x3]
    %v729 = vld [vmem:[#allocation5] sm:$0xff]
    %v730 = vld [vmem:[#allocation5 + $0x8] sm:$0xff]
    %v731 = vld [vmem:[#allocation5 + $0x10] sm:$0xff]
    %v732 = vld [vmem:[#allocation5 + $0x18] sm:$0xff]
    %v733 = vld [vmem:[%s6] sm:$0x1]
    %v735 = vlaneseq
    %v736 = vshrl.u32 %v735, 7
    %v737 = vsub.s32 0, %v736
    %v738 = vrot.slane %v733, %v737
    %v741 = vsel %vm208, 0.0, 0
    %743 = vmatprep.subr.mxu0 0.0
    %744 = vmatpush1.msra.mxu0 %v729
    %745 = vmatprep.subr.mxu0 0.0
    %746 = vmatpush1.msra.mxu0 %v730
    %747 = vmatprep.subr.mxu0 0.0
    %748 = vmatpush1.msra.mxu0 %v731
    %749 = vmatprep.subr.mxu0 0.0
    %750 = vmatpush1.msra.mxu0 %v732
    %751 = vmatprep.subr.mxu0 0.0
    %752 = vmatpush1.msra.mxu0 0.0
    %753 = vmatprep.subr.mxu0 0.0
    %754 = vmatpush1.msra.mxu0 0.0
    %755 = vmatprep.subr.mxu0 0.0
    %756 = vmatpush1.msra.mxu0 0.0
    %757 = vmatprep.subr.mxu0 0.0
    %758 = vmatpush1.msra.mxu0 0.0
    %759 = vmatprep.subr.mxu0 0.0
    %760 = vmatpush1.msra.mxu0 0.0
    %761 = vmatprep.subr.mxu0 0.0
    %762 = vmatpush1.msra.mxu0 0.0
    %763 = vmatprep.subr.mxu0 0.0
    %764 = vmatpush1.msra.mxu0 0.0
    %765 = vmatprep.subr.mxu0 0.0
    %766 = vmatpush1.msra.mxu0 0.0
    %767 = vmatprep.subr.mxu0 0.0
    %768 = vmatpush1.msra.mxu0 0.0
    %769 = vmatprep.subr.mxu0 0.0
    %770 = vmatpush1.msra.mxu0 0.0
    %771 = vmatprep.subr.mxu0 0.0
    %772 = vmatpush1.msra.mxu0 0.0
    %773 = vmatprep.subr.mxu0 0.0
    %774 = vmatpush1.msra.mxu0 0.0
    %775 = vmatprep.subr.mxu0 0.0
    %776 = vmatpush1.msra.mxu0 0.0
    %777 = vmatprep.subr.mxu0 0.0
    %778 = vmatpush1.msra.mxu0 0.0
    %779 = vmatprep.subr.mxu0 0.0
    %780 = vmatpush1.msra.mxu0 0.0
    %781 = vmatprep.subr.mxu0 0.0
    %782 = vmatpush1.msra.mxu0 0.0
    %783 = vmatprep.subr.mxu0 0.0
    %784 = vmatpush1.msra.mxu0 0.0
    %785 = vmatprep.subr.mxu0 0.0
    %786 = vmatpush1.msra.mxu0 0.0
    %787 = vmatprep.subr.mxu0 0.0
    %788 = vmatpush1.msra.mxu0 0.0
    %789 = vmatprep.subr.mxu0 0.0
    %790 = vmatpush1.msra.mxu0 0.0
    %791 = vmatprep.subr.mxu0 0.0
    %792 = vmatpush1.msra.mxu0 0.0
    %793 = vmatprep.subr.mxu0 0.0
    %794 = vmatpush1.msra.mxu0 0.0
    %795 = vmatprep.subr.mxu0 0.0
    %796 = vmatpush1.msra.mxu0 0.0
    %797 = vmatprep.subr.mxu0 0.0
    %798 = vmatpush1.msra.mxu0 0.0
    %799 = vmatprep.subr.mxu0 0.0
    %800 = vmatpush1.msra.mxu0 0.0
    %801 = vmatprep.subr.mxu0 0.0
    %802 = vmatpush1.msra.mxu0 0.0
    %803 = vmatprep.subr.mxu0 0.0
    %804 = vmatpush1.msra.mxu0 0.0
    %805 = vmatprep.subr.mxu0 0.0
    %806 = vmatpush1.msra.mxu0 0.0
    %807 = vmatprep.mubr.f32.mxu0 0.0
    %808 = vmatmul.mubr.f32.gmra.mrb[0].mxu0 %v741
    %v809 = vpop.f32.mrb[0].mxu0
    %v810 = vadd.f32 %v738, %v809
    %v811 = vpop.f32.mrb[0].mxu0
    %812 = vdwg.mxu0
    %s813 = scalar_lea.vmem [#allocation5], 32
    %v814 = vld [vmem:[%s813] sm:$0xff]
    %v815 = vld [vmem:[%s813 + $0x8] sm:$0xff]
    %v816 = vld [vmem:[%s813 + $0x10] sm:$0xff]
    %v817 = vld [vmem:[%s813 + $0x18] sm:$0xff]
    %s818 = scalar_lea.vmem %s6, 1
    %v819 = vld [vmem:[%s818] sm:$0x1]
    %v821 = vlaneseq
    %v822 = vshrl.u32 %v821, 7
    %v823 = vsub.s32 0, %v822
    %v824 = vrot.slane %v819, %v823
    %826 = vmatprep.subr.mxu0 0.0
    %827 = vmatpush1.msra.mxu0 %v814
    %828 = vmatprep.subr.mxu0 0.0
    %829 = vmatpush1.msra.mxu0 %v815
    %830 = vmatprep.subr.mxu0 0.0
    %831 = vmatpush1.msra.mxu0 %v816
    %832 = vmatprep.subr.mxu0 0.0
    %833 = vmatpush1.msra.mxu0 %v817
    %834 = vmatprep.subr.mxu0 0.0
    %835 = vmatpush1.msra.mxu0 0.0
    %836 = vmatprep.subr.mxu0 0.0
    %837 = vmatpush1.msra.mxu0 0.0
    %838 = vmatprep.subr.mxu0 0.0
    %839 = vmatpush1.msra.mxu0 0.0
    %840 = vmatprep.subr.mxu0 0.0
    %841 = vmatpush1.msra.mxu0 0.0
    %842 = vmatprep.subr.mxu0 0.0
    %843 = vmatpush1.msra.mxu0 0.0
    %844 = vmatprep.subr.mxu0 0.0
    %845 = vmatpush1.msra.mxu0 0.0
    %846 = vmatprep.subr.mxu0 0.0
    %847 = vmatpush1.msra.mxu0 0.0
    %848 = vmatprep.subr.mxu0 0.0
    %849 = vmatpush1.msra.mxu0 0.0
    %850 = vmatprep.subr.mxu0 0.0
    %851 = vmatpush1.msra.mxu0 0.0
    %852 = vmatprep.subr.mxu0 0.0
    %853 = vmatpush1.msra.mxu0 0.0
    %854 = vmatprep.subr.mxu0 0.0
    %855 = vmatpush1.msra.mxu0 0.0
    %856 = vmatprep.subr.mxu0 0.0
    %857 = vmatpush1.msra.mxu0 0.0
    %858 = vmatprep.subr.mxu0 0.0
    %859 = vmatpush1.msra.mxu0 0.0
    %860 = vmatprep.subr.mxu0 0.0
    %861 = vmatpush1.msra.mxu0 0.0
    %862 = vmatprep.subr.mxu0 0.0
    %863 = vmatpush1.msra.mxu0 0.0
    %864 = vmatprep.subr.mxu0 0.0
    %865 = vmatpush1.msra.mxu0 0.0
    %866 = vmatprep.subr.mxu0 0.0
    %867 = vmatpush1.msra.mxu0 0.0
    %868 = vmatprep.subr.mxu0 0.0
    %869 = vmatpush1.msra.mxu0 0.0
    %870 = vmatprep.subr.mxu0 0.0
    %871 = vmatpush1.msra.mxu0 0.0
    %872 = vmatprep.subr.mxu0 0.0
    %873 = vmatpush1.msra.mxu0 0.0
    %874 = vmatprep.subr.mxu0 0.0
    %875 = vmatpush1.msra.mxu0 0.0
    %876 = vmatprep.subr.mxu0 0.0
    %877 = vmatpush1.msra.mxu0 0.0
    %878 = vmatprep.subr.mxu0 0.0
    %879 = vmatpush1.msra.mxu0 0.0
    %880 = vmatprep.subr.mxu0 0.0
    %881 = vmatpush1.msra.mxu0 0.0
    %882 = vmatprep.subr.mxu0 0.0
    %883 = vmatpush1.msra.mxu0 0.0
    %884 = vmatprep.subr.mxu0 0.0
    %885 = vmatpush1.msra.mxu0 0.0
    %886 = vmatprep.subr.mxu0 0.0
    %887 = vmatpush1.msra.mxu0 0.0
    %888 = vmatprep.subr.mxu0 0.0
    %889 = vmatpush1.msra.mxu0 0.0
    %890 = vmatprep.mubr.f32.mxu0 0.0
    %891 = vmatmul.mubr.f32.gmra.mrb[0].mxu0 %v741
    %v892 = vpop.f32.mrb[0].mxu0
    %v893 = vadd.f32 %v824, %v892
    %v894 = vpop.f32.mrb[0].mxu0
    %895 = vdwg.mxu0
    %s896 = scalar_lea.vmem [#allocation5], 64
    %v897 = vld [vmem:[%s896] sm:$0xff]
    %v898 = vld [vmem:[%s896 + $0x8] sm:$0xff]
    %v899 = vld [vmem:[%s896 + $0x10] sm:$0xff]
    %v900 = vld [vmem:[%s896 + $0x18] sm:$0xff]
    %s901 = scalar_lea.vmem %s6, 2
    %v902 = vld [vmem:[%s901] sm:$0x1]
    %v904 = vlaneseq
    %v905 = vshrl.u32 %v904, 7
    %v906 = vsub.s32 0, %v905
    %v907 = vrot.slane %v902, %v906
    %909 = vmatprep.subr.mxu0 0.0
    %910 = vmatpush1.msra.mxu0 %v897
    %911 = vmatprep.subr.mxu0 0.0
    %912 = vmatpush1.msra.mxu0 %v898
    %913 = vmatprep.subr.mxu0 0.0
    %914 = vmatpush1.msra.mxu0 %v899
    %915 = vmatprep.subr.mxu0 0.0
    %916 = vmatpush1.msra.mxu0 %v900
    %917 = vmatprep.subr.mxu0 0.0
    %918 = vmatpush1.msra.mxu0 0.0
    %919 = vmatprep.subr.mxu0 0.0
    %920 = vmatpush1.msra.mxu0 0.0
    %921 = vmatprep.subr.mxu0 0.0
    %922 = vmatpush1.msra.mxu0 0.0
    %923 = vmatprep.subr.mxu0 0.0
    %924 = vmatpush1.msra.mxu0 0.0
    %925 = vmatprep.subr.mxu0 0.0
    %926 = vmatpush1.msra.mxu0 0.0
    %927 = vmatprep.subr.mxu0 0.0
    %928 = vmatpush1.msra.mxu0 0.0
    %929 = vmatprep.subr.mxu0 0.0
    %930 = vmatpush1.msra.mxu0 0.0
    %931 = vmatprep.subr.mxu0 0.0
    %932 = vmatpush1.msra.mxu0 0.0
    %933 = vmatprep.subr.mxu0 0.0
    %934 = vmatpush1.msra.mxu0 0.0
    %935 = vmatprep.subr.mxu0 0.0
    %936 = vmatpush1.msra.mxu0 0.0
    %937 = vmatprep.subr.mxu0 0.0
    %938 = vmatpush1.msra.mxu0 0.0
    %939 = vmatprep.subr.mxu0 0.0
    %940 = vmatpush1.msra.mxu0 0.0
    %941 = vmatprep.subr.mxu0 0.0
    %942 = vmatpush1.msra.mxu0 0.0
    %943 = vmatprep.subr.mxu0 0.0
    %944 = vmatpush1.msra.mxu0 0.0
    %945 = vmatprep.subr.mxu0 0.0
    %946 = vmatpush1.msra.mxu0 0.0
    %947 = vmatprep.subr.mxu0 0.0
    %948 = vmatpush1.msra.mxu0 0.0
    %949 = vmatprep.subr.mxu0 0.0
    %950 = vmatpush1.msra.mxu0 0.0
    %951 = vmatprep.subr.mxu0 0.0
    %952 = vmatpush1.msra.mxu0 0.0
    %953 = vmatprep.subr.mxu0 0.0
    %954 = vmatpush1.msra.mxu0 0.0
    %955 = vmatprep.subr.mxu0 0.0
    %956 = vmatpush1.msra.mxu0 0.0
    %957 = vmatprep.subr.mxu0 0.0
    %958 = vmatpush1.msra.mxu0 0.0
    %959 = vmatprep.subr.mxu0 0.0
    %960 = vmatpush1.msra.mxu0 0.0
    %961 = vmatprep.subr.mxu0 0.0
    %962 = vmatpush1.msra.mxu0 0.0
    %963 = vmatprep.subr.mxu0 0.0
    %964 = vmatpush1.msra.mxu0 0.0
    %965 = vmatprep.subr.mxu0 0.0
    %966 = vmatpush1.msra.mxu0 0.0
    %967 = vmatprep.subr.mxu0 0.0
    %968 = vmatpush1.msra.mxu0 0.0
    %969 = vmatprep.subr.mxu0 0.0
    %970 = vmatpush1.msra.mxu0 0.0
    %971 = vmatprep.subr.mxu0 0.0
    %972 = vmatpush1.msra.mxu0 0.0
    %973 = vmatprep.mubr.f32.mxu0 0.0
    %974 = vmatmul.mubr.f32.gmra.mrb[0].mxu0 %v741
    %v975 = vpop.f32.mrb[0].mxu0
    %v976 = vadd.f32 %v907, %v975
    %v977 = vpop.f32.mrb[0].mxu0
    %978 = vdwg.mxu0
    %v979 = vadd.f32 %v282, %v810
    %v980 = vxor.u32 %v979, 2147483648
    %v981 = vmul.f32 %v980, 1.442695
    %v982 = vpow.pop %v981
    %v983 = vadd.f32 %v982, 1.0
    %v984 = vrcp.pop %v983
    %v985 = vmul.f32 1.0, %v984
    %v986 = vadd.f32 %v370, %v893
    %v987 = vxor.u32 %v986, 2147483648
    %v988 = vmul.f32 %v987, 1.442695
    %v989 = vpow.pop %v988
    %v990 = vadd.f32 %v989, 1.0
    %v991 = vrcp.pop %v990
    %v992 = vmul.f32 1.0, %v991
    %v993 = vmul.f32 %v985, %v976
    %v994 = vadd.f32 %v458, %v993
    %v995 = vtanh.pop %v994
    %v996 = vsub.f32 1.0, %v992
    %v997 = vmul.f32 %v996, %v995
    %v998 = vmul.f32 %v992, 0.0
    %v999 = vadd.f32 %v997, %v998
    %vm1000 = vcmp.gt.s32.totalorder %v728, 0
    %v1001 = vsel %vm1000, 1, 0
    %v1002 = vcvt.s32.f32 %v1001
    %1004 = vset.pattern.permute.xlu0 0
    %1005 = vperm.xlu0 %1004, %v1002
    %v1006 = vpop.permute.xlu0 %1005
    %v1008 = vmul.f32 %v1006, %v999
    %v1009 = vsub.f32 1.0, %v1002
    %1011 = vset.pattern.permute.xlu0 0
    %1012 = vperm.xlu0 %1011, %v1009
    %v1013 = vpop.permute.xlu0 %1012
    %v1015 = vmul.f32 %v1013, 0.0
    %v1016 = vadd.f32 %v1008, %v1015
    %v1018 = vsel %vm208, %v1016, 0
    %1020 = vmatprep.subr.mxu0 0.0
    %1021 = vmatpush1.msra.mxu0 %v729
    %1022 = vmatprep.subr.mxu0 0.0
    %1023 = vmatpush1.msra.mxu0 %v730
    %1024 = vmatprep.subr.mxu0 0.0
    %1025 = vmatpush1.msra.mxu0 %v731
    %1026 = vmatprep.subr.mxu0 0.0
    %1027 = vmatpush1.msra.mxu0 %v732
    %1028 = vmatprep.subr.mxu0 0.0
    %1029 = vmatpush1.msra.mxu0 0.0
    %1030 = vmatprep.subr.mxu0 0.0
    %1031 = vmatpush1.msra.mxu0 0.0
    %1032 = vmatprep.subr.mxu0 0.0
    %1033 = vmatpush1.msra.mxu0 0.0
    %1034 = vmatprep.subr.mxu0 0.0
    %1035 = vmatpush1.msra.mxu0 0.0
    %1036 = vmatprep.subr.mxu0 0.0
    %1037 = vmatpush1.msra.mxu0 0.0
    %1038 = vmatprep.subr.mxu0 0.0
    %1039 = vmatpush1.msra.mxu0 0.0
    %1040 = vmatprep.subr.mxu0 0.0
    %1041 = vmatpush1.msra.mxu0 0.0
    %1042 = vmatprep.subr.mxu0 0.0
    %1043 = vmatpush1.msra.mxu0 0.0
    %1044 = vmatprep.subr.mxu0 0.0
    %1045 = vmatpush1.msra.mxu0 0.0
    %1046 = vmatprep.subr.mxu0 0.0
    %1047 = vmatpush1.msra.mxu0 0.0
    %1048 = vmatprep.subr.mxu0 0.0
    %1049 = vmatpush1.msra.mxu0 0.0
    %1050 = vmatprep.subr.mxu0 0.0
    %1051 = vmatpush1.msra.mxu0 0.0
    %1052 = vmatprep.subr.mxu0 0.0
    %1053 = vmatpush1.msra.mxu0 0.0
    %1054 = vmatprep.subr.mxu0 0.0
    %1055 = vmatpush1.msra.mxu0 0.0
    %1056 = vmatprep.subr.mxu0 0.0
    %1057 = vmatpush1.msra.mxu0 0.0
    %1058 = vmatprep.subr.mxu0 0.0
    %1059 = vmatpush1.msra.mxu0 0.0
    %1060 = vmatprep.subr.mxu0 0.0
    %1061 = vmatpush1.msra.mxu0 0.0
    %1062 = vmatprep.subr.mxu0 0.0
    %1063 = vmatpush1.msra.mxu0 0.0
    %1064 = vmatprep.subr.mxu0 0.0
    %1065 = vmatpush1.msra.mxu0 0.0
    %1066 = vmatprep.subr.mxu0 0.0
    %1067 = vmatpush1.msra.mxu0 0.0
    %1068 = vmatprep.subr.mxu0 0.0
    %1069 = vmatpush1.msra.mxu0 0.0
    %1070 = vmatprep.subr.mxu0 0.0
    %1071 = vmatpush1.msra.mxu0 0.0
    %1072 = vmatprep.subr.mxu0 0.0
    %1073 = vmatpush1.msra.mxu0 0.0
    %1074 = vmatprep.subr.mxu0 0.0
    %1075 = vmatpush1.msra.mxu0 0.0
    %1076 = vmatprep.subr.mxu0 0.0
    %1077 = vmatpush1.msra.mxu0 0.0
    %1078 = vmatprep.subr.mxu0 0.0
    %1079 = vmatpush1.msra.mxu0 0.0
    %1080 = vmatprep.subr.mxu0 0.0
    %1081 = vmatpush1.msra.mxu0 0.0
    %1082 = vmatprep.subr.mxu0 0.0
    %1083 = vmatpush1.msra.mxu0 0.0
    %1084 = vmatprep.mubr.f32.mxu0 0.0
    %1085 = vmatmul.mubr.f32.gmra.mrb[0].mxu0 %v1018
    %v1086 = vpop.f32.mrb[0].mxu0
    %v1087 = vadd.f32 %v738, %v1086
    %v1088 = vpop.f32.mrb[0].mxu0
    %1089 = vdwg.mxu0
    %1090 = vmatprep.subr.mxu0 0.0
    %1091 = vmatpush1.msra.mxu0 %v814
    %1092 = vmatprep.subr.mxu0 0.0
    %1093 = vmatpush1.msra.mxu0 %v815
    %1094 = vmatprep.subr.mxu0 0.0
    %1095 = vmatpush1.msra.mxu0 %v816
    %1096 = vmatprep.subr.mxu0 0.0
    %1097 = vmatpush1.msra.mxu0 %v817
    %1098 = vmatprep.subr.mxu0 0.0
    %1099 = vmatpush1.msra.mxu0 0.0
    %1100 = vmatprep.subr.mxu0 0.0
    %1101 = vmatpush1.msra.mxu0 0.0
    %1102 = vmatprep.subr.mxu0 0.0
    %1103 = vmatpush1.msra.mxu0 0.0
    %1104 = vmatprep.subr.mxu0 0.0
    %1105 = vmatpush1.msra.mxu0 0.0
    %1106 = vmatprep.subr.mxu0 0.0
    %1107 = vmatpush1.msra.mxu0 0.0
    %1108 = vmatprep.subr.mxu0 0.0
    %1109 = vmatpush1.msra.mxu0 0.0
    %1110 = vmatprep.subr.mxu0 0.0
    %1111 = vmatpush1.msra.mxu0 0.0
    %1112 = vmatprep.subr.mxu0 0.0
    %1113 = vmatpush1.msra.mxu0 0.0
    %1114 = vmatprep.subr.mxu0 0.0
    %1115 = vmatpush1.msra.mxu0 0.0
    %1116 = vmatprep.subr.mxu0 0.0
    %1117 = vmatpush1.msra.mxu0 0.0
    %1118 = vmatprep.subr.mxu0 0.0
    %1119 = vmatpush1.msra.mxu0 0.0
    %1120 = vmatprep.subr.mxu0 0.0
    %1121 = vmatpush1.msra.mxu0 0.0
    %1122 = vmatprep.subr.mxu0 0.0
    %1123 = vmatpush1.msra.mxu0 0.0
    %1124 = vmatprep.subr.mxu0 0.0
    %1125 = vmatpush1.msra.mxu0 0.0
    %1126 = vmatprep.subr.mxu0 0.0
    %1127 = vmatpush1.msra.mxu0 0.0
    %1128 = vmatprep.subr.mxu0 0.0
    %1129 = vmatpush1.msra.mxu0 0.0
    %1130 = vmatprep.subr.mxu0 0.0
    %1131 = vmatpush1.msra.mxu0 0.0
    %1132 = vmatprep.subr.mxu0 0.0
    %1133 = vmatpush1.msra.mxu0 0.0
    %1134 = vmatprep.subr.mxu0 0.0
    %1135 = vmatpush1.msra.mxu0 0.0
    %1136 = vmatprep.subr.mxu0 0.0
    %1137 = vmatpush1.msra.mxu0 0.0
    %1138 = vmatprep.subr.mxu0 0.0
    %1139 = vmatpush1.msra.mxu0 0.0
    %1140 = vmatprep.subr.mxu0 0.0
    %1141 = vmatpush1.msra.mxu0 0.0
    %1142 = vmatprep.subr.mxu0 0.0
    %1143 = vmatpush1.msra.mxu0 0.0
    %1144 = vmatprep.subr.mxu0 0.0
    %1145 = vmatpush1.msra.mxu0 0.0
    %1146 = vmatprep.subr.mxu0 0.0
    %1147 = vmatpush1.msra.mxu0 0.0
    %1148 = vmatprep.subr.mxu0 0.0
    %1149 = vmatpush1.msra.mxu0 0.0
    %1150 = vmatprep.subr.mxu0 0.0
    %1151 = vmatpush1.msra.mxu0 0.0
    %1152 = vmatprep.subr.mxu0 0.0
    %1153 = vmatpush1.msra.mxu0 0.0
    %1154 = vmatprep.mubr.f32.mxu0 0.0
    %1155 = vmatmul.mubr.f32.gmra.mrb[0].mxu0 %v1018
    %v1156 = vpop.f32.mrb[0].mxu0
    %v1157 = vadd.f32 %v824, %v1156
    %v1158 = vpop.f32.mrb[0].mxu0
    %1159 = vdwg.mxu0
    %1160 = vmatprep.subr.mxu0 0.0
    %1161 = vmatpush1.msra.mxu0 %v897
    %1162 = vmatprep.subr.mxu0 0.0
    %1163 = vmatpush1.msra.mxu0 %v898
    %1164 = vmatprep.subr.mxu0 0.0
    %1165 = vmatpush1.msra.mxu0 %v899
    %1166 = vmatprep.subr.mxu0 0.0
    %1167 = vmatpush1.msra.mxu0 %v900
    %1168 = vmatprep.subr.mxu0 0.0
    %1169 = vmatpush1.msra.mxu0 0.0
    %1170 = vmatprep.subr.mxu0 0.0
    %1171 = vmatpush1.msra.mxu0 0.0
    %1172 = vmatprep.subr.mxu0 0.0
    %1173 = vmatpush1.msra.mxu0 0.0
    %1174 = vmatprep.subr.mxu0 0.0
    %1175 = vmatpush1.msra.mxu0 0.0
    %1176 = vmatprep.subr.mxu0 0.0
    %1177 = vmatpush1.msra.mxu0 0.0
    %1178 = vmatprep.subr.mxu0 0.0
    %1179 = vmatpush1.msra.mxu0 0.0
    %1180 = vmatprep.subr.mxu0 0.0
    %1181 = vmatpush1.msra.mxu0 0.0
    %1182 = vmatprep.subr.mxu0 0.0
    %1183 = vmatpush1.msra.mxu0 0.0
    %1184 = vmatprep.subr.mxu0 0.0
    %1185 = vmatpush1.msra.mxu0 0.0
    %1186 = vmatprep.subr.mxu0 0.0
    %1187 = vmatpush1.msra.mxu0 0.0
    %1188 = vmatprep.subr.mxu0 0.0
    %1189 = vmatpush1.msra.mxu0 0.0
    %1190 = vmatprep.subr.mxu0 0.0
    %1191 = vmatpush1.msra.mxu0 0.0
    %1192 = vmatprep.subr.mxu0 0.0
    %1193 = vmatpush1.msra.mxu0 0.0
    %1194 = vmatprep.subr.mxu0 0.0
    %1195 = vmatpush1.msra.mxu0 0.0
    %1196 = vmatprep.subr.mxu0 0.0
    %1197 = vmatpush1.msra.mxu0 0.0
    %1198 = vmatprep.subr.mxu0 0.0
    %1199 = vmatpush1.msra.mxu0 0.0
    %1200 = vmatprep.subr.mxu0 0.0
    %1201 = vmatpush1.msra.mxu0 0.0
    %1202 = vmatprep.subr.mxu0 0.0
    %1203 = vmatpush1.msra.mxu0 0.0
    %1204 = vmatprep.subr.mxu0 0.0
    %1205 = vmatpush1.msra.mxu0 0.0
    %1206 = vmatprep.subr.mxu0 0.0
    %1207 = vmatpush1.msra.mxu0 0.0
    %1208 = vmatprep.subr.mxu0 0.0
    %1209 = vmatpush1.msra.mxu0 0.0
    %1210 = vmatprep.subr.mxu0 0.0
    %1211 = vmatpush1.msra.mxu0 0.0
    %1212 = vmatprep.subr.mxu0 0.0
    %1213 = vmatpush1.msra.mxu0 0.0
    %1214 = vmatprep.subr.mxu0 0.0
    %1215 = vmatpush1.msra.mxu0 0.0
    %1216 = vmatprep.subr.mxu0 0.0
    %1217 = vmatpush1.msra.mxu0 0.0
    %1218 = vmatprep.subr.mxu0 0.0
    %1219 = vmatpush1.msra.mxu0 0.0
    %1220 = vmatprep.subr.mxu0 0.0
    %1221 = vmatpush1.msra.mxu0 0.0
    %1222 = vmatprep.subr.mxu0 0.0
    %1223 = vmatpush1.msra.mxu0 0.0
    %1224 = vmatprep.mubr.f32.mxu0 0.0
    %1225 = vmatmul.mubr.f32.gmra.mrb[0].mxu0 %v1018
    %v1226 = vpop.f32.mrb[0].mxu0
    %v1227 = vadd.f32 %v907, %v1226
    %v1228 = vpop.f32.mrb[0].mxu0
    %1229 = vdwg.mxu0
    %v1231 = vrot.slane %v1087, 6
    %v1233 = vadd.f32 %v282, %v1231
    %v1234 = vxor.u32 %v1233, 2147483648
    %v1235 = vmul.f32 %v1234, 1.442695
    %v1236 = vpow.pop %v1235
    %v1237 = vadd.f32 %v1236, 1.0
    %v1238 = vrcp.pop %v1237
    %v1239 = vmul.f32 1.0, %v1238
    %v1241 = vrot.slane %v1157, 6
    %v1243 = vadd.f32 %v370, %v1241
    %v1244 = vxor.u32 %v1243, 2147483648
    %v1245 = vmul.f32 %v1244, 1.442695
    %v1246 = vpow.pop %v1245
    %v1247 = vadd.f32 %v1246, 1.0
    %v1248 = vrcp.pop %v1247
    %v1249 = vmul.f32 1.0, %v1248
    %v1251 = vrot.slane %v1227, 6
    %v1253 = vmul.f32 %v1239, %v1251
    %v1254 = vadd.f32 %v458, %v1253
    %v1255 = vtanh.pop %v1254
    %v1256 = vsub.f32 1.0, %v1249
    %v1257 = vmul.f32 %v1256, %v1255
    %v1258 = vrot.slane %v1016, 6
    %v1260 = vmul.f32 %v1249, %v1258
    %v1261 = vadd.f32 %v1257, %v1260
    %vm1262 = vcmp.gt.s32.totalorder %v728, 1
    %v1263 = vsel %vm1262, 1, 0
    %v1264 = vcvt.s32.f32 %v1263
    %1266 = vset.pattern.permute.xlu0 0
    %1267 = vperm.xlu0 %1266, %v1264
    %v1268 = vpop.permute.xlu0 %1267
    %v1271 = vrot.slane %v1261, 2
    %v1273 = vmul.f32 %v1268, %v1271
    %v1274 = vsub.f32 1.0, %v1264
    %1276 = vset.pattern.permute.xlu0 0
    %1277 = vperm.xlu0 %1276, %v1274
    %v1278 = vpop.permute.xlu0 %1277
    %v1280 = vmul.f32 %v1278, %v1016
    %v1281 = vadd.f32 %v1273, %v1280
    %v1283 = vsel %vm208, %v1281, 0
    %1285 = vmatprep.subr.mxu0 0.0
    %1286 = vmatpush1.msra.mxu0 %v729
    %1287 = vmatprep.subr.mxu0 0.0
    %1288 = vmatpush1.msra.mxu0 %v730
    %1289 = vmatprep.subr.mxu0 0.0
    %1290 = vmatpush1.msra.mxu0 %v731
    %1291 = vmatprep.subr.mxu0 0.0
    %1292 = vmatpush1.msra.mxu0 %v732
    %1293 = vmatprep.subr.mxu0 0.0
    %1294 = vmatpush1.msra.mxu0 0.0
    %1295 = vmatprep.subr.mxu0 0.0
    %1296 = vmatpush1.msra.mxu0 0.0
    %1297 = vmatprep.subr.mxu0 0.0
    %1298 = vmatpush1.msra.mxu0 0.0
    %1299 = vmatprep.subr.mxu0 0.0
    %1300 = vmatpush1.msra.mxu0 0.0
    %1301 = vmatprep.subr.mxu0 0.0
    %1302 = vmatpush1.msra.mxu0 0.0
    %1303 = vmatprep.subr.mxu0 0.0
    %1304 = vmatpush1.msra.mxu0 0.0
    %1305 = vmatprep.subr.mxu0 0.0
    %1306 = vmatpush1.msra.mxu0 0.0
    %1307 = vmatprep.subr.mxu0 0.0
    %1308 = vmatpush1.msra.mxu0 0.0
    %1309 = vmatprep.subr.mxu0 0.0
    %1310 = vmatpush1.msra.mxu0 0.0
    %1311 = vmatprep.subr.mxu0 0.0
    %1312 = vmatpush1.msra.mxu0 0.0
    %1313 = vmatprep.subr.mxu0 0.0
    %1314 = vmatpush1.msra.mxu0 0.0
    %1315 = vmatprep.subr.mxu0 0.0
    %1316 = vmatpush1.msra.mxu0 0.0
    %1317 = vmatprep.subr.mxu0 0.0
    %1318 = vmatpush1.msra.mxu0 0.0
    %1319 = vmatprep.subr.mxu0 0.0
    %1320 = vmatpush1.msra.mxu0 0.0
    %1321 = vmatprep.subr.mxu0 0.0
    %1322 = vmatpush1.msra.mxu0 0.0
    %1323 = vmatprep.subr.mxu0 0.0
    %1324 = vmatpush1.msra.mxu0 0.0
    %1325 = vmatprep.subr.mxu0 0.0
    %1326 = vmatpush1.msra.mxu0 0.0
    %1327 = vmatprep.subr.mxu0 0.0
    %1328 = vmatpush1.msra.mxu0 0.0
    %1329 = vmatprep.subr.mxu0 0.0
    %1330 = vmatpush1.msra.mxu0 0.0
    %1331 = vmatprep.subr.mxu0 0.0
    %1332 = vmatpush1.msra.mxu0 0.0
    %1333 = vmatprep.subr.mxu0 0.0
    %1334 = vmatpush1.msra.mxu0 0.0
    %1335 = vmatprep.subr.mxu0 0.0
    %1336 = vmatpush1.msra.mxu0 0.0
    %1337 = vmatprep.subr.mxu0 0.0
    %1338 = vmatpush1.msra.mxu0 0.0
    %1339 = vmatprep.subr.mxu0 0.0
    %1340 = vmatpush1.msra.mxu0 0.0
    %1341 = vmatprep.subr.mxu0 0.0
    %1342 = vmatpush1.msra.mxu0 0.0
    %1343 = vmatprep.subr.mxu0 0.0
    %1344 = vmatpush1.msra.mxu0 0.0
    %1345 = vmatprep.subr.mxu0 0.0
    %1346 = vmatpush1.msra.mxu0 0.0
    %1347 = vmatprep.subr.mxu0 0.0
    %1348 = vmatpush1.msra.mxu0 0.0
    %1349 = vmatprep.mubr.f32.mxu0 0.0
    %1350 = vmatmul.mubr.f32.gmra.mrb[0].mxu0 %v1283
    %v1351 = vpop.f32.mrb[0].mxu0
    %v1352 = vadd.f32 %v738, %v1351
    %v1353 = vpop.f32.mrb[0].mxu0
    %1354 = vdwg.mxu0
    %1355 = vmatprep.subr.mxu0 0.0
    %1356 = vmatpush1.msra.mxu0 %v814
    %1357 = vmatprep.subr.mxu0 0.0
    %1358 = vmatpush1.msra.mxu0 %v815
    %1359 = vmatprep.subr.mxu0 0.0
    %1360 = vmatpush1.msra.mxu0 %v816
    %1361 = vmatprep.subr.mxu0 0.0
    %1362 = vmatpush1.msra.mxu0 %v817
    %1363 = vmatprep.subr.mxu0 0.0
    %1364 = vmatpush1.msra.mxu0 0.0
    %1365 = vmatprep.subr.mxu0 0.0
    %1366 = vmatpush1.msra.mxu0 0.0
    %1367 = vmatprep.subr.mxu0 0.0
    %1368 = vmatpush1.msra.mxu0 0.0
    %1369 = vmatprep.subr.mxu0 0.0
    %1370 = vmatpush1.msra.mxu0 0.0
    %1371 = vmatprep.subr.mxu0 0.0
    %1372 = vmatpush1.msra.mxu0 0.0
    %1373 = vmatprep.subr.mxu0 0.0
    %1374 = vmatpush1.msra.mxu0 0.0
    %1375 = vmatprep.subr.mxu0 0.0
    %1376 = vmatpush1.msra.mxu0 0.0
    %1377 = vmatprep.subr.mxu0 0.0
    %1378 = vmatpush1.msra.mxu0 0.0
    %1379 = vmatprep.subr.mxu0 0.0
    %1380 = vmatpush1.msra.mxu0 0.0
    %1381 = vmatprep.subr.mxu0 0.0
    %1382 = vmatpush1.msra.mxu0 0.0
    %1383 = vmatprep.subr.mxu0 0.0
    %1384 = vmatpush1.msra.mxu0 0.0
    %1385 = vmatprep.subr.mxu0 0.0
    %1386 = vmatpush1.msra.mxu0 0.0
    %1387 = vmatprep.subr.mxu0 0.0
    %1388 = vmatpush1.msra.mxu0 0.0
    %1389 = vmatprep.subr.mxu0 0.0
    %1390 = vmatpush1.msra.mxu0 0.0
    %1391 = vmatprep.subr.mxu0 0.0
    %1392 = vmatpush1.msra.mxu0 0.0
    %1393 = vmatprep.subr.mxu0 0.0
    %1394 = vmatpush1.msra.mxu0 0.0
    %1395 = vmatprep.subr.mxu0 0.0
    %1396 = vmatpush1.msra.mxu0 0.0
    %1397 = vmatprep.subr.mxu0 0.0
    %1398 = vmatpush1.msra.mxu0 0.0
    %1399 = vmatprep.subr.mxu0 0.0
    %1400 = vmatpush1.msra.mxu0 0.0
    %1401 = vmatprep.subr.mxu0 0.0
    %1402 = vmatpush1.msra.mxu0 0.0
    %1403 = vmatprep.subr.mxu0 0.0
    %1404 = vmatpush1.msra.mxu0 0.0
    %1405 = vmatprep.subr.mxu0 0.0
    %1406 = vmatpush1.msra.mxu0 0.0
    %1407 = vmatprep.subr.mxu0 0.0
    %1408 = vmatpush1.msra.mxu0 0.0
    %1409 = vmatprep.subr.mxu0 0.0
    %1410 = vmatpush1.msra.mxu0 0.0
    %1411 = vmatprep.subr.mxu0 0.0
    %1412 = vmatpush1.msra.mxu0 0.0
    %1413 = vmatprep.subr.mxu0 0.0
    %1414 = vmatpush1.msra.mxu0 0.0
    %1415 = vmatprep.subr.mxu0 0.0
    %1416 = vmatpush1.msra.mxu0 0.0
    %1417 = vmatprep.subr.mxu0 0.0
    %1418 = vmatpush1.msra.mxu0 0.0
    %1419 = vmatprep.mubr.f32.mxu0 0.0
    %1420 = vmatmul.mubr.f32.gmra.mrb[0].mxu0 %v1283
    %v1421 = vpop.f32.mrb[0].mxu0
    %v1422 = vadd.f32 %v824, %v1421
    %v1423 = vpop.f32.mrb[0].mxu0
    %1424 = vdwg.mxu0
    %1425 = vmatprep.subr.mxu0 0.0
    %1426 = vmatpush1.msra.mxu0 %v897
    %1427 = vmatprep.subr.mxu0 0.0
    %1428 = vmatpush1.msra.mxu0 %v898
    %1429 = vmatprep.subr.mxu0 0.0
    %1430 = vmatpush1.msra.mxu0 %v899
    %1431 = vmatprep.subr.mxu0 0.0
    %1432 = vmatpush1.msra.mxu0 %v900
    %1433 = vmatprep.subr.mxu0 0.0
    %1434 = vmatpush1.msra.mxu0 0.0
    %1435 = vmatprep.subr.mxu0 0.0
    %1436 = vmatpush1.msra.mxu0 0.0
    %1437 = vmatprep.subr.mxu0 0.0
    %1438 = vmatpush1.msra.mxu0 0.0
    %1439 = vmatprep.subr.mxu0 0.0
    %1440 = vmatpush1.msra.mxu0 0.0
    %1441 = vmatprep.subr.mxu0 0.0
    %1442 = vmatpush1.msra.mxu0 0.0
    %1443 = vmatprep.subr.mxu0 0.0
    %1444 = vmatpush1.msra.mxu0 0.0
    %1445 = vmatprep.subr.mxu0 0.0
    %1446 = vmatpush1.msra.mxu0 0.0
    %1447 = vmatprep.subr.mxu0 0.0
    %1448 = vmatpush1.msra.mxu0 0.0
    %1449 = vmatprep.subr.mxu0 0.0
    %1450 = vmatpush1.msra.mxu0 0.0
    %1451 = vmatprep.subr.mxu0 0.0
    %1452 = vmatpush1.msra.mxu0 0.0
    %1453 = vmatprep.subr.mxu0 0.0
    %1454 = vmatpush1.msra.mxu0 0.0
    %1455 = vmatprep.subr.mxu0 0.0
    %1456 = vmatpush1.msra.mxu0 0.0
    %1457 = vmatprep.subr.mxu0 0.0
    %1458 = vmatpush1.msra.mxu0 0.0
    %1459 = vmatprep.subr.mxu0 0.0
    %1460 = vmatpush1.msra.mxu0 0.0
    %1461 = vmatprep.subr.mxu0 0.0
    %1462 = vmatpush1.msra.mxu0 0.0
    %1463 = vmatprep.subr.mxu0 0.0
    %1464 = vmatpush1.msra.mxu0 0.0
    %1465 = vmatprep.subr.mxu0 0.0
    %1466 = vmatpush1.msra.mxu0 0.0
    %1467 = vmatprep.subr.mxu0 0.0
    %1468 = vmatpush1.msra.mxu0 0.0
    %1469 = vmatprep.subr.mxu0 0.0
    %1470 = vmatpush1.msra.mxu0 0.0
    %1471 = vmatprep.subr.mxu0 0.0
    %1472 = vmatpush1.msra.mxu0 0.0
    %1473 = vmatprep.subr.mxu0 0.0
    %1474 = vmatpush1.msra.mxu0 0.0
    %1475 = vmatprep.subr.mxu0 0.0
    %1476 = vmatpush1.msra.mxu0 0.0
    %1477 = vmatprep.subr.mxu0 0.0
    %1478 = vmatpush1.msra.mxu0 0.0
    %1479 = vmatprep.subr.mxu0 0.0
    %1480 = vmatpush1.msra.mxu0 0.0
    %1481 = vmatprep.subr.mxu0 0.0
    %1482 = vmatpush1.msra.mxu0 0.0
    %1483 = vmatprep.subr.mxu0 0.0
    %1484 = vmatpush1.msra.mxu0 0.0
    %1485 = vmatprep.subr.mxu0 0.0
    %1486 = vmatpush1.msra.mxu0 0.0
    %1487 = vmatprep.subr.mxu0 0.0
    %1488 = vmatpush1.msra.mxu0 0.0
    %1489 = vmatprep.mubr.f32.mxu0 0.0
    %1490 = vmatmul.mubr.f32.gmra.mrb[0].mxu0 %v1283
    %v1491 = vpop.f32.mrb[0].mxu0
    %v1492 = vadd.f32 %v907, %v1491
    %v1493 = vpop.f32.mrb[0].mxu0
    %1494 = vdwg.mxu0
    %v1496 = vrot.slane %v1352, 4
    %v1498 = vadd.f32 %v282, %v1496
    %v1499 = vxor.u32 %v1498, 2147483648
    %v1500 = vmul.f32 %v1499, 1.442695
    %v1501 = vpow.pop %v1500
    %v1502 = vadd.f32 %v1501, 1.0
    %v1503 = vrcp.pop %v1502
    %v1504 = vmul.f32 1.0, %v1503
    %v1506 = vrot.slane %v1422, 4
    %v1508 = vadd.f32 %v370, %v1506
    %v1509 = vxor.u32 %v1508, 2147483648
    %v1510 = vmul.f32 %v1509, 1.442695
    %v1511 = vpow.pop %v1510
    %v1512 = vadd.f32 %v1511, 1.0
    %v1513 = vrcp.pop %v1512
    %v1514 = vmul.f32 1.0, %v1513
    %v1516 = vrot.slane %v1492, 4
    %v1518 = vmul.f32 %v1504, %v1516
    %v1519 = vadd.f32 %v458, %v1518
    %v1520 = vtanh.pop %v1519
    %v1521 = vsub.f32 1.0, %v1514
    %v1522 = vmul.f32 %v1521, %v1520
    %v1523 = vrot.slane %v1281, 4
    %v1525 = vmul.f32 %v1514, %v1523
    %v1526 = vadd.f32 %v1522, %v1525
    %vm1527 = vcmp.gt.s32.totalorder %v728, 2
    %v1528 = vsel %vm1527, 1, 0
    %v1529 = vcvt.s32.f32 %v1528
    %1531 = vset.pattern.permute.xlu0 0
    %1532 = vperm.xlu0 %1531, %v1529
    %v1533 = vpop.permute.xlu0 %1532
    %v1536 = vrot.slane %v1526, 4
    %v1538 = vmul.f32 %v1533, %v1536
    %v1539 = vsub.f32 1.0, %v1529
    %1541 = vset.pattern.permute.xlu0 0
    %1542 = vperm.xlu0 %1541, %v1539
    %v1543 = vpop.permute.xlu0 %1542
    %v1545 = vmul.f32 %v1543, %v1281
    %v1546 = vadd.f32 %v1538, %v1545
    %v1548 = vsel %vm208, %v1546, 0
    %1550 = vmatprep.subr.mxu0 0.0
    %1551 = vmatpush1.msra.mxu0 %v729
    %1552 = vmatprep.subr.mxu0 0.0
    %1553 = vmatpush1.msra.mxu0 %v730
    %1554 = vmatprep.subr.mxu0 0.0
    %1555 = vmatpush1.msra.mxu0 %v731
    %1556 = vmatprep.subr.mxu0 0.0
    %1557 = vmatpush1.msra.mxu0 %v732
    %1558 = vmatprep.subr.mxu0 0.0
    %1559 = vmatpush1.msra.mxu0 0.0
    %1560 = vmatprep.subr.mxu0 0.0
    %1561 = vmatpush1.msra.mxu0 0.0
    %1562 = vmatprep.subr.mxu0 0.0
    %1563 = vmatpush1.msra.mxu0 0.0
    %1564 = vmatprep.subr.mxu0 0.0
    %1565 = vmatpush1.msra.mxu0 0.0
    %1566 = vmatprep.subr.mxu0 0.0
    %1567 = vmatpush1.msra.mxu0 0.0
    %1568 = vmatprep.subr.mxu0 0.0
    %1569 = vmatpush1.msra.mxu0 0.0
    %1570 = vmatprep.subr.mxu0 0.0
    %1571 = vmatpush1.msra.mxu0 0.0
    %1572 = vmatprep.subr.mxu0 0.0
    %1573 = vmatpush1.msra.mxu0 0.0
    %1574 = vmatprep.subr.mxu0 0.0
    %1575 = vmatpush1.msra.mxu0 0.0
    %1576 = vmatprep.subr.mxu0 0.0
    %1577 = vmatpush1.msra.mxu0 0.0
    %1578 = vmatprep.subr.mxu0 0.0
    %1579 = vmatpush1.msra.mxu0 0.0
    %1580 = vmatprep.subr.mxu0 0.0
    %1581 = vmatpush1.msra.mxu0 0.0
    %1582 = vmatprep.subr.mxu0 0.0
    %1583 = vmatpush1.msra.mxu0 0.0
    %1584 = vmatprep.subr.mxu0 0.0
    %1585 = vmatpush1.msra.mxu0 0.0
    %1586 = vmatprep.subr.mxu0 0.0
    %1587 = vmatpush1.msra.mxu0 0.0
    %1588 = vmatprep.subr.mxu0 0.0
    %1589 = vmatpush1.msra.mxu0 0.0
    %1590 = vmatprep.subr.mxu0 0.0
    %1591 = vmatpush1.msra.mxu0 0.0
    %1592 = vmatprep.subr.mxu0 0.0
    %1593 = vmatpush1.msra.mxu0 0.0
    %1594 = vmatprep.subr.mxu0 0.0
    %1595 = vmatpush1.msra.mxu0 0.0
    %1596 = vmatprep.subr.mxu0 0.0
    %1597 = vmatpush1.msra.mxu0 0.0
    %1598 = vmatprep.subr.mxu0 0.0
    %1599 = vmatpush1.msra.mxu0 0.0
    %1600 = vmatprep.subr.mxu0 0.0
    %1601 = vmatpush1.msra.mxu0 0.0
    %1602 = vmatprep.subr.mxu0 0.0
    %1603 = vmatpush1.msra.mxu0 0.0
    %1604 = vmatprep.subr.mxu0 0.0
    %1605 = vmatpush1.msra.mxu0 0.0
    %1606 = vmatprep.subr.mxu0 0.0
    %1607 = vmatpush1.msra.mxu0 0.0
    %1608 = vmatprep.subr.mxu0 0.0
    %1609 = vmatpush1.msra.mxu0 0.0
    %1610 = vmatprep.subr.mxu0 0.0
    %1611 = vmatpush1.msra.mxu0 0.0
    %1612 = vmatprep.subr.mxu0 0.0
    %1613 = vmatpush1.msra.mxu0 0.0
    %1614 = vmatprep.mubr.f32.mxu0 0.0
    %1615 = vmatmul.mubr.f32.gmra.mrb[0].mxu0 %v1548
    %v1616 = vpop.f32.mrb[0].mxu0
    %v1617 = vadd.f32 %v738, %v1616
    %v1618 = vpop.f32.mrb[0].mxu0
    %1619 = vdwg.mxu0
    %1620 = vmatprep.subr.mxu0 0.0
    %1621 = vmatpush1.msra.mxu0 %v814
    %1622 = vmatprep.subr.mxu0 0.0
    %1623 = vmatpush1.msra.mxu0 %v815
    %1624 = vmatprep.subr.mxu0 0.0
    %1625 = vmatpush1.msra.mxu0 %v816
    %1626 = vmatprep.subr.mxu0 0.0
    %1627 = vmatpush1.msra.mxu0 %v817
    %1628 = vmatprep.subr.mxu0 0.0
    %1629 = vmatpush1.msra.mxu0 0.0
    %1630 = vmatprep.subr.mxu0 0.0
    %1631 = vmatpush1.msra.mxu0 0.0
    %1632 = vmatprep.subr.mxu0 0.0
    %1633 = vmatpush1.msra.mxu0 0.0
    %1634 = vmatprep.subr.mxu0 0.0
    %1635 = vmatpush1.msra.mxu0 0.0
    %1636 = vmatprep.subr.mxu0 0.0
    %1637 = vmatpush1.msra.mxu0 0.0
    %1638 = vmatprep.subr.mxu0 0.0
    %1639 = vmatpush1.msra.mxu0 0.0
    %1640 = vmatprep.subr.mxu0 0.0
    %1641 = vmatpush1.msra.mxu0 0.0
    %1642 = vmatprep.subr.mxu0 0.0
    %1643 = vmatpush1.msra.mxu0 0.0
    %1644 = vmatprep.subr.mxu0 0.0
    %1645 = vmatpush1.msra.mxu0 0.0
    %1646 = vmatprep.subr.mxu0 0.0
    %1647 = vmatpush1.msra.mxu0 0.0
    %1648 = vmatprep.subr.mxu0 0.0
    %1649 = vmatpush1.msra.mxu0 0.0
    %1650 = vmatprep.subr.mxu0 0.0
    %1651 = vmatpush1.msra.mxu0 0.0
    %1652 = vmatprep.subr.mxu0 0.0
    %1653 = vmatpush1.msra.mxu0 0.0
    %1654 = vmatprep.subr.mxu0 0.0
    %1655 = vmatpush1.msra.mxu0 0.0
    %1656 = vmatprep.subr.mxu0 0.0
    %1657 = vmatpush1.msra.mxu0 0.0
    %1658 = vmatprep.subr.mxu0 0.0
    %1659 = vmatpush1.msra.mxu0 0.0
    %1660 = vmatprep.subr.mxu0 0.0
    %1661 = vmatpush1.msra.mxu0 0.0
    %1662 = vmatprep.subr.mxu0 0.0
    %1663 = vmatpush1.msra.mxu0 0.0
    %1664 = vmatprep.subr.mxu0 0.0
    %1665 = vmatpush1.msra.mxu0 0.0
    %1666 = vmatprep.subr.mxu0 0.0
    %1667 = vmatpush1.msra.mxu0 0.0
    %1668 = vmatprep.subr.mxu0 0.0
    %1669 = vmatpush1.msra.mxu0 0.0
    %1670 = vmatprep.subr.mxu0 0.0
    %1671 = vmatpush1.msra.mxu0 0.0
    %1672 = vmatprep.subr.mxu0 0.0
    %1673 = vmatpush1.msra.mxu0 0.0
    %1674 = vmatprep.subr.mxu0 0.0
    %1675 = vmatpush1.msra.mxu0 0.0
    %1676 = vmatprep.subr.mxu0 0.0
    %1677 = vmatpush1.msra.mxu0 0.0
    %1678 = vmatprep.subr.mxu0 0.0
    %1679 = vmatpush1.msra.mxu0 0.0
    %1680 = vmatprep.subr.mxu0 0.0
    %1681 = vmatpush1.msra.mxu0 0.0
    %1682 = vmatprep.subr.mxu0 0.0
    %1683 = vmatpush1.msra.mxu0 0.0
    %1684 = vmatprep.mubr.f32.mxu0 0.0
    %1685 = vmatmul.mubr.f32.gmra.mrb[0].mxu0 %v1548
    %v1686 = vpop.f32.mrb[0].mxu0
    %v1687 = vadd.f32 %v824, %v1686
    %v1688 = vpop.f32.mrb[0].mxu0
    %1689 = vdwg.mxu0
    %1690 = vmatprep.subr.mxu0 0.0
    %1691 = vmatpush1.msra.mxu0 %v897
    %1692 = vmatprep.subr.mxu0 0.0
    %1693 = vmatpush1.msra.mxu0 %v898
    %1694 = vmatprep.subr.mxu0 0.0
    %1695 = vmatpush1.msra.mxu0 %v899
    %1696 = vmatprep.subr.mxu0 0.0
    %1697 = vmatpush1.msra.mxu0 %v900
    %1698 = vmatprep.subr.mxu0 0.0
    %1699 = vmatpush1.msra.mxu0 0.0
    %1700 = vmatprep.subr.mxu0 0.0
    %1701 = vmatpush1.msra.mxu0 0.0
    %1702 = vmatprep.subr.mxu0 0.0
    %1703 = vmatpush1.msra.mxu0 0.0
    %1704 = vmatprep.subr.mxu0 0.0
    %1705 = vmatpush1.msra.mxu0 0.0
    %1706 = vmatprep.subr.mxu0 0.0
    %1707 = vmatpush1.msra.mxu0 0.0
    %1708 = vmatprep.subr.mxu0 0.0
    %1709 = vmatpush1.msra.mxu0 0.0
    %1710 = vmatprep.subr.mxu0 0.0
    %1711 = vmatpush1.msra.mxu0 0.0
    %1712 = vmatprep.subr.mxu0 0.0
    %1713 = vmatpush1.msra.mxu0 0.0
    %1714 = vmatprep.subr.mxu0 0.0
    %1715 = vmatpush1.msra.mxu0 0.0
    %1716 = vmatprep.subr.mxu0 0.0
    %1717 = vmatpush1.msra.mxu0 0.0
    %1718 = vmatprep.subr.mxu0 0.0
    %1719 = vmatpush1.msra.mxu0 0.0
    %1720 = vmatprep.subr.mxu0 0.0
    %1721 = vmatpush1.msra.mxu0 0.0
    %1722 = vmatprep.subr.mxu0 0.0
    %1723 = vmatpush1.msra.mxu0 0.0
    %1724 = vmatprep.subr.mxu0 0.0
    %1725 = vmatpush1.msra.mxu0 0.0
    %1726 = vmatprep.subr.mxu0 0.0
    %1727 = vmatpush1.msra.mxu0 0.0
    %1728 = vmatprep.subr.mxu0 0.0
    %1729 = vmatpush1.msra.mxu0 0.0
    %1730 = vmatprep.subr.mxu0 0.0
    %1731 = vmatpush1.msra.mxu0 0.0
    %1732 = vmatprep.subr.mxu0 0.0
    %1733 = vmatpush1.msra.mxu0 0.0
    %1734 = vmatprep.subr.mxu0 0.0
    %1735 = vmatpush1.msra.mxu0 0.0
    %1736 = vmatprep.subr.mxu0 0.0
    %1737 = vmatpush1.msra.mxu0 0.0
    %1738 = vmatprep.subr.mxu0 0.0
    %1739 = vmatpush1.msra.mxu0 0.0
    %1740 = vmatprep.subr.mxu0 0.0
    %1741 = vmatpush1.msra.mxu0 0.0
    %1742 = vmatprep.subr.mxu0 0.0
    %1743 = vmatpush1.msra.mxu0 0.0
    %1744 = vmatprep.subr.mxu0 0.0
    %1745 = vmatpush1.msra.mxu0 0.0
    %1746 = vmatprep.subr.mxu0 0.0
    %1747 = vmatpush1.msra.mxu0 0.0
    %1748 = vmatprep.subr.mxu0 0.0
    %1749 = vmatpush1.msra.mxu0 0.0
    %1750 = vmatprep.subr.mxu0 0.0
    %1751 = vmatpush1.msra.mxu0 0.0
    %1752 = vmatprep.subr.mxu0 0.0
    %1753 = vmatpush1.msra.mxu0 0.0
    %1754 = vmatprep.mubr.f32.mxu0 0.0
    %1755 = vmatmul.mubr.f32.gmra.mrb[0].mxu0 %v1548
    %v1756 = vpop.f32.mrb[0].mxu0
    %v1757 = vadd.f32 %v907, %v1756
    %v1758 = vpop.f32.mrb[0].mxu0
    %1759 = vdwg.mxu0
    %v1761 = vrot.slane %v1617, 2
    %v1763 = vadd.f32 %v282, %v1761
    %v1764 = vxor.u32 %v1763, 2147483648
    %v1765 = vmul.f32 %v1764, 1.442695
    %v1766 = vpow.pop %v1765
    %v1767 = vadd.f32 %v1766, 1.0
    %v1768 = vrcp.pop %v1767
    %v1769 = vmul.f32 1.0, %v1768
    %v1771 = vrot.slane %v1687, 2
    %v1773 = vadd.f32 %v370, %v1771
    %v1774 = vxor.u32 %v1773, 2147483648
    %v1775 = vmul.f32 %v1774, 1.442695
    %v1776 = vpow.pop %v1775
    %v1777 = vadd.f32 %v1776, 1.0
    %v1778 = vrcp.pop %v1777
    %v1779 = vmul.f32 1.0, %v1778
    %v1781 = vrot.slane %v1757, 2
    %v1783 = vmul.f32 %v1769, %v1781
    %v1784 = vadd.f32 %v458, %v1783
    %v1785 = vtanh.pop %v1784
    %v1786 = vsub.f32 1.0, %v1779
    %v1787 = vmul.f32 %v1786, %v1785
    %v1788 = vrot.slane %v1546, 2
    %v1790 = vmul.f32 %v1779, %v1788
    %v1791 = vadd.f32 %v1787, %v1790
    %vm1792 = vcmp.gt.s32.totalorder %v728, 3
    %v1793 = vsel %vm1792, 1, 0
    %v1794 = vcvt.s32.f32 %v1793
    %1796 = vset.pattern.permute.xlu0 0
    %1797 = vperm.xlu0 %1796, %v1794
    %v1798 = vpop.permute.xlu0 %1797
    %v1801 = vrot.slane %v1791, 6
    %v1803 = vmul.f32 %v1798, %v1801
    %v1804 = vsub.f32 1.0, %v1794
    %1806 = vset.pattern.permute.xlu0 0
    %1807 = vperm.xlu0 %1806, %v1804
    %v1808 = vpop.permute.xlu0 %1807
    %v1810 = vmul.f32 %v1808, %v1546
    %v1811 = vadd.f32 %v1803, %v1810
    %v1813 = vsel %vm208, %v1811, 0
    %1815 = vmatprep.subr.mxu0 0.0
    %1816 = vmatpush1.msra.mxu0 %v729
    %1817 = vmatprep.subr.mxu0 0.0
    %1818 = vmatpush1.msra.mxu0 %v730
    %1819 = vmatprep.subr.mxu0 0.0
    %1820 = vmatpush1.msra.mxu0 %v731
    %1821 = vmatprep.subr.mxu0 0.0
    %1822 = vmatpush1.msra.mxu0 %v732
    %1823 = vmatprep.subr.mxu0 0.0
    %1824 = vmatpush1.msra.mxu0 0.0
    %1825 = vmatprep.subr.mxu0 0.0
    %1826 = vmatpush1.msra.mxu0 0.0
    %1827 = vmatprep.subr.mxu0 0.0
    %1828 = vmatpush1.msra.mxu0 0.0
    %1829 = vmatprep.subr.mxu0 0.0
    %1830 = vmatpush1.msra.mxu0 0.0
    %1831 = vmatprep.subr.mxu0 0.0
    %1832 = vmatpush1.msra.mxu0 0.0
    %1833 = vmatprep.subr.mxu0 0.0
    %1834 = vmatpush1.msra.mxu0 0.0
    %1835 = vmatprep.subr.mxu0 0.0
    %1836 = vmatpush1.msra.mxu0 0.0
    %1837 = vmatprep.subr.mxu0 0.0
    %1838 = vmatpush1.msra.mxu0 0.0
    %1839 = vmatprep.subr.mxu0 0.0
    %1840 = vmatpush1.msra.mxu0 0.0
    %1841 = vmatprep.subr.mxu0 0.0
    %1842 = vmatpush1.msra.mxu0 0.0
    %1843 = vmatprep.subr.mxu0 0.0
    %1844 = vmatpush1.msra.mxu0 0.0
    %1845 = vmatprep.subr.mxu0 0.0
    %1846 = vmatpush1.msra.mxu0 0.0
    %1847 = vmatprep.subr.mxu0 0.0
    %1848 = vmatpush1.msra.mxu0 0.0
    %1849 = vmatprep.subr.mxu0 0.0
    %1850 = vmatpush1.msra.mxu0 0.0
    %1851 = vmatprep.subr.mxu0 0.0
    %1852 = vmatpush1.msra.mxu0 0.0
    %1853 = vmatprep.subr.mxu0 0.0
    %1854 = vmatpush1.msra.mxu0 0.0
    %1855 = vmatprep.subr.mxu0 0.0
    %1856 = vmatpush1.msra.mxu0 0.0
    %1857 = vmatprep.subr.mxu0 0.0
    %1858 = vmatpush1.msra.mxu0 0.0
    %1859 = vmatprep.subr.mxu0 0.0
    %1860 = vmatpush1.msra.mxu0 0.0
    %1861 = vmatprep.subr.mxu0 0.0
    %1862 = vmatpush1.msra.mxu0 0.0
    %1863 = vmatprep.subr.mxu0 0.0
    %1864 = vmatpush1.msra.mxu0 0.0
    %1865 = vmatprep.subr.mxu0 0.0
    %1866 = vmatpush1.msra.mxu0 0.0
    %1867 = vmatprep.subr.mxu0 0.0
    %1868 = vmatpush1.msra.mxu0 0.0
    %1869 = vmatprep.subr.mxu0 0.0
    %1870 = vmatpush1.msra.mxu0 0.0
    %1871 = vmatprep.subr.mxu0 0.0
    %1872 = vmatpush1.msra.mxu0 0.0
    %1873 = vmatprep.subr.mxu0 0.0
    %1874 = vmatpush1.msra.mxu0 0.0
    %1875 = vmatprep.subr.mxu0 0.0
    %1876 = vmatpush1.msra.mxu0 0.0
    %1877 = vmatprep.subr.mxu0 0.0
    %1878 = vmatpush1.msra.mxu0 0.0
    %1879 = vmatprep.mubr.f32.mxu0 0.0
    %1880 = vmatmul.mubr.f32.gmra.mrb[0].mxu0 %v1813
    %v1881 = vpop.f32.mrb[0].mxu0
    %v1882 = vadd.f32 %v738, %v1881
    %v1883 = vpop.f32.mrb[0].mxu0
    %1884 = vdwg.mxu0
    %1885 = vmatprep.subr.mxu0 0.0
    %1886 = vmatpush1.msra.mxu0 %v814
    %1887 = vmatprep.subr.mxu0 0.0
    %1888 = vmatpush1.msra.mxu0 %v815
    %1889 = vmatprep.subr.mxu0 0.0
    %1890 = vmatpush1.msra.mxu0 %v816
    %1891 = vmatprep.subr.mxu0 0.0
    %1892 = vmatpush1.msra.mxu0 %v817
    %1893 = vmatprep.subr.mxu0 0.0
    %1894 = vmatpush1.msra.mxu0 0.0
    %1895 = vmatprep.subr.mxu0 0.0
    %1896 = vmatpush1.msra.mxu0 0.0
    %1897 = vmatprep.subr.mxu0 0.0
    %1898 = vmatpush1.msra.mxu0 0.0
    %1899 = vmatprep.subr.mxu0 0.0
    %1900 = vmatpush1.msra.mxu0 0.0
    %1901 = vmatprep.subr.mxu0 0.0
    %1902 = vmatpush1.msra.mxu0 0.0
    %1903 = vmatprep.subr.mxu0 0.0
    %1904 = vmatpush1.msra.mxu0 0.0
    %1905 = vmatprep.subr.mxu0 0.0
    %1906 = vmatpush1.msra.mxu0 0.0
    %1907 = vmatprep.subr.mxu0 0.0
    %1908 = vmatpush1.msra.mxu0 0.0
    %1909 = vmatprep.subr.mxu0 0.0
    %1910 = vmatpush1.msra.mxu0 0.0
    %1911 = vmatprep.subr.mxu0 0.0
    %1912 = vmatpush1.msra.mxu0 0.0
    %1913 = vmatprep.subr.mxu0 0.0
    %1914 = vmatpush1.msra.mxu0 0.0
    %1915 = vmatprep.subr.mxu0 0.0
    %1916 = vmatpush1.msra.mxu0 0.0
    %1917 = vmatprep.subr.mxu0 0.0
    %1918 = vmatpush1.msra.mxu0 0.0
    %1919 = vmatprep.subr.mxu0 0.0
    %1920 = vmatpush1.msra.mxu0 0.0
    %1921 = vmatprep.subr.mxu0 0.0
    %1922 = vmatpush1.msra.mxu0 0.0
    %1923 = vmatprep.subr.mxu0 0.0
    %1924 = vmatpush1.msra.mxu0 0.0
    %1925 = vmatprep.subr.mxu0 0.0
    %1926 = vmatpush1.msra.mxu0 0.0
    %1927 = vmatprep.subr.mxu0 0.0
    %1928 = vmatpush1.msra.mxu0 0.0
    %1929 = vmatprep.subr.mxu0 0.0
    %1930 = vmatpush1.msra.mxu0 0.0
    %1931 = vmatprep.subr.mxu0 0.0
    %1932 = vmatpush1.msra.mxu0 0.0
    %1933 = vmatprep.subr.mxu0 0.0
    %1934 = vmatpush1.msra.mxu0 0.0
    %1935 = vmatprep.subr.mxu0 0.0
    %1936 = vmatpush1.msra.mxu0 0.0
    %1937 = vmatprep.subr.mxu0 0.0
    %1938 = vmatpush1.msra.mxu0 0.0
    %1939 = vmatprep.subr.mxu0 0.0
    %1940 = vmatpush1.msra.mxu0 0.0
    %1941 = vmatprep.subr.mxu0 0.0
    %1942 = vmatpush1.msra.mxu0 0.0
    %1943 = vmatprep.subr.mxu0 0.0
    %1944 = vmatpush1.msra.mxu0 0.0
    %1945 = vmatprep.subr.mxu0 0.0
    %1946 = vmatpush1.msra.mxu0 0.0
    %1947 = vmatprep.subr.mxu0 0.0
    %1948 = vmatpush1.msra.mxu0 0.0
    %1949 = vmatprep.mubr.f32.mxu0 0.0
    %1950 = vmatmul.mubr.f32.gmra.mrb[0].mxu0 %v1813
    %v1951 = vpop.f32.mrb[0].mxu0
    %v1952 = vadd.f32 %v824, %v1951
    %v1953 = vpop.f32.mrb[0].mxu0
    %1954 = vdwg.mxu0
    %1955 = vmatprep.subr.mxu0 0.0
    %1956 = vmatpush1.msra.mxu0 %v897
    %1957 = vmatprep.subr.mxu0 0.0
    %1958 = vmatpush1.msra.mxu0 %v898
    %1959 = vmatprep.subr.mxu0 0.0
    %1960 = vmatpush1.msra.mxu0 %v899
    %1961 = vmatprep.subr.mxu0 0.0
    %1962 = vmatpush1.msra.mxu0 %v900
    %1963 = vmatprep.subr.mxu0 0.0
    %1964 = vmatpush1.msra.mxu0 0.0
    %1965 = vmatprep.subr.mxu0 0.0
    %1966 = vmatpush1.msra.mxu0 0.0
    %1967 = vmatprep.subr.mxu0 0.0
    %1968 = vmatpush1.msra.mxu0 0.0
    %1969 = vmatprep.subr.mxu0 0.0
    %1970 = vmatpush1.msra.mxu0 0.0
    %1971 = vmatprep.subr.mxu0 0.0
    %1972 = vmatpush1.msra.mxu0 0.0
    %1973 = vmatprep.subr.mxu0 0.0
    %1974 = vmatpush1.msra.mxu0 0.0
    %1975 = vmatprep.subr.mxu0 0.0
    %1976 = vmatpush1.msra.mxu0 0.0
    %1977 = vmatprep.subr.mxu0 0.0
    %1978 = vmatpush1.msra.mxu0 0.0
    %1979 = vmatprep.subr.mxu0 0.0
    %1980 = vmatpush1.msra.mxu0 0.0
    %1981 = vmatprep.subr.mxu0 0.0
    %1982 = vmatpush1.msra.mxu0 0.0
    %1983 = vmatprep.subr.mxu0 0.0
    %1984 = vmatpush1.msra.mxu0 0.0
    %1985 = vmatprep.subr.mxu0 0.0
    %1986 = vmatpush1.msra.mxu0 0.0
    %1987 = vmatprep.subr.mxu0 0.0
    %1988 = vmatpush1.msra.mxu0 0.0
    %1989 = vmatprep.subr.mxu0 0.0
    %1990 = vmatpush1.msra.mxu0 0.0
    %1991 = vmatprep.subr.mxu0 0.0
    %1992 = vmatpush1.msra.mxu0 0.0
    %1993 = vmatprep.subr.mxu0 0.0
    %1994 = vmatpush1.msra.mxu0 0.0
    %1995 = vmatprep.subr.mxu0 0.0
    %1996 = vmatpush1.msra.mxu0 0.0
    %1997 = vmatprep.subr.mxu0 0.0
    %1998 = vmatpush1.msra.mxu0 0.0
    %1999 = vmatprep.subr.mxu0 0.0
    %2000 = vmatpush1.msra.mxu0 0.0
    %2001 = vmatprep.subr.mxu0 0.0
    %2002 = vmatpush1.msra.mxu0 0.0
    %2003 = vmatprep.subr.mxu0 0.0
    %2004 = vmatpush1.msra.mxu0 0.0
    %2005 = vmatprep.subr.mxu0 0.0
    %2006 = vmatpush1.msra.mxu0 0.0
    %2007 = vmatprep.subr.mxu0 0.0
    %2008 = vmatpush1.msra.mxu0 0.0
    %2009 = vmatprep.subr.mxu0 0.0
    %2010 = vmatpush1.msra.mxu0 0.0
    %2011 = vmatprep.subr.mxu0 0.0
    %2012 = vmatpush1.msra.mxu0 0.0
    %2013 = vmatprep.subr.mxu0 0.0
    %2014 = vmatpush1.msra.mxu0 0.0
    %2015 = vmatprep.subr.mxu0 0.0
    %2016 = vmatpush1.msra.mxu0 0.0
    %2017 = vmatprep.subr.mxu0 0.0
    %2018 = vmatpush1.msra.mxu0 0.0
    %2019 = vmatprep.mubr.f32.mxu0 0.0
    %2020 = vmatmul.mubr.f32.gmra.mrb[0].mxu0 %v1813
    %v2021 = vpop.f32.mrb[0].mxu0
    %v2022 = vadd.f32 %v907, %v2021
    %v2023 = vpop.f32.mrb[0].mxu0
    %2024 = vdwg.mxu0
    %v2025 = vadd.f32 %v287, %v1882
    %v2026 = vxor.u32 %v2025, 2147483648
    %v2027 = vmul.f32 %v2026, 1.442695
    %v2028 = vpow.pop %v2027
    %v2029 = vadd.f32 %v2028, 1.0
    %v2030 = vrcp.pop %v2029
    %v2031 = vmul.f32 1.0, %v2030
    %v2032 = vadd.f32 %v375, %v1952
    %v2033 = vxor.u32 %v2032, 2147483648
    %v2034 = vmul.f32 %v2033, 1.442695
    %v2035 = vpow.pop %v2034
    %v2036 = vadd.f32 %v2035, 1.0
    %v2037 = vrcp.pop %v2036
    %v2038 = vmul.f32 1.0, %v2037
    %v2039 = vmul.f32 %v2031, %v2022
    %v2040 = vadd.f32 %v463, %v2039
    %v2041 = vtanh.pop %v2040
    %v2042 = vsub.f32 1.0, %v2038
    %v2043 = vmul.f32 %v2042, %v2041
    %v2044 = vmul.f32 %v2038, %v1811
    %v2045 = vadd.f32 %v2043, %v2044
    %vm2046 = vcmp.gt.s32.totalorder %v728, 4
    %v2047 = vsel %vm2046, 1, 0
    %v2048 = vcvt.s32.f32 %v2047
    %2050 = vset.pattern.permute.xlu0 0
    %2051 = vperm.xlu0 %2050, %v2048
    %v2052 = vpop.permute.xlu0 %2051
    %v2054 = vmul.f32 %v2052, %v2045
    %v2055 = vsub.f32 1.0, %v2048
    %2057 = vset.pattern.permute.xlu0 0
    %2058 = vperm.xlu0 %2057, %v2055
    %v2059 = vpop.permute.xlu0 %2058
    %v2061 = vmul.f32 %v2059, %v1811
    %v2062 = vadd.f32 %v2054, %v2061
    %v2064 = vsel %vm208, %v2062, 0
    %2066 = vmatprep.subr.mxu0 0.0
    %2067 = vmatpush1.msra.mxu0 %v729
    %2068 = vmatprep.subr.mxu0 0.0
    %2069 = vmatpush1.msra.mxu0 %v730
    %2070 = vmatprep.subr.mxu0 0.0
    %2071 = vmatpush1.msra.mxu0 %v731
    %2072 = vmatprep.subr.mxu0 0.0
    %2073 = vmatpush1.msra.mxu0 %v732
    %2074 = vmatprep.subr.mxu0 0.0
    %2075 = vmatpush1.msra.mxu0 0.0
    %2076 = vmatprep.subr.mxu0 0.0
    %2077 = vmatpush1.msra.mxu0 0.0
    %2078 = vmatprep.subr.mxu0 0.0
    %2079 = vmatpush1.msra.mxu0 0.0
    %2080 = vmatprep.subr.mxu0 0.0
    %2081 = vmatpush1.msra.mxu0 0.0
    %2082 = vmatprep.subr.mxu0 0.0
    %2083 = vmatpush1.msra.mxu0 0.0
    %2084 = vmatprep.subr.mxu0 0.0
    %2085 = vmatpush1.msra.mxu0 0.0
    %2086 = vmatprep.subr.mxu0 0.0
    %2087 = vmatpush1.msra.mxu0 0.0
    %2088 = vmatprep.subr.mxu0 0.0
    %2089 = vmatpush1.msra.mxu0 0.0
    %2090 = vmatprep.subr.mxu0 0.0
    %2091 = vmatpush1.msra.mxu0 0.0
    %2092 = vmatprep.subr.mxu0 0.0
    %2093 = vmatpush1.msra.mxu0 0.0
    %2094 = vmatprep.subr.mxu0 0.0
    %2095 = vmatpush1.msra.mxu0 0.0
    %2096 = vmatprep.subr.mxu0 0.0
    %2097 = vmatpush1.msra.mxu0 0.0
    %2098 = vmatprep.subr.mxu0 0.0
    %2099 = vmatpush1.msra.mxu0 0.0
    %2100 = vmatprep.subr.mxu0 0.0
    %2101 = vmatpush1.msra.mxu0 0.0
    %2102 = vmatprep.subr.mxu0 0.0
    %2103 = vmatpush1.msra.mxu0 0.0
    %2104 = vmatprep.subr.mxu0 0.0
    %2105 = vmatpush1.msra.mxu0 0.0
    %2106 = vmatprep.subr.mxu0 0.0
    %2107 = vmatpush1.msra.mxu0 0.0
    %2108 = vmatprep.subr.mxu0 0.0
    %2109 = vmatpush1.msra.mxu0 0.0
    %2110 = vmatprep.subr.mxu0 0.0
    %2111 = vmatpush1.msra.mxu0 0.0
    %2112 = vmatprep.subr.mxu0 0.0
    %2113 = vmatpush1.msra.mxu0 0.0
    %2114 = vmatprep.subr.mxu0 0.0
    %2115 = vmatpush1.msra.mxu0 0.0
    %2116 = vmatprep.subr.mxu0 0.0
    %2117 = vmatpush1.msra.mxu0 0.0
    %2118 = vmatprep.subr.mxu0 0.0
    %2119 = vmatpush1.msra.mxu0 0.0
    %2120 = vmatprep.subr.mxu0 0.0
    %2121 = vmatpush1.msra.mxu0 0.0
    %2122 = vmatprep.subr.mxu0 0.0
    %2123 = vmatpush1.msra.mxu0 0.0
    %2124 = vmatprep.subr.mxu0 0.0
    %2125 = vmatpush1.msra.mxu0 0.0
    %2126 = vmatprep.subr.mxu0 0.0
    %2127 = vmatpush1.msra.mxu0 0.0
    %2128 = vmatprep.subr.mxu0 0.0
    %2129 = vmatpush1.msra.mxu0 0.0
    %2130 = vmatprep.mubr.f32.mxu0 0.0
    %2131 = vmatmul.mubr.f32.gmra.mrb[0].mxu0 %v2064
    %v2132 = vpop.f32.mrb[0].mxu0
    %v2133 = vadd.f32 %v738, %v2132
    %v2134 = vpop.f32.mrb[0].mxu0
    %2135 = vdwg.mxu0
    %2136 = vmatprep.subr.mxu0 0.0
    %2137 = vmatpush1.msra.mxu0 %v814
    %2138 = vmatprep.subr.mxu0 0.0
    %2139 = vmatpush1.msra.mxu0 %v815
    %2140 = vmatprep.subr.mxu0 0.0
    %2141 = vmatpush1.msra.mxu0 %v816
    %2142 = vmatprep.subr.mxu0 0.0
    %2143 = vmatpush1.msra.mxu0 %v817
    %2144 = vmatprep.subr.mxu0 0.0
    %2145 = vmatpush1.msra.mxu0 0.0
    %2146 = vmatprep.subr.mxu0 0.0
    %2147 = vmatpush1.msra.mxu0 0.0
    %2148 = vmatprep.subr.mxu0 0.0
    %2149 = vmatpush1.msra.mxu0 0.0
    %2150 = vmatprep.subr.mxu0 0.0
    %2151 = vmatpush1.msra.mxu0 0.0
    %2152 = vmatprep.subr.mxu0 0.0
    %2153 = vmatpush1.msra.mxu0 0.0
    %2154 = vmatprep.subr.mxu0 0.0
    %2155 = vmatpush1.msra.mxu0 0.0
    %2156 = vmatprep.subr.mxu0 0.0
    %2157 = vmatpush1.msra.mxu0 0.0
    %2158 = vmatprep.subr.mxu0 0.0
    %2159 = vmatpush1.msra.mxu0 0.0
    %2160 = vmatprep.subr.mxu0 0.0
    %2161 = vmatpush1.msra.mxu0 0.0
    %2162 = vmatprep.subr.mxu0 0.0
    %2163 = vmatpush1.msra.mxu0 0.0
    %2164 = vmatprep.subr.mxu0 0.0
    %2165 = vmatpush1.msra.mxu0 0.0
    %2166 = vmatprep.subr.mxu0 0.0
    %2167 = vmatpush1.msra.mxu0 0.0
    %2168 = vmatprep.subr.mxu0 0.0
    %2169 = vmatpush1.msra.mxu0 0.0
    %2170 = vmatprep.subr.mxu0 0.0
    %2171 = vmatpush1.msra.mxu0 0.0
    %2172 = vmatprep.subr.mxu0 0.0
    %2173 = vmatpush1.msra.mxu0 0.0
    %2174 = vmatprep.subr.mxu0 0.0
    %2175 = vmatpush1.msra.mxu0 0.0
    %2176 = vmatprep.subr.mxu0 0.0
    %2177 = vmatpush1.msra.mxu0 0.0
    %2178 = vmatprep.subr.mxu0 0.0
    %2179 = vmatpush1.msra.mxu0 0.0
    %2180 = vmatprep.subr.mxu0 0.0
    %2181 = vmatpush1.msra.mxu0 0.0
    %2182 = vmatprep.subr.mxu0 0.0
    %2183 = vmatpush1.msra.mxu0 0.0
    %2184 = vmatprep.subr.mxu0 0.0
    %2185 = vmatpush1.msra.mxu0 0.0
    %2186 = vmatprep.subr.mxu0 0.0
    %2187 = vmatpush1.msra.mxu0 0.0
    %2188 = vmatprep.subr.mxu0 0.0
    %2189 = vmatpush1.msra.mxu0 0.0
    %2190 = vmatprep.subr.mxu0 0.0
    %2191 = vmatpush1.msra.mxu0 0.0
    %2192 = vmatprep.subr.mxu0 0.0
    %2193 = vmatpush1.msra.mxu0 0.0
    %2194 = vmatprep.subr.mxu0 0.0
    %2195 = vmatpush1.msra.mxu0 0.0
    %2196 = vmatprep.subr.mxu0 0.0
    %2197 = vmatpush1.msra.mxu0 0.0
    %2198 = vmatprep.subr.mxu0 0.0
    %2199 = vmatpush1.msra.mxu0 0.0
    %2200 = vmatprep.mubr.f32.mxu0 0.0
    %2201 = vmatmul.mubr.f32.gmra.mrb[0].mxu0 %v2064
    %v2202 = vpop.f32.mrb[0].mxu0
    %v2203 = vadd.f32 %v824, %v2202
    %v2204 = vpop.f32.mrb[0].mxu0
    %2205 = vdwg.mxu0
    %2206 = vmatprep.subr.mxu0 0.0
    %2207 = vmatpush1.msra.mxu0 %v897
    %2208 = vmatprep.subr.mxu0 0.0
    %2209 = vmatpush1.msra.mxu0 %v898
    %2210 = vmatprep.subr.mxu0 0.0
    %2211 = vmatpush1.msra.mxu0 %v899
    %2212 = vmatprep.subr.mxu0 0.0
    %2213 = vmatpush1.msra.mxu0 %v900
    %2214 = vmatprep.subr.mxu0 0.0
    %2215 = vmatpush1.msra.mxu0 0.0
    %2216 = vmatprep.subr.mxu0 0.0
    %2217 = vmatpush1.msra.mxu0 0.0
    %2218 = vmatprep.subr.mxu0 0.0
    %2219 = vmatpush1.msra.mxu0 0.0
    %2220 = vmatprep.subr.mxu0 0.0
    %2221 = vmatpush1.msra.mxu0 0.0
    %2222 = vmatprep.subr.mxu0 0.0
    %2223 = vmatpush1.msra.mxu0 0.0
    %2224 = vmatprep.subr.mxu0 0.0
    %2225 = vmatpush1.msra.mxu0 0.0
    %2226 = vmatprep.subr.mxu0 0.0
    %2227 = vmatpush1.msra.mxu0 0.0
    %2228 = vmatprep.subr.mxu0 0.0
    %2229 = vmatpush1.msra.mxu0 0.0
    %2230 = vmatprep.subr.mxu0 0.0
    %2231 = vmatpush1.msra.mxu0 0.0
    %2232 = vmatprep.subr.mxu0 0.0
    %2233 = vmatpush1.msra.mxu0 0.0
    %2234 = vmatprep.subr.mxu0 0.0
    %2235 = vmatpush1.msra.mxu0 0.0
    %2236 = vmatprep.subr.mxu0 0.0
    %2237 = vmatpush1.msra.mxu0 0.0
    %2238 = vmatprep.subr.mxu0 0.0
    %2239 = vmatpush1.msra.mxu0 0.0
    %2240 = vmatprep.subr.mxu0 0.0
    %2241 = vmatpush1.msra.mxu0 0.0
    %2242 = vmatprep.subr.mxu0 0.0
    %2243 = vmatpush1.msra.mxu0 0.0
    %2244 = vmatprep.subr.mxu0 0.0
    %2245 = vmatpush1.msra.mxu0 0.0
    %2246 = vmatprep.subr.mxu0 0.0
    %2247 = vmatpush1.msra.mxu0 0.0
    %2248 = vmatprep.subr.mxu0 0.0
    %2249 = vmatpush1.msra.mxu0 0.0
    %2250 = vmatprep.subr.mxu0 0.0
    %2251 = vmatpush1.msra.mxu0 0.0
    %2252 = vmatprep.subr.mxu0 0.0
    %2253 = vmatpush1.msra.mxu0 0.0
    %2254 = vmatprep.subr.mxu0 0.0
    %2255 = vmatpush1.msra.mxu0 0.0
    %2256 = vmatprep.subr.mxu0 0.0
    %2257 = vmatpush1.msra.mxu0 0.0
    %2258 = vmatprep.subr.mxu0 0.0
    %2259 = vmatpush1.msra.mxu0 0.0
    %2260 = vmatprep.subr.mxu0 0.0
    %2261 = vmatpush1.msra.mxu0 0.0
    %2262 = vmatprep.subr.mxu0 0.0
    %2263 = vmatpush1.msra.mxu0 0.0
    %2264 = vmatprep.subr.mxu0 0.0
    %2265 = vmatpush1.msra.mxu0 0.0
    %2266 = vmatprep.subr.mxu0 0.0
    %2267 = vmatpush1.msra.mxu0 0.0
    %2268 = vmatprep.subr.mxu0 0.0
    %2269 = vmatpush1.msra.mxu0 0.0
    %2270 = vmatprep.mubr.f32.mxu0 0.0
    %2271 = vmatmul.mubr.f32.gmra.mrb[0].mxu0 %v2064
    %v2272 = vpop.f32.mrb[0].mxu0
    %v2273 = vadd.f32 %v907, %v2272
    %v2274 = vpop.f32.mrb[0].mxu0
    %2275 = vdwg.mxu0
    %v2277 = vrot.slane %v2133, 6
    %v2279 = vadd.f32 %v287, %v2277
    %v2280 = vxor.u32 %v2279, 2147483648
    %v2281 = vmul.f32 %v2280, 1.442695
    %v2282 = vpow.pop %v2281
    %v2283 = vadd.f32 %v2282, 1.0
    %v2284 = vrcp.pop %v2283
    %v2285 = vmul.f32 1.0, %v2284
    %v2287 = vrot.slane %v2203, 6
    %v2289 = vadd.f32 %v375, %v2287
    %v2290 = vxor.u32 %v2289, 2147483648
    %v2291 = vmul.f32 %v2290, 1.442695
    %v2292 = vpow.pop %v2291
    %v2293 = vadd.f32 %v2292, 1.0
    %v2294 = vrcp.pop %v2293
    %v2295 = vmul.f32 1.0, %v2294
    %v2297 = vrot.slane %v2273, 6
    %v2299 = vmul.f32 %v2285, %v2297
    %v2300 = vadd.f32 %v463, %v2299
    %v2301 = vtanh.pop %v2300
    %v2302 = vsub.f32 1.0, %v2295
    %v2303 = vmul.f32 %v2302, %v2301
    %v2304 = vrot.slane %v2062, 6
    %v2306 = vmul.f32 %v2295, %v2304
    %v2307 = vadd.f32 %v2303, %v2306
    %vm2308 = vcmp.gt.s32.totalorder %v728, 5
    %v2309 = vsel %vm2308, 1, 0
    %v2310 = vcvt.s32.f32 %v2309
    %2312 = vset.pattern.permute.xlu0 0
    %2313 = vperm.xlu0 %2312, %v2310
    %v2314 = vpop.permute.xlu0 %2313
    %v2317 = vrot.slane %v2307, 2
    %v2319 = vmul.f32 %v2314, %v2317
    %v2320 = vsub.f32 1.0, %v2310
    %2322 = vset.pattern.permute.xlu0 0
    %2323 = vperm.xlu0 %2322, %v2320
    %v2324 = vpop.permute.xlu0 %2323
    %v2326 = vmul.f32 %v2324, %v2062
    %v2327 = vadd.f32 %v2319, %v2326
    %v2329 = vsel %vm208, %v2327, 0
    %2331 = vmatprep.subr.mxu0 0.0
    %2332 = vmatpush1.msra.mxu0 %v729
    %2333 = vmatprep.subr.mxu0 0.0
    %2334 = vmatpush1.msra.mxu0 %v730
    %2335 = vmatprep.subr.mxu0 0.0
    %2336 = vmatpush1.msra.mxu0 %v731
    %2337 = vmatprep.subr.mxu0 0.0
    %2338 = vmatpush1.msra.mxu0 %v732
    %2339 = vmatprep.subr.mxu0 0.0
    %2340 = vmatpush1.msra.mxu0 0.0
    %2341 = vmatprep.subr.mxu0 0.0
    %2342 = vmatpush1.msra.mxu0 0.0
    %2343 = vmatprep.subr.mxu0 0.0
    %2344 = vmatpush1.msra.mxu0 0.0
    %2345 = vmatprep.subr.mxu0 0.0
    %2346 = vmatpush1.msra.mxu0 0.0
    %2347 = vmatprep.subr.mxu0 0.0
    %2348 = vmatpush1.msra.mxu0 0.0
    %2349 = vmatprep.subr.mxu0 0.0
    %2350 = vmatpush1.msra.mxu0 0.0
    %2351 = vmatprep.subr.mxu0 0.0
    %2352 = vmatpush1.msra.mxu0 0.0
    %2353 = vmatprep.subr.mxu0 0.0
    %2354 = vmatpush1.msra.mxu0 0.0
    %2355 = vmatprep.subr.mxu0 0.0
    %2356 = vmatpush1.msra.mxu0 0.0
    %2357 = vmatprep.subr.mxu0 0.0
    %2358 = vmatpush1.msra.mxu0 0.0
    %2359 = vmatprep.subr.mxu0 0.0
    %2360 = vmatpush1.msra.mxu0 0.0
    %2361 = vmatprep.subr.mxu0 0.0
    %2362 = vmatpush1.msra.mxu0 0.0
    %2363 = vmatprep.subr.mxu0 0.0
    %2364 = vmatpush1.msra.mxu0 0.0
    %2365 = vmatprep.subr.mxu0 0.0
    %2366 = vmatpush1.msra.mxu0 0.0
    %2367 = vmatprep.subr.mxu0 0.0
    %2368 = vmatpush1.msra.mxu0 0.0
    %2369 = vmatprep.subr.mxu0 0.0
    %2370 = vmatpush1.msra.mxu0 0.0
    %2371 = vmatprep.subr.mxu0 0.0
    %2372 = vmatpush1.msra.mxu0 0.0
    %2373 = vmatprep.subr.mxu0 0.0
    %2374 = vmatpush1.msra.mxu0 0.0
    %2375 = vmatprep.subr.mxu0 0.0
    %2376 = vmatpush1.msra.mxu0 0.0
    %2377 = vmatprep.subr.mxu0 0.0
    %2378 = vmatpush1.msra.mxu0 0.0
    %2379 = vmatprep.subr.mxu0 0.0
    %2380 = vmatpush1.msra.mxu0 0.0
    %2381 = vmatprep.subr.mxu0 0.0
    %2382 = vmatpush1.msra.mxu0 0.0
    %2383 = vmatprep.subr.mxu0 0.0
    %2384 = vmatpush1.msra.mxu0 0.0
    %2385 = vmatprep.subr.mxu0 0.0
    %2386 = vmatpush1.msra.mxu0 0.0
    %2387 = vmatprep.subr.mxu0 0.0
    %2388 = vmatpush1.msra.mxu0 0.0
    %2389 = vmatprep.subr.mxu0 0.0
    %2390 = vmatpush1.msra.mxu0 0.0
    %2391 = vmatprep.subr.mxu0 0.0
    %2392 = vmatpush1.msra.mxu0 0.0
    %2393 = vmatprep.subr.mxu0 0.0
    %2394 = vmatpush1.msra.mxu0 0.0
    %2395 = vmatprep.mubr.f32.mxu0 0.0
    %2396 = vmatmul.mubr.f32.gmra.mrb[0].mxu0 %v2329
    %v2397 = vpop.f32.mrb[0].mxu0
    %v2398 = vadd.f32 %v738, %v2397
    %v2399 = vpop.f32.mrb[0].mxu0
    %2400 = vdwg.mxu0
    %2401 = vmatprep.subr.mxu0 0.0
    %2402 = vmatpush1.msra.mxu0 %v814
    %2403 = vmatprep.subr.mxu0 0.0
    %2404 = vmatpush1.msra.mxu0 %v815
    %2405 = vmatprep.subr.mxu0 0.0
    %2406 = vmatpush1.msra.mxu0 %v816
    %2407 = vmatprep.subr.mxu0 0.0
    %2408 = vmatpush1.msra.mxu0 %v817
    %2409 = vmatprep.subr.mxu0 0.0
    %2410 = vmatpush1.msra.mxu0 0.0
    %2411 = vmatprep.subr.mxu0 0.0
    %2412 = vmatpush1.msra.mxu0 0.0
    %2413 = vmatprep.subr.mxu0 0.0
    %2414 = vmatpush1.msra.mxu0 0.0
    %2415 = vmatprep.subr.mxu0 0.0
    %2416 = vmatpush1.msra.mxu0 0.0
    %2417 = vmatprep.subr.mxu0 0.0
    %2418 = vmatpush1.msra.mxu0 0.0
    %2419 = vmatprep.subr.mxu0 0.0
    %2420 = vmatpush1.msra.mxu0 0.0
    %2421 = vmatprep.subr.mxu0 0.0
    %2422 = vmatpush1.msra.mxu0 0.0
    %2423 = vmatprep.subr.mxu0 0.0
    %2424 = vmatpush1.msra.mxu0 0.0
    %2425 = vmatprep.subr.mxu0 0.0
    %2426 = vmatpush1.msra.mxu0 0.0
    %2427 = vmatprep.subr.mxu0 0.0
    %2428 = vmatpush1.msra.mxu0 0.0
    %2429 = vmatprep.subr.mxu0 0.0
    %2430 = vmatpush1.msra.mxu0 0.0
    %2431 = vmatprep.subr.mxu0 0.0
    %2432 = vmatpush1.msra.mxu0 0.0
    %2433 = vmatprep.subr.mxu0 0.0
    %2434 = vmatpush1.msra.mxu0 0.0
    %2435 = vmatprep.subr.mxu0 0.0
    %2436 = vmatpush1.msra.mxu0 0.0
    %2437 = vmatprep.subr.mxu0 0.0
    %2438 = vmatpush1.msra.mxu0 0.0
    %2439 = vmatprep.subr.mxu0 0.0
    %2440 = vmatpush1.msra.mxu0 0.0
    %2441 = vmatprep.subr.mxu0 0.0
    %2442 = vmatpush1.msra.mxu0 0.0
    %2443 = vmatprep.subr.mxu0 0.0
    %2444 = vmatpush1.msra.mxu0 0.0
    %2445 = vmatprep.subr.mxu0 0.0
    %2446 = vmatpush1.msra.mxu0 0.0
    %2447 = vmatprep.subr.mxu0 0.0
    %2448 = vmatpush1.msra.mxu0 0.0
    %2449 = vmatprep.subr.mxu0 0.0
    %2450 = vmatpush1.msra.mxu0 0.0
    %2451 = vmatprep.subr.mxu0 0.0
    %2452 = vmatpush1.msra.mxu0 0.0
    %2453 = vmatprep.subr.mxu0 0.0
    %2454 = vmatpush1.msra.mxu0 0.0
    %2455 = vmatprep.subr.mxu0 0.0
    %2456 = vmatpush1.msra.mxu0 0.0
    %2457 = vmatprep.subr.mxu0 0.0
    %2458 = vmatpush1.msra.mxu0 0.0
    %2459 = vmatprep.subr.mxu0 0.0
    %2460 = vmatpush1.msra.mxu0 0.0
    %2461 = vmatprep.subr.mxu0 0.0
    %2462 = vmatpush1.msra.mxu0 0.0
    %2463 = vmatprep.subr.mxu0 0.0
    %2464 = vmatpush1.msra.mxu0 0.0
    %2465 = vmatprep.mubr.f32.mxu0 0.0
    %2466 = vmatmul.mubr.f32.gmra.mrb[0].mxu0 %v2329
    %v2467 = vpop.f32.mrb[0].mxu0
    %v2468 = vadd.f32 %v824, %v2467
    %v2469 = vpop.f32.mrb[0].mxu0
    %2470 = vdwg.mxu0
    %2471 = vmatprep.subr.mxu0 0.0
    %2472 = vmatpush1.msra.mxu0 %v897
    %2473 = vmatprep.subr.mxu0 0.0
    %2474 = vmatpush1.msra.mxu0 %v898
    %2475 = vmatprep.subr.mxu0 0.0
    %2476 = vmatpush1.msra.mxu0 %v899
    %2477 = vmatprep.subr.mxu0 0.0
    %2478 = vmatpush1.msra.mxu0 %v900
    %2479 = vmatprep.subr.mxu0 0.0
    %2480 = vmatpush1.msra.mxu0 0.0
    %2481 = vmatprep.subr.mxu0 0.0
    %2482 = vmatpush1.msra.mxu0 0.0
    %2483 = vmatprep.subr.mxu0 0.0
    %2484 = vmatpush1.msra.mxu0 0.0
    %2485 = vmatprep.subr.mxu0 0.0
    %2486 = vmatpush1.msra.mxu0 0.0
    %2487 = vmatprep.subr.mxu0 0.0
    %2488 = vmatpush1.msra.mxu0 0.0
    %2489 = vmatprep.subr.mxu0 0.0
    %2490 = vmatpush1.msra.mxu0 0.0
    %2491 = vmatprep.subr.mxu0 0.0
    %2492 = vmatpush1.msra.mxu0 0.0
    %2493 = vmatprep.subr.mxu0 0.0
    %2494 = vmatpush1.msra.mxu0 0.0
    %2495 = vmatprep.subr.mxu0 0.0
    %2496 = vmatpush1.msra.mxu0 0.0
    %2497 = vmatprep.subr.mxu0 0.0
    %2498 = vmatpush1.msra.mxu0 0.0
    %2499 = vmatprep.subr.mxu0 0.0
    %2500 = vmatpush1.msra.mxu0 0.0
    %2501 = vmatprep.subr.mxu0 0.0
    %2502 = vmatpush1.msra.mxu0 0.0
    %2503 = vmatprep.subr.mxu0 0.0
    %2504 = vmatpush1.msra.mxu0 0.0
    %2505 = vmatprep.subr.mxu0 0.0
    %2506 = vmatpush1.msra.mxu0 0.0
    %2507 = vmatprep.subr.mxu0 0.0
    %2508 = vmatpush1.msra.mxu0 0.0
    %2509 = vmatprep.subr.mxu0 0.0
    %2510 = vmatpush1.msra.mxu0 0.0
    %2511 = vmatprep.subr.mxu0 0.0
    %2512 = vmatpush1.msra.mxu0 0.0
    %2513 = vmatprep.subr.mxu0 0.0
    %2514 = vmatpush1.msra.mxu0 0.0
    %2515 = vmatprep.subr.mxu0 0.0
    %2516 = vmatpush1.msra.mxu0 0.0
    %2517 = vmatprep.subr.mxu0 0.0
    %2518 = vmatpush1.msra.mxu0 0.0
    %2519 = vmatprep.subr.mxu0 0.0
    %2520 = vmatpush1.msra.mxu0 0.0
    %2521 = vmatprep.subr.mxu0 0.0
    %2522 = vmatpush1.msra.mxu0 0.0
    %2523 = vmatprep.subr.mxu0 0.0
    %2524 = vmatpush1.msra.mxu0 0.0
    %2525 = vmatprep.subr.mxu0 0.0
    %2526 = vmatpush1.msra.mxu0 0.0
    %2527 = vmatprep.subr.mxu0 0.0
    %2528 = vmatpush1.msra.mxu0 0.0
    %2529 = vmatprep.subr.mxu0 0.0
    %2530 = vmatpush1.msra.mxu0 0.0
    %2531 = vmatprep.subr.mxu0 0.0
    %2532 = vmatpush1.msra.mxu0 0.0
    %2533 = vmatprep.subr.mxu0 0.0
    %2534 = vmatpush1.msra.mxu0 0.0
    %2535 = vmatprep.mubr.f32.mxu0 0.0
    %2536 = vmatmul.mubr.f32.gmra.mrb[0].mxu0 %v2329
    %v2537 = vpop.f32.mrb[0].mxu0
    %v2538 = vadd.f32 %v907, %v2537
    %v2539 = vpop.f32.mrb[0].mxu0
    %2540 = vdwg.mxu0
    %v2542 = vrot.slane %v2398, 4
    %v2544 = vadd.f32 %v287, %v2542
    %v2545 = vxor.u32 %v2544, 2147483648
    %v2546 = vmul.f32 %v2545, 1.442695
    %v2547 = vpow.pop %v2546
    %v2548 = vadd.f32 %v2547, 1.0
    %v2549 = vrcp.pop %v2548
    %v2550 = vmul.f32 1.0, %v2549
    %v2552 = vrot.slane %v2468, 4
    %v2554 = vadd.f32 %v375, %v2552
    %v2555 = vxor.u32 %v2554, 2147483648
    %v2556 = vmul.f32 %v2555, 1.442695
    %v2557 = vpow.pop %v2556
    %v2558 = vadd.f32 %v2557, 1.0
    %v2559 = vrcp.pop %v2558
    %v2560 = vmul.f32 1.0, %v2559
    %v2562 = vrot.slane %v2538, 4
    %v2564 = vmul.f32 %v2550, %v2562
    %v2565 = vadd.f32 %v463, %v2564
    %v2566 = vtanh.pop %v2565
    %v2567 = vsub.f32 1.0, %v2560
    %v2568 = vmul.f32 %v2567, %v2566
    %v2569 = vrot.slane %v2327, 4
    %v2571 = vmul.f32 %v2560, %v2569
    %v2572 = vadd.f32 %v2568, %v2571
    %vm2573 = vcmp.gt.s32.totalorder %v728, 6
    %v2574 = vsel %vm2573, 1, 0
    %v2575 = vcvt.s32.f32 %v2574
    %2577 = vset.pattern.permute.xlu0 0
    %2578 = vperm.xlu0 %2577, %v2575
    %v2579 = vpop.permute.xlu0 %2578
    %v2582 = vrot.slane %v2572, 4
    %v2584 = vmul.f32 %v2579, %v2582
    %v2585 = vsub.f32 1.0, %v2575
    %2587 = vset.pattern.permute.xlu0 0
    %2588 = vperm.xlu0 %2587, %v2585
    %v2589 = vpop.permute.xlu0 %2588
    %v2591 = vmul.f32 %v2589, %v2327
    %v2592 = vadd.f32 %v2584, %v2591
    %v2594 = vsel %vm208, %v2592, 0
    %2596 = vmatprep.subr.mxu0 0.0
    %2597 = vmatpush1.msra.mxu0 %v729
    %2598 = vmatprep.subr.mxu0 0.0
    %2599 = vmatpush1.msra.mxu0 %v730
    %2600 = vmatprep.subr.mxu0 0.0
    %2601 = vmatpush1.msra.mxu0 %v731
    %2602 = vmatprep.subr.mxu0 0.0
    %2603 = vmatpush1.msra.mxu0 %v732
    %2604 = vmatprep.subr.mxu0 0.0
    %2605 = vmatpush1.msra.mxu0 0.0
    %2606 = vmatprep.subr.mxu0 0.0
    %2607 = vmatpush1.msra.mxu0 0.0
    %2608 = vmatprep.subr.mxu0 0.0
    %2609 = vmatpush1.msra.mxu0 0.0
    %2610 = vmatprep.subr.mxu0 0.0
    %2611 = vmatpush1.msra.mxu0 0.0
    %2612 = vmatprep.subr.mxu0 0.0
    %2613 = vmatpush1.msra.mxu0 0.0
    %2614 = vmatprep.subr.mxu0 0.0
    %2615 = vmatpush1.msra.mxu0 0.0
    %2616 = vmatprep.subr.mxu0 0.0
    %2617 = vmatpush1.msra.mxu0 0.0
    %2618 = vmatprep.subr.mxu0 0.0
    %2619 = vmatpush1.msra.mxu0 0.0
    %2620 = vmatprep.subr.mxu0 0.0
    %2621 = vmatpush1.msra.mxu0 0.0
    %2622 = vmatprep.subr.mxu0 0.0
    %2623 = vmatpush1.msra.mxu0 0.0
    %2624 = vmatprep.subr.mxu0 0.0
    %2625 = vmatpush1.msra.mxu0 0.0
    %2626 = vmatprep.subr.mxu0 0.0
    %2627 = vmatpush1.msra.mxu0 0.0
    %2628 = vmatprep.subr.mxu0 0.0
    %2629 = vmatpush1.msra.mxu0 0.0
    %2630 = vmatprep.subr.mxu0 0.0
    %2631 = vmatpush1.msra.mxu0 0.0
    %2632 = vmatprep.subr.mxu0 0.0
    %2633 = vmatpush1.msra.mxu0 0.0
    %2634 = vmatprep.subr.mxu0 0.0
    %2635 = vmatpush1.msra.mxu0 0.0
    %2636 = vmatprep.subr.mxu0 0.0
    %2637 = vmatpush1.msra.mxu0 0.0
    %2638 = vmatprep.subr.mxu0 0.0
    %2639 = vmatpush1.msra.mxu0 0.0
    %2640 = vmatprep.subr.mxu0 0.0
    %2641 = vmatpush1.msra.mxu0 0.0
    %2642 = vmatprep.subr.mxu0 0.0
    %2643 = vmatpush1.msra.mxu0 0.0
    %2644 = vmatprep.subr.mxu0 0.0
    %2645 = vmatpush1.msra.mxu0 0.0
    %2646 = vmatprep.subr.mxu0 0.0
    %2647 = vmatpush1.msra.mxu0 0.0
    %2648 = vmatprep.subr.mxu0 0.0
    %2649 = vmatpush1.msra.mxu0 0.0
    %2650 = vmatprep.subr.mxu0 0.0
    %2651 = vmatpush1.msra.mxu0 0.0
    %2652 = vmatprep.subr.mxu0 0.0
    %2653 = vmatpush1.msra.mxu0 0.0
    %2654 = vmatprep.subr.mxu0 0.0
    %2655 = vmatpush1.msra.mxu0 0.0
    %2656 = vmatprep.subr.mxu0 0.0
    %2657 = vmatpush1.msra.mxu0 0.0
    %2658 = vmatprep.subr.mxu0 0.0
    %2659 = vmatpush1.msra.mxu0 0.0
    %2660 = vmatprep.mubr.f32.mxu0 0.0
    %2661 = vmatmul.mubr.f32.gmra.mrb[0].mxu0 %v2594
    %v2662 = vpop.f32.mrb[0].mxu0
    %v2663 = vadd.f32 %v738, %v2662
    %v2664 = vpop.f32.mrb[0].mxu0
    %2665 = vdwg.mxu0
    %2666 = vmatprep.subr.mxu0 0.0
    %2667 = vmatpush1.msra.mxu0 %v814
    %2668 = vmatprep.subr.mxu0 0.0
    %2669 = vmatpush1.msra.mxu0 %v815
    %2670 = vmatprep.subr.mxu0 0.0
    %2671 = vmatpush1.msra.mxu0 %v816
    %2672 = vmatprep.subr.mxu0 0.0
    %2673 = vmatpush1.msra.mxu0 %v817
    %2674 = vmatprep.subr.mxu0 0.0
    %2675 = vmatpush1.msra.mxu0 0.0
    %2676 = vmatprep.subr.mxu0 0.0
    %2677 = vmatpush1.msra.mxu0 0.0
    %2678 = vmatprep.subr.mxu0 0.0
    %2679 = vmatpush1.msra.mxu0 0.0
    %2680 = vmatprep.subr.mxu0 0.0
    %2681 = vmatpush1.msra.mxu0 0.0
    %2682 = vmatprep.subr.mxu0 0.0
    %2683 = vmatpush1.msra.mxu0 0.0
    %2684 = vmatprep.subr.mxu0 0.0
    %2685 = vmatpush1.msra.mxu0 0.0
    %2686 = vmatprep.subr.mxu0 0.0
    %2687 = vmatpush1.msra.mxu0 0.0
    %2688 = vmatprep.subr.mxu0 0.0
    %2689 = vmatpush1.msra.mxu0 0.0
    %2690 = vmatprep.subr.mxu0 0.0
    %2691 = vmatpush1.msra.mxu0 0.0
    %2692 = vmatprep.subr.mxu0 0.0
    %2693 = vmatpush1.msra.mxu0 0.0
    %2694 = vmatprep.subr.mxu0 0.0
    %2695 = vmatpush1.msra.mxu0 0.0
    %2696 = vmatprep.subr.mxu0 0.0
    %2697 = vmatpush1.msra.mxu0 0.0
    %2698 = vmatprep.subr.mxu0 0.0
    %2699 = vmatpush1.msra.mxu0 0.0
    %2700 = vmatprep.subr.mxu0 0.0
    %2701 = vmatpush1.msra.mxu0 0.0
    %2702 = vmatprep.subr.mxu0 0.0
    %2703 = vmatpush1.msra.mxu0 0.0
    %2704 = vmatprep.subr.mxu0 0.0
    %2705 = vmatpush1.msra.mxu0 0.0
    %2706 = vmatprep.subr.mxu0 0.0
    %2707 = vmatpush1.msra.mxu0 0.0
    %2708 = vmatprep.subr.mxu0 0.0
    %2709 = vmatpush1.msra.mxu0 0.0
    %2710 = vmatprep.subr.mxu0 0.0
    %2711 = vmatpush1.msra.mxu0 0.0
    %2712 = vmatprep.subr.mxu0 0.0
    %2713 = vmatpush1.msra.mxu0 0.0
    %2714 = vmatprep.subr.mxu0 0.0
    %2715 = vmatpush1.msra.mxu0 0.0
    %2716 = vmatprep.subr.mxu0 0.0
    %2717 = vmatpush1.msra.mxu0 0.0
    %2718 = vmatprep.subr.mxu0 0.0
    %2719 = vmatpush1.msra.mxu0 0.0
    %2720 = vmatprep.subr.mxu0 0.0
    %2721 = vmatpush1.msra.mxu0 0.0
    %2722 = vmatprep.subr.mxu0 0.0
    %2723 = vmatpush1.msra.mxu0 0.0
    %2724 = vmatprep.subr.mxu0 0.0
    %2725 = vmatpush1.msra.mxu0 0.0
    %2726 = vmatprep.subr.mxu0 0.0
    %2727 = vmatpush1.msra.mxu0 0.0
    %2728 = vmatprep.subr.mxu0 0.0
    %2729 = vmatpush1.msra.mxu0 0.0
    %2730 = vmatprep.mubr.f32.mxu0 0.0
    %2731 = vmatmul.mubr.f32.gmra.mrb[0].mxu0 %v2594
    %v2732 = vpop.f32.mrb[0].mxu0
    %v2733 = vadd.f32 %v824, %v2732
    %v2734 = vpop.f32.mrb[0].mxu0
    %2735 = vdwg.mxu0
    %2736 = vmatprep.subr.mxu0 0.0
    %2737 = vmatpush1.msra.mxu0 %v897
    %2738 = vmatprep.subr.mxu0 0.0
    %2739 = vmatpush1.msra.mxu0 %v898
    %2740 = vmatprep.subr.mxu0 0.0
    %2741 = vmatpush1.msra.mxu0 %v899
    %2742 = vmatprep.subr.mxu0 0.0
    %2743 = vmatpush1.msra.mxu0 %v900
    %2744 = vmatprep.subr.mxu0 0.0
    %2745 = vmatpush1.msra.mxu0 0.0
    %2746 = vmatprep.subr.mxu0 0.0
    %2747 = vmatpush1.msra.mxu0 0.0
    %2748 = vmatprep.subr.mxu0 0.0
    %2749 = vmatpush1.msra.mxu0 0.0
    %2750 = vmatprep.subr.mxu0 0.0
    %2751 = vmatpush1.msra.mxu0 0.0
    %2752 = vmatprep.subr.mxu0 0.0
    %2753 = vmatpush1.msra.mxu0 0.0
    %2754 = vmatprep.subr.mxu0 0.0
    %2755 = vmatpush1.msra.mxu0 0.0
    %2756 = vmatprep.subr.mxu0 0.0
    %2757 = vmatpush1.msra.mxu0 0.0
    %2758 = vmatprep.subr.mxu0 0.0
    %2759 = vmatpush1.msra.mxu0 0.0
    %2760 = vmatprep.subr.mxu0 0.0
    %2761 = vmatpush1.msra.mxu0 0.0
    %2762 = vmatprep.subr.mxu0 0.0
    %2763 = vmatpush1.msra.mxu0 0.0
    %2764 = vmatprep.subr.mxu0 0.0
    %2765 = vmatpush1.msra.mxu0 0.0
    %2766 = vmatprep.subr.mxu0 0.0
    %2767 = vmatpush1.msra.mxu0 0.0
    %2768 = vmatprep.subr.mxu0 0.0
    %2769 = vmatpush1.msra.mxu0 0.0
    %2770 = vmatprep.subr.mxu0 0.0
    %2771 = vmatpush1.msra.mxu0 0.0
    %2772 = vmatprep.subr.mxu0 0.0
    %2773 = vmatpush1.msra.mxu0 0.0
    %2774 = vmatprep.subr.mxu0 0.0
    %2775 = vmatpush1.msra.mxu0 0.0
    %2776 = vmatprep.subr.mxu0 0.0
    %2777 = vmatpush1.msra.mxu0 0.0
    %2778 = vmatprep.subr.mxu0 0.0
    %2779 = vmatpush1.msra.mxu0 0.0
    %2780 = vmatprep.subr.mxu0 0.0
    %2781 = vmatpush1.msra.mxu0 0.0
    %2782 = vmatprep.subr.mxu0 0.0
    %2783 = vmatpush1.msra.mxu0 0.0
    %2784 = vmatprep.subr.mxu0 0.0
    %2785 = vmatpush1.msra.mxu0 0.0
    %2786 = vmatprep.subr.mxu0 0.0
    %2787 = vmatpush1.msra.mxu0 0.0
    %2788 = vmatprep.subr.mxu0 0.0
    %2789 = vmatpush1.msra.mxu0 0.0
    %2790 = vmatprep.subr.mxu0 0.0
    %2791 = vmatpush1.msra.mxu0 0.0
    %2792 = vmatprep.subr.mxu0 0.0
    %2793 = vmatpush1.msra.mxu0 0.0
    %2794 = vmatprep.subr.mxu0 0.0
    %2795 = vmatpush1.msra.mxu0 0.0
    %2796 = vmatprep.subr.mxu0 0.0
    %2797 = vmatpush1.msra.mxu0 0.0
    %2798 = vmatprep.subr.mxu0 0.0
    %2799 = vmatpush1.msra.mxu0 0.0
    %2800 = vmatprep.mubr.f32.mxu0 0.0
    %2801 = vmatmul.mubr.f32.gmra.mrb[0].mxu0 %v2594
    %v2802 = vpop.f32.mrb[0].mxu0
    %v2803 = vadd.f32 %v907, %v2802
    %v2804 = vpop.f32.mrb[0].mxu0
    %2805 = vdwg.mxu0
    %v2807 = vrot.slane %v2663, 2
    %v2809 = vadd.f32 %v287, %v2807
    %v2810 = vxor.u32 %v2809, 2147483648
    %v2811 = vmul.f32 %v2810, 1.442695
    %v2812 = vpow.pop %v2811
    %v2813 = vadd.f32 %v2812, 1.0
    %v2814 = vrcp.pop %v2813
    %v2815 = vmul.f32 1.0, %v2814
    %v2817 = vrot.slane %v2733, 2
    %v2819 = vadd.f32 %v375, %v2817
    %v2820 = vxor.u32 %v2819, 2147483648
    %v2821 = vmul.f32 %v2820, 1.442695
    %v2822 = vpow.pop %v2821
    %v2823 = vadd.f32 %v2822, 1.0
    %v2824 = vrcp.pop %v2823
    %v2825 = vmul.f32 1.0, %v2824
    %v2827 = vrot.slane %v2803, 2
    %v2829 = vmul.f32 %v2815, %v2827
    %v2830 = vadd.f32 %v463, %v2829
    %v2831 = vtanh.pop %v2830
    %v2832 = vsub.f32 1.0, %v2825
    %v2833 = vmul.f32 %v2832, %v2831
    %v2834 = vrot.slane %v2592, 2
    %v2836 = vmul.f32 %v2825, %v2834
    %v2837 = vadd.f32 %v2833, %v2836
    %vm2838 = vcmp.gt.s32.totalorder %v728, 7
    %v2839 = vsel %vm2838, 1, 0
    %v2840 = vcvt.s32.f32 %v2839
    %2842 = vset.pattern.permute.xlu0 0
    %2843 = vperm.xlu0 %2842, %v2840
    %v2844 = vpop.permute.xlu0 %2843
    %v2847 = vrot.slane %v2837, 6
    %v2849 = vmul.f32 %v2844, %v2847
    %v2850 = vsub.f32 1.0, %v2840
    %2852 = vset.pattern.permute.xlu0 0
    %2853 = vperm.xlu0 %2852, %v2850
    %v2854 = vpop.permute.xlu0 %2853
    %v2856 = vmul.f32 %v2854, %v2592
    %v2857 = vadd.f32 %v2849, %v2856
    %v2858 = vld [vmem:[#allocation8] sm:$0xff]
    %v2859 = vld [vmem:[#allocation8 + $0x8] sm:$0xff]
    %v2860 = vld [vmem:[#allocation8 + $0x10] sm:$0xff]
    %v2861 = vld [vmem:[#allocation8 + $0x18] sm:$0xff]
    %v2862 = vld [vmem:[%s10] sm:$0x1]
    %v2864 = vlaneseq
    %v2865 = vshrl.u32 %v2864, 7
    %v2866 = vsub.s32 0, %v2865
    %v2867 = vrot.slane %v2862, %v2866
    %2869 = vmatprep.subr.mxu0 0.0
    %2870 = vmatpush1.msra.mxu0 %v2858
    %2871 = vmatprep.subr.mxu0 0.0
    %2872 = vmatpush1.msra.mxu0 %v2859
    %2873 = vmatprep.subr.mxu0 0.0
    %2874 = vmatpush1.msra.mxu0 %v2860
    %2875 = vmatprep.subr.mxu0 0.0
    %2876 = vmatpush1.msra.mxu0 %v2861
    %2877 = vmatprep.subr.mxu0 0.0
    %2878 = vmatpush1.msra.mxu0 0.0
    %2879 = vmatprep.subr.mxu0 0.0
    %2880 = vmatpush1.msra.mxu0 0.0
    %2881 = vmatprep.subr.mxu0 0.0
    %2882 = vmatpush1.msra.mxu0 0.0
    %2883 = vmatprep.subr.mxu0 0.0
    %2884 = vmatpush1.msra.mxu0 0.0
    %2885 = vmatprep.subr.mxu0 0.0
    %2886 = vmatpush1.msra.mxu0 0.0
    %2887 = vmatprep.subr.mxu0 0.0
    %2888 = vmatpush1.msra.mxu0 0.0
    %2889 = vmatprep.subr.mxu0 0.0
    %2890 = vmatpush1.msra.mxu0 0.0
    %2891 = vmatprep.subr.mxu0 0.0
    %2892 = vmatpush1.msra.mxu0 0.0
    %2893 = vmatprep.subr.mxu0 0.0
    %2894 = vmatpush1.msra.mxu0 0.0
    %2895 = vmatprep.subr.mxu0 0.0
    %2896 = vmatpush1.msra.mxu0 0.0
    %2897 = vmatprep.subr.mxu0 0.0
    %2898 = vmatpush1.msra.mxu0 0.0
    %2899 = vmatprep.subr.mxu0 0.0
    %2900 = vmatpush1.msra.mxu0 0.0
    %2901 = vmatprep.subr.mxu0 0.0
    %2902 = vmatpush1.msra.mxu0 0.0
    %2903 = vmatprep.subr.mxu0 0.0
    %2904 = vmatpush1.msra.mxu0 0.0
    %2905 = vmatprep.subr.mxu0 0.0
    %2906 = vmatpush1.msra.mxu0 0.0
    %2907 = vmatprep.subr.mxu0 0.0
    %2908 = vmatpush1.msra.mxu0 0.0
    %2909 = vmatprep.subr.mxu0 0.0
    %2910 = vmatpush1.msra.mxu0 0.0
    %2911 = vmatprep.subr.mxu0 0.0
    %2912 = vmatpush1.msra.mxu0 0.0
    %2913 = vmatprep.subr.mxu0 0.0
    %2914 = vmatpush1.msra.mxu0 0.0
    %2915 = vmatprep.subr.mxu0 0.0
    %2916 = vmatpush1.msra.mxu0 0.0
    %2917 = vmatprep.subr.mxu0 0.0
    %2918 = vmatpush1.msra.mxu0 0.0
    %2919 = vmatprep.subr.mxu0 0.0
    %2920 = vmatpush1.msra.mxu0 0.0
    %2921 = vmatprep.subr.mxu0 0.0
    %2922 = vmatpush1.msra.mxu0 0.0
    %2923 = vmatprep.subr.mxu0 0.0
    %2924 = vmatpush1.msra.mxu0 0.0
    %2925 = vmatprep.subr.mxu0 0.0
    %2926 = vmatpush1.msra.mxu0 0.0
    %2927 = vmatprep.subr.mxu0 0.0
    %2928 = vmatpush1.msra.mxu0 0.0
    %2929 = vmatprep.subr.mxu0 0.0
    %2930 = vmatpush1.msra.mxu0 0.0
    %2931 = vmatprep.subr.mxu0 0.0
    %2932 = vmatpush1.msra.mxu0 0.0
    %2933 = vmatprep.mubr.f32.mxu0 0.0
    %2934 = vmatmul.mubr.f32.gmra.mrb[0].mxu0 %v741
    %v2935 = vpop.f32.mrb[0].mxu0
    %v2936 = vadd.f32 %v2867, %v2935
    %v2937 = vpop.f32.mrb[0].mxu0
    %2938 = vdwg.mxu0
    %s2939 = scalar_lea.vmem [#allocation8], 32
    %v2940 = vld [vmem:[%s2939] sm:$0xff]
    %v2941 = vld [vmem:[%s2939 + $0x8] sm:$0xff]
    %v2942 = vld [vmem:[%s2939 + $0x10] sm:$0xff]
    %v2943 = vld [vmem:[%s2939 + $0x18] sm:$0xff]
    %s2944 = scalar_lea.vmem %s10, 1
    %v2945 = vld [vmem:[%s2944] sm:$0x1]
    %v2947 = vlaneseq
    %v2948 = vshrl.u32 %v2947, 7
    %v2949 = vsub.s32 0, %v2948
    %v2950 = vrot.slane %v2945, %v2949
    %2952 = vmatprep.subr.mxu0 0.0
    %2953 = vmatpush1.msra.mxu0 %v2940
    %2954 = vmatprep.subr.mxu0 0.0
    %2955 = vmatpush1.msra.mxu0 %v2941
    %2956 = vmatprep.subr.mxu0 0.0
    %2957 = vmatpush1.msra.mxu0 %v2942
    %2958 = vmatprep.subr.mxu0 0.0
    %2959 = vmatpush1.msra.mxu0 %v2943
    %2960 = vmatprep.subr.mxu0 0.0
    %2961 = vmatpush1.msra.mxu0 0.0
    %2962 = vmatprep.subr.mxu0 0.0
    %2963 = vmatpush1.msra.mxu0 0.0
    %2964 = vmatprep.subr.mxu0 0.0
    %2965 = vmatpush1.msra.mxu0 0.0
    %2966 = vmatprep.subr.mxu0 0.0
    %2967 = vmatpush1.msra.mxu0 0.0
    %2968 = vmatprep.subr.mxu0 0.0
    %2969 = vmatpush1.msra.mxu0 0.0
    %2970 = vmatprep.subr.mxu0 0.0
    %2971 = vmatpush1.msra.mxu0 0.0
    %2972 = vmatprep.subr.mxu0 0.0
    %2973 = vmatpush1.msra.mxu0 0.0
    %2974 = vmatprep.subr.mxu0 0.0
    %2975 = vmatpush1.msra.mxu0 0.0
    %2976 = vmatprep.subr.mxu0 0.0
    %2977 = vmatpush1.msra.mxu0 0.0
    %2978 = vmatprep.subr.mxu0 0.0
    %2979 = vmatpush1.msra.mxu0 0.0
    %2980 = vmatprep.subr.mxu0 0.0
    %2981 = vmatpush1.msra.mxu0 0.0
    %2982 = vmatprep.subr.mxu0 0.0
    %2983 = vmatpush1.msra.mxu0 0.0
    %2984 = vmatprep.subr.mxu0 0.0
    %2985 = vmatpush1.msra.mxu0 0.0
    %2986 = vmatprep.subr.mxu0 0.0
    %2987 = vmatpush1.msra.mxu0 0.0
    %2988 = vmatprep.subr.mxu0 0.0
    %2989 = vmatpush1.msra.mxu0 0.0
    %2990 = vmatprep.subr.mxu0 0.0
    %2991 = vmatpush1.msra.mxu0 0.0
    %2992 = vmatprep.subr.mxu0 0.0
    %2993 = vmatpush1.msra.mxu0 0.0
    %2994 = vmatprep.subr.mxu0 0.0
    %2995 = vmatpush1.msra.mxu0 0.0
    %2996 = vmatprep.subr.mxu0 0.0
    %2997 = vmatpush1.msra.mxu0 0.0
    %2998 = vmatprep.subr.mxu0 0.0
    %2999 = vmatpush1.msra.mxu0 0.0
    %3000 = vmatprep.subr.mxu0 0.0
    %3001 = vmatpush1.msra.mxu0 0.0
    %3002 = vmatprep.subr.mxu0 0.0
    %3003 = vmatpush1.msra.mxu0 0.0
    %3004 = vmatprep.subr.mxu0 0.0
    %3005 = vmatpush1.msra.mxu0 0.0
    %3006 = vmatprep.subr.mxu0 0.0
    %3007 = vmatpush1.msra.mxu0 0.0
    %3008 = vmatprep.subr.mxu0 0.0
    %3009 = vmatpush1.msra.mxu0 0.0
    %3010 = vmatprep.subr.mxu0 0.0
    %3011 = vmatpush1.msra.mxu0 0.0
    %3012 = vmatprep.subr.mxu0 0.0
    %3013 = vmatpush1.msra.mxu0 0.0
    %3014 = vmatprep.subr.mxu0 0.0
    %3015 = vmatpush1.msra.mxu0 0.0
    %3016 = vmatprep.mubr.f32.mxu0 0.0
    %3017 = vmatmul.mubr.f32.gmra.mrb[0].mxu0 %v741
    %v3018 = vpop.f32.mrb[0].mxu0
    %v3019 = vadd.f32 %v2950, %v3018
    %v3020 = vpop.f32.mrb[0].mxu0
    %3021 = vdwg.mxu0
    %s3022 = scalar_lea.vmem [#allocation8], 64
    %v3023 = vld [vmem:[%s3022] sm:$0xff]
    %v3024 = vld [vmem:[%s3022 + $0x8] sm:$0xff]
    %v3025 = vld [vmem:[%s3022 + $0x10] sm:$0xff]
    %v3026 = vld [vmem:[%s3022 + $0x18] sm:$0xff]
    %s3027 = scalar_lea.vmem %s10, 2
    %v3028 = vld [vmem:[%s3027] sm:$0x1]
    %v3030 = vlaneseq
    %v3031 = vshrl.u32 %v3030, 7
    %v3032 = vsub.s32 0, %v3031
    %v3033 = vrot.slane %v3028, %v3032
    %3035 = vmatprep.subr.mxu0 0.0
    %3036 = vmatpush1.msra.mxu0 %v3023
    %3037 = vmatprep.subr.mxu0 0.0
    %3038 = vmatpush1.msra.mxu0 %v3024
    %3039 = vmatprep.subr.mxu0 0.0
    %3040 = vmatpush1.msra.mxu0 %v3025
    %3041 = vmatprep.subr.mxu0 0.0
    %3042 = vmatpush1.msra.mxu0 %v3026
    %3043 = vmatprep.subr.mxu0 0.0
    %3044 = vmatpush1.msra.mxu0 0.0
    %3045 = vmatprep.subr.mxu0 0.0
    %3046 = vmatpush1.msra.mxu0 0.0
    %3047 = vmatprep.subr.mxu0 0.0
    %3048 = vmatpush1.msra.mxu0 0.0
    %3049 = vmatprep.subr.mxu0 0.0
    %3050 = vmatpush1.msra.mxu0 0.0
    %3051 = vmatprep.subr.mxu0 0.0
    %3052 = vmatpush1.msra.mxu0 0.0
    %3053 = vmatprep.subr.mxu0 0.0
    %3054 = vmatpush1.msra.mxu0 0.0
    %3055 = vmatprep.subr.mxu0 0.0
    %3056 = vmatpush1.msra.mxu0 0.0
    %3057 = vmatprep.subr.mxu0 0.0
    %3058 = vmatpush1.msra.mxu0 0.0
    %3059 = vmatprep.subr.mxu0 0.0
    %3060 = vmatpush1.msra.mxu0 0.0
    %3061 = vmatprep.subr.mxu0 0.0
    %3062 = vmatpush1.msra.mxu0 0.0
    %3063 = vmatprep.subr.mxu0 0.0
    %3064 = vmatpush1.msra.mxu0 0.0
    %3065 = vmatprep.subr.mxu0 0.0
    %3066 = vmatpush1.msra.mxu0 0.0
    %3067 = vmatprep.subr.mxu0 0.0
    %3068 = vmatpush1.msra.mxu0 0.0
    %3069 = vmatprep.subr.mxu0 0.0
    %3070 = vmatpush1.msra.mxu0 0.0
    %3071 = vmatprep.subr.mxu0 0.0
    %3072 = vmatpush1.msra.mxu0 0.0
    %3073 = vmatprep.subr.mxu0 0.0
    %3074 = vmatpush1.msra.mxu0 0.0
    %3075 = vmatprep.subr.mxu0 0.0
    %3076 = vmatpush1.msra.mxu0 0.0
    %3077 = vmatprep.subr.mxu0 0.0
    %3078 = vmatpush1.msra.mxu0 0.0
    %3079 = vmatprep.subr.mxu0 0.0
    %3080 = vmatpush1.msra.mxu0 0.0
    %3081 = vmatprep.subr.mxu0 0.0
    %3082 = vmatpush1.msra.mxu0 0.0
    %3083 = vmatprep.subr.mxu0 0.0
    %3084 = vmatpush1.msra.mxu0 0.0
    %3085 = vmatprep.subr.mxu0 0.0
    %3086 = vmatpush1.msra.mxu0 0.0
    %3087 = vmatprep.subr.mxu0 0.0
    %3088 = vmatpush1.msra.mxu0 0.0
    %3089 = vmatprep.subr.mxu0 0.0
    %3090 = vmatpush1.msra.mxu0 0.0
    %3091 = vmatprep.subr.mxu0 0.0
    %3092 = vmatpush1.msra.mxu0 0.0
    %3093 = vmatprep.subr.mxu0 0.0
    %3094 = vmatpush1.msra.mxu0 0.0
    %3095 = vmatprep.subr.mxu0 0.0
    %3096 = vmatpush1.msra.mxu0 0.0
    %3097 = vmatprep.subr.mxu0 0.0
    %3098 = vmatpush1.msra.mxu0 0.0
    %3099 = vmatprep.mubr.f32.mxu0 0.0
    %3100 = vmatmul.mubr.f32.gmra.mrb[0].mxu0 %v741
    %v3101 = vpop.f32.mrb[0].mxu0
    %v3102 = vadd.f32 %v3033, %v3101
    %v3103 = vpop.f32.mrb[0].mxu0
    %3104 = vdwg.mxu0
    %v3106 = vrot.slane %v2936, 2
    %v3108 = vadd.f32 %v549, %v3106
    %v3109 = vxor.u32 %v3108, 2147483648
    %v3110 = vmul.f32 %v3109, 1.442695
    %v3111 = vpow.pop %v3110
    %v3112 = vadd.f32 %v3111, 1.0
    %v3113 = vrcp.pop %v3112
    %v3114 = vmul.f32 1.0, %v3113
    %v3116 = vrot.slane %v3019, 2
    %v3118 = vadd.f32 %v637, %v3116
    %v3119 = vxor.u32 %v3118, 2147483648
    %v3120 = vmul.f32 %v3119, 1.442695
    %v3121 = vpow.pop %v3120
    %v3122 = vadd.f32 %v3121, 1.0
    %v3123 = vrcp.pop %v3122
    %v3124 = vmul.f32 1.0, %v3123
    %v3126 = vrot.slane %v3102, 2
    %v3128 = vmul.f32 %v3114, %v3126
    %v3129 = vadd.f32 %v725, %v3128
    %v3130 = vtanh.pop %v3129
    %v3131 = vsub.f32 1.0, %v3124
    %v3132 = vmul.f32 %v3131, %v3130
    %v3133 = vmul.f32 %v3124, 0.0
    %v3134 = vadd.f32 %v3132, %v3133
    %v3136 = vrot.slane %v3134, 6
    %v3138 = vmul.f32 %v2844, %v3136
    %v3139 = vmul.f32 %v2854, 0.0
    %v3140 = vadd.f32 %v3138, %v3139
    %v3142 = vsel %vm208, %v3140, 0
    %3144 = vmatprep.subr.mxu0 0.0
    %3145 = vmatpush1.msra.mxu0 %v2858
    %3146 = vmatprep.subr.mxu0 0.0
    %3147 = vmatpush1.msra.mxu0 %v2859
    %3148 = vmatprep.subr.mxu0 0.0
    %3149 = vmatpush1.msra.mxu0 %v2860
    %3150 = vmatprep.subr.mxu0 0.0
    %3151 = vmatpush1.msra.mxu0 %v2861
    %3152 = vmatprep.subr.mxu0 0.0
    %3153 = vmatpush1.msra.mxu0 0.0
    %3154 = vmatprep.subr.mxu0 0.0
    %3155 = vmatpush1.msra.mxu0 0.0
    %3156 = vmatprep.subr.mxu0 0.0
    %3157 = vmatpush1.msra.mxu0 0.0
    %3158 = vmatprep.subr.mxu0 0.0
    %3159 = vmatpush1.msra.mxu0 0.0
    %3160 = vmatprep.subr.mxu0 0.0
    %3161 = vmatpush1.msra.mxu0 0.0
    %3162 = vmatprep.subr.mxu0 0.0
    %3163 = vmatpush1.msra.mxu0 0.0
    %3164 = vmatprep.subr.mxu0 0.0
    %3165 = vmatpush1.msra.mxu0 0.0
    %3166 = vmatprep.subr.mxu0 0.0
    %3167 = vmatpush1.msra.mxu0 0.0
    %3168 = vmatprep.subr.mxu0 0.0
    %3169 = vmatpush1.msra.mxu0 0.0
    %3170 = vmatprep.subr.mxu0 0.0
    %3171 = vmatpush1.msra.mxu0 0.0
    %3172 = vmatprep.subr.mxu0 0.0
    %3173 = vmatpush1.msra.mxu0 0.0
    %3174 = vmatprep.subr.mxu0 0.0
    %3175 = vmatpush1.msra.mxu0 0.0
    %3176 = vmatprep.subr.mxu0 0.0
    %3177 = vmatpush1.msra.mxu0 0.0
    %3178 = vmatprep.subr.mxu0 0.0
    %3179 = vmatpush1.msra.mxu0 0.0
    %3180 = vmatprep.subr.mxu0 0.0
    %3181 = vmatpush1.msra.mxu0 0.0
    %3182 = vmatprep.subr.mxu0 0.0
    %3183 = vmatpush1.msra.mxu0 0.0
    %3184 = vmatprep.subr.mxu0 0.0
    %3185 = vmatpush1.msra.mxu0 0.0
    %3186 = vmatprep.subr.mxu0 0.0
    %3187 = vmatpush1.msra.mxu0 0.0
    %3188 = vmatprep.subr.mxu0 0.0
    %3189 = vmatpush1.msra.mxu0 0.0
    %3190 = vmatprep.subr.mxu0 0.0
    %3191 = vmatpush1.msra.mxu0 0.0
    %3192 = vmatprep.subr.mxu0 0.0
    %3193 = vmatpush1.msra.mxu0 0.0
    %3194 = vmatprep.subr.mxu0 0.0
    %3195 = vmatpush1.msra.mxu0 0.0
    %3196 = vmatprep.subr.mxu0 0.0
    %3197 = vmatpush1.msra.mxu0 0.0
    %3198 = vmatprep.subr.mxu0 0.0
    %3199 = vmatpush1.msra.mxu0 0.0
    %3200 = vmatprep.subr.mxu0 0.0
    %3201 = vmatpush1.msra.mxu0 0.0
    %3202 = vmatprep.subr.mxu0 0.0
    %3203 = vmatpush1.msra.mxu0 0.0
    %3204 = vmatprep.subr.mxu0 0.0
    %3205 = vmatpush1.msra.mxu0 0.0
    %3206 = vmatprep.subr.mxu0 0.0
    %3207 = vmatpush1.msra.mxu0 0.0
    %3208 = vmatprep.mubr.f32.mxu0 0.0
    %3209 = vmatmul.mubr.f32.gmra.mrb[0].mxu0 %v3142
    %v3210 = vpop.f32.mrb[0].mxu0
    %v3211 = vadd.f32 %v2867, %v3210
    %v3212 = vpop.f32.mrb[0].mxu0
    %3213 = vdwg.mxu0
    %3214 = vmatprep.subr.mxu0 0.0
    %3215 = vmatpush1.msra.mxu0 %v2940
    %3216 = vmatprep.subr.mxu0 0.0
    %3217 = vmatpush1.msra.mxu0 %v2941
    %3218 = vmatprep.subr.mxu0 0.0
    %3219 = vmatpush1.msra.mxu0 %v2942
    %3220 = vmatprep.subr.mxu0 0.0
    %3221 = vmatpush1.msra.mxu0 %v2943
    %3222 = vmatprep.subr.mxu0 0.0
    %3223 = vmatpush1.msra.mxu0 0.0
    %3224 = vmatprep.subr.mxu0 0.0
    %3225 = vmatpush1.msra.mxu0 0.0
    %3226 = vmatprep.subr.mxu0 0.0
    %3227 = vmatpush1.msra.mxu0 0.0
    %3228 = vmatprep.subr.mxu0 0.0
    %3229 = vmatpush1.msra.mxu0 0.0
    %3230 = vmatprep.subr.mxu0 0.0
    %3231 = vmatpush1.msra.mxu0 0.0
    %3232 = vmatprep.subr.mxu0 0.0
    %3233 = vmatpush1.msra.mxu0 0.0
    %3234 = vmatprep.subr.mxu0 0.0
    %3235 = vmatpush1.msra.mxu0 0.0
    %3236 = vmatprep.subr.mxu0 0.0
    %3237 = vmatpush1.msra.mxu0 0.0
    %3238 = vmatprep.subr.mxu0 0.0
    %3239 = vmatpush1.msra.mxu0 0.0
    %3240 = vmatprep.subr.mxu0 0.0
    %3241 = vmatpush1.msra.mxu0 0.0
    %3242 = vmatprep.subr.mxu0 0.0
    %3243 = vmatpush1.msra.mxu0 0.0
    %3244 = vmatprep.subr.mxu0 0.0
    %3245 = vmatpush1.msra.mxu0 0.0
    %3246 = vmatprep.subr.mxu0 0.0
    %3247 = vmatpush1.msra.mxu0 0.0
    %3248 = vmatprep.subr.mxu0 0.0
    %3249 = vmatpush1.msra.mxu0 0.0
    %3250 = vmatprep.subr.mxu0 0.0
    %3251 = vmatpush1.msra.mxu0 0.0
    %3252 = vmatprep.subr.mxu0 0.0
    %3253 = vmatpush1.msra.mxu0 0.0
    %3254 = vmatprep.subr.mxu0 0.0
    %3255 = vmatpush1.msra.mxu0 0.0
    %3256 = vmatprep.subr.mxu0 0.0
    %3257 = vmatpush1.msra.mxu0 0.0
    %3258 = vmatprep.subr.mxu0 0.0
    %3259 = vmatpush1.msra.mxu0 0.0
    %3260 = vmatprep.subr.mxu0 0.0
    %3261 = vmatpush1.msra.mxu0 0.0
    %3262 = vmatprep.subr.mxu0 0.0
    %3263 = vmatpush1.msra.mxu0 0.0
    %3264 = vmatprep.subr.mxu0 0.0
    %3265 = vmatpush1.msra.mxu0 0.0
    %3266 = vmatprep.subr.mxu0 0.0
    %3267 = vmatpush1.msra.mxu0 0.0
    %3268 = vmatprep.subr.mxu0 0.0
    %3269 = vmatpush1.msra.mxu0 0.0
    %3270 = vmatprep.subr.mxu0 0.0
    %3271 = vmatpush1.msra.mxu0 0.0
    %3272 = vmatprep.subr.mxu0 0.0
    %3273 = vmatpush1.msra.mxu0 0.0
    %3274 = vmatprep.subr.mxu0 0.0
    %3275 = vmatpush1.msra.mxu0 0.0
    %3276 = vmatprep.subr.mxu0 0.0
    %3277 = vmatpush1.msra.mxu0 0.0
    %3278 = vmatprep.mubr.f32.mxu0 0.0
    %3279 = vmatmul.mubr.f32.gmra.mrb[0].mxu0 %v3142
    %v3280 = vpop.f32.mrb[0].mxu0
    %v3281 = vadd.f32 %v2950, %v3280
    %v3282 = vpop.f32.mrb[0].mxu0
    %3283 = vdwg.mxu0
    %3284 = vmatprep.subr.mxu0 0.0
    %3285 = vmatpush1.msra.mxu0 %v3023
    %3286 = vmatprep.subr.mxu0 0.0
    %3287 = vmatpush1.msra.mxu0 %v3024
    %3288 = vmatprep.subr.mxu0 0.0
    %3289 = vmatpush1.msra.mxu0 %v3025
    %3290 = vmatprep.subr.mxu0 0.0
    %3291 = vmatpush1.msra.mxu0 %v3026
    %3292 = vmatprep.subr.mxu0 0.0
    %3293 = vmatpush1.msra.mxu0 0.0
    %3294 = vmatprep.subr.mxu0 0.0
    %3295 = vmatpush1.msra.mxu0 0.0
    %3296 = vmatprep.subr.mxu0 0.0
    %3297 = vmatpush1.msra.mxu0 0.0
    %3298 = vmatprep.subr.mxu0 0.0
    %3299 = vmatpush1.msra.mxu0 0.0
    %3300 = vmatprep.subr.mxu0 0.0
    %3301 = vmatpush1.msra.mxu0 0.0
    %3302 = vmatprep.subr.mxu0 0.0
    %3303 = vmatpush1.msra.mxu0 0.0
    %3304 = vmatprep.subr.mxu0 0.0
    %3305 = vmatpush1.msra.mxu0 0.0
    %3306 = vmatprep.subr.mxu0 0.0
    %3307 = vmatpush1.msra.mxu0 0.0
    %3308 = vmatprep.subr.mxu0 0.0
    %3309 = vmatpush1.msra.mxu0 0.0
    %3310 = vmatprep.subr.mxu0 0.0
    %3311 = vmatpush1.msra.mxu0 0.0
    %3312 = vmatprep.subr.mxu0 0.0
    %3313 = vmatpush1.msra.mxu0 0.0
    %3314 = vmatprep.subr.mxu0 0.0
    %3315 = vmatpush1.msra.mxu0 0.0
    %3316 = vmatprep.subr.mxu0 0.0
    %3317 = vmatpush1.msra.mxu0 0.0
    %3318 = vmatprep.subr.mxu0 0.0
    %3319 = vmatpush1.msra.mxu0 0.0
    %3320 = vmatprep.subr.mxu0 0.0
    %3321 = vmatpush1.msra.mxu0 0.0
    %3322 = vmatprep.subr.mxu0 0.0
    %3323 = vmatpush1.msra.mxu0 0.0
    %3324 = vmatprep.subr.mxu0 0.0
    %3325 = vmatpush1.msra.mxu0 0.0
    %3326 = vmatprep.subr.mxu0 0.0
    %3327 = vmatpush1.msra.mxu0 0.0
    %3328 = vmatprep.subr.mxu0 0.0
    %3329 = vmatpush1.msra.mxu0 0.0
    %3330 = vmatprep.subr.mxu0 0.0
    %3331 = vmatpush1.msra.mxu0 0.0
    %3332 = vmatprep.subr.mxu0 0.0
    %3333 = vmatpush1.msra.mxu0 0.0
    %3334 = vmatprep.subr.mxu0 0.0
    %3335 = vmatpush1.msra.mxu0 0.0
    %3336 = vmatprep.subr.mxu0 0.0
    %3337 = vmatpush1.msra.mxu0 0.0
    %3338 = vmatprep.subr.mxu0 0.0
    %3339 = vmatpush1.msra.mxu0 0.0
    %3340 = vmatprep.subr.mxu0 0.0
    %3341 = vmatpush1.msra.mxu0 0.0
    %3342 = vmatprep.subr.mxu0 0.0
    %3343 = vmatpush1.msra.mxu0 0.0
    %3344 = vmatprep.subr.mxu0 0.0
    %3345 = vmatpush1.msra.mxu0 0.0
    %3346 = vmatprep.subr.mxu0 0.0
    %3347 = vmatpush1.msra.mxu0 0.0
    %3348 = vmatprep.mubr.f32.mxu0 0.0
    %3349 = vmatmul.mubr.f32.gmra.mrb[0].mxu0 %v3142
    %v3350 = vpop.f32.mrb[0].mxu0
    %v3351 = vadd.f32 %v3033, %v3350
    %v3352 = vpop.f32.mrb[0].mxu0
    %3353 = vdwg.mxu0
    %v3355 = vrot.slane %v3211, 4
    %v3357 = vadd.f32 %v549, %v3355
    %v3358 = vxor.u32 %v3357, 2147483648
    %v3359 = vmul.f32 %v3358, 1.442695
    %v3360 = vpow.pop %v3359
    %v3361 = vadd.f32 %v3360, 1.0
    %v3362 = vrcp.pop %v3361
    %v3363 = vmul.f32 1.0, %v3362
    %v3365 = vrot.slane %v3281, 4
    %v3367 = vadd.f32 %v637, %v3365
    %v3368 = vxor.u32 %v3367, 2147483648
    %v3369 = vmul.f32 %v3368, 1.442695
    %v3370 = vpow.pop %v3369
    %v3371 = vadd.f32 %v3370, 1.0
    %v3372 = vrcp.pop %v3371
    %v3373 = vmul.f32 1.0, %v3372
    %v3375 = vrot.slane %v3351, 4
    %v3377 = vmul.f32 %v3363, %v3375
    %v3378 = vadd.f32 %v725, %v3377
    %v3379 = vtanh.pop %v3378
    %v3380 = vsub.f32 1.0, %v3373
    %v3381 = vmul.f32 %v3380, %v3379
    %v3382 = vrot.slane %v3140, 4
    %v3384 = vmul.f32 %v3373, %v3382
    %v3385 = vadd.f32 %v3381, %v3384
    %v3387 = vrot.slane %v3385, 4
    %v3389 = vmul.f32 %v2579, %v3387
    %v3390 = vmul.f32 %v2589, %v3140
    %v3391 = vadd.f32 %v3389, %v3390
    %v3393 = vsel %vm208, %v3391, 0
    %3395 = vmatprep.subr.mxu0 0.0
    %3396 = vmatpush1.msra.mxu0 %v2858
    %3397 = vmatprep.subr.mxu0 0.0
    %3398 = vmatpush1.msra.mxu0 %v2859
    %3399 = vmatprep.subr.mxu0 0.0
    %3400 = vmatpush1.msra.mxu0 %v2860
    %3401 = vmatprep.subr.mxu0 0.0
    %3402 = vmatpush1.msra.mxu0 %v2861
    %3403 = vmatprep.subr.mxu0 0.0
    %3404 = vmatpush1.msra.mxu0 0.0
    %3405 = vmatprep.subr.mxu0 0.0
    %3406 = vmatpush1.msra.mxu0 0.0
    %3407 = vmatprep.subr.mxu0 0.0
    %3408 = vmatpush1.msra.mxu0 0.0
    %3409 = vmatprep.subr.mxu0 0.0
    %3410 = vmatpush1.msra.mxu0 0.0
    %3411 = vmatprep.subr.mxu0 0.0
    %3412 = vmatpush1.msra.mxu0 0.0
    %3413 = vmatprep.subr.mxu0 0.0
    %3414 = vmatpush1.msra.mxu0 0.0
    %3415 = vmatprep.subr.mxu0 0.0
    %3416 = vmatpush1.msra.mxu0 0.0
    %3417 = vmatprep.subr.mxu0 0.0
    %3418 = vmatpush1.msra.mxu0 0.0
    %3419 = vmatprep.subr.mxu0 0.0
    %3420 = vmatpush1.msra.mxu0 0.0
    %3421 = vmatprep.subr.mxu0 0.0
    %3422 = vmatpush1.msra.mxu0 0.0
    %3423 = vmatprep.subr.mxu0 0.0
    %3424 = vmatpush1.msra.mxu0 0.0
    %3425 = vmatprep.subr.mxu0 0.0
    %3426 = vmatpush1.msra.mxu0 0.0
    %3427 = vmatprep.subr.mxu0 0.0
    %3428 = vmatpush1.msra.mxu0 0.0
    %3429 = vmatprep.subr.mxu0 0.0
    %3430 = vmatpush1.msra.mxu0 0.0
    %3431 = vmatprep.subr.mxu0 0.0
    %3432 = vmatpush1.msra.mxu0 0.0
    %3433 = vmatprep.subr.mxu0 0.0
    %3434 = vmatpush1.msra.mxu0 0.0
    %3435 = vmatprep.subr.mxu0 0.0
    %3436 = vmatpush1.msra.mxu0 0.0
    %3437 = vmatprep.subr.mxu0 0.0
    %3438 = vmatpush1.msra.mxu0 0.0
    %3439 = vmatprep.subr.mxu0 0.0
    %3440 = vmatpush1.msra.mxu0 0.0
    %3441 = vmatprep.subr.mxu0 0.0
    %3442 = vmatpush1.msra.mxu0 0.0
    %3443 = vmatprep.subr.mxu0 0.0
    %3444 = vmatpush1.msra.mxu0 0.0
    %3445 = vmatprep.subr.mxu0 0.0
    %3446 = vmatpush1.msra.mxu0 0.0
    %3447 = vmatprep.subr.mxu0 0.0
    %3448 = vmatpush1.msra.mxu0 0.0
    %3449 = vmatprep.subr.mxu0 0.0
    %3450 = vmatpush1.msra.mxu0 0.0
    %3451 = vmatprep.subr.mxu0 0.0
    %3452 = vmatpush1.msra.mxu0 0.0
    %3453 = vmatprep.subr.mxu0 0.0
    %3454 = vmatpush1.msra.mxu0 0.0
    %3455 = vmatprep.subr.mxu0 0.0
    %3456 = vmatpush1.msra.mxu0 0.0
    %3457 = vmatprep.subr.mxu0 0.0
    %3458 = vmatpush1.msra.mxu0 0.0
    %3459 = vmatprep.mubr.f32.mxu0 0.0
    %3460 = vmatmul.mubr.f32.gmra.mrb[0].mxu0 %v3393
    %v3461 = vpop.f32.mrb[0].mxu0
    %v3462 = vadd.f32 %v2867, %v3461
    %v3463 = vpop.f32.mrb[0].mxu0
    %3464 = vdwg.mxu0
    %3465 = vmatprep.subr.mxu0 0.0
    %3466 = vmatpush1.msra.mxu0 %v2940
    %3467 = vmatprep.subr.mxu0 0.0
    %3468 = vmatpush1.msra.mxu0 %v2941
    %3469 = vmatprep.subr.mxu0 0.0
    %3470 = vmatpush1.msra.mxu0 %v2942
    %3471 = vmatprep.subr.mxu0 0.0
    %3472 = vmatpush1.msra.mxu0 %v2943
    %3473 = vmatprep.subr.mxu0 0.0
    %3474 = vmatpush1.msra.mxu0 0.0
    %3475 = vmatprep.subr.mxu0 0.0
    %3476 = vmatpush1.msra.mxu0 0.0
    %3477 = vmatprep.subr.mxu0 0.0
    %3478 = vmatpush1.msra.mxu0 0.0
    %3479 = vmatprep.subr.mxu0 0.0
    %3480 = vmatpush1.msra.mxu0 0.0
    %3481 = vmatprep.subr.mxu0 0.0
    %3482 = vmatpush1.msra.mxu0 0.0
    %3483 = vmatprep.subr.mxu0 0.0
    %3484 = vmatpush1.msra.mxu0 0.0
    %3485 = vmatprep.subr.mxu0 0.0
    %3486 = vmatpush1.msra.mxu0 0.0
    %3487 = vmatprep.subr.mxu0 0.0
    %3488 = vmatpush1.msra.mxu0 0.0
    %3489 = vmatprep.subr.mxu0 0.0
    %3490 = vmatpush1.msra.mxu0 0.0
    %3491 = vmatprep.subr.mxu0 0.0
    %3492 = vmatpush1.msra.mxu0 0.0
    %3493 = vmatprep.subr.mxu0 0.0
    %3494 = vmatpush1.msra.mxu0 0.0
    %3495 = vmatprep.subr.mxu0 0.0
    %3496 = vmatpush1.msra.mxu0 0.0
    %3497 = vmatprep.subr.mxu0 0.0
    %3498 = vmatpush1.msra.mxu0 0.0
    %3499 = vmatprep.subr.mxu0 0.0
    %3500 = vmatpush1.msra.mxu0 0.0
    %3501 = vmatprep.subr.mxu0 0.0
    %3502 = vmatpush1.msra.mxu0 0.0
    %3503 = vmatprep.subr.mxu0 0.0
    %3504 = vmatpush1.msra.mxu0 0.0
    %3505 = vmatprep.subr.mxu0 0.0
    %3506 = vmatpush1.msra.mxu0 0.0
    %3507 = vmatprep.subr.mxu0 0.0
    %3508 = vmatpush1.msra.mxu0 0.0
    %3509 = vmatprep.subr.mxu0 0.0
    %3510 = vmatpush1.msra.mxu0 0.0
    %3511 = vmatprep.subr.mxu0 0.0
    %3512 = vmatpush1.msra.mxu0 0.0
    %3513 = vmatprep.subr.mxu0 0.0
    %3514 = vmatpush1.msra.mxu0 0.0
    %3515 = vmatprep.subr.mxu0 0.0
    %3516 = vmatpush1.msra.mxu0 0.0
    %3517 = vmatprep.subr.mxu0 0.0
    %3518 = vmatpush1.msra.mxu0 0.0
    %3519 = vmatprep.subr.mxu0 0.0
    %3520 = vmatpush1.msra.mxu0 0.0
    %3521 = vmatprep.subr.mxu0 0.0
    %3522 = vmatpush1.msra.mxu0 0.0
    %3523 = vmatprep.subr.mxu0 0.0
    %3524 = vmatpush1.msra.mxu0 0.0
    %3525 = vmatprep.subr.mxu0 0.0
    %3526 = vmatpush1.msra.mxu0 0.0
    %3527 = vmatprep.subr.mxu0 0.0
    %3528 = vmatpush1.msra.mxu0 0.0
    %3529 = vmatprep.mubr.f32.mxu0 0.0
    %3530 = vmatmul.mubr.f32.gmra.mrb[0].mxu0 %v3393
    %v3531 = vpop.f32.mrb[0].mxu0
    %v3532 = vadd.f32 %v2950, %v3531
    %v3533 = vpop.f32.mrb[0].mxu0
    %3534 = vdwg.mxu0
    %3535 = vmatprep.subr.mxu0 0.0
    %3536 = vmatpush1.msra.mxu0 %v3023
    %3537 = vmatprep.subr.mxu0 0.0
    %3538 = vmatpush1.msra.mxu0 %v3024
    %3539 = vmatprep.subr.mxu0 0.0
    %3540 = vmatpush1.msra.mxu0 %v3025
    %3541 = vmatprep.subr.mxu0 0.0
    %3542 = vmatpush1.msra.mxu0 %v3026
    %3543 = vmatprep.subr.mxu0 0.0
    %3544 = vmatpush1.msra.mxu0 0.0
    %3545 = vmatprep.subr.mxu0 0.0
    %3546 = vmatpush1.msra.mxu0 0.0
    %3547 = vmatprep.subr.mxu0 0.0
    %3548 = vmatpush1.msra.mxu0 0.0
    %3549 = vmatprep.subr.mxu0 0.0
    %3550 = vmatpush1.msra.mxu0 0.0
    %3551 = vmatprep.subr.mxu0 0.0
    %3552 = vmatpush1.msra.mxu0 0.0
    %3553 = vmatprep.subr.mxu0 0.0
    %3554 = vmatpush1.msra.mxu0 0.0
    %3555 = vmatprep.subr.mxu0 0.0
    %3556 = vmatpush1.msra.mxu0 0.0
    %3557 = vmatprep.subr.mxu0 0.0
    %3558 = vmatpush1.msra.mxu0 0.0
    %3559 = vmatprep.subr.mxu0 0.0
    %3560 = vmatpush1.msra.mxu0 0.0
    %3561 = vmatprep.subr.mxu0 0.0
    %3562 = vmatpush1.msra.mxu0 0.0
    %3563 = vmatprep.subr.mxu0 0.0
    %3564 = vmatpush1.msra.mxu0 0.0
    %3565 = vmatprep.subr.mxu0 0.0
    %3566 = vmatpush1.msra.mxu0 0.0
    %3567 = vmatprep.subr.mxu0 0.0
    %3568 = vmatpush1.msra.mxu0 0.0
    %3569 = vmatprep.subr.mxu0 0.0
    %3570 = vmatpush1.msra.mxu0 0.0
    %3571 = vmatprep.subr.mxu0 0.0
    %3572 = vmatpush1.msra.mxu0 0.0
    %3573 = vmatprep.subr.mxu0 0.0
    %3574 = vmatpush1.msra.mxu0 0.0
    %3575 = vmatprep.subr.mxu0 0.0
    %3576 = vmatpush1.msra.mxu0 0.0
    %3577 = vmatprep.subr.mxu0 0.0
    %3578 = vmatpush1.msra.mxu0 0.0
    %3579 = vmatprep.subr.mxu0 0.0
    %3580 = vmatpush1.msra.mxu0 0.0
    %3581 = vmatprep.subr.mxu0 0.0
    %3582 = vmatpush1.msra.mxu0 0.0
    %3583 = vmatprep.subr.mxu0 0.0
    %3584 = vmatpush1.msra.mxu0 0.0
    %3585 = vmatprep.subr.mxu0 0.0
    %3586 = vmatpush1.msra.mxu0 0.0
    %3587 = vmatprep.subr.mxu0 0.0
    %3588 = vmatpush1.msra.mxu0 0.0
    %3589 = vmatprep.subr.mxu0 0.0
    %3590 = vmatpush1.msra.mxu0 0.0
    %3591 = vmatprep.subr.mxu0 0.0
    %3592 = vmatpush1.msra.mxu0 0.0
    %3593 = vmatprep.subr.mxu0 0.0
    %3594 = vmatpush1.msra.mxu0 0.0
    %3595 = vmatprep.subr.mxu0 0.0
    %3596 = vmatpush1.msra.mxu0 0.0
    %3597 = vmatprep.subr.mxu0 0.0
    %3598 = vmatpush1.msra.mxu0 0.0
    %3599 = vmatprep.mubr.f32.mxu0 0.0
    %3600 = vmatmul.mubr.f32.gmra.mrb[0].mxu0 %v3393
    %v3601 = vpop.f32.mrb[0].mxu0
    %v3602 = vadd.f32 %v3033, %v3601
    %v3603 = vpop.f32.mrb[0].mxu0
    %3604 = vdwg.mxu0
    %v3606 = vrot.slane %v3462, 6
    %v3608 = vadd.f32 %v549, %v3606
    %v3609 = vxor.u32 %v3608, 2147483648
    %v3610 = vmul.f32 %v3609, 1.442695
    %v3611 = vpow.pop %v3610
    %v3612 = vadd.f32 %v3611, 1.0
    %v3613 = vrcp.pop %v3612
    %v3614 = vmul.f32 1.0, %v3613
    %v3616 = vrot.slane %v3532, 6
    %v3618 = vadd.f32 %v637, %v3616
    %v3619 = vxor.u32 %v3618, 2147483648
    %v3620 = vmul.f32 %v3619, 1.442695
    %v3621 = vpow.pop %v3620
    %v3622 = vadd.f32 %v3621, 1.0
    %v3623 = vrcp.pop %v3622
    %v3624 = vmul.f32 1.0, %v3623
    %v3626 = vrot.slane %v3602, 6
    %v3628 = vmul.f32 %v3614, %v3626
    %v3629 = vadd.f32 %v725, %v3628
    %v3630 = vtanh.pop %v3629
    %v3631 = vsub.f32 1.0, %v3624
    %v3632 = vmul.f32 %v3631, %v3630
    %v3633 = vrot.slane %v3391, 6
    %v3635 = vmul.f32 %v3624, %v3633
    %v3636 = vadd.f32 %v3632, %v3635
    %v3638 = vrot.slane %v3636, 2
    %v3640 = vmul.f32 %v2314, %v3638
    %v3641 = vmul.f32 %v2324, %v3391
    %v3642 = vadd.f32 %v3640, %v3641
    %v3644 = vsel %vm208, %v3642, 0
    %3646 = vmatprep.subr.mxu0 0.0
    %3647 = vmatpush1.msra.mxu0 %v2858
    %3648 = vmatprep.subr.mxu0 0.0
    %3649 = vmatpush1.msra.mxu0 %v2859
    %3650 = vmatprep.subr.mxu0 0.0
    %3651 = vmatpush1.msra.mxu0 %v2860
    %3652 = vmatprep.subr.mxu0 0.0
    %3653 = vmatpush1.msra.mxu0 %v2861
    %3654 = vmatprep.subr.mxu0 0.0
    %3655 = vmatpush1.msra.mxu0 0.0
    %3656 = vmatprep.subr.mxu0 0.0
    %3657 = vmatpush1.msra.mxu0 0.0
    %3658 = vmatprep.subr.mxu0 0.0
    %3659 = vmatpush1.msra.mxu0 0.0
    %3660 = vmatprep.subr.mxu0 0.0
    %3661 = vmatpush1.msra.mxu0 0.0
    %3662 = vmatprep.subr.mxu0 0.0
    %3663 = vmatpush1.msra.mxu0 0.0
    %3664 = vmatprep.subr.mxu0 0.0
    %3665 = vmatpush1.msra.mxu0 0.0
    %3666 = vmatprep.subr.mxu0 0.0
    %3667 = vmatpush1.msra.mxu0 0.0
    %3668 = vmatprep.subr.mxu0 0.0
    %3669 = vmatpush1.msra.mxu0 0.0
    %3670 = vmatprep.subr.mxu0 0.0
    %3671 = vmatpush1.msra.mxu0 0.0
    %3672 = vmatprep.subr.mxu0 0.0
    %3673 = vmatpush1.msra.mxu0 0.0
    %3674 = vmatprep.subr.mxu0 0.0
    %3675 = vmatpush1.msra.mxu0 0.0
    %3676 = vmatprep.subr.mxu0 0.0
    %3677 = vmatpush1.msra.mxu0 0.0
    %3678 = vmatprep.subr.mxu0 0.0
    %3679 = vmatpush1.msra.mxu0 0.0
    %3680 = vmatprep.subr.mxu0 0.0
    %3681 = vmatpush1.msra.mxu0 0.0
    %3682 = vmatprep.subr.mxu0 0.0
    %3683 = vmatpush1.msra.mxu0 0.0
    %3684 = vmatprep.subr.mxu0 0.0
    %3685 = vmatpush1.msra.mxu0 0.0
    %3686 = vmatprep.subr.mxu0 0.0
    %3687 = vmatpush1.msra.mxu0 0.0
    %3688 = vmatprep.subr.mxu0 0.0
    %3689 = vmatpush1.msra.mxu0 0.0
    %3690 = vmatprep.subr.mxu0 0.0
    %3691 = vmatpush1.msra.mxu0 0.0
    %3692 = vmatprep.subr.mxu0 0.0
    %3693 = vmatpush1.msra.mxu0 0.0
    %3694 = vmatprep.subr.mxu0 0.0
    %3695 = vmatpush1.msra.mxu0 0.0
    %3696 = vmatprep.subr.mxu0 0.0
    %3697 = vmatpush1.msra.mxu0 0.0
    %3698 = vmatprep.subr.mxu0 0.0
    %3699 = vmatpush1.msra.mxu0 0.0
    %3700 = vmatprep.subr.mxu0 0.0
    %3701 = vmatpush1.msra.mxu0 0.0
    %3702 = vmatprep.subr.mxu0 0.0
    %3703 = vmatpush1.msra.mxu0 0.0
    %3704 = vmatprep.subr.mxu0 0.0
    %3705 = vmatpush1.msra.mxu0 0.0
    %3706 = vmatprep.subr.mxu0 0.0
    %3707 = vmatpush1.msra.mxu0 0.0
    %3708 = vmatprep.subr.mxu0 0.0
    %3709 = vmatpush1.msra.mxu0 0.0
    %3710 = vmatprep.mubr.f32.mxu0 0.0
    %3711 = vmatmul.mubr.f32.gmra.mrb[0].mxu0 %v3644
    %v3712 = vpop.f32.mrb[0].mxu0
    %v3713 = vadd.f32 %v2867, %v3712
    %v3714 = vpop.f32.mrb[0].mxu0
    %3715 = vdwg.mxu0
    %3716 = vmatprep.subr.mxu0 0.0
    %3717 = vmatpush1.msra.mxu0 %v2940
    %3718 = vmatprep.subr.mxu0 0.0
    %3719 = vmatpush1.msra.mxu0 %v2941
    %3720 = vmatprep.subr.mxu0 0.0
    %3721 = vmatpush1.msra.mxu0 %v2942
    %3722 = vmatprep.subr.mxu0 0.0
    %3723 = vmatpush1.msra.mxu0 %v2943
    %3724 = vmatprep.subr.mxu0 0.0
    %3725 = vmatpush1.msra.mxu0 0.0
    %3726 = vmatprep.subr.mxu0 0.0
    %3727 = vmatpush1.msra.mxu0 0.0
    %3728 = vmatprep.subr.mxu0 0.0
    %3729 = vmatpush1.msra.mxu0 0.0
    %3730 = vmatprep.subr.mxu0 0.0
    %3731 = vmatpush1.msra.mxu0 0.0
    %3732 = vmatprep.subr.mxu0 0.0
    %3733 = vmatpush1.msra.mxu0 0.0
    %3734 = vmatprep.subr.mxu0 0.0
    %3735 = vmatpush1.msra.mxu0 0.0
    %3736 = vmatprep.subr.mxu0 0.0
    %3737 = vmatpush1.msra.mxu0 0.0
    %3738 = vmatprep.subr.mxu0 0.0
    %3739 = vmatpush1.msra.mxu0 0.0
    %3740 = vmatprep.subr.mxu0 0.0
    %3741 = vmatpush1.msra.mxu0 0.0
    %3742 = vmatprep.subr.mxu0 0.0
    %3743 = vmatpush1.msra.mxu0 0.0
    %3744 = vmatprep.subr.mxu0 0.0
    %3745 = vmatpush1.msra.mxu0 0.0
    %3746 = vmatprep.subr.mxu0 0.0
    %3747 = vmatpush1.msra.mxu0 0.0
    %3748 = vmatprep.subr.mxu0 0.0
    %3749 = vmatpush1.msra.mxu0 0.0
    %3750 = vmatprep.subr.mxu0 0.0
    %3751 = vmatpush1.msra.mxu0 0.0
    %3752 = vmatprep.subr.mxu0 0.0
    %3753 = vmatpush1.msra.mxu0 0.0
    %3754 = vmatprep.subr.mxu0 0.0
    %3755 = vmatpush1.msra.mxu0 0.0
    %3756 = vmatprep.subr.mxu0 0.0
    %3757 = vmatpush1.msra.mxu0 0.0
    %3758 = vmatprep.subr.mxu0 0.0
    %3759 = vmatpush1.msra.mxu0 0.0
    %3760 = vmatprep.subr.mxu0 0.0
    %3761 = vmatpush1.msra.mxu0 0.0
    %3762 = vmatprep.subr.mxu0 0.0
    %3763 = vmatpush1.msra.mxu0 0.0
    %3764 = vmatprep.subr.mxu0 0.0
    %3765 = vmatpush1.msra.mxu0 0.0
    %3766 = vmatprep.subr.mxu0 0.0
    %3767 = vmatpush1.msra.mxu0 0.0
    %3768 = vmatprep.subr.mxu0 0.0
    %3769 = vmatpush1.msra.mxu0 0.0
    %3770 = vmatprep.subr.mxu0 0.0
    %3771 = vmatpush1.msra.mxu0 0.0
    %3772 = vmatprep.subr.mxu0 0.0
    %3773 = vmatpush1.msra.mxu0 0.0
    %3774 = vmatprep.subr.mxu0 0.0
    %3775 = vmatpush1.msra.mxu0 0.0
    %3776 = vmatprep.subr.mxu0 0.0
    %3777 = vmatpush1.msra.mxu0 0.0
    %3778 = vmatprep.subr.mxu0 0.0
    %3779 = vmatpush1.msra.mxu0 0.0
    %3780 = vmatprep.mubr.f32.mxu0 0.0
    %3781 = vmatmul.mubr.f32.gmra.mrb[0].mxu0 %v3644
    %v3782 = vpop.f32.mrb[0].mxu0
    %v3783 = vadd.f32 %v2950, %v3782
    %v3784 = vpop.f32.mrb[0].mxu0
    %3785 = vdwg.mxu0
    %3786 = vmatprep.subr.mxu0 0.0
    %3787 = vmatpush1.msra.mxu0 %v3023
    %3788 = vmatprep.subr.mxu0 0.0
    %3789 = vmatpush1.msra.mxu0 %v3024
    %3790 = vmatprep.subr.mxu0 0.0
    %3791 = vmatpush1.msra.mxu0 %v3025
    %3792 = vmatprep.subr.mxu0 0.0
    %3793 = vmatpush1.msra.mxu0 %v3026
    %3794 = vmatprep.subr.mxu0 0.0
    %3795 = vmatpush1.msra.mxu0 0.0
    %3796 = vmatprep.subr.mxu0 0.0
    %3797 = vmatpush1.msra.mxu0 0.0
    %3798 = vmatprep.subr.mxu0 0.0
    %3799 = vmatpush1.msra.mxu0 0.0
    %3800 = vmatprep.subr.mxu0 0.0
    %3801 = vmatpush1.msra.mxu0 0.0
    %3802 = vmatprep.subr.mxu0 0.0
    %3803 = vmatpush1.msra.mxu0 0.0
    %3804 = vmatprep.subr.mxu0 0.0
    %3805 = vmatpush1.msra.mxu0 0.0
    %3806 = vmatprep.subr.mxu0 0.0
    %3807 = vmatpush1.msra.mxu0 0.0
    %3808 = vmatprep.subr.mxu0 0.0
    %3809 = vmatpush1.msra.mxu0 0.0
    %3810 = vmatprep.subr.mxu0 0.0
    %3811 = vmatpush1.msra.mxu0 0.0
    %3812 = vmatprep.subr.mxu0 0.0
    %3813 = vmatpush1.msra.mxu0 0.0
    %3814 = vmatprep.subr.mxu0 0.0
    %3815 = vmatpush1.msra.mxu0 0.0
    %3816 = vmatprep.subr.mxu0 0.0
    %3817 = vmatpush1.msra.mxu0 0.0
    %3818 = vmatprep.subr.mxu0 0.0
    %3819 = vmatpush1.msra.mxu0 0.0
    %3820 = vmatprep.subr.mxu0 0.0
    %3821 = vmatpush1.msra.mxu0 0.0
    %3822 = vmatprep.subr.mxu0 0.0
    %3823 = vmatpush1.msra.mxu0 0.0
    %3824 = vmatprep.subr.mxu0 0.0
    %3825 = vmatpush1.msra.mxu0 0.0
    %3826 = vmatprep.subr.mxu0 0.0
    %3827 = vmatpush1.msra.mxu0 0.0
    %3828 = vmatprep.subr.mxu0 0.0
    %3829 = vmatpush1.msra.mxu0 0.0
    %3830 = vmatprep.subr.mxu0 0.0
    %3831 = vmatpush1.msra.mxu0 0.0
    %3832 = vmatprep.subr.mxu0 0.0
    %3833 = vmatpush1.msra.mxu0 0.0
    %3834 = vmatprep.subr.mxu0 0.0
    %3835 = vmatpush1.msra.mxu0 0.0
    %3836 = vmatprep.subr.mxu0 0.0
    %3837 = vmatpush1.msra.mxu0 0.0
    %3838 = vmatprep.subr.mxu0 0.0
    %3839 = vmatpush1.msra.mxu0 0.0
    %3840 = vmatprep.subr.mxu0 0.0
    %3841 = vmatpush1.msra.mxu0 0.0
    %3842 = vmatprep.subr.mxu0 0.0
    %3843 = vmatpush1.msra.mxu0 0.0
    %3844 = vmatprep.subr.mxu0 0.0
    %3845 = vmatpush1.msra.mxu0 0.0
    %3846 = vmatprep.subr.mxu0 0.0
    %3847 = vmatpush1.msra.mxu0 0.0
    %3848 = vmatprep.subr.mxu0 0.0
    %3849 = vmatpush1.msra.mxu0 0.0
    %3850 = vmatprep.mubr.f32.mxu0 0.0
    %3851 = vmatmul.mubr.f32.gmra.mrb[0].mxu0 %v3644
    %v3852 = vpop.f32.mrb[0].mxu0
    %v3853 = vadd.f32 %v3033, %v3852
    %v3854 = vpop.f32.mrb[0].mxu0
    %3855 = vdwg.mxu0
    %v3856 = vadd.f32 %v549, %v3713
    %v3857 = vxor.u32 %v3856, 2147483648
    %v3858 = vmul.f32 %v3857, 1.442695
    %v3859 = vpow.pop %v3858
    %v3860 = vadd.f32 %v3859, 1.0
    %v3861 = vrcp.pop %v3860
    %v3862 = vmul.f32 1.0, %v3861
    %v3863 = vadd.f32 %v637, %v3783
    %v3864 = vxor.u32 %v3863, 2147483648
    %v3865 = vmul.f32 %v3864, 1.442695
    %v3866 = vpow.pop %v3865
    %v3867 = vadd.f32 %v3866, 1.0
    %v3868 = vrcp.pop %v3867
    %v3869 = vmul.f32 1.0, %v3868
    %v3870 = vmul.f32 %v3862, %v3853
    %v3871 = vadd.f32 %v725, %v3870
    %v3872 = vtanh.pop %v3871
    %v3873 = vsub.f32 1.0, %v3869
    %v3874 = vmul.f32 %v3873, %v3872
    %v3875 = vmul.f32 %v3869, %v3642
    %v3876 = vadd.f32 %v3874, %v3875
    %v3877 = vmul.f32 %v2052, %v3876
    %v3878 = vmul.f32 %v2059, %v3642
    %v3879 = vadd.f32 %v3877, %v3878
    %v3881 = vsel %vm208, %v3879, 0
    %3883 = vmatprep.subr.mxu0 0.0
    %3884 = vmatpush1.msra.mxu0 %v2858
    %3885 = vmatprep.subr.mxu0 0.0
    %3886 = vmatpush1.msra.mxu0 %v2859
    %3887 = vmatprep.subr.mxu0 0.0
    %3888 = vmatpush1.msra.mxu0 %v2860
    %3889 = vmatprep.subr.mxu0 0.0
    %3890 = vmatpush1.msra.mxu0 %v2861
    %3891 = vmatprep.subr.mxu0 0.0
    %3892 = vmatpush1.msra.mxu0 0.0
    %3893 = vmatprep.subr.mxu0 0.0
    %3894 = vmatpush1.msra.mxu0 0.0
    %3895 = vmatprep.subr.mxu0 0.0
    %3896 = vmatpush1.msra.mxu0 0.0
    %3897 = vmatprep.subr.mxu0 0.0
    %3898 = vmatpush1.msra.mxu0 0.0
    %3899 = vmatprep.subr.mxu0 0.0
    %3900 = vmatpush1.msra.mxu0 0.0
    %3901 = vmatprep.subr.mxu0 0.0
    %3902 = vmatpush1.msra.mxu0 0.0
    %3903 = vmatprep.subr.mxu0 0.0
    %3904 = vmatpush1.msra.mxu0 0.0
    %3905 = vmatprep.subr.mxu0 0.0
    %3906 = vmatpush1.msra.mxu0 0.0
    %3907 = vmatprep.subr.mxu0 0.0
    %3908 = vmatpush1.msra.mxu0 0.0
    %3909 = vmatprep.subr.mxu0 0.0
    %3910 = vmatpush1.msra.mxu0 0.0
    %3911 = vmatprep.subr.mxu0 0.0
    %3912 = vmatpush1.msra.mxu0 0.0
    %3913 = vmatprep.subr.mxu0 0.0
    %3914 = vmatpush1.msra.mxu0 0.0
    %3915 = vmatprep.subr.mxu0 0.0
    %3916 = vmatpush1.msra.mxu0 0.0
    %3917 = vmatprep.subr.mxu0 0.0
    %3918 = vmatpush1.msra.mxu0 0.0
    %3919 = vmatprep.subr.mxu0 0.0
    %3920 = vmatpush1.msra.mxu0 0.0
    %3921 = vmatprep.subr.mxu0 0.0
    %3922 = vmatpush1.msra.mxu0 0.0
    %3923 = vmatprep.subr.mxu0 0.0
    %3924 = vmatpush1.msra.mxu0 0.0
    %3925 = vmatprep.subr.mxu0 0.0
    %3926 = vmatpush1.msra.mxu0 0.0
    %3927 = vmatprep.subr.mxu0 0.0
    %3928 = vmatpush1.msra.mxu0 0.0
    %3929 = vmatprep.subr.mxu0 0.0
    %3930 = vmatpush1.msra.mxu0 0.0
    %3931 = vmatprep.subr.mxu0 0.0
    %3932 = vmatpush1.msra.mxu0 0.0
    %3933 = vmatprep.subr.mxu0 0.0
    %3934 = vmatpush1.msra.mxu0 0.0
    %3935 = vmatprep.subr.mxu0 0.0
    %3936 = vmatpush1.msra.mxu0 0.0
    %3937 = vmatprep.subr.mxu0 0.0
    %3938 = vmatpush1.msra.mxu0 0.0
    %3939 = vmatprep.subr.mxu0 0.0
    %3940 = vmatpush1.msra.mxu0 0.0
    %3941 = vmatprep.subr.mxu0 0.0
    %3942 = vmatpush1.msra.mxu0 0.0
    %3943 = vmatprep.subr.mxu0 0.0
    %3944 = vmatpush1.msra.mxu0 0.0
    %3945 = vmatprep.subr.mxu0 0.0
    %3946 = vmatpush1.msra.mxu0 0.0
    %3947 = vmatprep.mubr.f32.mxu0 0.0
    %3948 = vmatmul.mubr.f32.gmra.mrb[0].mxu0 %v3881
    %v3949 = vpop.f32.mrb[0].mxu0
    %v3950 = vadd.f32 %v2867, %v3949
    %v3951 = vpop.f32.mrb[0].mxu0
    %3952 = vdwg.mxu0
    %3953 = vmatprep.subr.mxu0 0.0
    %3954 = vmatpush1.msra.mxu0 %v2940
    %3955 = vmatprep.subr.mxu0 0.0
    %3956 = vmatpush1.msra.mxu0 %v2941
    %3957 = vmatprep.subr.mxu0 0.0
    %3958 = vmatpush1.msra.mxu0 %v2942
    %3959 = vmatprep.subr.mxu0 0.0
    %3960 = vmatpush1.msra.mxu0 %v2943
    %3961 = vmatprep.subr.mxu0 0.0
    %3962 = vmatpush1.msra.mxu0 0.0
    %3963 = vmatprep.subr.mxu0 0.0
    %3964 = vmatpush1.msra.mxu0 0.0
    %3965 = vmatprep.subr.mxu0 0.0
    %3966 = vmatpush1.msra.mxu0 0.0
    %3967 = vmatprep.subr.mxu0 0.0
    %3968 = vmatpush1.msra.mxu0 0.0
    %3969 = vmatprep.subr.mxu0 0.0
    %3970 = vmatpush1.msra.mxu0 0.0
    %3971 = vmatprep.subr.mxu0 0.0
    %3972 = vmatpush1.msra.mxu0 0.0
    %3973 = vmatprep.subr.mxu0 0.0
    %3974 = vmatpush1.msra.mxu0 0.0
    %3975 = vmatprep.subr.mxu0 0.0
    %3976 = vmatpush1.msra.mxu0 0.0
    %3977 = vmatprep.subr.mxu0 0.0
    %3978 = vmatpush1.msra.mxu0 0.0
    %3979 = vmatprep.subr.mxu0 0.0
    %3980 = vmatpush1.msra.mxu0 0.0
    %3981 = vmatprep.subr.mxu0 0.0
    %3982 = vmatpush1.msra.mxu0 0.0
    %3983 = vmatprep.subr.mxu0 0.0
    %3984 = vmatpush1.msra.mxu0 0.0
    %3985 = vmatprep.subr.mxu0 0.0
    %3986 = vmatpush1.msra.mxu0 0.0
    %3987 = vmatprep.subr.mxu0 0.0
    %3988 = vmatpush1.msra.mxu0 0.0
    %3989 = vmatprep.subr.mxu0 0.0
    %3990 = vmatpush1.msra.mxu0 0.0
    %3991 = vmatprep.subr.mxu0 0.0
    %3992 = vmatpush1.msra.mxu0 0.0
    %3993 = vmatprep.subr.mxu0 0.0
    %3994 = vmatpush1.msra.mxu0 0.0
    %3995 = vmatprep.subr.mxu0 0.0
    %3996 = vmatpush1.msra.mxu0 0.0
    %3997 = vmatprep.subr.mxu0 0.0
    %3998 = vmatpush1.msra.mxu0 0.0
    %3999 = vmatprep.subr.mxu0 0.0
    %4000 = vmatpush1.msra.mxu0 0.0
    %4001 = vmatprep.subr.mxu0 0.0
    %4002 = vmatpush1.msra.mxu0 0.0
    %4003 = vmatprep.subr.mxu0 0.0
    %4004 = vmatpush1.msra.mxu0 0.0
    %4005 = vmatprep.subr.mxu0 0.0
    %4006 = vmatpush1.msra.mxu0 0.0
    %4007 = vmatprep.subr.mxu0 0.0
    %4008 = vmatpush1.msra.mxu0 0.0
    %4009 = vmatprep.subr.mxu0 0.0
    %4010 = vmatpush1.msra.mxu0 0.0
    %4011 = vmatprep.subr.mxu0 0.0
    %4012 = vmatpush1.msra.mxu0 0.0
    %4013 = vmatprep.subr.mxu0 0.0
    %4014 = vmatpush1.msra.mxu0 0.0
    %4015 = vmatprep.subr.mxu0 0.0
    %4016 = vmatpush1.msra.mxu0 0.0
    %4017 = vmatprep.mubr.f32.mxu0 0.0
    %4018 = vmatmul.mubr.f32.gmra.mrb[0].mxu0 %v3881
    %v4019 = vpop.f32.mrb[0].mxu0
    %v4020 = vadd.f32 %v2950, %v4019
    %v4021 = vpop.f32.mrb[0].mxu0
    %4022 = vdwg.mxu0
    %4023 = vmatprep.subr.mxu0 0.0
    %4024 = vmatpush1.msra.mxu0 %v3023
    %4025 = vmatprep.subr.mxu0 0.0
    %4026 = vmatpush1.msra.mxu0 %v3024
    %4027 = vmatprep.subr.mxu0 0.0
    %4028 = vmatpush1.msra.mxu0 %v3025
    %4029 = vmatprep.subr.mxu0 0.0
    %4030 = vmatpush1.msra.mxu0 %v3026
    %4031 = vmatprep.subr.mxu0 0.0
    %4032 = vmatpush1.msra.mxu0 0.0
    %4033 = vmatprep.subr.mxu0 0.0
    %4034 = vmatpush1.msra.mxu0 0.0
    %4035 = vmatprep.subr.mxu0 0.0
    %4036 = vmatpush1.msra.mxu0 0.0
    %4037 = vmatprep.subr.mxu0 0.0
    %4038 = vmatpush1.msra.mxu0 0.0
    %4039 = vmatprep.subr.mxu0 0.0
    %4040 = vmatpush1.msra.mxu0 0.0
    %4041 = vmatprep.subr.mxu0 0.0
    %4042 = vmatpush1.msra.mxu0 0.0
    %4043 = vmatprep.subr.mxu0 0.0
    %4044 = vmatpush1.msra.mxu0 0.0
    %4045 = vmatprep.subr.mxu0 0.0
    %4046 = vmatpush1.msra.mxu0 0.0
    %4047 = vmatprep.subr.mxu0 0.0
    %4048 = vmatpush1.msra.mxu0 0.0
    %4049 = vmatprep.subr.mxu0 0.0
    %4050 = vmatpush1.msra.mxu0 0.0
    %4051 = vmatprep.subr.mxu0 0.0
    %4052 = vmatpush1.msra.mxu0 0.0
    %4053 = vmatprep.subr.mxu0 0.0
    %4054 = vmatpush1.msra.mxu0 0.0
    %4055 = vmatprep.subr.mxu0 0.0
    %4056 = vmatpush1.msra.mxu0 0.0
    %4057 = vmatprep.subr.mxu0 0.0
    %4058 = vmatpush1.msra.mxu0 0.0
    %4059 = vmatprep.subr.mxu0 0.0
    %4060 = vmatpush1.msra.mxu0 0.0
    %4061 = vmatprep.subr.mxu0 0.0
    %4062 = vmatpush1.msra.mxu0 0.0
    %4063 = vmatprep.subr.mxu0 0.0
    %4064 = vmatpush1.msra.mxu0 0.0
    %4065 = vmatprep.subr.mxu0 0.0
    %4066 = vmatpush1.msra.mxu0 0.0
    %4067 = vmatprep.subr.mxu0 0.0
    %4068 = vmatpush1.msra.mxu0 0.0
    %4069 = vmatprep.subr.mxu0 0.0
    %4070 = vmatpush1.msra.mxu0 0.0
    %4071 = vmatprep.subr.mxu0 0.0
    %4072 = vmatpush1.msra.mxu0 0.0
    %4073 = vmatprep.subr.mxu0 0.0
    %4074 = vmatpush1.msra.mxu0 0.0
    %4075 = vmatprep.subr.mxu0 0.0
    %4076 = vmatpush1.msra.mxu0 0.0
    %4077 = vmatprep.subr.mxu0 0.0
    %4078 = vmatpush1.msra.mxu0 0.0
    %4079 = vmatprep.subr.mxu0 0.0
    %4080 = vmatpush1.msra.mxu0 0.0
    %4081 = vmatprep.subr.mxu0 0.0
    %4082 = vmatpush1.msra.mxu0 0.0
    %4083 = vmatprep.subr.mxu0 0.0
    %4084 = vmatpush1.msra.mxu0 0.0
    %4085 = vmatprep.subr.mxu0 0.0
    %4086 = vmatpush1.msra.mxu0 0.0
    %4087 = vmatprep.mubr.f32.mxu0 0.0
    %4088 = vmatmul.mubr.f32.gmra.mrb[0].mxu0 %v3881
    %v4089 = vpop.f32.mrb[0].mxu0
    %v4090 = vadd.f32 %v3033, %v4089
    %v4091 = vpop.f32.mrb[0].mxu0
    %4092 = vdwg.mxu0
    %v4094 = vrot.slane %v3950, 2
    %v4096 = vadd.f32 %v544, %v4094
    %v4097 = vxor.u32 %v4096, 2147483648
    %v4098 = vmul.f32 %v4097, 1.442695
    %v4099 = vpow.pop %v4098
    %v4100 = vadd.f32 %v4099, 1.0
    %v4101 = vrcp.pop %v4100
    %v4102 = vmul.f32 1.0, %v4101
    %v4104 = vrot.slane %v4020, 2
    %v4106 = vadd.f32 %v632, %v4104
    %v4107 = vxor.u32 %v4106, 2147483648
    %v4108 = vmul.f32 %v4107, 1.442695
    %v4109 = vpow.pop %v4108
    %v4110 = vadd.f32 %v4109, 1.0
    %v4111 = vrcp.pop %v4110
    %v4112 = vmul.f32 1.0, %v4111
    %v4114 = vrot.slane %v4090, 2
    %v4116 = vmul.f32 %v4102, %v4114
    %v4117 = vadd.f32 %v720, %v4116
    %v4118 = vtanh.pop %v4117
    %v4119 = vsub.f32 1.0, %v4112
    %v4120 = vmul.f32 %v4119, %v4118
    %v4121 = vrot.slane %v3879, 2
    %v4123 = vmul.f32 %v4112, %v4121
    %v4124 = vadd.f32 %v4120, %v4123
    %v4126 = vrot.slane %v4124, 6
    %v4128 = vmul.f32 %v1798, %v4126
    %v4129 = vmul.f32 %v1808, %v3879
    %v4130 = vadd.f32 %v4128, %v4129
    %v4132 = vsel %vm208, %v4130, 0
    %4134 = vmatprep.subr.mxu0 0.0
    %4135 = vmatpush1.msra.mxu0 %v2858
    %4136 = vmatprep.subr.mxu0 0.0
    %4137 = vmatpush1.msra.mxu0 %v2859
    %4138 = vmatprep.subr.mxu0 0.0
    %4139 = vmatpush1.msra.mxu0 %v2860
    %4140 = vmatprep.subr.mxu0 0.0
    %4141 = vmatpush1.msra.mxu0 %v2861
    %4142 = vmatprep.subr.mxu0 0.0
    %4143 = vmatpush1.msra.mxu0 0.0
    %4144 = vmatprep.subr.mxu0 0.0
    %4145 = vmatpush1.msra.mxu0 0.0
    %4146 = vmatprep.subr.mxu0 0.0
    %4147 = vmatpush1.msra.mxu0 0.0
    %4148 = vmatprep.subr.mxu0 0.0
    %4149 = vmatpush1.msra.mxu0 0.0
    %4150 = vmatprep.subr.mxu0 0.0
    %4151 = vmatpush1.msra.mxu0 0.0
    %4152 = vmatprep.subr.mxu0 0.0
    %4153 = vmatpush1.msra.mxu0 0.0
    %4154 = vmatprep.subr.mxu0 0.0
    %4155 = vmatpush1.msra.mxu0 0.0
    %4156 = vmatprep.subr.mxu0 0.0
    %4157 = vmatpush1.msra.mxu0 0.0
    %4158 = vmatprep.subr.mxu0 0.0
    %4159 = vmatpush1.msra.mxu0 0.0
    %4160 = vmatprep.subr.mxu0 0.0
    %4161 = vmatpush1.msra.mxu0 0.0
    %4162 = vmatprep.subr.mxu0 0.0
    %4163 = vmatpush1.msra.mxu0 0.0
    %4164 = vmatprep.subr.mxu0 0.0
    %4165 = vmatpush1.msra.mxu0 0.0
    %4166 = vmatprep.subr.mxu0 0.0
    %4167 = vmatpush1.msra.mxu0 0.0
    %4168 = vmatprep.subr.mxu0 0.0
    %4169 = vmatpush1.msra.mxu0 0.0
    %4170 = vmatprep.subr.mxu0 0.0
    %4171 = vmatpush1.msra.mxu0 0.0
    %4172 = vmatprep.subr.mxu0 0.0
    %4173 = vmatpush1.msra.mxu0 0.0
    %4174 = vmatprep.subr.mxu0 0.0
    %4175 = vmatpush1.msra.mxu0 0.0
    %4176 = vmatprep.subr.mxu0 0.0
    %4177 = vmatpush1.msra.mxu0 0.0
    %4178 = vmatprep.subr.mxu0 0.0
    %4179 = vmatpush1.msra.mxu0 0.0
    %4180 = vmatprep.subr.mxu0 0.0
    %4181 = vmatpush1.msra.mxu0 0.0
    %4182 = vmatprep.subr.mxu0 0.0
    %4183 = vmatpush1.msra.mxu0 0.0
    %4184 = vmatprep.subr.mxu0 0.0
    %4185 = vmatpush1.msra.mxu0 0.0
    %4186 = vmatprep.subr.mxu0 0.0
    %4187 = vmatpush1.msra.mxu0 0.0
    %4188 = vmatprep.subr.mxu0 0.0
    %4189 = vmatpush1.msra.mxu0 0.0
    %4190 = vmatprep.subr.mxu0 0.0
    %4191 = vmatpush1.msra.mxu0 0.0
    %4192 = vmatprep.subr.mxu0 0.0
    %4193 = vmatpush1.msra.mxu0 0.0
    %4194 = vmatprep.subr.mxu0 0.0
    %4195 = vmatpush1.msra.mxu0 0.0
    %4196 = vmatprep.subr.mxu0 0.0
    %4197 = vmatpush1.msra.mxu0 0.0
    %4198 = vmatprep.mubr.f32.mxu0 0.0
    %4199 = vmatmul.mubr.f32.gmra.mrb[0].mxu0 %v4132
    %v4200 = vpop.f32.mrb[0].mxu0
    %v4201 = vadd.f32 %v2867, %v4200
    %v4202 = vpop.f32.mrb[0].mxu0
    %4203 = vdwg.mxu0
    %4204 = vmatprep.subr.mxu0 0.0
    %4205 = vmatpush1.msra.mxu0 %v2940
    %4206 = vmatprep.subr.mxu0 0.0
    %4207 = vmatpush1.msra.mxu0 %v2941
    %4208 = vmatprep.subr.mxu0 0.0
    %4209 = vmatpush1.msra.mxu0 %v2942
    %4210 = vmatprep.subr.mxu0 0.0
    %4211 = vmatpush1.msra.mxu0 %v2943
    %4212 = vmatprep.subr.mxu0 0.0
    %4213 = vmatpush1.msra.mxu0 0.0
    %4214 = vmatprep.subr.mxu0 0.0
    %4215 = vmatpush1.msra.mxu0 0.0
    %4216 = vmatprep.subr.mxu0 0.0
    %4217 = vmatpush1.msra.mxu0 0.0
    %4218 = vmatprep.subr.mxu0 0.0
    %4219 = vmatpush1.msra.mxu0 0.0
    %4220 = vmatprep.subr.mxu0 0.0
    %4221 = vmatpush1.msra.mxu0 0.0
    %4222 = vmatprep.subr.mxu0 0.0
    %4223 = vmatpush1.msra.mxu0 0.0
    %4224 = vmatprep.subr.mxu0 0.0
    %4225 = vmatpush1.msra.mxu0 0.0
    %4226 = vmatprep.subr.mxu0 0.0
    %4227 = vmatpush1.msra.mxu0 0.0
    %4228 = vmatprep.subr.mxu0 0.0
    %4229 = vmatpush1.msra.mxu0 0.0
    %4230 = vmatprep.subr.mxu0 0.0
    %4231 = vmatpush1.msra.mxu0 0.0
    %4232 = vmatprep.subr.mxu0 0.0
    %4233 = vmatpush1.msra.mxu0 0.0
    %4234 = vmatprep.subr.mxu0 0.0
    %4235 = vmatpush1.msra.mxu0 0.0
    %4236 = vmatprep.subr.mxu0 0.0
    %4237 = vmatpush1.msra.mxu0 0.0
    %4238 = vmatprep.subr.mxu0 0.0
    %4239 = vmatpush1.msra.mxu0 0.0
    %4240 = vmatprep.subr.mxu0 0.0
    %4241 = vmatpush1.msra.mxu0 0.0
    %4242 = vmatprep.subr.mxu0 0.0
    %4243 = vmatpush1.msra.mxu0 0.0
    %4244 = vmatprep.subr.mxu0 0.0
    %4245 = vmatpush1.msra.mxu0 0.0
    %4246 = vmatprep.subr.mxu0 0.0
    %4247 = vmatpush1.msra.mxu0 0.0
    %4248 = vmatprep.subr.mxu0 0.0
    %4249 = vmatpush1.msra.mxu0 0.0
    %4250 = vmatprep.subr.mxu0 0.0
    %4251 = vmatpush1.msra.mxu0 0.0
    %4252 = vmatprep.subr.mxu0 0.0
    %4253 = vmatpush1.msra.mxu0 0.0
    %4254 = vmatprep.subr.mxu0 0.0
    %4255 = vmatpush1.msra.mxu0 0.0
    %4256 = vmatprep.subr.mxu0 0.0
    %4257 = vmatpush1.msra.mxu0 0.0
    %4258 = vmatprep.subr.mxu0 0.0
    %4259 = vmatpush1.msra.mxu0 0.0
    %4260 = vmatprep.subr.mxu0 0.0
    %4261 = vmatpush1.msra.mxu0 0.0
    %4262 = vmatprep.subr.mxu0 0.0
    %4263 = vmatpush1.msra.mxu0 0.0
    %4264 = vmatprep.subr.mxu0 0.0
    %4265 = vmatpush1.msra.mxu0 0.0
    %4266 = vmatprep.subr.mxu0 0.0
    %4267 = vmatpush1.msra.mxu0 0.0
    %4268 = vmatprep.mubr.f32.mxu0 0.0
    %4269 = vmatmul.mubr.f32.gmra.mrb[0].mxu0 %v4132
    %v4270 = vpop.f32.mrb[0].mxu0
    %v4271 = vadd.f32 %v2950, %v4270
    %v4272 = vpop.f32.mrb[0].mxu0
    %4273 = vdwg.mxu0
    %4274 = vmatprep.subr.mxu0 0.0
    %4275 = vmatpush1.msra.mxu0 %v3023
    %4276 = vmatprep.subr.mxu0 0.0
    %4277 = vmatpush1.msra.mxu0 %v3024
    %4278 = vmatprep.subr.mxu0 0.0
    %4279 = vmatpush1.msra.mxu0 %v3025
    %4280 = vmatprep.subr.mxu0 0.0
    %4281 = vmatpush1.msra.mxu0 %v3026
    %4282 = vmatprep.subr.mxu0 0.0
    %4283 = vmatpush1.msra.mxu0 0.0
    %4284 = vmatprep.subr.mxu0 0.0
    %4285 = vmatpush1.msra.mxu0 0.0
    %4286 = vmatprep.subr.mxu0 0.0
    %4287 = vmatpush1.msra.mxu0 0.0
    %4288 = vmatprep.subr.mxu0 0.0
    %4289 = vmatpush1.msra.mxu0 0.0
    %4290 = vmatprep.subr.mxu0 0.0
    %4291 = vmatpush1.msra.mxu0 0.0
    %4292 = vmatprep.subr.mxu0 0.0
    %4293 = vmatpush1.msra.mxu0 0.0
    %4294 = vmatprep.subr.mxu0 0.0
    %4295 = vmatpush1.msra.mxu0 0.0
    %4296 = vmatprep.subr.mxu0 0.0
    %4297 = vmatpush1.msra.mxu0 0.0
    %4298 = vmatprep.subr.mxu0 0.0
    %4299 = vmatpush1.msra.mxu0 0.0
    %4300 = vmatprep.subr.mxu0 0.0
    %4301 = vmatpush1.msra.mxu0 0.0
    %4302 = vmatprep.subr.mxu0 0.0
    %4303 = vmatpush1.msra.mxu0 0.0
    %4304 = vmatprep.subr.mxu0 0.0
    %4305 = vmatpush1.msra.mxu0 0.0
    %4306 = vmatprep.subr.mxu0 0.0
    %4307 = vmatpush1.msra.mxu0 0.0
    %4308 = vmatprep.subr.mxu0 0.0
    %4309 = vmatpush1.msra.mxu0 0.0
    %4310 = vmatprep.subr.mxu0 0.0
    %4311 = vmatpush1.msra.mxu0 0.0
    %4312 = vmatprep.subr.mxu0 0.0
    %4313 = vmatpush1.msra.mxu0 0.0
    %4314 = vmatprep.subr.mxu0 0.0
    %4315 = vmatpush1.msra.mxu0 0.0
    %4316 = vmatprep.subr.mxu0 0.0
    %4317 = vmatpush1.msra.mxu0 0.0
    %4318 = vmatprep.subr.mxu0 0.0
    %4319 = vmatpush1.msra.mxu0 0.0
    %4320 = vmatprep.subr.mxu0 0.0
    %4321 = vmatpush1.msra.mxu0 0.0
    %4322 = vmatprep.subr.mxu0 0.0
    %4323 = vmatpush1.msra.mxu0 0.0
    %4324 = vmatprep.subr.mxu0 0.0
    %4325 = vmatpush1.msra.mxu0 0.0
    %4326 = vmatprep.subr.mxu0 0.0
    %4327 = vmatpush1.msra.mxu0 0.0
    %4328 = vmatprep.subr.mxu0 0.0
    %4329 = vmatpush1.msra.mxu0 0.0
    %4330 = vmatprep.subr.mxu0 0.0
    %4331 = vmatpush1.msra.mxu0 0.0
    %4332 = vmatprep.subr.mxu0 0.0
    %4333 = vmatpush1.msra.mxu0 0.0
    %4334 = vmatprep.subr.mxu0 0.0
    %4335 = vmatpush1.msra.mxu0 0.0
    %4336 = vmatprep.subr.mxu0 0.0
    %4337 = vmatpush1.msra.mxu0 0.0
    %4338 = vmatprep.mubr.f32.mxu0 0.0
    %4339 = vmatmul.mubr.f32.gmra.mrb[0].mxu0 %v4132
    %v4340 = vpop.f32.mrb[0].mxu0
    %v4341 = vadd.f32 %v3033, %v4340
    %v4342 = vpop.f32.mrb[0].mxu0
    %4343 = vdwg.mxu0
    %v4345 = vrot.slane %v4201, 4
    %v4347 = vadd.f32 %v544, %v4345
    %v4348 = vxor.u32 %v4347, 2147483648
    %v4349 = vmul.f32 %v4348, 1.442695
    %v4350 = vpow.pop %v4349
    %v4351 = vadd.f32 %v4350, 1.0
    %v4352 = vrcp.pop %v4351
    %v4353 = vmul.f32 1.0, %v4352
    %v4355 = vrot.slane %v4271, 4
    %v4357 = vadd.f32 %v632, %v4355
    %v4358 = vxor.u32 %v4357, 2147483648
    %v4359 = vmul.f32 %v4358, 1.442695
    %v4360 = vpow.pop %v4359
    %v4361 = vadd.f32 %v4360, 1.0
    %v4362 = vrcp.pop %v4361
    %v4363 = vmul.f32 1.0, %v4362
    %v4365 = vrot.slane %v4341, 4
    %v4367 = vmul.f32 %v4353, %v4365
    %v4368 = vadd.f32 %v720, %v4367
    %v4369 = vtanh.pop %v4368
    %v4370 = vsub.f32 1.0, %v4363
    %v4371 = vmul.f32 %v4370, %v4369
    %v4372 = vrot.slane %v4130, 4
    %v4374 = vmul.f32 %v4363, %v4372
    %v4375 = vadd.f32 %v4371, %v4374
    %v4377 = vrot.slane %v4375, 4
    %v4379 = vmul.f32 %v1533, %v4377
    %v4380 = vmul.f32 %v1543, %v4130
    %v4381 = vadd.f32 %v4379, %v4380
    %v4383 = vsel %vm208, %v4381, 0
    %4385 = vmatprep.subr.mxu0 0.0
    %4386 = vmatpush1.msra.mxu0 %v2858
    %4387 = vmatprep.subr.mxu0 0.0
    %4388 = vmatpush1.msra.mxu0 %v2859
    %4389 = vmatprep.subr.mxu0 0.0
    %4390 = vmatpush1.msra.mxu0 %v2860
    %4391 = vmatprep.subr.mxu0 0.0
    %4392 = vmatpush1.msra.mxu0 %v2861
    %4393 = vmatprep.subr.mxu0 0.0
    %4394 = vmatpush1.msra.mxu0 0.0
    %4395 = vmatprep.subr.mxu0 0.0
    %4396 = vmatpush1.msra.mxu0 0.0
    %4397 = vmatprep.subr.mxu0 0.0
    %4398 = vmatpush1.msra.mxu0 0.0
    %4399 = vmatprep.subr.mxu0 0.0
    %4400 = vmatpush1.msra.mxu0 0.0
    %4401 = vmatprep.subr.mxu0 0.0
    %4402 = vmatpush1.msra.mxu0 0.0
    %4403 = vmatprep.subr.mxu0 0.0
    %4404 = vmatpush1.msra.mxu0 0.0
    %4405 = vmatprep.subr.mxu0 0.0
    %4406 = vmatpush1.msra.mxu0 0.0
    %4407 = vmatprep.subr.mxu0 0.0
    %4408 = vmatpush1.msra.mxu0 0.0
    %4409 = vmatprep.subr.mxu0 0.0
    %4410 = vmatpush1.msra.mxu0 0.0
    %4411 = vmatprep.subr.mxu0 0.0
    %4412 = vmatpush1.msra.mxu0 0.0
    %4413 = vmatprep.subr.mxu0 0.0
    %4414 = vmatpush1.msra.mxu0 0.0
    %4415 = vmatprep.subr.mxu0 0.0
    %4416 = vmatpush1.msra.mxu0 0.0
    %4417 = vmatprep.subr.mxu0 0.0
    %4418 = vmatpush1.msra.mxu0 0.0
    %4419 = vmatprep.subr.mxu0 0.0
    %4420 = vmatpush1.msra.mxu0 0.0
    %4421 = vmatprep.subr.mxu0 0.0
    %4422 = vmatpush1.msra.mxu0 0.0
    %4423 = vmatprep.subr.mxu0 0.0
    %4424 = vmatpush1.msra.mxu0 0.0
    %4425 = vmatprep.subr.mxu0 0.0
    %4426 = vmatpush1.msra.mxu0 0.0
    %4427 = vmatprep.subr.mxu0 0.0
    %4428 = vmatpush1.msra.mxu0 0.0
    %4429 = vmatprep.subr.mxu0 0.0
    %4430 = vmatpush1.msra.mxu0 0.0
    %4431 = vmatprep.subr.mxu0 0.0
    %4432 = vmatpush1.msra.mxu0 0.0
    %4433 = vmatprep.subr.mxu0 0.0
    %4434 = vmatpush1.msra.mxu0 0.0
    %4435 = vmatprep.subr.mxu0 0.0
    %4436 = vmatpush1.msra.mxu0 0.0
    %4437 = vmatprep.subr.mxu0 0.0
    %4438 = vmatpush1.msra.mxu0 0.0
    %4439 = vmatprep.subr.mxu0 0.0
    %4440 = vmatpush1.msra.mxu0 0.0
    %4441 = vmatprep.subr.mxu0 0.0
    %4442 = vmatpush1.msra.mxu0 0.0
    %4443 = vmatprep.subr.mxu0 0.0
    %4444 = vmatpush1.msra.mxu0 0.0
    %4445 = vmatprep.subr.mxu0 0.0
    %4446 = vmatpush1.msra.mxu0 0.0
    %4447 = vmatprep.subr.mxu0 0.0
    %4448 = vmatpush1.msra.mxu0 0.0
    %4449 = vmatprep.mubr.f32.mxu0 0.0
    %4450 = vmatmul.mubr.f32.gmra.mrb[0].mxu0 %v4383
    %v4451 = vpop.f32.mrb[0].mxu0
    %v4452 = vadd.f32 %v2867, %v4451
    %v4453 = vpop.f32.mrb[0].mxu0
    %4454 = vdwg.mxu0
    %4455 = vmatprep.subr.mxu0 0.0
    %4456 = vmatpush1.msra.mxu0 %v2940
    %4457 = vmatprep.subr.mxu0 0.0
    %4458 = vmatpush1.msra.mxu0 %v2941
    %4459 = vmatprep.subr.mxu0 0.0
    %4460 = vmatpush1.msra.mxu0 %v2942
    %4461 = vmatprep.subr.mxu0 0.0
    %4462 = vmatpush1.msra.mxu0 %v2943
    %4463 = vmatprep.subr.mxu0 0.0
    %4464 = vmatpush1.msra.mxu0 0.0
    %4465 = vmatprep.subr.mxu0 0.0
    %4466 = vmatpush1.msra.mxu0 0.0
    %4467 = vmatprep.subr.mxu0 0.0
    %4468 = vmatpush1.msra.mxu0 0.0
    %4469 = vmatprep.subr.mxu0 0.0
    %4470 = vmatpush1.msra.mxu0 0.0
    %4471 = vmatprep.subr.mxu0 0.0
    %4472 = vmatpush1.msra.mxu0 0.0
    %4473 = vmatprep.subr.mxu0 0.0
    %4474 = vmatpush1.msra.mxu0 0.0
    %4475 = vmatprep.subr.mxu0 0.0
    %4476 = vmatpush1.msra.mxu0 0.0
    %4477 = vmatprep.subr.mxu0 0.0
    %4478 = vmatpush1.msra.mxu0 0.0
    %4479 = vmatprep.subr.mxu0 0.0
    %4480 = vmatpush1.msra.mxu0 0.0
    %4481 = vmatprep.subr.mxu0 0.0
    %4482 = vmatpush1.msra.mxu0 0.0
    %4483 = vmatprep.subr.mxu0 0.0
    %4484 = vmatpush1.msra.mxu0 0.0
    %4485 = vmatprep.subr.mxu0 0.0
    %4486 = vmatpush1.msra.mxu0 0.0
    %4487 = vmatprep.subr.mxu0 0.0
    %4488 = vmatpush1.msra.mxu0 0.0
    %4489 = vmatprep.subr.mxu0 0.0
    %4490 = vmatpush1.msra.mxu0 0.0
    %4491 = vmatprep.subr.mxu0 0.0
    %4492 = vmatpush1.msra.mxu0 0.0
    %4493 = vmatprep.subr.mxu0 0.0
    %4494 = vmatpush1.msra.mxu0 0.0
    %4495 = vmatprep.subr.mxu0 0.0
    %4496 = vmatpush1.msra.mxu0 0.0
    %4497 = vmatprep.subr.mxu0 0.0
    %4498 = vmatpush1.msra.mxu0 0.0
    %4499 = vmatprep.subr.mxu0 0.0
    %4500 = vmatpush1.msra.mxu0 0.0
    %4501 = vmatprep.subr.mxu0 0.0
    %4502 = vmatpush1.msra.mxu0 0.0
    %4503 = vmatprep.subr.mxu0 0.0
    %4504 = vmatpush1.msra.mxu0 0.0
    %4505 = vmatprep.subr.mxu0 0.0
    %4506 = vmatpush1.msra.mxu0 0.0
    %4507 = vmatprep.subr.mxu0 0.0
    %4508 = vmatpush1.msra.mxu0 0.0
    %4509 = vmatprep.subr.mxu0 0.0
    %4510 = vmatpush1.msra.mxu0 0.0
    %4511 = vmatprep.subr.mxu0 0.0
    %4512 = vmatpush1.msra.mxu0 0.0
    %4513 = vmatprep.subr.mxu0 0.0
    %4514 = vmatpush1.msra.mxu0 0.0
    %4515 = vmatprep.subr.mxu0 0.0
    %4516 = vmatpush1.msra.mxu0 0.0
    %4517 = vmatprep.subr.mxu0 0.0
    %4518 = vmatpush1.msra.mxu0 0.0
    %4519 = vmatprep.mubr.f32.mxu0 0.0
    %4520 = vmatmul.mubr.f32.gmra.mrb[0].mxu0 %v4383
    %v4521 = vpop.f32.mrb[0].mxu0
    %v4522 = vadd.f32 %v2950, %v4521
    %v4523 = vpop.f32.mrb[0].mxu0
    %4524 = vdwg.mxu0
    %4525 = vmatprep.subr.mxu0 0.0
    %4526 = vmatpush1.msra.mxu0 %v3023
    %4527 = vmatprep.subr.mxu0 0.0
    %4528 = vmatpush1.msra.mxu0 %v3024
    %4529 = vmatprep.subr.mxu0 0.0
    %4530 = vmatpush1.msra.mxu0 %v3025
    %4531 = vmatprep.subr.mxu0 0.0
    %4532 = vmatpush1.msra.mxu0 %v3026
    %4533 = vmatprep.subr.mxu0 0.0
    %4534 = vmatpush1.msra.mxu0 0.0
    %4535 = vmatprep.subr.mxu0 0.0
    %4536 = vmatpush1.msra.mxu0 0.0
    %4537 = vmatprep.subr.mxu0 0.0
    %4538 = vmatpush1.msra.mxu0 0.0
    %4539 = vmatprep.subr.mxu0 0.0
    %4540 = vmatpush1.msra.mxu0 0.0
    %4541 = vmatprep.subr.mxu0 0.0
    %4542 = vmatpush1.msra.mxu0 0.0
    %4543 = vmatprep.subr.mxu0 0.0
    %4544 = vmatpush1.msra.mxu0 0.0
    %4545 = vmatprep.subr.mxu0 0.0
    %4546 = vmatpush1.msra.mxu0 0.0
    %4547 = vmatprep.subr.mxu0 0.0
    %4548 = vmatpush1.msra.mxu0 0.0
    %4549 = vmatprep.subr.mxu0 0.0
    %4550 = vmatpush1.msra.mxu0 0.0
    %4551 = vmatprep.subr.mxu0 0.0
    %4552 = vmatpush1.msra.mxu0 0.0
    %4553 = vmatprep.subr.mxu0 0.0
    %4554 = vmatpush1.msra.mxu0 0.0
    %4555 = vmatprep.subr.mxu0 0.0
    %4556 = vmatpush1.msra.mxu0 0.0
    %4557 = vmatprep.subr.mxu0 0.0
    %4558 = vmatpush1.msra.mxu0 0.0
    %4559 = vmatprep.subr.mxu0 0.0
    %4560 = vmatpush1.msra.mxu0 0.0
    %4561 = vmatprep.subr.mxu0 0.0
    %4562 = vmatpush1.msra.mxu0 0.0
    %4563 = vmatprep.subr.mxu0 0.0
    %4564 = vmatpush1.msra.mxu0 0.0
    %4565 = vmatprep.subr.mxu0 0.0
    %4566 = vmatpush1.msra.mxu0 0.0
    %4567 = vmatprep.subr.mxu0 0.0
    %4568 = vmatpush1.msra.mxu0 0.0
    %4569 = vmatprep.subr.mxu0 0.0
    %4570 = vmatpush1.msra.mxu0 0.0
    %4571 = vmatprep.subr.mxu0 0.0
    %4572 = vmatpush1.msra.mxu0 0.0
    %4573 = vmatprep.subr.mxu0 0.0
    %4574 = vmatpush1.msra.mxu0 0.0
    %4575 = vmatprep.subr.mxu0 0.0
    %4576 = vmatpush1.msra.mxu0 0.0
    %4577 = vmatprep.subr.mxu0 0.0
    %4578 = vmatpush1.msra.mxu0 0.0
    %4579 = vmatprep.subr.mxu0 0.0
    %4580 = vmatpush1.msra.mxu0 0.0
    %4581 = vmatprep.subr.mxu0 0.0
    %4582 = vmatpush1.msra.mxu0 0.0
    %4583 = vmatprep.subr.mxu0 0.0
    %4584 = vmatpush1.msra.mxu0 0.0
    %4585 = vmatprep.subr.mxu0 0.0
    %4586 = vmatpush1.msra.mxu0 0.0
    %4587 = vmatprep.subr.mxu0 0.0
    %4588 = vmatpush1.msra.mxu0 0.0
    %4589 = vmatprep.mubr.f32.mxu0 0.0
    %4590 = vmatmul.mubr.f32.gmra.mrb[0].mxu0 %v4383
    %v4591 = vpop.f32.mrb[0].mxu0
    %v4592 = vadd.f32 %v3033, %v4591
    %v4593 = vpop.f32.mrb[0].mxu0
    %4594 = vdwg.mxu0
    %v4596 = vrot.slane %v4452, 6
    %v4598 = vadd.f32 %v544, %v4596
    %v4599 = vxor.u32 %v4598, 2147483648
    %v4600 = vmul.f32 %v4599, 1.442695
    %v4601 = vpow.pop %v4600
    %v4602 = vadd.f32 %v4601, 1.0
    %v4603 = vrcp.pop %v4602
    %v4604 = vmul.f32 1.0, %v4603
    %v4606 = vrot.slane %v4522, 6
    %v4608 = vadd.f32 %v632, %v4606
    %v4609 = vxor.u32 %v4608, 2147483648
    %v4610 = vmul.f32 %v4609, 1.442695
    %v4611 = vpow.pop %v4610
    %v4612 = vadd.f32 %v4611, 1.0
    %v4613 = vrcp.pop %v4612
    %v4614 = vmul.f32 1.0, %v4613
    %v4616 = vrot.slane %v4592, 6
    %v4618 = vmul.f32 %v4604, %v4616
    %v4619 = vadd.f32 %v720, %v4618
    %v4620 = vtanh.pop %v4619
    %v4621 = vsub.f32 1.0, %v4614
    %v4622 = vmul.f32 %v4621, %v4620
    %v4623 = vrot.slane %v4381, 6
    %v4625 = vmul.f32 %v4614, %v4623
    %v4626 = vadd.f32 %v4622, %v4625
    %v4628 = vrot.slane %v4626, 2
    %v4630 = vmul.f32 %v1268, %v4628
    %v4631 = vmul.f32 %v1278, %v4381
    %v4632 = vadd.f32 %v4630, %v4631
    %v4634 = vsel %vm208, %v4632, 0
    %4636 = vmatprep.subr.mxu0 0.0
    %4637 = vmatpush1.msra.mxu0 %v2858
    %4638 = vmatprep.subr.mxu0 0.0
    %4639 = vmatpush1.msra.mxu0 %v2859
    %4640 = vmatprep.subr.mxu0 0.0
    %4641 = vmatpush1.msra.mxu0 %v2860
    %4642 = vmatprep.subr.mxu0 0.0
    %4643 = vmatpush1.msra.mxu0 %v2861
    %4644 = vmatprep.subr.mxu0 0.0
    %4645 = vmatpush1.msra.mxu0 0.0
    %4646 = vmatprep.subr.mxu0 0.0
    %4647 = vmatpush1.msra.mxu0 0.0
    %4648 = vmatprep.subr.mxu0 0.0
    %4649 = vmatpush1.msra.mxu0 0.0
    %4650 = vmatprep.subr.mxu0 0.0
    %4651 = vmatpush1.msra.mxu0 0.0
    %4652 = vmatprep.subr.mxu0 0.0
    %4653 = vmatpush1.msra.mxu0 0.0
    %4654 = vmatprep.subr.mxu0 0.0
    %4655 = vmatpush1.msra.mxu0 0.0
    %4656 = vmatprep.subr.mxu0 0.0
    %4657 = vmatpush1.msra.mxu0 0.0
    %4658 = vmatprep.subr.mxu0 0.0
    %4659 = vmatpush1.msra.mxu0 0.0
    %4660 = vmatprep.subr.mxu0 0.0
    %4661 = vmatpush1.msra.mxu0 0.0
    %4662 = vmatprep.subr.mxu0 0.0
    %4663 = vmatpush1.msra.mxu0 0.0
    %4664 = vmatprep.subr.mxu0 0.0
    %4665 = vmatpush1.msra.mxu0 0.0
    %4666 = vmatprep.subr.mxu0 0.0
    %4667 = vmatpush1.msra.mxu0 0.0
    %4668 = vmatprep.subr.mxu0 0.0
    %4669 = vmatpush1.msra.mxu0 0.0
    %4670 = vmatprep.subr.mxu0 0.0
    %4671 = vmatpush1.msra.mxu0 0.0
    %4672 = vmatprep.subr.mxu0 0.0
    %4673 = vmatpush1.msra.mxu0 0.0
    %4674 = vmatprep.subr.mxu0 0.0
    %4675 = vmatpush1.msra.mxu0 0.0
    %4676 = vmatprep.subr.mxu0 0.0
    %4677 = vmatpush1.msra.mxu0 0.0
    %4678 = vmatprep.subr.mxu0 0.0
    %4679 = vmatpush1.msra.mxu0 0.0
    %4680 = vmatprep.subr.mxu0 0.0
    %4681 = vmatpush1.msra.mxu0 0.0
    %4682 = vmatprep.subr.mxu0 0.0
    %4683 = vmatpush1.msra.mxu0 0.0
    %4684 = vmatprep.subr.mxu0 0.0
    %4685 = vmatpush1.msra.mxu0 0.0
    %4686 = vmatprep.subr.mxu0 0.0
    %4687 = vmatpush1.msra.mxu0 0.0
    %4688 = vmatprep.subr.mxu0 0.0
    %4689 = vmatpush1.msra.mxu0 0.0
    %4690 = vmatprep.subr.mxu0 0.0
    %4691 = vmatpush1.msra.mxu0 0.0
    %4692 = vmatprep.subr.mxu0 0.0
    %4693 = vmatpush1.msra.mxu0 0.0
    %4694 = vmatprep.subr.mxu0 0.0
    %4695 = vmatpush1.msra.mxu0 0.0
    %4696 = vmatprep.subr.mxu0 0.0
    %4697 = vmatpush1.msra.mxu0 0.0
    %4698 = vmatprep.subr.mxu0 0.0
    %4699 = vmatpush1.msra.mxu0 0.0
    %4700 = vmatprep.mubr.f32.mxu0 0.0
    %4701 = vmatmul.mubr.f32.gmra.mrb[0].mxu0 %v4634
    %v4702 = vpop.f32.mrb[0].mxu0
    %v4703 = vadd.f32 %v2867, %v4702
    %v4704 = vpop.f32.mrb[0].mxu0
    %4705 = vdwg.mxu0
    %4706 = vmatprep.subr.mxu0 0.0
    %4707 = vmatpush1.msra.mxu0 %v2940
    %4708 = vmatprep.subr.mxu0 0.0
    %4709 = vmatpush1.msra.mxu0 %v2941
    %4710 = vmatprep.subr.mxu0 0.0
    %4711 = vmatpush1.msra.mxu0 %v2942
    %4712 = vmatprep.subr.mxu0 0.0
    %4713 = vmatpush1.msra.mxu0 %v2943
    %4714 = vmatprep.subr.mxu0 0.0
    %4715 = vmatpush1.msra.mxu0 0.0
    %4716 = vmatprep.subr.mxu0 0.0
    %4717 = vmatpush1.msra.mxu0 0.0
    %4718 = vmatprep.subr.mxu0 0.0
    %4719 = vmatpush1.msra.mxu0 0.0
    %4720 = vmatprep.subr.mxu0 0.0
    %4721 = vmatpush1.msra.mxu0 0.0
    %4722 = vmatprep.subr.mxu0 0.0
    %4723 = vmatpush1.msra.mxu0 0.0
    %4724 = vmatprep.subr.mxu0 0.0
    %4725 = vmatpush1.msra.mxu0 0.0
    %4726 = vmatprep.subr.mxu0 0.0
    %4727 = vmatpush1.msra.mxu0 0.0
    %4728 = vmatprep.subr.mxu0 0.0
    %4729 = vmatpush1.msra.mxu0 0.0
    %4730 = vmatprep.subr.mxu0 0.0
    %4731 = vmatpush1.msra.mxu0 0.0
    %4732 = vmatprep.subr.mxu0 0.0
    %4733 = vmatpush1.msra.mxu0 0.0
    %4734 = vmatprep.subr.mxu0 0.0
    %4735 = vmatpush1.msra.mxu0 0.0
    %4736 = vmatprep.subr.mxu0 0.0
    %4737 = vmatpush1.msra.mxu0 0.0
    %4738 = vmatprep.subr.mxu0 0.0
    %4739 = vmatpush1.msra.mxu0 0.0
    %4740 = vmatprep.subr.mxu0 0.0
    %4741 = vmatpush1.msra.mxu0 0.0
    %4742 = vmatprep.subr.mxu0 0.0
    %4743 = vmatpush1.msra.mxu0 0.0
    %4744 = vmatprep.subr.mxu0 0.0
    %4745 = vmatpush1.msra.mxu0 0.0
    %4746 = vmatprep.subr.mxu0 0.0
    %4747 = vmatpush1.msra.mxu0 0.0
    %4748 = vmatprep.subr.mxu0 0.0
    %4749 = vmatpush1.msra.mxu0 0.0
    %4750 = vmatprep.subr.mxu0 0.0
    %4751 = vmatpush1.msra.mxu0 0.0
    %4752 = vmatprep.subr.mxu0 0.0
    %4753 = vmatpush1.msra.mxu0 0.0
    %4754 = vmatprep.subr.mxu0 0.0
    %4755 = vmatpush1.msra.mxu0 0.0
    %4756 = vmatprep.subr.mxu0 0.0
    %4757 = vmatpush1.msra.mxu0 0.0
    %4758 = vmatprep.subr.mxu0 0.0
    %4759 = vmatpush1.msra.mxu0 0.0
    %4760 = vmatprep.subr.mxu0 0.0
    %4761 = vmatpush1.msra.mxu0 0.0
    %4762 = vmatprep.subr.mxu0 0.0
    %4763 = vmatpush1.msra.mxu0 0.0
    %4764 = vmatprep.subr.mxu0 0.0
    %4765 = vmatpush1.msra.mxu0 0.0
    %4766 = vmatprep.subr.mxu0 0.0
    %4767 = vmatpush1.msra.mxu0 0.0
    %4768 = vmatprep.subr.mxu0 0.0
    %4769 = vmatpush1.msra.mxu0 0.0
    %4770 = vmatprep.mubr.f32.mxu0 0.0
    %4771 = vmatmul.mubr.f32.gmra.mrb[0].mxu0 %v4634
    %v4772 = vpop.f32.mrb[0].mxu0
    %v4773 = vadd.f32 %v2950, %v4772
    %v4774 = vpop.f32.mrb[0].mxu0
    %4775 = vdwg.mxu0
    %4776 = vmatprep.subr.mxu0 0.0
    %4777 = vmatpush1.msra.mxu0 %v3023
    %4778 = vmatprep.subr.mxu0 0.0
    %4779 = vmatpush1.msra.mxu0 %v3024
    %4780 = vmatprep.subr.mxu0 0.0
    %4781 = vmatpush1.msra.mxu0 %v3025
    %4782 = vmatprep.subr.mxu0 0.0
    %4783 = vmatpush1.msra.mxu0 %v3026
    %4784 = vmatprep.subr.mxu0 0.0
    %4785 = vmatpush1.msra.mxu0 0.0
    %4786 = vmatprep.subr.mxu0 0.0
    %4787 = vmatpush1.msra.mxu0 0.0
    %4788 = vmatprep.subr.mxu0 0.0
    %4789 = vmatpush1.msra.mxu0 0.0
    %4790 = vmatprep.subr.mxu0 0.0
    %4791 = vmatpush1.msra.mxu0 0.0
    %4792 = vmatprep.subr.mxu0 0.0
    %4793 = vmatpush1.msra.mxu0 0.0
    %4794 = vmatprep.subr.mxu0 0.0
    %4795 = vmatpush1.msra.mxu0 0.0
    %4796 = vmatprep.subr.mxu0 0.0
    %4797 = vmatpush1.msra.mxu0 0.0
    %4798 = vmatprep.subr.mxu0 0.0
    %4799 = vmatpush1.msra.mxu0 0.0
    %4800 = vmatprep.subr.mxu0 0.0
    %4801 = vmatpush1.msra.mxu0 0.0
    %4802 = vmatprep.subr.mxu0 0.0
    %4803 = vmatpush1.msra.mxu0 0.0
    %4804 = vmatprep.subr.mxu0 0.0
    %4805 = vmatpush1.msra.mxu0 0.0
    %4806 = vmatprep.subr.mxu0 0.0
    %4807 = vmatpush1.msra.mxu0 0.0
    %4808 = vmatprep.subr.mxu0 0.0
    %4809 = vmatpush1.msra.mxu0 0.0
    %4810 = vmatprep.subr.mxu0 0.0
    %4811 = vmatpush1.msra.mxu0 0.0
    %4812 = vmatprep.subr.mxu0 0.0
    %4813 = vmatpush1.msra.mxu0 0.0
    %4814 = vmatprep.subr.mxu0 0.0
    %4815 = vmatpush1.msra.mxu0 0.0
    %4816 = vmatprep.subr.mxu0 0.0
    %4817 = vmatpush1.msra.mxu0 0.0
    %4818 = vmatprep.subr.mxu0 0.0
    %4819 = vmatpush1.msra.mxu0 0.0
    %4820 = vmatprep.subr.mxu0 0.0
    %4821 = vmatpush1.msra.mxu0 0.0
    %4822 = vmatprep.subr.mxu0 0.0
    %4823 = vmatpush1.msra.mxu0 0.0
    %4824 = vmatprep.subr.mxu0 0.0
    %4825 = vmatpush1.msra.mxu0 0.0
    %4826 = vmatprep.subr.mxu0 0.0
    %4827 = vmatpush1.msra.mxu0 0.0
    %4828 = vmatprep.subr.mxu0 0.0
    %4829 = vmatpush1.msra.mxu0 0.0
    %4830 = vmatprep.subr.mxu0 0.0
    %4831 = vmatpush1.msra.mxu0 0.0
    %4832 = vmatprep.subr.mxu0 0.0
    %4833 = vmatpush1.msra.mxu0 0.0
    %4834 = vmatprep.subr.mxu0 0.0
    %4835 = vmatpush1.msra.mxu0 0.0
    %4836 = vmatprep.subr.mxu0 0.0
    %4837 = vmatpush1.msra.mxu0 0.0
    %4838 = vmatprep.subr.mxu0 0.0
    %4839 = vmatpush1.msra.mxu0 0.0
    %4840 = vmatprep.mubr.f32.mxu0 0.0
    %4841 = vmatmul.mubr.f32.gmra.mrb[0].mxu0 %v4634
    %v4842 = vpop.f32.mrb[0].mxu0
    %v4843 = vadd.f32 %v3033, %v4842
    %v4844 = vpop.f32.mrb[0].mxu0
    %4845 = vdwg.mxu0
    %v4846 = vadd.f32 %v544, %v4703
    %v4847 = vxor.u32 %v4846, 2147483648
    %v4848 = vmul.f32 %v4847, 1.442695
    %v4849 = vpow.pop %v4848
    %v4850 = vadd.f32 %v4849, 1.0
    %v4851 = vrcp.pop %v4850
    %v4852 = vmul.f32 1.0, %v4851
    %v4853 = vadd.f32 %v632, %v4773
    %v4854 = vxor.u32 %v4853, 2147483648
    %v4855 = vmul.f32 %v4854, 1.442695
    %v4856 = vpow.pop %v4855
    %v4857 = vadd.f32 %v4856, 1.0
    %v4858 = vrcp.pop %v4857
    %v4859 = vmul.f32 1.0, %v4858
    %v4860 = vmul.f32 %v4852, %v4843
    %v4861 = vadd.f32 %v720, %v4860
    %v4862 = vtanh.pop %v4861
    %v4863 = vsub.f32 1.0, %v4859
    %v4864 = vmul.f32 %v4863, %v4862
    %v4865 = vmul.f32 %v4859, %v4632
    %v4866 = vadd.f32 %v4864, %v4865
    %v4867 = vmul.f32 %v1006, %v4866
    %v4868 = vmul.f32 %v1013, %v4632
    %v4869 = vadd.f32 %v4867, %v4868
    %v4870 = vadd.f32 %v1008, %v4867
    %v4871 = vadd.f32 %v1273, %v4630
    %v4872 = vadd.f32 %v1538, %v4379
    %v4873 = vadd.f32 %v1803, %v4128
    %v4874 = vadd.f32 %v2054, %v3877
    %v4875 = vadd.f32 %v2319, %v3640
    %v4876 = vadd.f32 %v2584, %v3389
    %v4877 = vadd.f32 %v2849, %v3138
    %vm4878 = vcmask 254976
    %4879 = vst.msk [vmem:[#allocation10] sm:$0x3] %vm4878, %v4870
    %4880 = vst.msk [vmem:[#allocation10 + $0x2] sm:$0x3] %vm4878, %v4871
    %4881 = vst.msk [vmem:[#allocation10 + $0x4] sm:$0x3] %vm4878, %v4872
    %4882 = vst.msk [vmem:[#allocation10 + $0x6] sm:$0x3] %vm4878, %v4873
    %4883 = vst.msk [vmem:[#allocation10 + $0x8] sm:$0x3] %vm4878, %v4874
    %4884 = vst.msk [vmem:[#allocation10 + $0xa] sm:$0x3] %vm4878, %v4875
    %4885 = vst.msk [vmem:[#allocation10 + $0xc] sm:$0x3] %vm4878, %v4876
    %4886 = vst.msk [vmem:[#allocation10 + $0xe] sm:$0x3] %vm4878, %v4877
    %v4887 = vadd.f32 %v2857, %v4869
    %4888 = vst.msk [vmem:[#allocation11] sm:$0x3] %vm4878, %v4887
    // Predicated region
    $region62: #{tpu_custom_call.1} parent=1 // pred_check
      _
    $region63: #{tpu_custom_call.1} parent=1 // pred_check_branch
      %4890 = sbr.rel (0) target = $region65
    $region64: #{tpu_custom_call.1} parent=1 // pred_region
      %s4892 = ssub.s32 256, 256
      %4893 = vsyncadd [#allocation4], %s4892
      %s4894 = sshll.u32 [#allocation10], 4
      %s4895 = int_to_ptr.vmem [resolvable:$true] %s4894
      %4900 = dma.vmem_to_hbm [thread:$0]  %s4895, 256, %s11, [#allocation4], 32, 32, 2
    $region65: #{tpu_custom_call.1} parent=1 // pred_fallthru
      _
    // Predicated region
    $region66: #{tpu_custom_call.1} parent=1 // pred_check
      _
    $region67: #{tpu_custom_call.1} parent=1 // pred_check_branch
      %4902 = sbr.rel (0) target = $region69
    $region68: #{tpu_custom_call.1} parent=1 // pred_region
      %s4904 = ssub.s32 32, 32
      %4905 = vsyncadd [#allocation12], %s4904
      %s4907 = sshll.u32 [#allocation11], 4
      %s4908 = int_to_ptr.vmem [resolvable:$true] %s4907
      %4910 = dma.vmem_to_hbm [thread:$0]  %s4908, 32, %s12, [#allocation12]
    $region69: #{tpu_custom_call.1} parent=1 // pred_fallthru
      _
    // Predicated region
    $region70: #{tpu_custom_call.1} parent=1 // pred_check
      _
    $region71: #{tpu_custom_call.1} parent=1 // pred_check_branch
      %4912 = sbr.rel (0) target = $region73
    $region72: #{tpu_custom_call.1} parent=1 // pred_region
      %4913 = dma.done [#allocation4], 256
    $region73: #{tpu_custom_call.1} parent=1 // pred_fallthru
      _
    // Predicated region
    $region74: #{tpu_custom_call.1} parent=1 // pred_check
      _
    $region75: #{tpu_custom_call.1} parent=1 // pred_check_branch
      %4915 = sbr.rel (0) target = $region77
    $region76: #{tpu_custom_call.1} parent=1 // pred_region
      %4916 = dma.done [#allocation12], 32
    $region77: #{tpu_custom_call.1} parent=1 // pred_fallthru
      _
    %4917 = vsyncpa [#allocation3], 1
    %4918 = vsyncpa [#allocation6], 1
    %4919 = vsyncpa [#allocation9], 1
    %4920 = vsyncpa [#allocation4], 1
    %4921 = vsyncpa [#allocation12], 1

</llo_original>
